<compile_context>
chip_gen: v7x
topology: tpu7x:2x2x1
jax: 0.10.0
libtpu: 0.0.40
codegen_flags: <defaults>
</compile_context>

<pallas_src>
import jax
import jax.numpy as jnp
import numpy as np
from jax.experimental import pallas as pl
from jax.experimental.pallas import tpu as pltpu

LANE_TILE = 128  # batch tile per grid step = one full lane width


# ---------------------------------------------------------------------------
# Fused Pallas kernel: all (l1, l2) pairs, all l3 outputs, one batch tile.
#
# Inputs (per batch tile):
#   x_refs[l]   : (d_l, mul_l, TB)         -- batch in lanes
#   w_refs[pair]: (d1*d2, Msum_pair, TB)   -- lane-replicated fused Wigner-3j,
#                                             resident (constant block index)
# Outputs:
#   out_refs[l3]: (C_l3, d3, TB)           -- C_l3 = sum over pairs of mul1*mul2
# Scratch:
#   t_refs[pair]: (d1, mul2, Msum_pair, TB)
# ---------------------------------------------------------------------------
def _make_fused_kernel(pair_descs, n_x, n_w, n_out):
    n_pairs = len(pair_descs)

    def kernel(*refs):
        x_refs = refs[:n_x]
        w_refs = refs[n_x:n_x + n_w]
        out_refs = refs[n_x + n_w:n_x + n_w + n_out]
        t_refs = refs[n_x + n_w + n_out:n_x + n_w + n_out + n_pairs]

        for p_idx, pd in enumerate(pair_descs):
            x1 = x_refs[pd["i1"]]          # (d1, mul1, TB)
            x2 = x_refs[pd["i2"]]          # (d2, mul2, TB)
            w = w_refs[pd["iw"]]           # (d1*d2, Msum, TB)
            t_scr = t_refs[p_idx]          # (d1, mul2, Msum, TB)
            d1, d2 = pd["d1"], pd["d2"]
            mul1, mul2 = pd["mul1"], pd["mul2"]

            # Hoisted row loads (leading-dim ref index -> no sublane shuffle).
            x2_rows = [x2[n] for n in range(d2)]     # each (mul2, TB)
            x1_rows = [x1[m] for m in range(d1)]     # each (mul1, TB)

            # ---- pass 1: t[m] = sum_n x2_row[n] * w[m,n] ---------------------
            for m in range(d1):
                t_m = x2_rows[0][:, None, :] * w[m * d2][None, :, :]
                for n in range(1, d2):
                    t_m = t_m + x2_rows[n][:, None, :] * w[m * d2 + n][None, :, :]
                t_scr[m] = t_m                       # (mul2, Msum, TB)

            # ---- pass 2: per output channel block i, acc = sum_m x1[i,m]*t[m]
            for i in range(mul1):
                x1_i0 = x1_rows[0][i:i + 1][:, None, :]          # (1, 1, TB)
                acc = x1_i0 * t_scr[0]                           # (mul2, Msum, TB)
                for m in range(1, d1):
                    x1_im = x1_rows[m][i:i + 1][:, None, :]
                    acc = acc + x1_im * t_scr[m]
                # scatter the fused M axis into the per-l3 output slabs
                for (oidx, m_off, d3, c_off) in pd["outs"]:
                    out_refs[oidx][c_off + i * mul2:c_off + (i + 1) * mul2, :, :] = (
                        acc[:, m_off:m_off + d3, :]
                    )

    return kernel


# ---------------------------------------------------------------------------
# Module port (glue in plain JAX / Python)
# ---------------------------------------------------------------------------
class TPNonlinearityPallas:
    """Port of TP_nonlinearity with ls_rule in {'full','elementwise'} and
    channel_rule='full' (the PyTorch defaults). All irreps have parity 'e', so
    irreps_in is a list of (mul, l) tuples and filter_ls_out a list of output
    l values (or None)."""

    # TODO(synk): ls_rule='efficient' (networkx MST connectivity) and
    # channel_rule='elementwise' code paths are not implemented here.

    def __init__(self, irreps_in, w3j_matrices, filter_ls_out=None,
                 ls_rule="full", channel_rule="full", filter_symmetric=True):
        assert ls_rule in ("full", "elementwise")
        assert channel_rule == "full"
        self.irreps_in = list(irreps_in)
        self.w3j_matrices = w3j_matrices
        self.ls_rule = ls_rule
        self.channel_rule = channel_rule
        self.filter_symmetric = filter_symmetric

        out_ls_muls = {}
        for mul1, l1 in self.irreps_in:
            for mul2, l2 in self.irreps_in:
                if filter_symmetric and l2 < l1:
                    continue
                if ls_rule == "elementwise" and l1 != l2:
                    continue
                for l3 in range(abs(l1 - l2), l1 + l2 + 1):
                    if filter_ls_out is not None and l3 not in filter_ls_out:
                        continue
                    out_ls_muls[l3] = out_ls_muls.get(l3, 0) + mul1 * mul2
        # o3.Irreps(out).sort().irreps.simplify() -> sorted unique l's
        self.ls_out = sorted(out_ls_muls.keys())
        self.set_ls_out = set(self.ls_out)

    def __call__(self, x):
        available_ls = sorted(x.keys())
        B = next(iter(x.values())).shape[0]
        Bp = ((B + LANE_TILE - 1) // LANE_TILE) * LANE_TILE

        # Transpose/pad every input ONCE: (B, mul, d) -> (d, mul, Bp), batch in lanes.
        xt, muls = {}, {}
        for l in available_ls:
            xl = jnp.transpose(x[l].astype(jnp.float32), (2, 1, 0))
            xt[l] = jnp.pad(xl, ((0, 0), (0, 0), (0, Bp - B)))
            muls[l] = x[l].shape[1]

        # Build static pair descriptors, fused + lane-replicated w3j arrays,
        # and the per-l3 output channel layout (same ordering as torch.cat).
        x_index = {l: i for i, l in enumerate(available_ls)}
        pair_descs, w_arrays = [], []
        c_count = {l3: 0 for l3 in self.ls_out}
        for l1 in available_ls:
            for l2 in available_ls:
                if self.ls_rule == "elementwise" and l1 != l2:
                    continue
                if self.filter_symmetric and l2 < l1:
                    continue
                output_ls = [l for l in range(abs(l1 - l2), l1 + l2 + 1)
                             if l in self.set_ls_out]
                if not output_ls:
                    continue
                d1, d2 = 2 * l1 + 1, 2 * l2 + 1
                mul1, mul2 = muls[l1], muls[l2]
                w_cat = jnp.concatenate(
                    [self.w3j_matrices[(l1, l2, l3)].astype(jnp.float32)
                     for l3 in output_ls], axis=2)                  # (d1, d2, Msum)
                msum = w_cat.shape[-1]
                w_rep = jnp.broadcast_to(
                    w_cat.reshape(d1 * d2, msum, 1), (d1 * d2, msum, LANE_TILE))
                outs, m_off = [], 0
                for l3 in output_ls:
                    d3 = 2 * l3 + 1
                    outs.append((l3, m_off, d3, c_count[l3]))
                    c_count[l3] += mul1 * mul2
                    m_off += d3
                pair_descs.append(dict(
                    i1=x_index[l1], i2=x_index[l2], iw=len(w_arrays),
                    mul1=mul1, mul2=mul2, d1=d1, d2=d2, msum=msum, outs=outs))
                w_arrays.append(w_rep)

        if not pair_descs:
            return {l3: jnp.zeros((B, 0), jnp.float32) for l3 in self.ls_out}

        out_l3s = [l3 for l3 in self.ls_out if c_count[l3] > 0]
        out_index = {l3: i for i, l3 in enumerate(out_l3s)}
        for pd in pair_descs:
            pd["outs"] = [(out_index[l3], m_off, d3, c_off)
                          for (l3, m_off, d3, c_off) in pd["outs"]]

        n_x, n_w, n_out = len(available_ls), len(w_arrays), len(out_l3s)
        kernel = _make_fused_kernel(pair_descs, n_x, n_w, n_out)

        out_shape = [jax.ShapeDtypeStruct((c_count[l3], 2 * l3 + 1, Bp), jnp.float32)
                     for l3 in out_l3s]
        in_specs = (
            [pl.BlockSpec((2 * l + 1, muls[l], LANE_TILE), lambda g: (0, 0, g))
             for l in available_ls]
            +
            # constant block index -> w3j stays resident in VMEM across tiles
            [pl.BlockSpec((w.shape[0], w.shape[1], LANE_TILE), lambda g: (0, 0, 0))
             for w in w_arrays]
        )
        out_specs = [pl.BlockSpec((c_count[l3], 2 * l3 + 1, LANE_TILE),
                                  lambda g: (0, 0, g))
                     for l3 in out_l3s]
        scratch_shapes = [pltpu.VMEM((pd["d1"], pd["mul2"], pd["msum"], LANE_TILE),
                                     jnp.float32)
                          for pd in pair_descs]

        outs = pl.pallas_call(
            kernel,
            out_shape=out_shape,
            grid=(Bp // LANE_TILE,),
            in_specs=in_specs,
            out_specs=out_specs,
            scratch_shapes=scratch_shapes,
            compiler_params=pltpu.CompilerParams(dimension_semantics=("parallel",)),
        )(*[xt[l] for l in available_ls], *w_arrays)

        result = {}
        for l3 in self.ls_out:
            if c_count[l3] > 0:
                o = outs[out_index[l3]]                     # (C_l3, d3, Bp)
                result[l3] = jnp.transpose(o[:, :, :B], (2, 0, 1))  # (B, C_l3, d3)
            else:
                # matches torch.zeros(batch, 0) fallback
                result[l3] = jnp.zeros((B, 0), jnp.float32)
        return result


# ---------------------------------------------------------------------------
# Pure-JAX reference (mirrors the torch einsums verbatim) for verification
# ---------------------------------------------------------------------------
def reference_forward(module, x):
    available_ls = sorted(x.keys())
    output = {l3: [] for l3 in module.ls_out}
    for l1 in available_ls:
        for l2 in available_ls:
            if module.ls_rule == "elementwise" and l1 != l2:
                continue
            if module.filter_symmetric and l2 < l1:
                continue
            output_ls = [l for l in range(abs(l1 - l2), l1 + l2 + 1)
                         if l in module.set_ls_out]
            if not output_ls:
                continue
            op = jnp.einsum("bim,bjn->bijmn", x[l1], x[l2])
            b, i, j, m, n = op.shape
            op = op.reshape(b, i * j, m, n)
            for l3 in output_ls:
                output[l3].append(
                    jnp.einsum("mnM,bimn->biM", module.w3j_matrices[(l1, l2, l3)], op)
                )
    return {l3: jnp.concatenate(v, axis=1) for l3, v in output.items() if v}


# ---------------------------------------------------------------------------
# Main
# ---------------------------------------------------------------------------
if __name__ == "__main__":
    key = jax.random.PRNGKey(0)

    # Small irreps: 4x0e + 4x1e + 4x2e  ->  x[l] has shape (B=2, 4, 2l+1)
    irreps_in = [(4, 0), (4, 1), (4, 2)]
    B = 2

    x = {}
    for mul, l in irreps_in:
        key, sub = jax.random.split(key)
        x[l] = jax.random.normal(sub, (B, mul, 2 * l + 1), dtype=jnp.float32)

    # Deterministic synthetic "Wigner 3j" parameter matrices (correct shapes).
    # TODO(synk): real Wigner-3j values are supplied externally in the original
    # module's __init__; here they are deterministic random stand-ins.
    w3j_matrices = {}
    ls = sorted({l for _, l in irreps_in})
    for l1 in ls:
        for l2 in ls:
            if l2 < l1:
                continue
            for l3 in range(abs(l1 - l2), l1 + l2 + 1):
                key, sub = jax.random.split(key)
                w3j_matrices[(l1, l2, l3)] = jax.random.normal(
                    sub, (2 * l1 + 1, 2 * l2 + 1, 2 * l3 + 1), dtype=jnp.float32
                )

    module = TPNonlinearityPallas(
        irreps_in, w3j_matrices,
        filter_ls_out=None, ls_rule="full", channel_rule="full",
        filter_symmetric=True,
    )

    out = module(x)
    out = jax.block_until_ready(out)

    ref = reference_forward(module, x)
    for l3 in module.ls_out:
        assert out[l3].shape == ref[l3].shape, (l3, out[l3].shape, ref[l3].shape)
        np.testing.assert_allclose(
            np.asarray(out[l3]), np.asarray(ref[l3]), rtol=1e-4, atol=1e-4
        )

    print("KERNEL_OK")
</pallas_src>

<mosaic_0001>
module attributes {stable_mosaic.version = 11 : i64} {
  func.func @kernel(%arg0: i32, %arg1: memref<1x4x128xf32, #tpu.memory_space<vmem>>, %arg2: memref<3x4x128xf32, #tpu.memory_space<vmem>>, %arg3: memref<5x4x128xf32, #tpu.memory_space<vmem>>, %arg4: memref<1x1x128xf32, #tpu.memory_space<vmem>>, %arg5: memref<3x3x128xf32, #tpu.memory_space<vmem>>, %arg6: memref<5x5x128xf32, #tpu.memory_space<vmem>>, %arg7: memref<9x9x128xf32, #tpu.memory_space<vmem>>, %arg8: memref<15x15x128xf32, #tpu.memory_space<vmem>>, %arg9: memref<25x25x128xf32, #tpu.memory_space<vmem>>, %arg10: memref<48x1x128xf32, #tpu.memory_space<vmem>>, %arg11: memref<64x3x128xf32, #tpu.memory_space<vmem>>, %arg12: memref<64x5x128xf32, #tpu.memory_space<vmem>>, %arg13: memref<32x7x128xf32, #tpu.memory_space<vmem>>, %arg14: memref<16x9x128xf32, #tpu.memory_space<vmem>>, %arg15: memref<1x4x1x128xf32, #tpu.memory_space<vmem>>, %arg16: memref<1x4x3x128xf32, #tpu.memory_space<vmem>>, %arg17: memref<1x4x5x128xf32, #tpu.memory_space<vmem>>, %arg18: memref<3x4x9x128xf32, #tpu.memory_space<vmem>>, %arg19: memref<3x4x15x128xf32, #tpu.memory_space<vmem>>, %arg20: memref<5x4x25x128xf32, #tpu.memory_space<vmem>>) attributes {dimension_semantics = [#tpu.dimension_semantics<parallel>], iteration_bounds = array<i64: 1>, scalar_prefetch = 0 : i64, scratch_operands = 6 : i64, tpu.core_type = #tpu.core_type<tc>, window_params = [{transform_indices = @transform_0, window_bounds = array<i64: 1, 4, 128>}, {transform_indices = @transform_1, window_bounds = array<i64: 3, 4, 128>}, {transform_indices = @transform_2, window_bounds = array<i64: 5, 4, 128>}, {pipeline_mode = #tpu.pipeline_mode<synchronous>, transform_indices = @transform_3, window_bounds = array<i64: 1, 1, 128>}, {pipeline_mode = #tpu.pipeline_mode<synchronous>, transform_indices = @transform_4, window_bounds = array<i64: 3, 3, 128>}, {pipeline_mode = #tpu.pipeline_mode<synchronous>, transform_indices = @transform_5, window_bounds = array<i64: 5, 5, 128>}, {pipeline_mode = #tpu.pipeline_mode<synchronous>, transform_indices = @transform_6, window_bounds = array<i64: 9, 9, 128>}, {pipeline_mode = #tpu.pipeline_mode<synchronous>, transform_indices = @transform_7, window_bounds = array<i64: 15, 15, 128>}, {pipeline_mode = #tpu.pipeline_mode<synchronous>, transform_indices = @transform_8, window_bounds = array<i64: 25, 25, 128>}, {transform_indices = @transform_9, window_bounds = array<i64: 48, 1, 128>}, {transform_indices = @transform_10, window_bounds = array<i64: 64, 3, 128>}, {transform_indices = @transform_11, window_bounds = array<i64: 64, 5, 128>}, {transform_indices = @transform_12, window_bounds = array<i64: 32, 7, 128>}, {transform_indices = @transform_13, window_bounds = array<i64: 16, 9, 128>}]} {
    %c0 = arith.constant 0 : index
    %c0_0 = arith.constant 0 : index
    %c0_1 = arith.constant 0 : index
    %0 = vector.load %arg1[%c0, %c0_0, %c0_1] : memref<1x4x128xf32, #tpu.memory_space<vmem>>, vector<1x4x128xf32>
    %1 = vector.shape_cast %0 : vector<1x4x128xf32> to vector<4x128xf32>
    %c0_2 = arith.constant 0 : index
    %c0_3 = arith.constant 0 : index
    %c0_4 = arith.constant 0 : index
    %2 = vector.load %arg1[%c0_2, %c0_3, %c0_4] : memref<1x4x128xf32, #tpu.memory_space<vmem>>, vector<1x4x128xf32>
    %3 = vector.shape_cast %2 : vector<1x4x128xf32> to vector<4x128xf32>
    %4 = vector.shape_cast %1 : vector<4x128xf32> to vector<4x1x128xf32>
    %c0_5 = arith.constant 0 : index
    %c0_6 = arith.constant 0 : index
    %c0_7 = arith.constant 0 : index
    %5 = vector.load %arg4[%c0_5, %c0_6, %c0_7] : memref<1x1x128xf32, #tpu.memory_space<vmem>>, vector<1x1x128xf32>
    %6 = vector.shape_cast %5 : vector<1x1x128xf32> to vector<1x128xf32>
    %7 = vector.shape_cast %6 : vector<1x128xf32> to vector<1x1x128xf32>
    %8 = vector.broadcast %7 : vector<1x1x128xf32> to vector<4x1x128xf32>
    %9 = arith.mulf %4, %8 : vector<4x1x128xf32>
    %c0_8 = arith.constant 0 : index
    %c0_9 = arith.constant 0 : index
    %c0_10 = arith.constant 0 : index
    %c0_11 = arith.constant 0 : index
    %10 = vector.load %arg15[%c0_8, %c0_9, %c0_10, %c0_11] : memref<1x4x1x128xf32, #tpu.memory_space<vmem>>, vector<1x4x1x128xf32>
    %11 = vector.shape_cast %10 : vector<1x4x1x128xf32> to vector<4x1x128xf32>
    %12 = vector.shape_cast %9 : vector<4x1x128xf32> to vector<1x4x1x128xf32>
    tpu.vector_store %arg15[%c0_8, %c0_9, %c0_10, %c0_11], %12 {strides = array<i32>} : memref<1x4x1x128xf32, #tpu.memory_space<vmem>>, vector<1x4x1x128xf32>,
    %13 = vector.extract_strided_slice %3 {offsets = [0, 0], sizes = [1, 128], strides = [1, 1]} : vector<4x128xf32> to vector<1x128xf32>
    %14 = vector.shape_cast %13 : vector<1x128xf32> to vector<1x1x128xf32>
    %c0_12 = arith.constant 0 : index
    %c0_13 = arith.constant 0 : index
    %c0_14 = arith.constant 0 : index
    %c0_15 = arith.constant 0 : index
    %15 = vector.load %arg15[%c0_12, %c0_13, %c0_14, %c0_15] : memref<1x4x1x128xf32, #tpu.memory_space<vmem>>, vector<1x4x1x128xf32>
    %16 = vector.shape_cast %15 : vector<1x4x1x128xf32> to vector<4x1x128xf32>
    %17 = vector.broadcast %14 : vector<1x1x128xf32> to vector<4x1x128xf32>
    %18 = arith.mulf %17, %16 : vector<4x1x128xf32>
    %c0_16 = arith.constant 0 : index
    %c0_17 = arith.constant 0 : index
    %c0_18 = arith.constant 0 : index
    %19 = vector.load %arg10[%c0_16, %c0_17, %c0_18] : memref<48x1x128xf32, #tpu.memory_space<vmem>>, vector<4x1x128xf32>
    tpu.vector_store %arg10[%c0_16, %c0_17, %c0_18], %18 {strides = array<i32>} : memref<48x1x128xf32, #tpu.memory_space<vmem>>, vector<4x1x128xf32>,
    %20 = vector.extract_strided_slice %3 {offsets = [1, 0], sizes = [1, 128], strides = [1, 1]} : vector<4x128xf32> to vector<1x128xf32>
    %21 = vector.shape_cast %20 : vector<1x128xf32> to vector<1x1x128xf32>
    %c0_19 = arith.constant 0 : index
    %c0_20 = arith.constant 0 : index
    %c0_21 = arith.constant 0 : index
    %c0_22 = arith.constant 0 : index
    %22 = vector.load %arg15[%c0_19, %c0_20, %c0_21, %c0_22] : memref<1x4x1x128xf32, #tpu.memory_space<vmem>>, vector<1x4x1x128xf32>
    %23 = vector.shape_cast %22 : vector<1x4x1x128xf32> to vector<4x1x128xf32>
    %24 = vector.broadcast %21 : vector<1x1x128xf32> to vector<4x1x128xf32>
    %25 = arith.mulf %24, %23 : vector<4x1x128xf32>
    %c4 = arith.constant 4 : index
    %c0_23 = arith.constant 0 : index
    %c0_24 = arith.constant 0 : index
    %26 = vector.load %arg10[%c4, %c0_23, %c0_24] : memref<48x1x128xf32, #tpu.memory_space<vmem>>, vector<4x1x128xf32>
    tpu.vector_store %arg10[%c4, %c0_23, %c0_24], %25 {strides = array<i32>} : memref<48x1x128xf32, #tpu.memory_space<vmem>>, vector<4x1x128xf32>,
    %27 = vector.extract_strided_slice %3 {offsets = [2, 0], sizes = [1, 128], strides = [1, 1]} : vector<4x128xf32> to vector<1x128xf32>
    %28 = vector.shape_cast %27 : vector<1x128xf32> to vector<1x1x128xf32>
    %c0_25 = arith.constant 0 : index
    %c0_26 = arith.constant 0 : index
    %c0_27 = arith.constant 0 : index
    %c0_28 = arith.constant 0 : index
    %29 = vector.load %arg15[%c0_25, %c0_26, %c0_27, %c0_28] : memref<1x4x1x128xf32, #tpu.memory_space<vmem>>, vector<1x4x1x128xf32>
    %30 = vector.shape_cast %29 : vector<1x4x1x128xf32> to vector<4x1x128xf32>
    %31 = vector.broadcast %28 : vector<1x1x128xf32> to vector<4x1x128xf32>
    %32 = arith.mulf %31, %30 : vector<4x1x128xf32>
    %c8 = arith.constant 8 : index
    %c0_29 = arith.constant 0 : index
    %c0_30 = arith.constant 0 : index
    %33 = vector.load %arg10[%c8, %c0_29, %c0_30] : memref<48x1x128xf32, #tpu.memory_space<vmem>>, vector<4x1x128xf32>
    tpu.vector_store %arg10[%c8, %c0_29, %c0_30], %32 {strides = array<i32>} : memref<48x1x128xf32, #tpu.memory_space<vmem>>, vector<4x1x128xf32>,
    %34 = vector.extract_strided_slice %3 {offsets = [3, 0], sizes = [1, 128], strides = [1, 1]} : vector<4x128xf32> to vector<1x128xf32>
    %35 = vector.shape_cast %34 : vector<1x128xf32> to vector<1x1x128xf32>
    %c0_31 = arith.constant 0 : index
    %c0_32 = arith.constant 0 : index
    %c0_33 = arith.constant 0 : index
    %c0_34 = arith.constant 0 : index
    %36 = vector.load %arg15[%c0_31, %c0_32, %c0_33, %c0_34] : memref<1x4x1x128xf32, #tpu.memory_space<vmem>>, vector<1x4x1x128xf32>
    %37 = vector.shape_cast %36 : vector<1x4x1x128xf32> to vector<4x1x128xf32>
    %38 = vector.broadcast %35 : vector<1x1x128xf32> to vector<4x1x128xf32>
    %39 = arith.mulf %38, %37 : vector<4x1x128xf32>
    %c12 = arith.constant 12 : index
    %c0_35 = arith.constant 0 : index
    %c0_36 = arith.constant 0 : index
    %40 = vector.load %arg10[%c12, %c0_35, %c0_36] : memref<48x1x128xf32, #tpu.memory_space<vmem>>, vector<4x1x128xf32>
    tpu.vector_store %arg10[%c12, %c0_35, %c0_36], %39 {strides = array<i32>} : memref<48x1x128xf32, #tpu.memory_space<vmem>>, vector<4x1x128xf32>,
    %c0_37 = arith.constant 0 : index
    %c0_38 = arith.constant 0 : index
    %c0_39 = arith.constant 0 : index
    %41 = vector.load %arg2[%c0_37, %c0_38, %c0_39] : memref<3x4x128xf32, #tpu.memory_space<vmem>>, vector<1x4x128xf32>
    %42 = vector.shape_cast %41 : vector<1x4x128xf32> to vector<4x128xf32>
    %c1 = arith.constant 1 : index
    %c0_40 = arith.constant 0 : index
    %c0_41 = arith.constant 0 : index
    %43 = vector.load %arg2[%c1, %c0_40, %c0_41] : memref<3x4x128xf32, #tpu.memory_space<vmem>>, vector<1x4x128xf32>
    %44 = vector.shape_cast %43 : vector<1x4x128xf32> to vector<4x128xf32>
    %c2 = arith.constant 2 : index
    %c0_42 = arith.constant 0 : index
    %c0_43 = arith.constant 0 : index
    %45 = vector.load %arg2[%c2, %c0_42, %c0_43] : memref<3x4x128xf32, #tpu.memory_space<vmem>>, vector<1x4x128xf32>
    %46 = vector.shape_cast %45 : vector<1x4x128xf32> to vector<4x128xf32>
    %c0_44 = arith.constant 0 : index
    %c0_45 = arith.constant 0 : index
    %c0_46 = arith.constant 0 : index
    %47 = vector.load %arg1[%c0_44, %c0_45, %c0_46] : memref<1x4x128xf32, #tpu.memory_space<vmem>>, vector<1x4x128xf32>
    %48 = vector.shape_cast %47 : vector<1x4x128xf32> to vector<4x128xf32>
    %49 = vector.shape_cast %42 : vector<4x128xf32> to vector<4x1x128xf32>
    %c0_47 = arith.constant 0 : index
    %c0_48 = arith.constant 0 : index
    %c0_49 = arith.constant 0 : index
    %50 = vector.load %arg5[%c0_47, %c0_48, %c0_49] : memref<3x3x128xf32, #tpu.memory_space<vmem>>, vector<1x3x128xf32>
    %51 = vector.shape_cast %50 : vector<1x3x128xf32> to vector<3x128xf32>
    %52 = vector.shape_cast %51 : vector<3x128xf32> to vector<1x3x128xf32>
    %53 = vector.broadcast %49 : vector<4x1x128xf32> to vector<4x3x128xf32>
    %54 = vector.broadcast %52 : vector<1x3x128xf32> to vector<4x3x128xf32>
    %55 = arith.mulf %53, %54 : vector<4x3x128xf32>
    %56 = vector.shape_cast %44 : vector<4x128xf32> to vector<4x1x128xf32>
    %c1_50 = arith.constant 1 : index
    %c0_51 = arith.constant 0 : index
    %c0_52 = arith.constant 0 : index
    %57 = vector.load %arg5[%c1_50, %c0_51, %c0_52] : memref<3x3x128xf32, #tpu.memory_space<vmem>>, vector<1x3x128xf32>
    %58 = vector.shape_cast %57 : vector<1x3x128xf32> to vector<3x128xf32>
    %59 = vector.shape_cast %58 : vector<3x128xf32> to vector<1x3x128xf32>
    %60 = vector.broadcast %56 : vector<4x1x128xf32> to vector<4x3x128xf32>
    %61 = vector.broadcast %59 : vector<1x3x128xf32> to vector<4x3x128xf32>
    %62 = arith.mulf %60, %61 : vector<4x3x128xf32>
    %63 = arith.addf %55, %62 : vector<4x3x128xf32>
    %64 = vector.shape_cast %46 : vector<4x128xf32> to vector<4x1x128xf32>
    %c2_53 = arith.constant 2 : index
    %c0_54 = arith.constant 0 : index
    %c0_55 = arith.constant 0 : index
    %65 = vector.load %arg5[%c2_53, %c0_54, %c0_55] : memref<3x3x128xf32, #tpu.memory_space<vmem>>, vector<1x3x128xf32>
    %66 = vector.shape_cast %65 : vector<1x3x128xf32> to vector<3x128xf32>
    %67 = vector.shape_cast %66 : vector<3x128xf32> to vector<1x3x128xf32>
    %68 = vector.broadcast %64 : vector<4x1x128xf32> to vector<4x3x128xf32>
    %69 = vector.broadcast %67 : vector<1x3x128xf32> to vector<4x3x128xf32>
    %70 = arith.mulf %68, %69 : vector<4x3x128xf32>
    %71 = arith.addf %63, %70 : vector<4x3x128xf32>
    %c0_56 = arith.constant 0 : index
    %c0_57 = arith.constant 0 : index
    %c0_58 = arith.constant 0 : index
    %c0_59 = arith.constant 0 : index
    %72 = vector.load %arg16[%c0_56, %c0_57, %c0_58, %c0_59] : memref<1x4x3x128xf32, #tpu.memory_space<vmem>>, vector<1x4x3x128xf32>
    %73 = vector.shape_cast %72 : vector<1x4x3x128xf32> to vector<4x3x128xf32>
    %74 = vector.shape_cast %71 : vector<4x3x128xf32> to vector<1x4x3x128xf32>
    tpu.vector_store %arg16[%c0_56, %c0_57, %c0_58, %c0_59], %74 {strides = array<i32>} : memref<1x4x3x128xf32, #tpu.memory_space<vmem>>, vector<1x4x3x128xf32>,
    %75 = vector.extract_strided_slice %48 {offsets = [0, 0], sizes = [1, 128], strides = [1, 1]} : vector<4x128xf32> to vector<1x128xf32>
    %76 = vector.shape_cast %75 : vector<1x128xf32> to vector<1x1x128xf32>
    %c0_60 = arith.constant 0 : index
    %c0_61 = arith.constant 0 : index
    %c0_62 = arith.constant 0 : index
    %c0_63 = arith.constant 0 : index
    %77 = vector.load %arg16[%c0_60, %c0_61, %c0_62, %c0_63] : memref<1x4x3x128xf32, #tpu.memory_space<vmem>>, vector<1x4x3x128xf32>
    %78 = vector.shape_cast %77 : vector<1x4x3x128xf32> to vector<4x3x128xf32>
    %79 = vector.broadcast %76 : vector<1x1x128xf32> to vector<4x3x128xf32>
    %80 = arith.mulf %79, %78 : vector<4x3x128xf32>
    %c0_64 = arith.constant 0 : index
    %c0_65 = arith.constant 0 : index
    %c0_66 = arith.constant 0 : index
    %81 = vector.load %arg11[%c0_64, %c0_65, %c0_66] : memref<64x3x128xf32, #tpu.memory_space<vmem>>, vector<4x3x128xf32>
    tpu.vector_store %arg11[%c0_64, %c0_65, %c0_66], %80 {strides = array<i32>} : memref<64x3x128xf32, #tpu.memory_space<vmem>>, vector<4x3x128xf32>,
    %82 = vector.extract_strided_slice %48 {offsets = [1, 0], sizes = [1, 128], strides = [1, 1]} : vector<4x128xf32> to vector<1x128xf32>
    %83 = vector.shape_cast %82 : vector<1x128xf32> to vector<1x1x128xf32>
    %c0_67 = arith.constant 0 : index
    %c0_68 = arith.constant 0 : index
    %c0_69 = arith.constant 0 : index
    %c0_70 = arith.constant 0 : index
    %84 = vector.load %arg16[%c0_67, %c0_68, %c0_69, %c0_70] : memref<1x4x3x128xf32, #tpu.memory_space<vmem>>, vector<1x4x3x128xf32>
    %85 = vector.shape_cast %84 : vector<1x4x3x128xf32> to vector<4x3x128xf32>
    %86 = vector.broadcast %83 : vector<1x1x128xf32> to vector<4x3x128xf32>
    %87 = arith.mulf %86, %85 : vector<4x3x128xf32>
    %c4_71 = arith.constant 4 : index
    %c0_72 = arith.constant 0 : index
    %c0_73 = arith.constant 0 : index
    %88 = vector.load %arg11[%c4_71, %c0_72, %c0_73] : memref<64x3x128xf32, #tpu.memory_space<vmem>>, vector<4x3x128xf32>
    tpu.vector_store %arg11[%c4_71, %c0_72, %c0_73], %87 {strides = array<i32>} : memref<64x3x128xf32, #tpu.memory_space<vmem>>, vector<4x3x128xf32>,
    %89 = vector.extract_strided_slice %48 {offsets = [2, 0], sizes = [1, 128], strides = [1, 1]} : vector<4x128xf32> to vector<1x128xf32>
    %90 = vector.shape_cast %89 : vector<1x128xf32> to vector<1x1x128xf32>
    %c0_74 = arith.constant 0 : index
    %c0_75 = arith.constant 0 : index
    %c0_76 = arith.constant 0 : index
    %c0_77 = arith.constant 0 : index
    %91 = vector.load %arg16[%c0_74, %c0_75, %c0_76, %c0_77] : memref<1x4x3x128xf32, #tpu.memory_space<vmem>>, vector<1x4x3x128xf32>
    %92 = vector.shape_cast %91 : vector<1x4x3x128xf32> to vector<4x3x128xf32>
    %93 = vector.broadcast %90 : vector<1x1x128xf32> to vector<4x3x128xf32>
    %94 = arith.mulf %93, %92 : vector<4x3x128xf32>
    %c8_78 = arith.constant 8 : index
    %c0_79 = arith.constant 0 : index
    %c0_80 = arith.constant 0 : index
    %95 = vector.load %arg11[%c8_78, %c0_79, %c0_80] : memref<64x3x128xf32, #tpu.memory_space<vmem>>, vector<4x3x128xf32>
    tpu.vector_store %arg11[%c8_78, %c0_79, %c0_80], %94 {strides = array<i32>} : memref<64x3x128xf32, #tpu.memory_space<vmem>>, vector<4x3x128xf32>,
    %96 = vector.extract_strided_slice %48 {offsets = [3, 0], sizes = [1, 128], strides = [1, 1]} : vector<4x128xf32> to vector<1x128xf32>
    %97 = vector.shape_cast %96 : vector<1x128xf32> to vector<1x1x128xf32>
    %c0_81 = arith.constant 0 : index
    %c0_82 = arith.constant 0 : index
    %c0_83 = arith.constant 0 : index
    %c0_84 = arith.constant 0 : index
    %98 = vector.load %arg16[%c0_81, %c0_82, %c0_83, %c0_84] : memref<1x4x3x128xf32, #tpu.memory_space<vmem>>, vector<1x4x3x128xf32>
    %99 = vector.shape_cast %98 : vector<1x4x3x128xf32> to vector<4x3x128xf32>
    %100 = vector.broadcast %97 : vector<1x1x128xf32> to vector<4x3x128xf32>
    %101 = arith.mulf %100, %99 : vector<4x3x128xf32>
    %c12_85 = arith.constant 12 : index
    %c0_86 = arith.constant 0 : index
    %c0_87 = arith.constant 0 : index
    %102 = vector.load %arg11[%c12_85, %c0_86, %c0_87] : memref<64x3x128xf32, #tpu.memory_space<vmem>>, vector<4x3x128xf32>
    tpu.vector_store %arg11[%c12_85, %c0_86, %c0_87], %101 {strides = array<i32>} : memref<64x3x128xf32, #tpu.memory_space<vmem>>, vector<4x3x128xf32>,
    %c0_88 = arith.constant 0 : index
    %c0_89 = arith.constant 0 : index
    %c0_90 = arith.constant 0 : index
    %103 = vector.load %arg3[%c0_88, %c0_89, %c0_90] : memref<5x4x128xf32, #tpu.memory_space<vmem>>, vector<1x4x128xf32>
    %104 = vector.shape_cast %103 : vector<1x4x128xf32> to vector<4x128xf32>
    %c1_91 = arith.constant 1 : index
    %c0_92 = arith.constant 0 : index
    %c0_93 = arith.constant 0 : index
    %105 = vector.load %arg3[%c1_91, %c0_92, %c0_93] : memref<5x4x128xf32, #tpu.memory_space<vmem>>, vector<1x4x128xf32>
    %106 = vector.shape_cast %105 : vector<1x4x128xf32> to vector<4x128xf32>
    %c2_94 = arith.constant 2 : index
    %c0_95 = arith.constant 0 : index
    %c0_96 = arith.constant 0 : index
    %107 = vector.load %arg3[%c2_94, %c0_95, %c0_96] : memref<5x4x128xf32, #tpu.memory_space<vmem>>, vector<1x4x128xf32>
    %108 = vector.shape_cast %107 : vector<1x4x128xf32> to vector<4x128xf32>
    %c3 = arith.constant 3 : index
    %c0_97 = arith.constant 0 : index
    %c0_98 = arith.constant 0 : index
    %109 = vector.load %arg3[%c3, %c0_97, %c0_98] : memref<5x4x128xf32, #tpu.memory_space<vmem>>, vector<1x4x128xf32>
    %110 = vector.shape_cast %109 : vector<1x4x128xf32> to vector<4x128xf32>
    %c4_99 = arith.constant 4 : index
    %c0_100 = arith.constant 0 : index
    %c0_101 = arith.constant 0 : index
    %111 = vector.load %arg3[%c4_99, %c0_100, %c0_101] : memref<5x4x128xf32, #tpu.memory_space<vmem>>, vector<1x4x128xf32>
    %112 = vector.shape_cast %111 : vector<1x4x128xf32> to vector<4x128xf32>
    %c0_102 = arith.constant 0 : index
    %c0_103 = arith.constant 0 : index
    %c0_104 = arith.constant 0 : index
    %113 = vector.load %arg1[%c0_102, %c0_103, %c0_104] : memref<1x4x128xf32, #tpu.memory_space<vmem>>, vector<1x4x128xf32>
    %114 = vector.shape_cast %113 : vector<1x4x128xf32> to vector<4x128xf32>
    %115 = vector.shape_cast %104 : vector<4x128xf32> to vector<4x1x128xf32>
    %c0_105 = arith.constant 0 : index
    %c0_106 = arith.constant 0 : index
    %c0_107 = arith.constant 0 : index
    %116 = vector.load %arg6[%c0_105, %c0_106, %c0_107] : memref<5x5x128xf32, #tpu.memory_space<vmem>>, vector<1x5x128xf32>
    %117 = vector.shape_cast %116 : vector<1x5x128xf32> to vector<5x128xf32>
    %118 = vector.shape_cast %117 : vector<5x128xf32> to vector<1x5x128xf32>
    %119 = vector.broadcast %115 : vector<4x1x128xf32> to vector<4x5x128xf32>
    %120 = vector.broadcast %118 : vector<1x5x128xf32> to vector<4x5x128xf32>
    %121 = arith.mulf %119, %120 : vector<4x5x128xf32>
    %122 = vector.shape_cast %106 : vector<4x128xf32> to vector<4x1x128xf32>
    %c1_108 = arith.constant 1 : index
    %c0_109 = arith.constant 0 : index
    %c0_110 = arith.constant 0 : index
    %123 = vector.load %arg6[%c1_108, %c0_109, %c0_110] : memref<5x5x128xf32, #tpu.memory_space<vmem>>, vector<1x5x128xf32>
    %124 = vector.shape_cast %123 : vector<1x5x128xf32> to vector<5x128xf32>
    %125 = vector.shape_cast %124 : vector<5x128xf32> to vector<1x5x128xf32>
    %126 = vector.broadcast %122 : vector<4x1x128xf32> to vector<4x5x128xf32>
    %127 = vector.broadcast %125 : vector<1x5x128xf32> to vector<4x5x128xf32>
    %128 = arith.mulf %126, %127 : vector<4x5x128xf32>
    %129 = arith.addf %121, %128 : vector<4x5x128xf32>
    %130 = vector.shape_cast %108 : vector<4x128xf32> to vector<4x1x128xf32>
    %c2_111 = arith.constant 2 : index
    %c0_112 = arith.constant 0 : index
    %c0_113 = arith.constant 0 : index
    %131 = vector.load %arg6[%c2_111, %c0_112, %c0_113] : memref<5x5x128xf32, #tpu.memory_space<vmem>>, vector<1x5x128xf32>
    %132 = vector.shape_cast %131 : vector<1x5x128xf32> to vector<5x128xf32>
    %133 = vector.shape_cast %132 : vector<5x128xf32> to vector<1x5x128xf32>
    %134 = vector.broadcast %130 : vector<4x1x128xf32> to vector<4x5x128xf32>
    %135 = vector.broadcast %133 : vector<1x5x128xf32> to vector<4x5x128xf32>
    %136 = arith.mulf %134, %135 : vector<4x5x128xf32>
    %137 = arith.addf %129, %136 : vector<4x5x128xf32>
    %138 = vector.shape_cast %110 : vector<4x128xf32> to vector<4x1x128xf32>
    %c3_114 = arith.constant 3 : index
    %c0_115 = arith.constant 0 : index
    %c0_116 = arith.constant 0 : index
    %139 = vector.load %arg6[%c3_114, %c0_115, %c0_116] : memref<5x5x128xf32, #tpu.memory_space<vmem>>, vector<1x5x128xf32>
    %140 = vector.shape_cast %139 : vector<1x5x128xf32> to vector<5x128xf32>
    %141 = vector.shape_cast %140 : vector<5x128xf32> to vector<1x5x128xf32>
    %142 = vector.broadcast %138 : vector<4x1x128xf32> to vector<4x5x128xf32>
    %143 = vector.broadcast %141 : vector<1x5x128xf32> to vector<4x5x128xf32>
    %144 = arith.mulf %142, %143 : vector<4x5x128xf32>
    %145 = arith.addf %137, %144 : vector<4x5x128xf32>
    %146 = vector.shape_cast %112 : vector<4x128xf32> to vector<4x1x128xf32>
    %c4_117 = arith.constant 4 : index
    %c0_118 = arith.constant 0 : index
    %c0_119 = arith.constant 0 : index
    %147 = vector.load %arg6[%c4_117, %c0_118, %c0_119] : memref<5x5x128xf32, #tpu.memory_space<vmem>>, vector<1x5x128xf32>
    %148 = vector.shape_cast %147 : vector<1x5x128xf32> to vector<5x128xf32>
    %149 = vector.shape_cast %148 : vector<5x128xf32> to vector<1x5x128xf32>
    %150 = vector.broadcast %146 : vector<4x1x128xf32> to vector<4x5x128xf32>
    %151 = vector.broadcast %149 : vector<1x5x128xf32> to vector<4x5x128xf32>
    %152 = arith.mulf %150, %151 : vector<4x5x128xf32>
    %153 = arith.addf %145, %152 : vector<4x5x128xf32>
    %c0_120 = arith.constant 0 : index
    %c0_121 = arith.constant 0 : index
    %c0_122 = arith.constant 0 : index
    %c0_123 = arith.constant 0 : index
    %154 = vector.load %arg17[%c0_120, %c0_121, %c0_122, %c0_123] : memref<1x4x5x128xf32, #tpu.memory_space<vmem>>, vector<1x4x5x128xf32>
    %155 = vector.shape_cast %154 : vector<1x4x5x128xf32> to vector<4x5x128xf32>
    %156 = vector.shape_cast %153 : vector<4x5x128xf32> to vector<1x4x5x128xf32>
    tpu.vector_store %arg17[%c0_120, %c0_121, %c0_122, %c0_123], %156 {strides = array<i32>} : memref<1x4x5x128xf32, #tpu.memory_space<vmem>>, vector<1x4x5x128xf32>,
    %157 = vector.extract_strided_slice %114 {offsets = [0, 0], sizes = [1, 128], strides = [1, 1]} : vector<4x128xf32> to vector<1x128xf32>
    %158 = vector.shape_cast %157 : vector<1x128xf32> to vector<1x1x128xf32>
    %c0_124 = arith.constant 0 : index
    %c0_125 = arith.constant 0 : index
    %c0_126 = arith.constant 0 : index
    %c0_127 = arith.constant 0 : index
    %159 = vector.load %arg17[%c0_124, %c0_125, %c0_126, %c0_127] : memref<1x4x5x128xf32, #tpu.memory_space<vmem>>, vector<1x4x5x128xf32>
    %160 = vector.shape_cast %159 : vector<1x4x5x128xf32> to vector<4x5x128xf32>
    %161 = vector.broadcast %158 : vector<1x1x128xf32> to vector<4x5x128xf32>
    %162 = arith.mulf %161, %160 : vector<4x5x128xf32>
    %c0_128 = arith.constant 0 : index
    %c0_129 = arith.constant 0 : index
    %c0_130 = arith.constant 0 : index
    %163 = vector.load %arg12[%c0_128, %c0_129, %c0_130] : memref<64x5x128xf32, #tpu.memory_space<vmem>>, vector<4x5x128xf32>
    tpu.vector_store %arg12[%c0_128, %c0_129, %c0_130], %162 {strides = array<i32>} : memref<64x5x128xf32, #tpu.memory_space<vmem>>, vector<4x5x128xf32>,
    %164 = vector.extract_strided_slice %114 {offsets = [1, 0], sizes = [1, 128], strides = [1, 1]} : vector<4x128xf32> to vector<1x128xf32>
    %165 = vector.shape_cast %164 : vector<1x128xf32> to vector<1x1x128xf32>
    %c0_131 = arith.constant 0 : index
    %c0_132 = arith.constant 0 : index
    %c0_133 = arith.constant 0 : index
    %c0_134 = arith.constant 0 : index
    %166 = vector.load %arg17[%c0_131, %c0_132, %c0_133, %c0_134] : memref<1x4x5x128xf32, #tpu.memory_space<vmem>>, vector<1x4x5x128xf32>
    %167 = vector.shape_cast %166 : vector<1x4x5x128xf32> to vector<4x5x128xf32>
    %168 = vector.broadcast %165 : vector<1x1x128xf32> to vector<4x5x128xf32>
    %169 = arith.mulf %168, %167 : vector<4x5x128xf32>
    %c4_135 = arith.constant 4 : index
    %c0_136 = arith.constant 0 : index
    %c0_137 = arith.constant 0 : index
    %170 = vector.load %arg12[%c4_135, %c0_136, %c0_137] : memref<64x5x128xf32, #tpu.memory_space<vmem>>, vector<4x5x128xf32>
    tpu.vector_store %arg12[%c4_135, %c0_136, %c0_137], %169 {strides = array<i32>} : memref<64x5x128xf32, #tpu.memory_space<vmem>>, vector<4x5x128xf32>,
    %171 = vector.extract_strided_slice %114 {offsets = [2, 0], sizes = [1, 128], strides = [1, 1]} : vector<4x128xf32> to vector<1x128xf32>
    %172 = vector.shape_cast %171 : vector<1x128xf32> to vector<1x1x128xf32>
    %c0_138 = arith.constant 0 : index
    %c0_139 = arith.constant 0 : index
    %c0_140 = arith.constant 0 : index
    %c0_141 = arith.constant 0 : index
    %173 = vector.load %arg17[%c0_138, %c0_139, %c0_140, %c0_141] : memref<1x4x5x128xf32, #tpu.memory_space<vmem>>, vector<1x4x5x128xf32>
    %174 = vector.shape_cast %173 : vector<1x4x5x128xf32> to vector<4x5x128xf32>
    %175 = vector.broadcast %172 : vector<1x1x128xf32> to vector<4x5x128xf32>
    %176 = arith.mulf %175, %174 : vector<4x5x128xf32>
    %c8_142 = arith.constant 8 : index
    %c0_143 = arith.constant 0 : index
    %c0_144 = arith.constant 0 : index
    %177 = vector.load %arg12[%c8_142, %c0_143, %c0_144] : memref<64x5x128xf32, #tpu.memory_space<vmem>>, vector<4x5x128xf32>
    tpu.vector_store %arg12[%c8_142, %c0_143, %c0_144], %176 {strides = array<i32>} : memref<64x5x128xf32, #tpu.memory_space<vmem>>, vector<4x5x128xf32>,
    %178 = vector.extract_strided_slice %114 {offsets = [3, 0], sizes = [1, 128], strides = [1, 1]} : vector<4x128xf32> to vector<1x128xf32>
    %179 = vector.shape_cast %178 : vector<1x128xf32> to vector<1x1x128xf32>
    %c0_145 = arith.constant 0 : index
    %c0_146 = arith.constant 0 : index
    %c0_147 = arith.constant 0 : index
    %c0_148 = arith.constant 0 : index
    %180 = vector.load %arg17[%c0_145, %c0_146, %c0_147, %c0_148] : memref<1x4x5x128xf32, #tpu.memory_space<vmem>>, vector<1x4x5x128xf32>
    %181 = vector.shape_cast %180 : vector<1x4x5x128xf32> to vector<4x5x128xf32>
    %182 = vector.broadcast %179 : vector<1x1x128xf32> to vector<4x5x128xf32>
    %183 = arith.mulf %182, %181 : vector<4x5x128xf32>
    %c12_149 = arith.constant 12 : index
    %c0_150 = arith.constant 0 : index
    %c0_151 = arith.constant 0 : index
    %184 = vector.load %arg12[%c12_149, %c0_150, %c0_151] : memref<64x5x128xf32, #tpu.memory_space<vmem>>, vector<4x5x128xf32>
    tpu.vector_store %arg12[%c12_149, %c0_150, %c0_151], %183 {strides = array<i32>} : memref<64x5x128xf32, #tpu.memory_space<vmem>>, vector<4x5x128xf32>,
    %c0_152 = arith.constant 0 : index
    %c0_153 = arith.constant 0 : index
    %c0_154 = arith.constant 0 : index
    %185 = vector.load %arg2[%c0_152, %c0_153, %c0_154] : memref<3x4x128xf32, #tpu.memory_space<vmem>>, vector<1x4x128xf32>
    %186 = vector.shape_cast %185 : vector<1x4x128xf32> to vector<4x128xf32>
    %c1_155 = arith.constant 1 : index
    %c0_156 = arith.constant 0 : index
    %c0_157 = arith.constant 0 : index
    %187 = vector.load %arg2[%c1_155, %c0_156, %c0_157] : memref<3x4x128xf32, #tpu.memory_space<vmem>>, vector<1x4x128xf32>
    %188 = vector.shape_cast %187 : vector<1x4x128xf32> to vector<4x128xf32>
    %c2_158 = arith.constant 2 : index
    %c0_159 = arith.constant 0 : index
    %c0_160 = arith.constant 0 : index
    %189 = vector.load %arg2[%c2_158, %c0_159, %c0_160] : memref<3x4x128xf32, #tpu.memory_space<vmem>>, vector<1x4x128xf32>
    %190 = vector.shape_cast %189 : vector<1x4x128xf32> to vector<4x128xf32>
    %c0_161 = arith.constant 0 : index
    %c0_162 = arith.constant 0 : index
    %c0_163 = arith.constant 0 : index
    %191 = vector.load %arg2[%c0_161, %c0_162, %c0_163] : memref<3x4x128xf32, #tpu.memory_space<vmem>>, vector<1x4x128xf32>
    %192 = vector.shape_cast %191 : vector<1x4x128xf32> to vector<4x128xf32>
    %c1_164 = arith.constant 1 : index
    %c0_165 = arith.constant 0 : index
    %c0_166 = arith.constant 0 : index
    %193 = vector.load %arg2[%c1_164, %c0_165, %c0_166] : memref<3x4x128xf32, #tpu.memory_space<vmem>>, vector<1x4x128xf32>
    %194 = vector.shape_cast %193 : vector<1x4x128xf32> to vector<4x128xf32>
    %c2_167 = arith.constant 2 : index
    %c0_168 = arith.constant 0 : index
    %c0_169 = arith.constant 0 : index
    %195 = vector.load %arg2[%c2_167, %c0_168, %c0_169] : memref<3x4x128xf32, #tpu.memory_space<vmem>>, vector<1x4x128xf32>
    %196 = vector.shape_cast %195 : vector<1x4x128xf32> to vector<4x128xf32>
    %197 = vector.shape_cast %186 : vector<4x128xf32> to vector<4x1x128xf32>
    %c0_170 = arith.constant 0 : index
    %c0_171 = arith.constant 0 : index
    %c0_172 = arith.constant 0 : index
    %198 = vector.load %arg7[%c0_170, %c0_171, %c0_172] : memref<9x9x128xf32, #tpu.memory_space<vmem>>, vector<1x9x128xf32>
    %199 = vector.shape_cast %198 : vector<1x9x128xf32> to vector<9x128xf32>
    %200 = vector.shape_cast %199 : vector<9x128xf32> to vector<1x9x128xf32>
    %201 = vector.broadcast %197 : vector<4x1x128xf32> to vector<4x9x128xf32>
    %202 = vector.broadcast %200 : vector<1x9x128xf32> to vector<4x9x128xf32>
    %203 = arith.mulf %201, %202 : vector<4x9x128xf32>
    %204 = vector.shape_cast %188 : vector<4x128xf32> to vector<4x1x128xf32>
    %c1_173 = arith.constant 1 : index
    %c0_174 = arith.constant 0 : index
    %c0_175 = arith.constant 0 : index
    %205 = vector.load %arg7[%c1_173, %c0_174, %c0_175] : memref<9x9x128xf32, #tpu.memory_space<vmem>>, vector<1x9x128xf32>
    %206 = vector.shape_cast %205 : vector<1x9x128xf32> to vector<9x128xf32>
    %207 = vector.shape_cast %206 : vector<9x128xf32> to vector<1x9x128xf32>
    %208 = vector.broadcast %204 : vector<4x1x128xf32> to vector<4x9x128xf32>
    %209 = vector.broadcast %207 : vector<1x9x128xf32> to vector<4x9x128xf32>
    %210 = arith.mulf %208, %209 : vector<4x9x128xf32>
    %211 = arith.addf %203, %210 : vector<4x9x128xf32>
    %212 = vector.shape_cast %190 : vector<4x128xf32> to vector<4x1x128xf32>
    %c2_176 = arith.constant 2 : index
    %c0_177 = arith.constant 0 : index
    %c0_178 = arith.constant 0 : index
    %213 = vector.load %arg7[%c2_176, %c0_177, %c0_178] : memref<9x9x128xf32, #tpu.memory_space<vmem>>, vector<1x9x128xf32>
    %214 = vector.shape_cast %213 : vector<1x9x128xf32> to vector<9x128xf32>
    %215 = vector.shape_cast %214 : vector<9x128xf32> to vector<1x9x128xf32>
    %216 = vector.broadcast %212 : vector<4x1x128xf32> to vector<4x9x128xf32>
    %217 = vector.broadcast %215 : vector<1x9x128xf32> to vector<4x9x128xf32>
    %218 = arith.mulf %216, %217 : vector<4x9x128xf32>
    %219 = arith.addf %211, %218 : vector<4x9x128xf32>
    %c0_179 = arith.constant 0 : index
    %c0_180 = arith.constant 0 : index
    %c0_181 = arith.constant 0 : index
    %c0_182 = arith.constant 0 : index
    %220 = vector.load %arg18[%c0_179, %c0_180, %c0_181, %c0_182] : memref<3x4x9x128xf32, #tpu.memory_space<vmem>>, vector<1x4x9x128xf32>
    %221 = vector.shape_cast %220 : vector<1x4x9x128xf32> to vector<4x9x128xf32>
    %222 = vector.shape_cast %219 : vector<4x9x128xf32> to vector<1x4x9x128xf32>
    tpu.vector_store %arg18[%c0_179, %c0_180, %c0_181, %c0_182], %222 {strides = array<i32>} : memref<3x4x9x128xf32, #tpu.memory_space<vmem>>, vector<1x4x9x128xf32>,
    %223 = vector.shape_cast %186 : vector<4x128xf32> to vector<4x1x128xf32>
    %c3_183 = arith.constant 3 : index
    %c0_184 = arith.constant 0 : index
    %c0_185 = arith.constant 0 : index
    %224 = vector.load %arg7[%c3_183, %c0_184, %c0_185] : memref<9x9x128xf32, #tpu.memory_space<vmem>>, vector<1x9x128xf32>
    %225 = vector.shape_cast %224 : vector<1x9x128xf32> to vector<9x128xf32>
    %226 = vector.shape_cast %225 : vector<9x128xf32> to vector<1x9x128xf32>
    %227 = vector.broadcast %223 : vector<4x1x128xf32> to vector<4x9x128xf32>
    %228 = vector.broadcast %226 : vector<1x9x128xf32> to vector<4x9x128xf32>
    %229 = arith.mulf %227, %228 : vector<4x9x128xf32>
    %230 = vector.shape_cast %188 : vector<4x128xf32> to vector<4x1x128xf32>
    %c4_186 = arith.constant 4 : index
    %c0_187 = arith.constant 0 : index
    %c0_188 = arith.constant 0 : index
    %231 = vector.load %arg7[%c4_186, %c0_187, %c0_188] : memref<9x9x128xf32, #tpu.memory_space<vmem>>, vector<1x9x128xf32>
    %232 = vector.shape_cast %231 : vector<1x9x128xf32> to vector<9x128xf32>
    %233 = vector.shape_cast %232 : vector<9x128xf32> to vector<1x9x128xf32>
    %234 = vector.broadcast %230 : vector<4x1x128xf32> to vector<4x9x128xf32>
    %235 = vector.broadcast %233 : vector<1x9x128xf32> to vector<4x9x128xf32>
    %236 = arith.mulf %234, %235 : vector<4x9x128xf32>
    %237 = arith.addf %229, %236 : vector<4x9x128xf32>
    %238 = vector.shape_cast %190 : vector<4x128xf32> to vector<4x1x128xf32>
    %c5 = arith.constant 5 : index
    %c0_189 = arith.constant 0 : index
    %c0_190 = arith.constant 0 : index
    %239 = vector.load %arg7[%c5, %c0_189, %c0_190] : memref<9x9x128xf32, #tpu.memory_space<vmem>>, vector<1x9x128xf32>
    %240 = vector.shape_cast %239 : vector<1x9x128xf32> to vector<9x128xf32>
    %241 = vector.shape_cast %240 : vector<9x128xf32> to vector<1x9x128xf32>
    %242 = vector.broadcast %238 : vector<4x1x128xf32> to vector<4x9x128xf32>
    %243 = vector.broadcast %241 : vector<1x9x128xf32> to vector<4x9x128xf32>
    %244 = arith.mulf %242, %243 : vector<4x9x128xf32>
    %245 = arith.addf %237, %244 : vector<4x9x128xf32>
    %c1_191 = arith.constant 1 : index
    %c0_192 = arith.constant 0 : index
    %c0_193 = arith.constant 0 : index
    %c0_194 = arith.constant 0 : index
    %246 = vector.load %arg18[%c1_191, %c0_192, %c0_193, %c0_194] : memref<3x4x9x128xf32, #tpu.memory_space<vmem>>, vector<1x4x9x128xf32>
    %247 = vector.shape_cast %246 : vector<1x4x9x128xf32> to vector<4x9x128xf32>
    %248 = vector.shape_cast %245 : vector<4x9x128xf32> to vector<1x4x9x128xf32>
    tpu.vector_store %arg18[%c1_191, %c0_192, %c0_193, %c0_194], %248 {strides = array<i32>} : memref<3x4x9x128xf32, #tpu.memory_space<vmem>>, vector<1x4x9x128xf32>,
    %249 = vector.shape_cast %186 : vector<4x128xf32> to vector<4x1x128xf32>
    %c6 = arith.constant 6 : index
    %c0_195 = arith.constant 0 : index
    %c0_196 = arith.constant 0 : index
    %250 = vector.load %arg7[%c6, %c0_195, %c0_196] : memref<9x9x128xf32, #tpu.memory_space<vmem>>, vector<1x9x128xf32>
    %251 = vector.shape_cast %250 : vector<1x9x128xf32> to vector<9x128xf32>
    %252 = vector.shape_cast %251 : vector<9x128xf32> to vector<1x9x128xf32>
    %253 = vector.broadcast %249 : vector<4x1x128xf32> to vector<4x9x128xf32>
    %254 = vector.broadcast %252 : vector<1x9x128xf32> to vector<4x9x128xf32>
    %255 = arith.mulf %253, %254 : vector<4x9x128xf32>
    %256 = vector.shape_cast %188 : vector<4x128xf32> to vector<4x1x128xf32>
    %c7 = arith.constant 7 : index
    %c0_197 = arith.constant 0 : index
    %c0_198 = arith.constant 0 : index
    %257 = vector.load %arg7[%c7, %c0_197, %c0_198] : memref<9x9x128xf32, #tpu.memory_space<vmem>>, vector<1x9x128xf32>
    %258 = vector.shape_cast %257 : vector<1x9x128xf32> to vector<9x128xf32>
    %259 = vector.shape_cast %258 : vector<9x128xf32> to vector<1x9x128xf32>
    %260 = vector.broadcast %256 : vector<4x1x128xf32> to vector<4x9x128xf32>
    %261 = vector.broadcast %259 : vector<1x9x128xf32> to vector<4x9x128xf32>
    %262 = arith.mulf %260, %261 : vector<4x9x128xf32>
    %263 = arith.addf %255, %262 : vector<4x9x128xf32>
    %264 = vector.shape_cast %190 : vector<4x128xf32> to vector<4x1x128xf32>
    %c8_199 = arith.constant 8 : index
    %c0_200 = arith.constant 0 : index
    %c0_201 = arith.constant 0 : index
    %265 = vector.load %arg7[%c8_199, %c0_200, %c0_201] : memref<9x9x128xf32, #tpu.memory_space<vmem>>, vector<1x9x128xf32>
    %266 = vector.shape_cast %265 : vector<1x9x128xf32> to vector<9x128xf32>
    %267 = vector.shape_cast %266 : vector<9x128xf32> to vector<1x9x128xf32>
    %268 = vector.broadcast %264 : vector<4x1x128xf32> to vector<4x9x128xf32>
    %269 = vector.broadcast %267 : vector<1x9x128xf32> to vector<4x9x128xf32>
    %270 = arith.mulf %268, %269 : vector<4x9x128xf32>
    %271 = arith.addf %263, %270 : vector<4x9x128xf32>
    %c2_202 = arith.constant 2 : index
    %c0_203 = arith.constant 0 : index
    %c0_204 = arith.constant 0 : index
    %c0_205 = arith.constant 0 : index
    %272 = vector.load %arg18[%c2_202, %c0_203, %c0_204, %c0_205] : memref<3x4x9x128xf32, #tpu.memory_space<vmem>>, vector<1x4x9x128xf32>
    %273 = vector.shape_cast %272 : vector<1x4x9x128xf32> to vector<4x9x128xf32>
    %274 = vector.shape_cast %271 : vector<4x9x128xf32> to vector<1x4x9x128xf32>
    tpu.vector_store %arg18[%c2_202, %c0_203, %c0_204, %c0_205], %274 {strides = array<i32>} : memref<3x4x9x128xf32, #tpu.memory_space<vmem>>, vector<1x4x9x128xf32>,
    %275 = vector.extract_strided_slice %192 {offsets = [0, 0], sizes = [1, 128], strides = [1, 1]} : vector<4x128xf32> to vector<1x128xf32>
    %276 = vector.shape_cast %275 : vector<1x128xf32> to vector<1x1x128xf32>
    %c0_206 = arith.constant 0 : index
    %c0_207 = arith.constant 0 : index
    %c0_208 = arith.constant 0 : index
    %c0_209 = arith.constant 0 : index
    %277 = vector.load %arg18[%c0_206, %c0_207, %c0_208, %c0_209] : memref<3x4x9x128xf32, #tpu.memory_space<vmem>>, vector<1x4x9x128xf32>
    %278 = vector.shape_cast %277 : vector<1x4x9x128xf32> to vector<4x9x128xf32>
    %279 = vector.broadcast %276 : vector<1x1x128xf32> to vector<4x9x128xf32>
    %280 = arith.mulf %279, %278 : vector<4x9x128xf32>
    %281 = vector.extract_strided_slice %194 {offsets = [0, 0], sizes = [1, 128], strides = [1, 1]} : vector<4x128xf32> to vector<1x128xf32>
    %282 = vector.shape_cast %281 : vector<1x128xf32> to vector<1x1x128xf32>
    %c1_210 = arith.constant 1 : index
    %c0_211 = arith.constant 0 : index
    %c0_212 = arith.constant 0 : index
    %c0_213 = arith.constant 0 : index
    %283 = vector.load %arg18[%c1_210, %c0_211, %c0_212, %c0_213] : memref<3x4x9x128xf32, #tpu.memory_space<vmem>>, vector<1x4x9x128xf32>
    %284 = vector.shape_cast %283 : vector<1x4x9x128xf32> to vector<4x9x128xf32>
    %285 = vector.broadcast %282 : vector<1x1x128xf32> to vector<4x9x128xf32>
    %286 = arith.mulf %285, %284 : vector<4x9x128xf32>
    %287 = arith.addf %280, %286 : vector<4x9x128xf32>
    %288 = vector.extract_strided_slice %196 {offsets = [0, 0], sizes = [1, 128], strides = [1, 1]} : vector<4x128xf32> to vector<1x128xf32>
    %289 = vector.shape_cast %288 : vector<1x128xf32> to vector<1x1x128xf32>
    %c2_214 = arith.constant 2 : index
    %c0_215 = arith.constant 0 : index
    %c0_216 = arith.constant 0 : index
    %c0_217 = arith.constant 0 : index
    %290 = vector.load %arg18[%c2_214, %c0_215, %c0_216, %c0_217] : memref<3x4x9x128xf32, #tpu.memory_space<vmem>>, vector<1x4x9x128xf32>
    %291 = vector.shape_cast %290 : vector<1x4x9x128xf32> to vector<4x9x128xf32>
    %292 = vector.broadcast %289 : vector<1x1x128xf32> to vector<4x9x128xf32>
    %293 = arith.mulf %292, %291 : vector<4x9x128xf32>
    %294 = arith.addf %287, %293 : vector<4x9x128xf32>
    %295 = vector.extract_strided_slice %294 {offsets = [0, 0, 0], sizes = [4, 1, 128], strides = [1, 1, 1]} : vector<4x9x128xf32> to vector<4x1x128xf32>
    %c16 = arith.constant 16 : index
    %c0_218 = arith.constant 0 : index
    %c0_219 = arith.constant 0 : index
    %296 = vector.load %arg10[%c16, %c0_218, %c0_219] : memref<48x1x128xf32, #tpu.memory_space<vmem>>, vector<4x1x128xf32>
    tpu.vector_store %arg10[%c16, %c0_218, %c0_219], %295 {strides = array<i32>} : memref<48x1x128xf32, #tpu.memory_space<vmem>>, vector<4x1x128xf32>,
    %297 = vector.extract_strided_slice %294 {offsets = [0, 1, 0], sizes = [4, 3, 128], strides = [1, 1, 1]} : vector<4x9x128xf32> to vector<4x3x128xf32>
    %c16_220 = arith.constant 16 : index
    %c0_221 = arith.constant 0 : index
    %c0_222 = arith.constant 0 : index
    %298 = vector.load %arg11[%c16_220, %c0_221, %c0_222] : memref<64x3x128xf32, #tpu.memory_space<vmem>>, vector<4x3x128xf32>
    tpu.vector_store %arg11[%c16_220, %c0_221, %c0_222], %297 {strides = array<i32>} : memref<64x3x128xf32, #tpu.memory_space<vmem>>, vector<4x3x128xf32>,
    %299 = vector.extract_strided_slice %294 {offsets = [0, 4, 0], sizes = [4, 5, 128], strides = [1, 1, 1]} : vector<4x9x128xf32> to vector<4x5x128xf32>
    %c16_223 = arith.constant 16 : index
    %c0_224 = arith.constant 0 : index
    %c0_225 = arith.constant 0 : index
    %300 = vector.load %arg12[%c16_223, %c0_224, %c0_225] : memref<64x5x128xf32, #tpu.memory_space<vmem>>, vector<4x5x128xf32>
    tpu.vector_store %arg12[%c16_223, %c0_224, %c0_225], %299 {strides = array<i32>} : memref<64x5x128xf32, #tpu.memory_space<vmem>>, vector<4x5x128xf32>,
    %301 = vector.extract_strided_slice %192 {offsets = [1, 0], sizes = [1, 128], strides = [1, 1]} : vector<4x128xf32> to vector<1x128xf32>
    %302 = vector.shape_cast %301 : vector<1x128xf32> to vector<1x1x128xf32>
    %c0_226 = arith.constant 0 : index
    %c0_227 = arith.constant 0 : index
    %c0_228 = arith.constant 0 : index
    %c0_229 = arith.constant 0 : index
    %303 = vector.load %arg18[%c0_226, %c0_227, %c0_228, %c0_229] : memref<3x4x9x128xf32, #tpu.memory_space<vmem>>, vector<1x4x9x128xf32>
    %304 = vector.shape_cast %303 : vector<1x4x9x128xf32> to vector<4x9x128xf32>
    %305 = vector.broadcast %302 : vector<1x1x128xf32> to vector<4x9x128xf32>
    %306 = arith.mulf %305, %304 : vector<4x9x128xf32>
    %307 = vector.extract_strided_slice %194 {offsets = [1, 0], sizes = [1, 128], strides = [1, 1]} : vector<4x128xf32> to vector<1x128xf32>
    %308 = vector.shape_cast %307 : vector<1x128xf32> to vector<1x1x128xf32>
    %c1_230 = arith.constant 1 : index
    %c0_231 = arith.constant 0 : index
    %c0_232 = arith.constant 0 : index
    %c0_233 = arith.constant 0 : index
    %309 = vector.load %arg18[%c1_230, %c0_231, %c0_232, %c0_233] : memref<3x4x9x128xf32, #tpu.memory_space<vmem>>, vector<1x4x9x128xf32>
    %310 = vector.shape_cast %309 : vector<1x4x9x128xf32> to vector<4x9x128xf32>
    %311 = vector.broadcast %308 : vector<1x1x128xf32> to vector<4x9x128xf32>
    %312 = arith.mulf %311, %310 : vector<4x9x128xf32>
    %313 = arith.addf %306, %312 : vector<4x9x128xf32>
    %314 = vector.extract_strided_slice %196 {offsets = [1, 0], sizes = [1, 128], strides = [1, 1]} : vector<4x128xf32> to vector<1x128xf32>
    %315 = vector.shape_cast %314 : vector<1x128xf32> to vector<1x1x128xf32>
    %c2_234 = arith.constant 2 : index
    %c0_235 = arith.constant 0 : index
    %c0_236 = arith.constant 0 : index
    %c0_237 = arith.constant 0 : index
    %316 = vector.load %arg18[%c2_234, %c0_235, %c0_236, %c0_237] : memref<3x4x9x128xf32, #tpu.memory_space<vmem>>, vector<1x4x9x128xf32>
    %317 = vector.shape_cast %316 : vector<1x4x9x128xf32> to vector<4x9x128xf32>
    %318 = vector.broadcast %315 : vector<1x1x128xf32> to vector<4x9x128xf32>
    %319 = arith.mulf %318, %317 : vector<4x9x128xf32>
    %320 = arith.addf %313, %319 : vector<4x9x128xf32>
    %321 = vector.extract_strided_slice %320 {offsets = [0, 0, 0], sizes = [4, 1, 128], strides = [1, 1, 1]} : vector<4x9x128xf32> to vector<4x1x128xf32>
    %c20 = arith.constant 20 : index
    %c0_238 = arith.constant 0 : index
    %c0_239 = arith.constant 0 : index
    %322 = vector.load %arg10[%c20, %c0_238, %c0_239] : memref<48x1x128xf32, #tpu.memory_space<vmem>>, vector<4x1x128xf32>
    tpu.vector_store %arg10[%c20, %c0_238, %c0_239], %321 {strides = array<i32>} : memref<48x1x128xf32, #tpu.memory_space<vmem>>, vector<4x1x128xf32>,
    %323 = vector.extract_strided_slice %320 {offsets = [0, 1, 0], sizes = [4, 3, 128], strides = [1, 1, 1]} : vector<4x9x128xf32> to vector<4x3x128xf32>
    %c20_240 = arith.constant 20 : index
    %c0_241 = arith.constant 0 : index
    %c0_242 = arith.constant 0 : index
    %324 = vector.load %arg11[%c20_240, %c0_241, %c0_242] : memref<64x3x128xf32, #tpu.memory_space<vmem>>, vector<4x3x128xf32>
    tpu.vector_store %arg11[%c20_240, %c0_241, %c0_242], %323 {strides = array<i32>} : memref<64x3x128xf32, #tpu.memory_space<vmem>>, vector<4x3x128xf32>,
    %325 = vector.extract_strided_slice %320 {offsets = [0, 4, 0], sizes = [4, 5, 128], strides = [1, 1, 1]} : vector<4x9x128xf32> to vector<4x5x128xf32>
    %c20_243 = arith.constant 20 : index
    %c0_244 = arith.constant 0 : index
    %c0_245 = arith.constant 0 : index
    %326 = vector.load %arg12[%c20_243, %c0_244, %c0_245] : memref<64x5x128xf32, #tpu.memory_space<vmem>>, vector<4x5x128xf32>
    tpu.vector_store %arg12[%c20_243, %c0_244, %c0_245], %325 {strides = array<i32>} : memref<64x5x128xf32, #tpu.memory_space<vmem>>, vector<4x5x128xf32>,
    %327 = vector.extract_strided_slice %192 {offsets = [2, 0], sizes = [1, 128], strides = [1, 1]} : vector<4x128xf32> to vector<1x128xf32>
    %328 = vector.shape_cast %327 : vector<1x128xf32> to vector<1x1x128xf32>
    %c0_246 = arith.constant 0 : index
    %c0_247 = arith.constant 0 : index
    %c0_248 = arith.constant 0 : index
    %c0_249 = arith.constant 0 : index
    %329 = vector.load %arg18[%c0_246, %c0_247, %c0_248, %c0_249] : memref<3x4x9x128xf32, #tpu.memory_space<vmem>>, vector<1x4x9x128xf32>
    %330 = vector.shape_cast %329 : vector<1x4x9x128xf32> to vector<4x9x128xf32>
    %331 = vector.broadcast %328 : vector<1x1x128xf32> to vector<4x9x128xf32>
    %332 = arith.mulf %331, %330 : vector<4x9x128xf32>
    %333 = vector.extract_strided_slice %194 {offsets = [2, 0], sizes = [1, 128], strides = [1, 1]} : vector<4x128xf32> to vector<1x128xf32>
    %334 = vector.shape_cast %333 : vector<1x128xf32> to vector<1x1x128xf32>
    %c1_250 = arith.constant 1 : index
    %c0_251 = arith.constant 0 : index
    %c0_252 = arith.constant 0 : index
    %c0_253 = arith.constant 0 : index
    %335 = vector.load %arg18[%c1_250, %c0_251, %c0_252, %c0_253] : memref<3x4x9x128xf32, #tpu.memory_space<vmem>>, vector<1x4x9x128xf32>
    %336 = vector.shape_cast %335 : vector<1x4x9x128xf32> to vector<4x9x128xf32>
    %337 = vector.broadcast %334 : vector<1x1x128xf32> to vector<4x9x128xf32>
    %338 = arith.mulf %337, %336 : vector<4x9x128xf32>
    %339 = arith.addf %332, %338 : vector<4x9x128xf32>
    %340 = vector.extract_strided_slice %196 {offsets = [2, 0], sizes = [1, 128], strides = [1, 1]} : vector<4x128xf32> to vector<1x128xf32>
    %341 = vector.shape_cast %340 : vector<1x128xf32> to vector<1x1x128xf32>
    %c2_254 = arith.constant 2 : index
    %c0_255 = arith.constant 0 : index
    %c0_256 = arith.constant 0 : index
    %c0_257 = arith.constant 0 : index
    %342 = vector.load %arg18[%c2_254, %c0_255, %c0_256, %c0_257] : memref<3x4x9x128xf32, #tpu.memory_space<vmem>>, vector<1x4x9x128xf32>
    %343 = vector.shape_cast %342 : vector<1x4x9x128xf32> to vector<4x9x128xf32>
    %344 = vector.broadcast %341 : vector<1x1x128xf32> to vector<4x9x128xf32>
    %345 = arith.mulf %344, %343 : vector<4x9x128xf32>
    %346 = arith.addf %339, %345 : vector<4x9x128xf32>
    %347 = vector.extract_strided_slice %346 {offsets = [0, 0, 0], sizes = [4, 1, 128], strides = [1, 1, 1]} : vector<4x9x128xf32> to vector<4x1x128xf32>
    %c24 = arith.constant 24 : index
    %c0_258 = arith.constant 0 : index
    %c0_259 = arith.constant 0 : index
    %348 = vector.load %arg10[%c24, %c0_258, %c0_259] : memref<48x1x128xf32, #tpu.memory_space<vmem>>, vector<4x1x128xf32>
    tpu.vector_store %arg10[%c24, %c0_258, %c0_259], %347 {strides = array<i32>} : memref<48x1x128xf32, #tpu.memory_space<vmem>>, vector<4x1x128xf32>,
    %349 = vector.extract_strided_slice %346 {offsets = [0, 1, 0], sizes = [4, 3, 128], strides = [1, 1, 1]} : vector<4x9x128xf32> to vector<4x3x128xf32>
    %c24_260 = arith.constant 24 : index
    %c0_261 = arith.constant 0 : index
    %c0_262 = arith.constant 0 : index
    %350 = vector.load %arg11[%c24_260, %c0_261, %c0_262] : memref<64x3x128xf32, #tpu.memory_space<vmem>>, vector<4x3x128xf32>
    tpu.vector_store %arg11[%c24_260, %c0_261, %c0_262], %349 {strides = array<i32>} : memref<64x3x128xf32, #tpu.memory_space<vmem>>, vector<4x3x128xf32>,
    %351 = vector.extract_strided_slice %346 {offsets = [0, 4, 0], sizes = [4, 5, 128], strides = [1, 1, 1]} : vector<4x9x128xf32> to vector<4x5x128xf32>
    %c24_263 = arith.constant 24 : index
    %c0_264 = arith.constant 0 : index
    %c0_265 = arith.constant 0 : index
    %352 = vector.load %arg12[%c24_263, %c0_264, %c0_265] : memref<64x5x128xf32, #tpu.memory_space<vmem>>, vector<4x5x128xf32>
    tpu.vector_store %arg12[%c24_263, %c0_264, %c0_265], %351 {strides = array<i32>} : memref<64x5x128xf32, #tpu.memory_space<vmem>>, vector<4x5x128xf32>,
    %353 = vector.extract_strided_slice %192 {offsets = [3, 0], sizes = [1, 128], strides = [1, 1]} : vector<4x128xf32> to vector<1x128xf32>
    %354 = vector.shape_cast %353 : vector<1x128xf32> to vector<1x1x128xf32>
    %c0_266 = arith.constant 0 : index
    %c0_267 = arith.constant 0 : index
    %c0_268 = arith.constant 0 : index
    %c0_269 = arith.constant 0 : index
    %355 = vector.load %arg18[%c0_266, %c0_267, %c0_268, %c0_269] : memref<3x4x9x128xf32, #tpu.memory_space<vmem>>, vector<1x4x9x128xf32>
    %356 = vector.shape_cast %355 : vector<1x4x9x128xf32> to vector<4x9x128xf32>
    %357 = vector.broadcast %354 : vector<1x1x128xf32> to vector<4x9x128xf32>
    %358 = arith.mulf %357, %356 : vector<4x9x128xf32>
    %359 = vector.extract_strided_slice %194 {offsets = [3, 0], sizes = [1, 128], strides = [1, 1]} : vector<4x128xf32> to vector<1x128xf32>
    %360 = vector.shape_cast %359 : vector<1x128xf32> to vector<1x1x128xf32>
    %c1_270 = arith.constant 1 : index
    %c0_271 = arith.constant 0 : index
    %c0_272 = arith.constant 0 : index
    %c0_273 = arith.constant 0 : index
    %361 = vector.load %arg18[%c1_270, %c0_271, %c0_272, %c0_273] : memref<3x4x9x128xf32, #tpu.memory_space<vmem>>, vector<1x4x9x128xf32>
    %362 = vector.shape_cast %361 : vector<1x4x9x128xf32> to vector<4x9x128xf32>
    %363 = vector.broadcast %360 : vector<1x1x128xf32> to vector<4x9x128xf32>
    %364 = arith.mulf %363, %362 : vector<4x9x128xf32>
    %365 = arith.addf %358, %364 : vector<4x9x128xf32>
    %366 = vector.extract_strided_slice %196 {offsets = [3, 0], sizes = [1, 128], strides = [1, 1]} : vector<4x128xf32> to vector<1x128xf32>
    %367 = vector.shape_cast %366 : vector<1x128xf32> to vector<1x1x128xf32>
    %c2_274 = arith.constant 2 : index
    %c0_275 = arith.constant 0 : index
    %c0_276 = arith.constant 0 : index
    %c0_277 = arith.constant 0 : index
    %368 = vector.load %arg18[%c2_274, %c0_275, %c0_276, %c0_277] : memref<3x4x9x128xf32, #tpu.memory_space<vmem>>, vector<1x4x9x128xf32>
    %369 = vector.shape_cast %368 : vector<1x4x9x128xf32> to vector<4x9x128xf32>
    %370 = vector.broadcast %367 : vector<1x1x128xf32> to vector<4x9x128xf32>
    %371 = arith.mulf %370, %369 : vector<4x9x128xf32>
    %372 = arith.addf %365, %371 : vector<4x9x128xf32>
    %373 = vector.extract_strided_slice %372 {offsets = [0, 0, 0], sizes = [4, 1, 128], strides = [1, 1, 1]} : vector<4x9x128xf32> to vector<4x1x128xf32>
    %c28 = arith.constant 28 : index
    %c0_278 = arith.constant 0 : index
    %c0_279 = arith.constant 0 : index
    %374 = vector.load %arg10[%c28, %c0_278, %c0_279] : memref<48x1x128xf32, #tpu.memory_space<vmem>>, vector<4x1x128xf32>
    tpu.vector_store %arg10[%c28, %c0_278, %c0_279], %373 {strides = array<i32>} : memref<48x1x128xf32, #tpu.memory_space<vmem>>, vector<4x1x128xf32>,
    %375 = vector.extract_strided_slice %372 {offsets = [0, 1, 0], sizes = [4, 3, 128], strides = [1, 1, 1]} : vector<4x9x128xf32> to vector<4x3x128xf32>
    %c28_280 = arith.constant 28 : index
    %c0_281 = arith.constant 0 : index
    %c0_282 = arith.constant 0 : index
    %376 = vector.load %arg11[%c28_280, %c0_281, %c0_282] : memref<64x3x128xf32, #tpu.memory_space<vmem>>, vector<4x3x128xf32>
    tpu.vector_store %arg11[%c28_280, %c0_281, %c0_282], %375 {strides = array<i32>} : memref<64x3x128xf32, #tpu.memory_space<vmem>>, vector<4x3x128xf32>,
    %377 = vector.extract_strided_slice %372 {offsets = [0, 4, 0], sizes = [4, 5, 128], strides = [1, 1, 1]} : vector<4x9x128xf32> to vector<4x5x128xf32>
    %c28_283 = arith.constant 28 : index
    %c0_284 = arith.constant 0 : index
    %c0_285 = arith.constant 0 : index
    %378 = vector.load %arg12[%c28_283, %c0_284, %c0_285] : memref<64x5x128xf32, #tpu.memory_space<vmem>>, vector<4x5x128xf32>
    tpu.vector_store %arg12[%c28_283, %c0_284, %c0_285], %377 {strides = array<i32>} : memref<64x5x128xf32, #tpu.memory_space<vmem>>, vector<4x5x128xf32>,
    %c0_286 = arith.constant 0 : index
    %c0_287 = arith.constant 0 : index
    %c0_288 = arith.constant 0 : index
    %379 = vector.load %arg3[%c0_286, %c0_287, %c0_288] : memref<5x4x128xf32, #tpu.memory_space<vmem>>, vector<1x4x128xf32>
    %380 = vector.shape_cast %379 : vector<1x4x128xf32> to vector<4x128xf32>
    %c1_289 = arith.constant 1 : index
    %c0_290 = arith.constant 0 : index
    %c0_291 = arith.constant 0 : index
    %381 = vector.load %arg3[%c1_289, %c0_290, %c0_291] : memref<5x4x128xf32, #tpu.memory_space<vmem>>, vector<1x4x128xf32>
    %382 = vector.shape_cast %381 : vector<1x4x128xf32> to vector<4x128xf32>
    %c2_292 = arith.constant 2 : index
    %c0_293 = arith.constant 0 : index
    %c0_294 = arith.constant 0 : index
    %383 = vector.load %arg3[%c2_292, %c0_293, %c0_294] : memref<5x4x128xf32, #tpu.memory_space<vmem>>, vector<1x4x128xf32>
    %384 = vector.shape_cast %383 : vector<1x4x128xf32> to vector<4x128xf32>
    %c3_295 = arith.constant 3 : index
    %c0_296 = arith.constant 0 : index
    %c0_297 = arith.constant 0 : index
    %385 = vector.load %arg3[%c3_295, %c0_296, %c0_297] : memref<5x4x128xf32, #tpu.memory_space<vmem>>, vector<1x4x128xf32>
    %386 = vector.shape_cast %385 : vector<1x4x128xf32> to vector<4x128xf32>
    %c4_298 = arith.constant 4 : index
    %c0_299 = arith.constant 0 : index
    %c0_300 = arith.constant 0 : index
    %387 = vector.load %arg3[%c4_298, %c0_299, %c0_300] : memref<5x4x128xf32, #tpu.memory_space<vmem>>, vector<1x4x128xf32>
    %388 = vector.shape_cast %387 : vector<1x4x128xf32> to vector<4x128xf32>
    %c0_301 = arith.constant 0 : index
    %c0_302 = arith.constant 0 : index
    %c0_303 = arith.constant 0 : index
    %389 = vector.load %arg2[%c0_301, %c0_302, %c0_303] : memref<3x4x128xf32, #tpu.memory_space<vmem>>, vector<1x4x128xf32>
    %390 = vector.shape_cast %389 : vector<1x4x128xf32> to vector<4x128xf32>
    %c1_304 = arith.constant 1 : index
    %c0_305 = arith.constant 0 : index
    %c0_306 = arith.constant 0 : index
    %391 = vector.load %arg2[%c1_304, %c0_305, %c0_306] : memref<3x4x128xf32, #tpu.memory_space<vmem>>, vector<1x4x128xf32>
    %392 = vector.shape_cast %391 : vector<1x4x128xf32> to vector<4x128xf32>
    %c2_307 = arith.constant 2 : index
    %c0_308 = arith.constant 0 : index
    %c0_309 = arith.constant 0 : index
    %393 = vector.load %arg2[%c2_307, %c0_308, %c0_309] : memref<3x4x128xf32, #tpu.memory_space<vmem>>, vector<1x4x128xf32>
    %394 = vector.shape_cast %393 : vector<1x4x128xf32> to vector<4x128xf32>
    %395 = vector.shape_cast %380 : vector<4x128xf32> to vector<4x1x128xf32>
    %c0_310 = arith.constant 0 : index
    %c0_311 = arith.constant 0 : index
    %c0_312 = arith.constant 0 : index
    %396 = vector.load %arg8[%c0_310, %c0_311, %c0_312] : memref<15x15x128xf32, #tpu.memory_space<vmem>>, vector<1x15x128xf32>
    %397 = vector.shape_cast %396 : vector<1x15x128xf32> to vector<15x128xf32>
    %398 = vector.shape_cast %397 : vector<15x128xf32> to vector<1x15x128xf32>
    %399 = vector.broadcast %395 : vector<4x1x128xf32> to vector<4x15x128xf32>
    %400 = vector.broadcast %398 : vector<1x15x128xf32> to vector<4x15x128xf32>
    %401 = arith.mulf %399, %400 : vector<4x15x128xf32>
    %402 = vector.shape_cast %382 : vector<4x128xf32> to vector<4x1x128xf32>
    %c1_313 = arith.constant 1 : index
    %c0_314 = arith.constant 0 : index
    %c0_315 = arith.constant 0 : index
    %403 = vector.load %arg8[%c1_313, %c0_314, %c0_315] : memref<15x15x128xf32, #tpu.memory_space<vmem>>, vector<1x15x128xf32>
    %404 = vector.shape_cast %403 : vector<1x15x128xf32> to vector<15x128xf32>
    %405 = vector.shape_cast %404 : vector<15x128xf32> to vector<1x15x128xf32>
    %406 = vector.broadcast %402 : vector<4x1x128xf32> to vector<4x15x128xf32>
    %407 = vector.broadcast %405 : vector<1x15x128xf32> to vector<4x15x128xf32>
    %408 = arith.mulf %406, %407 : vector<4x15x128xf32>
    %409 = arith.addf %401, %408 : vector<4x15x128xf32>
    %410 = vector.shape_cast %384 : vector<4x128xf32> to vector<4x1x128xf32>
    %c2_316 = arith.constant 2 : index
    %c0_317 = arith.constant 0 : index
    %c0_318 = arith.constant 0 : index
    %411 = vector.load %arg8[%c2_316, %c0_317, %c0_318] : memref<15x15x128xf32, #tpu.memory_space<vmem>>, vector<1x15x128xf32>
    %412 = vector.shape_cast %411 : vector<1x15x128xf32> to vector<15x128xf32>
    %413 = vector.shape_cast %412 : vector<15x128xf32> to vector<1x15x128xf32>
    %414 = vector.broadcast %410 : vector<4x1x128xf32> to vector<4x15x128xf32>
    %415 = vector.broadcast %413 : vector<1x15x128xf32> to vector<4x15x128xf32>
    %416 = arith.mulf %414, %415 : vector<4x15x128xf32>
    %417 = arith.addf %409, %416 : vector<4x15x128xf32>
    %418 = vector.shape_cast %386 : vector<4x128xf32> to vector<4x1x128xf32>
    %c3_319 = arith.constant 3 : index
    %c0_320 = arith.constant 0 : index
    %c0_321 = arith.constant 0 : index
    %419 = vector.load %arg8[%c3_319, %c0_320, %c0_321] : memref<15x15x128xf32, #tpu.memory_space<vmem>>, vector<1x15x128xf32>
    %420 = vector.shape_cast %419 : vector<1x15x128xf32> to vector<15x128xf32>
    %421 = vector.shape_cast %420 : vector<15x128xf32> to vector<1x15x128xf32>
    %422 = vector.broadcast %418 : vector<4x1x128xf32> to vector<4x15x128xf32>
    %423 = vector.broadcast %421 : vector<1x15x128xf32> to vector<4x15x128xf32>
    %424 = arith.mulf %422, %423 : vector<4x15x128xf32>
    %425 = arith.addf %417, %424 : vector<4x15x128xf32>
    %426 = vector.shape_cast %388 : vector<4x128xf32> to vector<4x1x128xf32>
    %c4_322 = arith.constant 4 : index
    %c0_323 = arith.constant 0 : index
    %c0_324 = arith.constant 0 : index
    %427 = vector.load %arg8[%c4_322, %c0_323, %c0_324] : memref<15x15x128xf32, #tpu.memory_space<vmem>>, vector<1x15x128xf32>
    %428 = vector.shape_cast %427 : vector<1x15x128xf32> to vector<15x128xf32>
    %429 = vector.shape_cast %428 : vector<15x128xf32> to vector<1x15x128xf32>
    %430 = vector.broadcast %426 : vector<4x1x128xf32> to vector<4x15x128xf32>
    %431 = vector.broadcast %429 : vector<1x15x128xf32> to vector<4x15x128xf32>
    %432 = arith.mulf %430, %431 : vector<4x15x128xf32>
    %433 = arith.addf %425, %432 : vector<4x15x128xf32>
    %c0_325 = arith.constant 0 : index
    %c0_326 = arith.constant 0 : index
    %c0_327 = arith.constant 0 : index
    %c0_328 = arith.constant 0 : index
    %434 = vector.load %arg19[%c0_325, %c0_326, %c0_327, %c0_328] : memref<3x4x15x128xf32, #tpu.memory_space<vmem>>, vector<1x4x15x128xf32>
    %435 = vector.shape_cast %434 : vector<1x4x15x128xf32> to vector<4x15x128xf32>
    %436 = vector.shape_cast %433 : vector<4x15x128xf32> to vector<1x4x15x128xf32>
    tpu.vector_store %arg19[%c0_325, %c0_326, %c0_327, %c0_328], %436 {strides = array<i32>} : memref<3x4x15x128xf32, #tpu.memory_space<vmem>>, vector<1x4x15x128xf32>,
    %437 = vector.shape_cast %380 : vector<4x128xf32> to vector<4x1x128xf32>
    %c5_329 = arith.constant 5 : index
    %c0_330 = arith.constant 0 : index
    %c0_331 = arith.constant 0 : index
    %438 = vector.load %arg8[%c5_329, %c0_330, %c0_331] : memref<15x15x128xf32, #tpu.memory_space<vmem>>, vector<1x15x128xf32>
    %439 = vector.shape_cast %438 : vector<1x15x128xf32> to vector<15x128xf32>
    %440 = vector.shape_cast %439 : vector<15x128xf32> to vector<1x15x128xf32>
    %441 = vector.broadcast %437 : vector<4x1x128xf32> to vector<4x15x128xf32>
    %442 = vector.broadcast %440 : vector<1x15x128xf32> to vector<4x15x128xf32>
    %443 = arith.mulf %441, %442 : vector<4x15x128xf32>
    %444 = vector.shape_cast %382 : vector<4x128xf32> to vector<4x1x128xf32>
    %c6_332 = arith.constant 6 : index
    %c0_333 = arith.constant 0 : index
    %c0_334 = arith.constant 0 : index
    %445 = vector.load %arg8[%c6_332, %c0_333, %c0_334] : memref<15x15x128xf32, #tpu.memory_space<vmem>>, vector<1x15x128xf32>
    %446 = vector.shape_cast %445 : vector<1x15x128xf32> to vector<15x128xf32>
    %447 = vector.shape_cast %446 : vector<15x128xf32> to vector<1x15x128xf32>
    %448 = vector.broadcast %444 : vector<4x1x128xf32> to vector<4x15x128xf32>
    %449 = vector.broadcast %447 : vector<1x15x128xf32> to vector<4x15x128xf32>
    %450 = arith.mulf %448, %449 : vector<4x15x128xf32>
    %451 = arith.addf %443, %450 : vector<4x15x128xf32>
    %452 = vector.shape_cast %384 : vector<4x128xf32> to vector<4x1x128xf32>
    %c7_335 = arith.constant 7 : index
    %c0_336 = arith.constant 0 : index
    %c0_337 = arith.constant 0 : index
    %453 = vector.load %arg8[%c7_335, %c0_336, %c0_337] : memref<15x15x128xf32, #tpu.memory_space<vmem>>, vector<1x15x128xf32>
    %454 = vector.shape_cast %453 : vector<1x15x128xf32> to vector<15x128xf32>
    %455 = vector.shape_cast %454 : vector<15x128xf32> to vector<1x15x128xf32>
    %456 = vector.broadcast %452 : vector<4x1x128xf32> to vector<4x15x128xf32>
    %457 = vector.broadcast %455 : vector<1x15x128xf32> to vector<4x15x128xf32>
    %458 = arith.mulf %456, %457 : vector<4x15x128xf32>
    %459 = arith.addf %451, %458 : vector<4x15x128xf32>
    %460 = vector.shape_cast %386 : vector<4x128xf32> to vector<4x1x128xf32>
    %c8_338 = arith.constant 8 : index
    %c0_339 = arith.constant 0 : index
    %c0_340 = arith.constant 0 : index
    %461 = vector.load %arg8[%c8_338, %c0_339, %c0_340] : memref<15x15x128xf32, #tpu.memory_space<vmem>>, vector<1x15x128xf32>
    %462 = vector.shape_cast %461 : vector<1x15x128xf32> to vector<15x128xf32>
    %463 = vector.shape_cast %462 : vector<15x128xf32> to vector<1x15x128xf32>
    %464 = vector.broadcast %460 : vector<4x1x128xf32> to vector<4x15x128xf32>
    %465 = vector.broadcast %463 : vector<1x15x128xf32> to vector<4x15x128xf32>
    %466 = arith.mulf %464, %465 : vector<4x15x128xf32>
    %467 = arith.addf %459, %466 : vector<4x15x128xf32>
    %468 = vector.shape_cast %388 : vector<4x128xf32> to vector<4x1x128xf32>
    %c9 = arith.constant 9 : index
    %c0_341 = arith.constant 0 : index
    %c0_342 = arith.constant 0 : index
    %469 = vector.load %arg8[%c9, %c0_341, %c0_342] : memref<15x15x128xf32, #tpu.memory_space<vmem>>, vector<1x15x128xf32>
    %470 = vector.shape_cast %469 : vector<1x15x128xf32> to vector<15x128xf32>
    %471 = vector.shape_cast %470 : vector<15x128xf32> to vector<1x15x128xf32>
    %472 = vector.broadcast %468 : vector<4x1x128xf32> to vector<4x15x128xf32>
    %473 = vector.broadcast %471 : vector<1x15x128xf32> to vector<4x15x128xf32>
    %474 = arith.mulf %472, %473 : vector<4x15x128xf32>
    %475 = arith.addf %467, %474 : vector<4x15x128xf32>
    %c1_343 = arith.constant 1 : index
    %c0_344 = arith.constant 0 : index
    %c0_345 = arith.constant 0 : index
    %c0_346 = arith.constant 0 : index
    %476 = vector.load %arg19[%c1_343, %c0_344, %c0_345, %c0_346] : memref<3x4x15x128xf32, #tpu.memory_space<vmem>>, vector<1x4x15x128xf32>
    %477 = vector.shape_cast %476 : vector<1x4x15x128xf32> to vector<4x15x128xf32>
    %478 = vector.shape_cast %475 : vector<4x15x128xf32> to vector<1x4x15x128xf32>
    tpu.vector_store %arg19[%c1_343, %c0_344, %c0_345, %c0_346], %478 {strides = array<i32>} : memref<3x4x15x128xf32, #tpu.memory_space<vmem>>, vector<1x4x15x128xf32>,
    %479 = vector.shape_cast %380 : vector<4x128xf32> to vector<4x1x128xf32>
    %c10 = arith.constant 10 : index
    %c0_347 = arith.constant 0 : index
    %c0_348 = arith.constant 0 : index
    %480 = vector.load %arg8[%c10, %c0_347, %c0_348] : memref<15x15x128xf32, #tpu.memory_space<vmem>>, vector<1x15x128xf32>
    %481 = vector.shape_cast %480 : vector<1x15x128xf32> to vector<15x128xf32>
    %482 = vector.shape_cast %481 : vector<15x128xf32> to vector<1x15x128xf32>
    %483 = vector.broadcast %479 : vector<4x1x128xf32> to vector<4x15x128xf32>
    %484 = vector.broadcast %482 : vector<1x15x128xf32> to vector<4x15x128xf32>
    %485 = arith.mulf %483, %484 : vector<4x15x128xf32>
    %486 = vector.shape_cast %382 : vector<4x128xf32> to vector<4x1x128xf32>
    %c11 = arith.constant 11 : index
    %c0_349 = arith.constant 0 : index
    %c0_350 = arith.constant 0 : index
    %487 = vector.load %arg8[%c11, %c0_349, %c0_350] : memref<15x15x128xf32, #tpu.memory_space<vmem>>, vector<1x15x128xf32>
    %488 = vector.shape_cast %487 : vector<1x15x128xf32> to vector<15x128xf32>
    %489 = vector.shape_cast %488 : vector<15x128xf32> to vector<1x15x128xf32>
    %490 = vector.broadcast %486 : vector<4x1x128xf32> to vector<4x15x128xf32>
    %491 = vector.broadcast %489 : vector<1x15x128xf32> to vector<4x15x128xf32>
    %492 = arith.mulf %490, %491 : vector<4x15x128xf32>
    %493 = arith.addf %485, %492 : vector<4x15x128xf32>
    %494 = vector.shape_cast %384 : vector<4x128xf32> to vector<4x1x128xf32>
    %c12_351 = arith.constant 12 : index
    %c0_352 = arith.constant 0 : index
    %c0_353 = arith.constant 0 : index
    %495 = vector.load %arg8[%c12_351, %c0_352, %c0_353] : memref<15x15x128xf32, #tpu.memory_space<vmem>>, vector<1x15x128xf32>
    %496 = vector.shape_cast %495 : vector<1x15x128xf32> to vector<15x128xf32>
    %497 = vector.shape_cast %496 : vector<15x128xf32> to vector<1x15x128xf32>
    %498 = vector.broadcast %494 : vector<4x1x128xf32> to vector<4x15x128xf32>
    %499 = vector.broadcast %497 : vector<1x15x128xf32> to vector<4x15x128xf32>
    %500 = arith.mulf %498, %499 : vector<4x15x128xf32>
    %501 = arith.addf %493, %500 : vector<4x15x128xf32>
    %502 = vector.shape_cast %386 : vector<4x128xf32> to vector<4x1x128xf32>
    %c13 = arith.constant 13 : index
    %c0_354 = arith.constant 0 : index
    %c0_355 = arith.constant 0 : index
    %503 = vector.load %arg8[%c13, %c0_354, %c0_355] : memref<15x15x128xf32, #tpu.memory_space<vmem>>, vector<1x15x128xf32>
    %504 = vector.shape_cast %503 : vector<1x15x128xf32> to vector<15x128xf32>
    %505 = vector.shape_cast %504 : vector<15x128xf32> to vector<1x15x128xf32>
    %506 = vector.broadcast %502 : vector<4x1x128xf32> to vector<4x15x128xf32>
    %507 = vector.broadcast %505 : vector<1x15x128xf32> to vector<4x15x128xf32>
    %508 = arith.mulf %506, %507 : vector<4x15x128xf32>
    %509 = arith.addf %501, %508 : vector<4x15x128xf32>
    %510 = vector.shape_cast %388 : vector<4x128xf32> to vector<4x1x128xf32>
    %c14 = arith.constant 14 : index
    %c0_356 = arith.constant 0 : index
    %c0_357 = arith.constant 0 : index
    %511 = vector.load %arg8[%c14, %c0_356, %c0_357] : memref<15x15x128xf32, #tpu.memory_space<vmem>>, vector<1x15x128xf32>
    %512 = vector.shape_cast %511 : vector<1x15x128xf32> to vector<15x128xf32>
    %513 = vector.shape_cast %512 : vector<15x128xf32> to vector<1x15x128xf32>
    %514 = vector.broadcast %510 : vector<4x1x128xf32> to vector<4x15x128xf32>
    %515 = vector.broadcast %513 : vector<1x15x128xf32> to vector<4x15x128xf32>
    %516 = arith.mulf %514, %515 : vector<4x15x128xf32>
    %517 = arith.addf %509, %516 : vector<4x15x128xf32>
    %c2_358 = arith.constant 2 : index
    %c0_359 = arith.constant 0 : index
    %c0_360 = arith.constant 0 : index
    %c0_361 = arith.constant 0 : index
    %518 = vector.load %arg19[%c2_358, %c0_359, %c0_360, %c0_361] : memref<3x4x15x128xf32, #tpu.memory_space<vmem>>, vector<1x4x15x128xf32>
    %519 = vector.shape_cast %518 : vector<1x4x15x128xf32> to vector<4x15x128xf32>
    %520 = vector.shape_cast %517 : vector<4x15x128xf32> to vector<1x4x15x128xf32>
    tpu.vector_store %arg19[%c2_358, %c0_359, %c0_360, %c0_361], %520 {strides = array<i32>} : memref<3x4x15x128xf32, #tpu.memory_space<vmem>>, vector<1x4x15x128xf32>,
    %521 = vector.extract_strided_slice %390 {offsets = [0, 0], sizes = [1, 128], strides = [1, 1]} : vector<4x128xf32> to vector<1x128xf32>
    %522 = vector.shape_cast %521 : vector<1x128xf32> to vector<1x1x128xf32>
    %c0_362 = arith.constant 0 : index
    %c0_363 = arith.constant 0 : index
    %c0_364 = arith.constant 0 : index
    %c0_365 = arith.constant 0 : index
    %523 = vector.load %arg19[%c0_362, %c0_363, %c0_364, %c0_365] : memref<3x4x15x128xf32, #tpu.memory_space<vmem>>, vector<1x4x15x128xf32>
    %524 = vector.shape_cast %523 : vector<1x4x15x128xf32> to vector<4x15x128xf32>
    %525 = vector.broadcast %522 : vector<1x1x128xf32> to vector<4x15x128xf32>
    %526 = arith.mulf %525, %524 : vector<4x15x128xf32>
    %527 = vector.extract_strided_slice %392 {offsets = [0, 0], sizes = [1, 128], strides = [1, 1]} : vector<4x128xf32> to vector<1x128xf32>
    %528 = vector.shape_cast %527 : vector<1x128xf32> to vector<1x1x128xf32>
    %c1_366 = arith.constant 1 : index
    %c0_367 = arith.constant 0 : index
    %c0_368 = arith.constant 0 : index
    %c0_369 = arith.constant 0 : index
    %529 = vector.load %arg19[%c1_366, %c0_367, %c0_368, %c0_369] : memref<3x4x15x128xf32, #tpu.memory_space<vmem>>, vector<1x4x15x128xf32>
    %530 = vector.shape_cast %529 : vector<1x4x15x128xf32> to vector<4x15x128xf32>
    %531 = vector.broadcast %528 : vector<1x1x128xf32> to vector<4x15x128xf32>
    %532 = arith.mulf %531, %530 : vector<4x15x128xf32>
    %533 = arith.addf %526, %532 : vector<4x15x128xf32>
    %534 = vector.extract_strided_slice %394 {offsets = [0, 0], sizes = [1, 128], strides = [1, 1]} : vector<4x128xf32> to vector<1x128xf32>
    %535 = vector.shape_cast %534 : vector<1x128xf32> to vector<1x1x128xf32>
    %c2_370 = arith.constant 2 : index
    %c0_371 = arith.constant 0 : index
    %c0_372 = arith.constant 0 : index
    %c0_373 = arith.constant 0 : index
    %536 = vector.load %arg19[%c2_370, %c0_371, %c0_372, %c0_373] : memref<3x4x15x128xf32, #tpu.memory_space<vmem>>, vector<1x4x15x128xf32>
    %537 = vector.shape_cast %536 : vector<1x4x15x128xf32> to vector<4x15x128xf32>
    %538 = vector.broadcast %535 : vector<1x1x128xf32> to vector<4x15x128xf32>
    %539 = arith.mulf %538, %537 : vector<4x15x128xf32>
    %540 = arith.addf %533, %539 : vector<4x15x128xf32>
    %541 = vector.extract_strided_slice %540 {offsets = [0, 0, 0], sizes = [4, 3, 128], strides = [1, 1, 1]} : vector<4x15x128xf32> to vector<4x3x128xf32>
    %c32 = arith.constant 32 : index
    %c0_374 = arith.constant 0 : index
    %c0_375 = arith.constant 0 : index
    %542 = vector.load %arg11[%c32, %c0_374, %c0_375] : memref<64x3x128xf32, #tpu.memory_space<vmem>>, vector<4x3x128xf32>
    tpu.vector_store %arg11[%c32, %c0_374, %c0_375], %541 {strides = array<i32>} : memref<64x3x128xf32, #tpu.memory_space<vmem>>, vector<4x3x128xf32>,
    %543 = vector.extract_strided_slice %540 {offsets = [0, 3, 0], sizes = [4, 5, 128], strides = [1, 1, 1]} : vector<4x15x128xf32> to vector<4x5x128xf32>
    %c32_376 = arith.constant 32 : index
    %c0_377 = arith.constant 0 : index
    %c0_378 = arith.constant 0 : index
    %544 = vector.load %arg12[%c32_376, %c0_377, %c0_378] : memref<64x5x128xf32, #tpu.memory_space<vmem>>, vector<4x5x128xf32>
    tpu.vector_store %arg12[%c32_376, %c0_377, %c0_378], %543 {strides = array<i32>} : memref<64x5x128xf32, #tpu.memory_space<vmem>>, vector<4x5x128xf32>,
    %545 = vector.extract_strided_slice %540 {offsets = [0, 8, 0], sizes = [4, 7, 128], strides = [1, 1, 1]} : vector<4x15x128xf32> to vector<4x7x128xf32>
    %c0_379 = arith.constant 0 : index
    %c0_380 = arith.constant 0 : index
    %c0_381 = arith.constant 0 : index
    %546 = vector.load %arg13[%c0_379, %c0_380, %c0_381] : memref<32x7x128xf32, #tpu.memory_space<vmem>>, vector<4x7x128xf32>
    tpu.vector_store %arg13[%c0_379, %c0_380, %c0_381], %545 {strides = array<i32>} : memref<32x7x128xf32, #tpu.memory_space<vmem>>, vector<4x7x128xf32>,
    %547 = vector.extract_strided_slice %390 {offsets = [1, 0], sizes = [1, 128], strides = [1, 1]} : vector<4x128xf32> to vector<1x128xf32>
    %548 = vector.shape_cast %547 : vector<1x128xf32> to vector<1x1x128xf32>
    %c0_382 = arith.constant 0 : index
    %c0_383 = arith.constant 0 : index
    %c0_384 = arith.constant 0 : index
    %c0_385 = arith.constant 0 : index
    %549 = vector.load %arg19[%c0_382, %c0_383, %c0_384, %c0_385] : memref<3x4x15x128xf32, #tpu.memory_space<vmem>>, vector<1x4x15x128xf32>
    %550 = vector.shape_cast %549 : vector<1x4x15x128xf32> to vector<4x15x128xf32>
    %551 = vector.broadcast %548 : vector<1x1x128xf32> to vector<4x15x128xf32>
    %552 = arith.mulf %551, %550 : vector<4x15x128xf32>
    %553 = vector.extract_strided_slice %392 {offsets = [1, 0], sizes = [1, 128], strides = [1, 1]} : vector<4x128xf32> to vector<1x128xf32>
    %554 = vector.shape_cast %553 : vector<1x128xf32> to vector<1x1x128xf32>
    %c1_386 = arith.constant 1 : index
    %c0_387 = arith.constant 0 : index
    %c0_388 = arith.constant 0 : index
    %c0_389 = arith.constant 0 : index
    %555 = vector.load %arg19[%c1_386, %c0_387, %c0_388, %c0_389] : memref<3x4x15x128xf32, #tpu.memory_space<vmem>>, vector<1x4x15x128xf32>
    %556 = vector.shape_cast %555 : vector<1x4x15x128xf32> to vector<4x15x128xf32>
    %557 = vector.broadcast %554 : vector<1x1x128xf32> to vector<4x15x128xf32>
    %558 = arith.mulf %557, %556 : vector<4x15x128xf32>
    %559 = arith.addf %552, %558 : vector<4x15x128xf32>
    %560 = vector.extract_strided_slice %394 {offsets = [1, 0], sizes = [1, 128], strides = [1, 1]} : vector<4x128xf32> to vector<1x128xf32>
    %561 = vector.shape_cast %560 : vector<1x128xf32> to vector<1x1x128xf32>
    %c2_390 = arith.constant 2 : index
    %c0_391 = arith.constant 0 : index
    %c0_392 = arith.constant 0 : index
    %c0_393 = arith.constant 0 : index
    %562 = vector.load %arg19[%c2_390, %c0_391, %c0_392, %c0_393] : memref<3x4x15x128xf32, #tpu.memory_space<vmem>>, vector<1x4x15x128xf32>
    %563 = vector.shape_cast %562 : vector<1x4x15x128xf32> to vector<4x15x128xf32>
    %564 = vector.broadcast %561 : vector<1x1x128xf32> to vector<4x15x128xf32>
    %565 = arith.mulf %564, %563 : vector<4x15x128xf32>
    %566 = arith.addf %559, %565 : vector<4x15x128xf32>
    %567 = vector.extract_strided_slice %566 {offsets = [0, 0, 0], sizes = [4, 3, 128], strides = [1, 1, 1]} : vector<4x15x128xf32> to vector<4x3x128xf32>
    %c36 = arith.constant 36 : index
    %c0_394 = arith.constant 0 : index
    %c0_395 = arith.constant 0 : index
    %568 = vector.load %arg11[%c36, %c0_394, %c0_395] : memref<64x3x128xf32, #tpu.memory_space<vmem>>, vector<4x3x128xf32>
    tpu.vector_store %arg11[%c36, %c0_394, %c0_395], %567 {strides = array<i32>} : memref<64x3x128xf32, #tpu.memory_space<vmem>>, vector<4x3x128xf32>,
    %569 = vector.extract_strided_slice %566 {offsets = [0, 3, 0], sizes = [4, 5, 128], strides = [1, 1, 1]} : vector<4x15x128xf32> to vector<4x5x128xf32>
    %c36_396 = arith.constant 36 : index
    %c0_397 = arith.constant 0 : index
    %c0_398 = arith.constant 0 : index
    %570 = vector.load %arg12[%c36_396, %c0_397, %c0_398] : memref<64x5x128xf32, #tpu.memory_space<vmem>>, vector<4x5x128xf32>
    tpu.vector_store %arg12[%c36_396, %c0_397, %c0_398], %569 {strides = array<i32>} : memref<64x5x128xf32, #tpu.memory_space<vmem>>, vector<4x5x128xf32>,
    %571 = vector.extract_strided_slice %566 {offsets = [0, 8, 0], sizes = [4, 7, 128], strides = [1, 1, 1]} : vector<4x15x128xf32> to vector<4x7x128xf32>
    %c4_399 = arith.constant 4 : index
    %c0_400 = arith.constant 0 : index
    %c0_401 = arith.constant 0 : index
    %572 = vector.load %arg13[%c4_399, %c0_400, %c0_401] : memref<32x7x128xf32, #tpu.memory_space<vmem>>, vector<4x7x128xf32>
    tpu.vector_store %arg13[%c4_399, %c0_400, %c0_401], %571 {strides = array<i32>} : memref<32x7x128xf32, #tpu.memory_space<vmem>>, vector<4x7x128xf32>,
    %573 = vector.extract_strided_slice %390 {offsets = [2, 0], sizes = [1, 128], strides = [1, 1]} : vector<4x128xf32> to vector<1x128xf32>
    %574 = vector.shape_cast %573 : vector<1x128xf32> to vector<1x1x128xf32>
    %c0_402 = arith.constant 0 : index
    %c0_403 = arith.constant 0 : index
    %c0_404 = arith.constant 0 : index
    %c0_405 = arith.constant 0 : index
    %575 = vector.load %arg19[%c0_402, %c0_403, %c0_404, %c0_405] : memref<3x4x15x128xf32, #tpu.memory_space<vmem>>, vector<1x4x15x128xf32>
    %576 = vector.shape_cast %575 : vector<1x4x15x128xf32> to vector<4x15x128xf32>
    %577 = vector.broadcast %574 : vector<1x1x128xf32> to vector<4x15x128xf32>
    %578 = arith.mulf %577, %576 : vector<4x15x128xf32>
    %579 = vector.extract_strided_slice %392 {offsets = [2, 0], sizes = [1, 128], strides = [1, 1]} : vector<4x128xf32> to vector<1x128xf32>
    %580 = vector.shape_cast %579 : vector<1x128xf32> to vector<1x1x128xf32>
    %c1_406 = arith.constant 1 : index
    %c0_407 = arith.constant 0 : index
    %c0_408 = arith.constant 0 : index
    %c0_409 = arith.constant 0 : index
    %581 = vector.load %arg19[%c1_406, %c0_407, %c0_408, %c0_409] : memref<3x4x15x128xf32, #tpu.memory_space<vmem>>, vector<1x4x15x128xf32>
    %582 = vector.shape_cast %581 : vector<1x4x15x128xf32> to vector<4x15x128xf32>
    %583 = vector.broadcast %580 : vector<1x1x128xf32> to vector<4x15x128xf32>
    %584 = arith.mulf %583, %582 : vector<4x15x128xf32>
    %585 = arith.addf %578, %584 : vector<4x15x128xf32>
    %586 = vector.extract_strided_slice %394 {offsets = [2, 0], sizes = [1, 128], strides = [1, 1]} : vector<4x128xf32> to vector<1x128xf32>
    %587 = vector.shape_cast %586 : vector<1x128xf32> to vector<1x1x128xf32>
    %c2_410 = arith.constant 2 : index
    %c0_411 = arith.constant 0 : index
    %c0_412 = arith.constant 0 : index
    %c0_413 = arith.constant 0 : index
    %588 = vector.load %arg19[%c2_410, %c0_411, %c0_412, %c0_413] : memref<3x4x15x128xf32, #tpu.memory_space<vmem>>, vector<1x4x15x128xf32>
    %589 = vector.shape_cast %588 : vector<1x4x15x128xf32> to vector<4x15x128xf32>
    %590 = vector.broadcast %587 : vector<1x1x128xf32> to vector<4x15x128xf32>
    %591 = arith.mulf %590, %589 : vector<4x15x128xf32>
    %592 = arith.addf %585, %591 : vector<4x15x128xf32>
    %593 = vector.extract_strided_slice %592 {offsets = [0, 0, 0], sizes = [4, 3, 128], strides = [1, 1, 1]} : vector<4x15x128xf32> to vector<4x3x128xf32>
    %c40 = arith.constant 40 : index
    %c0_414 = arith.constant 0 : index
    %c0_415 = arith.constant 0 : index
    %594 = vector.load %arg11[%c40, %c0_414, %c0_415] : memref<64x3x128xf32, #tpu.memory_space<vmem>>, vector<4x3x128xf32>
    tpu.vector_store %arg11[%c40, %c0_414, %c0_415], %593 {strides = array<i32>} : memref<64x3x128xf32, #tpu.memory_space<vmem>>, vector<4x3x128xf32>,
    %595 = vector.extract_strided_slice %592 {offsets = [0, 3, 0], sizes = [4, 5, 128], strides = [1, 1, 1]} : vector<4x15x128xf32> to vector<4x5x128xf32>
    %c40_416 = arith.constant 40 : index
    %c0_417 = arith.constant 0 : index
    %c0_418 = arith.constant 0 : index
    %596 = vector.load %arg12[%c40_416, %c0_417, %c0_418] : memref<64x5x128xf32, #tpu.memory_space<vmem>>, vector<4x5x128xf32>
    tpu.vector_store %arg12[%c40_416, %c0_417, %c0_418], %595 {strides = array<i32>} : memref<64x5x128xf32, #tpu.memory_space<vmem>>, vector<4x5x128xf32>,
    %597 = vector.extract_strided_slice %592 {offsets = [0, 8, 0], sizes = [4, 7, 128], strides = [1, 1, 1]} : vector<4x15x128xf32> to vector<4x7x128xf32>
    %c8_419 = arith.constant 8 : index
    %c0_420 = arith.constant 0 : index
    %c0_421 = arith.constant 0 : index
    %598 = vector.load %arg13[%c8_419, %c0_420, %c0_421] : memref<32x7x128xf32, #tpu.memory_space<vmem>>, vector<4x7x128xf32>
    tpu.vector_store %arg13[%c8_419, %c0_420, %c0_421], %597 {strides = array<i32>} : memref<32x7x128xf32, #tpu.memory_space<vmem>>, vector<4x7x128xf32>,
    %599 = vector.extract_strided_slice %390 {offsets = [3, 0], sizes = [1, 128], strides = [1, 1]} : vector<4x128xf32> to vector<1x128xf32>
    %600 = vector.shape_cast %599 : vector<1x128xf32> to vector<1x1x128xf32>
    %c0_422 = arith.constant 0 : index
    %c0_423 = arith.constant 0 : index
    %c0_424 = arith.constant 0 : index
    %c0_425 = arith.constant 0 : index
    %601 = vector.load %arg19[%c0_422, %c0_423, %c0_424, %c0_425] : memref<3x4x15x128xf32, #tpu.memory_space<vmem>>, vector<1x4x15x128xf32>
    %602 = vector.shape_cast %601 : vector<1x4x15x128xf32> to vector<4x15x128xf32>
    %603 = vector.broadcast %600 : vector<1x1x128xf32> to vector<4x15x128xf32>
    %604 = arith.mulf %603, %602 : vector<4x15x128xf32>
    %605 = vector.extract_strided_slice %392 {offsets = [3, 0], sizes = [1, 128], strides = [1, 1]} : vector<4x128xf32> to vector<1x128xf32>
    %606 = vector.shape_cast %605 : vector<1x128xf32> to vector<1x1x128xf32>
    %c1_426 = arith.constant 1 : index
    %c0_427 = arith.constant 0 : index
    %c0_428 = arith.constant 0 : index
    %c0_429 = arith.constant 0 : index
    %607 = vector.load %arg19[%c1_426, %c0_427, %c0_428, %c0_429] : memref<3x4x15x128xf32, #tpu.memory_space<vmem>>, vector<1x4x15x128xf32>
    %608 = vector.shape_cast %607 : vector<1x4x15x128xf32> to vector<4x15x128xf32>
    %609 = vector.broadcast %606 : vector<1x1x128xf32> to vector<4x15x128xf32>
    %610 = arith.mulf %609, %608 : vector<4x15x128xf32>
    %611 = arith.addf %604, %610 : vector<4x15x128xf32>
    %612 = vector.extract_strided_slice %394 {offsets = [3, 0], sizes = [1, 128], strides = [1, 1]} : vector<4x128xf32> to vector<1x128xf32>
    %613 = vector.shape_cast %612 : vector<1x128xf32> to vector<1x1x128xf32>
    %c2_430 = arith.constant 2 : index
    %c0_431 = arith.constant 0 : index
    %c0_432 = arith.constant 0 : index
    %c0_433 = arith.constant 0 : index
    %614 = vector.load %arg19[%c2_430, %c0_431, %c0_432, %c0_433] : memref<3x4x15x128xf32, #tpu.memory_space<vmem>>, vector<1x4x15x128xf32>
    %615 = vector.shape_cast %614 : vector<1x4x15x128xf32> to vector<4x15x128xf32>
    %616 = vector.broadcast %613 : vector<1x1x128xf32> to vector<4x15x128xf32>
    %617 = arith.mulf %616, %615 : vector<4x15x128xf32>
    %618 = arith.addf %611, %617 : vector<4x15x128xf32>
    %619 = vector.extract_strided_slice %618 {offsets = [0, 0, 0], sizes = [4, 3, 128], strides = [1, 1, 1]} : vector<4x15x128xf32> to vector<4x3x128xf32>
    %c44 = arith.constant 44 : index
    %c0_434 = arith.constant 0 : index
    %c0_435 = arith.constant 0 : index
    %620 = vector.load %arg11[%c44, %c0_434, %c0_435] : memref<64x3x128xf32, #tpu.memory_space<vmem>>, vector<4x3x128xf32>
    tpu.vector_store %arg11[%c44, %c0_434, %c0_435], %619 {strides = array<i32>} : memref<64x3x128xf32, #tpu.memory_space<vmem>>, vector<4x3x128xf32>,
    %621 = vector.extract_strided_slice %618 {offsets = [0, 3, 0], sizes = [4, 5, 128], strides = [1, 1, 1]} : vector<4x15x128xf32> to vector<4x5x128xf32>
    %c44_436 = arith.constant 44 : index
    %c0_437 = arith.constant 0 : index
    %c0_438 = arith.constant 0 : index
    %622 = vector.load %arg12[%c44_436, %c0_437, %c0_438] : memref<64x5x128xf32, #tpu.memory_space<vmem>>, vector<4x5x128xf32>
    tpu.vector_store %arg12[%c44_436, %c0_437, %c0_438], %621 {strides = array<i32>} : memref<64x5x128xf32, #tpu.memory_space<vmem>>, vector<4x5x128xf32>,
    %623 = vector.extract_strided_slice %618 {offsets = [0, 8, 0], sizes = [4, 7, 128], strides = [1, 1, 1]} : vector<4x15x128xf32> to vector<4x7x128xf32>
    %c12_439 = arith.constant 12 : index
    %c0_440 = arith.constant 0 : index
    %c0_441 = arith.constant 0 : index
    %624 = vector.load %arg13[%c12_439, %c0_440, %c0_441] : memref<32x7x128xf32, #tpu.memory_space<vmem>>, vector<4x7x128xf32>
    tpu.vector_store %arg13[%c12_439, %c0_440, %c0_441], %623 {strides = array<i32>} : memref<32x7x128xf32, #tpu.memory_space<vmem>>, vector<4x7x128xf32>,
    %c0_442 = arith.constant 0 : index
    %c0_443 = arith.constant 0 : index
    %c0_444 = arith.constant 0 : index
    %625 = vector.load %arg3[%c0_442, %c0_443, %c0_444] : memref<5x4x128xf32, #tpu.memory_space<vmem>>, vector<1x4x128xf32>
    %626 = vector.shape_cast %625 : vector<1x4x128xf32> to vector<4x128xf32>
    %c1_445 = arith.constant 1 : index
    %c0_446 = arith.constant 0 : index
    %c0_447 = arith.constant 0 : index
    %627 = vector.load %arg3[%c1_445, %c0_446, %c0_447] : memref<5x4x128xf32, #tpu.memory_space<vmem>>, vector<1x4x128xf32>
    %628 = vector.shape_cast %627 : vector<1x4x128xf32> to vector<4x128xf32>
    %c2_448 = arith.constant 2 : index
    %c0_449 = arith.constant 0 : index
    %c0_450 = arith.constant 0 : index
    %629 = vector.load %arg3[%c2_448, %c0_449, %c0_450] : memref<5x4x128xf32, #tpu.memory_space<vmem>>, vector<1x4x128xf32>
    %630 = vector.shape_cast %629 : vector<1x4x128xf32> to vector<4x128xf32>
    %c3_451 = arith.constant 3 : index
    %c0_452 = arith.constant 0 : index
    %c0_453 = arith.constant 0 : index
    %631 = vector.load %arg3[%c3_451, %c0_452, %c0_453] : memref<5x4x128xf32, #tpu.memory_space<vmem>>, vector<1x4x128xf32>
    %632 = vector.shape_cast %631 : vector<1x4x128xf32> to vector<4x128xf32>
    %c4_454 = arith.constant 4 : index
    %c0_455 = arith.constant 0 : index
    %c0_456 = arith.constant 0 : index
    %633 = vector.load %arg3[%c4_454, %c0_455, %c0_456] : memref<5x4x128xf32, #tpu.memory_space<vmem>>, vector<1x4x128xf32>
    %634 = vector.shape_cast %633 : vector<1x4x128xf32> to vector<4x128xf32>
    %c0_457 = arith.constant 0 : index
    %c0_458 = arith.constant 0 : index
    %c0_459 = arith.constant 0 : index
    %635 = vector.load %arg3[%c0_457, %c0_458, %c0_459] : memref<5x4x128xf32, #tpu.memory_space<vmem>>, vector<1x4x128xf32>
    %636 = vector.shape_cast %635 : vector<1x4x128xf32> to vector<4x128xf32>
    %c1_460 = arith.constant 1 : index
    %c0_461 = arith.constant 0 : index
    %c0_462 = arith.constant 0 : index
    %637 = vector.load %arg3[%c1_460, %c0_461, %c0_462] : memref<5x4x128xf32, #tpu.memory_space<vmem>>, vector<1x4x128xf32>
    %638 = vector.shape_cast %637 : vector<1x4x128xf32> to vector<4x128xf32>
    %c2_463 = arith.constant 2 : index
    %c0_464 = arith.constant 0 : index
    %c0_465 = arith.constant 0 : index
    %639 = vector.load %arg3[%c2_463, %c0_464, %c0_465] : memref<5x4x128xf32, #tpu.memory_space<vmem>>, vector<1x4x128xf32>
    %640 = vector.shape_cast %639 : vector<1x4x128xf32> to vector<4x128xf32>
    %c3_466 = arith.constant 3 : index
    %c0_467 = arith.constant 0 : index
    %c0_468 = arith.constant 0 : index
    %641 = vector.load %arg3[%c3_466, %c0_467, %c0_468] : memref<5x4x128xf32, #tpu.memory_space<vmem>>, vector<1x4x128xf32>
    %642 = vector.shape_cast %641 : vector<1x4x128xf32> to vector<4x128xf32>
    %c4_469 = arith.constant 4 : index
    %c0_470 = arith.constant 0 : index
    %c0_471 = arith.constant 0 : index
    %643 = vector.load %arg3[%c4_469, %c0_470, %c0_471] : memref<5x4x128xf32, #tpu.memory_space<vmem>>, vector<1x4x128xf32>
    %644 = vector.shape_cast %643 : vector<1x4x128xf32> to vector<4x128xf32>
    %645 = vector.shape_cast %626 : vector<4x128xf32> to vector<4x1x128xf32>
    %c0_472 = arith.constant 0 : index
    %c0_473 = arith.constant 0 : index
    %c0_474 = arith.constant 0 : index
    %646 = vector.load %arg9[%c0_472, %c0_473, %c0_474] : memref<25x25x128xf32, #tpu.memory_space<vmem>>, vector<1x25x128xf32>
    %647 = vector.shape_cast %646 : vector<1x25x128xf32> to vector<25x128xf32>
    %648 = vector.shape_cast %647 : vector<25x128xf32> to vector<1x25x128xf32>
    %649 = vector.broadcast %645 : vector<4x1x128xf32> to vector<4x25x128xf32>
    %650 = vector.broadcast %648 : vector<1x25x128xf32> to vector<4x25x128xf32>
    %651 = arith.mulf %649, %650 : vector<4x25x128xf32>
    %652 = vector.shape_cast %628 : vector<4x128xf32> to vector<4x1x128xf32>
    %c1_475 = arith.constant 1 : index
    %c0_476 = arith.constant 0 : index
    %c0_477 = arith.constant 0 : index
    %653 = vector.load %arg9[%c1_475, %c0_476, %c0_477] : memref<25x25x128xf32, #tpu.memory_space<vmem>>, vector<1x25x128xf32>
    %654 = vector.shape_cast %653 : vector<1x25x128xf32> to vector<25x128xf32>
    %655 = vector.shape_cast %654 : vector<25x128xf32> to vector<1x25x128xf32>
    %656 = vector.broadcast %652 : vector<4x1x128xf32> to vector<4x25x128xf32>
    %657 = vector.broadcast %655 : vector<1x25x128xf32> to vector<4x25x128xf32>
    %658 = arith.mulf %656, %657 : vector<4x25x128xf32>
    %659 = arith.addf %651, %658 : vector<4x25x128xf32>
    %660 = vector.shape_cast %630 : vector<4x128xf32> to vector<4x1x128xf32>
    %c2_478 = arith.constant 2 : index
    %c0_479 = arith.constant 0 : index
    %c0_480 = arith.constant 0 : index
    %661 = vector.load %arg9[%c2_478, %c0_479, %c0_480] : memref<25x25x128xf32, #tpu.memory_space<vmem>>, vector<1x25x128xf32>
    %662 = vector.shape_cast %661 : vector<1x25x128xf32> to vector<25x128xf32>
    %663 = vector.shape_cast %662 : vector<25x128xf32> to vector<1x25x128xf32>
    %664 = vector.broadcast %660 : vector<4x1x128xf32> to vector<4x25x128xf32>
    %665 = vector.broadcast %663 : vector<1x25x128xf32> to vector<4x25x128xf32>
    %666 = arith.mulf %664, %665 : vector<4x25x128xf32>
    %667 = arith.addf %659, %666 : vector<4x25x128xf32>
    %668 = vector.shape_cast %632 : vector<4x128xf32> to vector<4x1x128xf32>
    %c3_481 = arith.constant 3 : index
    %c0_482 = arith.constant 0 : index
    %c0_483 = arith.constant 0 : index
    %669 = vector.load %arg9[%c3_481, %c0_482, %c0_483] : memref<25x25x128xf32, #tpu.memory_space<vmem>>, vector<1x25x128xf32>
    %670 = vector.shape_cast %669 : vector<1x25x128xf32> to vector<25x128xf32>
    %671 = vector.shape_cast %670 : vector<25x128xf32> to vector<1x25x128xf32>
    %672 = vector.broadcast %668 : vector<4x1x128xf32> to vector<4x25x128xf32>
    %673 = vector.broadcast %671 : vector<1x25x128xf32> to vector<4x25x128xf32>
    %674 = arith.mulf %672, %673 : vector<4x25x128xf32>
    %675 = arith.addf %667, %674 : vector<4x25x128xf32>
    %676 = vector.shape_cast %634 : vector<4x128xf32> to vector<4x1x128xf32>
    %c4_484 = arith.constant 4 : index
    %c0_485 = arith.constant 0 : index
    %c0_486 = arith.constant 0 : index
    %677 = vector.load %arg9[%c4_484, %c0_485, %c0_486] : memref<25x25x128xf32, #tpu.memory_space<vmem>>, vector<1x25x128xf32>
    %678 = vector.shape_cast %677 : vector<1x25x128xf32> to vector<25x128xf32>
    %679 = vector.shape_cast %678 : vector<25x128xf32> to vector<1x25x128xf32>
    %680 = vector.broadcast %676 : vector<4x1x128xf32> to vector<4x25x128xf32>
    %681 = vector.broadcast %679 : vector<1x25x128xf32> to vector<4x25x128xf32>
    %682 = arith.mulf %680, %681 : vector<4x25x128xf32>
    %683 = arith.addf %675, %682 : vector<4x25x128xf32>
    %c0_487 = arith.constant 0 : index
    %c0_488 = arith.constant 0 : index
    %c0_489 = arith.constant 0 : index
    %c0_490 = arith.constant 0 : index
    %684 = vector.load %arg20[%c0_487, %c0_488, %c0_489, %c0_490] : memref<5x4x25x128xf32, #tpu.memory_space<vmem>>, vector<1x4x25x128xf32>
    %685 = vector.shape_cast %684 : vector<1x4x25x128xf32> to vector<4x25x128xf32>
    %686 = vector.shape_cast %683 : vector<4x25x128xf32> to vector<1x4x25x128xf32>
    tpu.vector_store %arg20[%c0_487, %c0_488, %c0_489, %c0_490], %686 {strides = array<i32>} : memref<5x4x25x128xf32, #tpu.memory_space<vmem>>, vector<1x4x25x128xf32>,
    %687 = vector.shape_cast %626 : vector<4x128xf32> to vector<4x1x128xf32>
    %c5_491 = arith.constant 5 : index
    %c0_492 = arith.constant 0 : index
    %c0_493 = arith.constant 0 : index
    %688 = vector.load %arg9[%c5_491, %c0_492, %c0_493] : memref<25x25x128xf32, #tpu.memory_space<vmem>>, vector<1x25x128xf32>
    %689 = vector.shape_cast %688 : vector<1x25x128xf32> to vector<25x128xf32>
    %690 = vector.shape_cast %689 : vector<25x128xf32> to vector<1x25x128xf32>
    %691 = vector.broadcast %687 : vector<4x1x128xf32> to vector<4x25x128xf32>
    %692 = vector.broadcast %690 : vector<1x25x128xf32> to vector<4x25x128xf32>
    %693 = arith.mulf %691, %692 : vector<4x25x128xf32>
    %694 = vector.shape_cast %628 : vector<4x128xf32> to vector<4x1x128xf32>
    %c6_494 = arith.constant 6 : index
    %c0_495 = arith.constant 0 : index
    %c0_496 = arith.constant 0 : index
    %695 = vector.load %arg9[%c6_494, %c0_495, %c0_496] : memref<25x25x128xf32, #tpu.memory_space<vmem>>, vector<1x25x128xf32>
    %696 = vector.shape_cast %695 : vector<1x25x128xf32> to vector<25x128xf32>
    %697 = vector.shape_cast %696 : vector<25x128xf32> to vector<1x25x128xf32>
    %698 = vector.broadcast %694 : vector<4x1x128xf32> to vector<4x25x128xf32>
    %699 = vector.broadcast %697 : vector<1x25x128xf32> to vector<4x25x128xf32>
    %700 = arith.mulf %698, %699 : vector<4x25x128xf32>
    %701 = arith.addf %693, %700 : vector<4x25x128xf32>
    %702 = vector.shape_cast %630 : vector<4x128xf32> to vector<4x1x128xf32>
    %c7_497 = arith.constant 7 : index
    %c0_498 = arith.constant 0 : index
    %c0_499 = arith.constant 0 : index
    %703 = vector.load %arg9[%c7_497, %c0_498, %c0_499] : memref<25x25x128xf32, #tpu.memory_space<vmem>>, vector<1x25x128xf32>
    %704 = vector.shape_cast %703 : vector<1x25x128xf32> to vector<25x128xf32>
    %705 = vector.shape_cast %704 : vector<25x128xf32> to vector<1x25x128xf32>
    %706 = vector.broadcast %702 : vector<4x1x128xf32> to vector<4x25x128xf32>
    %707 = vector.broadcast %705 : vector<1x25x128xf32> to vector<4x25x128xf32>
    %708 = arith.mulf %706, %707 : vector<4x25x128xf32>
    %709 = arith.addf %701, %708 : vector<4x25x128xf32>
    %710 = vector.shape_cast %632 : vector<4x128xf32> to vector<4x1x128xf32>
    %c8_500 = arith.constant 8 : index
    %c0_501 = arith.constant 0 : index
    %c0_502 = arith.constant 0 : index
    %711 = vector.load %arg9[%c8_500, %c0_501, %c0_502] : memref<25x25x128xf32, #tpu.memory_space<vmem>>, vector<1x25x128xf32>
    %712 = vector.shape_cast %711 : vector<1x25x128xf32> to vector<25x128xf32>
    %713 = vector.shape_cast %712 : vector<25x128xf32> to vector<1x25x128xf32>
    %714 = vector.broadcast %710 : vector<4x1x128xf32> to vector<4x25x128xf32>
    %715 = vector.broadcast %713 : vector<1x25x128xf32> to vector<4x25x128xf32>
    %716 = arith.mulf %714, %715 : vector<4x25x128xf32>
    %717 = arith.addf %709, %716 : vector<4x25x128xf32>
    %718 = vector.shape_cast %634 : vector<4x128xf32> to vector<4x1x128xf32>
    %c9_503 = arith.constant 9 : index
    %c0_504 = arith.constant 0 : index
    %c0_505 = arith.constant 0 : index
    %719 = vector.load %arg9[%c9_503, %c0_504, %c0_505] : memref<25x25x128xf32, #tpu.memory_space<vmem>>, vector<1x25x128xf32>
    %720 = vector.shape_cast %719 : vector<1x25x128xf32> to vector<25x128xf32>
    %721 = vector.shape_cast %720 : vector<25x128xf32> to vector<1x25x128xf32>
    %722 = vector.broadcast %718 : vector<4x1x128xf32> to vector<4x25x128xf32>
    %723 = vector.broadcast %721 : vector<1x25x128xf32> to vector<4x25x128xf32>
    %724 = arith.mulf %722, %723 : vector<4x25x128xf32>
    %725 = arith.addf %717, %724 : vector<4x25x128xf32>
    %c1_506 = arith.constant 1 : index
    %c0_507 = arith.constant 0 : index
    %c0_508 = arith.constant 0 : index
    %c0_509 = arith.constant 0 : index
    %726 = vector.load %arg20[%c1_506, %c0_507, %c0_508, %c0_509] : memref<5x4x25x128xf32, #tpu.memory_space<vmem>>, vector<1x4x25x128xf32>
    %727 = vector.shape_cast %726 : vector<1x4x25x128xf32> to vector<4x25x128xf32>
    %728 = vector.shape_cast %725 : vector<4x25x128xf32> to vector<1x4x25x128xf32>
    tpu.vector_store %arg20[%c1_506, %c0_507, %c0_508, %c0_509], %728 {strides = array<i32>} : memref<5x4x25x128xf32, #tpu.memory_space<vmem>>, vector<1x4x25x128xf32>,
    %729 = vector.shape_cast %626 : vector<4x128xf32> to vector<4x1x128xf32>
    %c10_510 = arith.constant 10 : index
    %c0_511 = arith.constant 0 : index
    %c0_512 = arith.constant 0 : index
    %730 = vector.load %arg9[%c10_510, %c0_511, %c0_512] : memref<25x25x128xf32, #tpu.memory_space<vmem>>, vector<1x25x128xf32>
    %731 = vector.shape_cast %730 : vector<1x25x128xf32> to vector<25x128xf32>
    %732 = vector.shape_cast %731 : vector<25x128xf32> to vector<1x25x128xf32>
    %733 = vector.broadcast %729 : vector<4x1x128xf32> to vector<4x25x128xf32>
    %734 = vector.broadcast %732 : vector<1x25x128xf32> to vector<4x25x128xf32>
    %735 = arith.mulf %733, %734 : vector<4x25x128xf32>
    %736 = vector.shape_cast %628 : vector<4x128xf32> to vector<4x1x128xf32>
    %c11_513 = arith.constant 11 : index
    %c0_514 = arith.constant 0 : index
    %c0_515 = arith.constant 0 : index
    %737 = vector.load %arg9[%c11_513, %c0_514, %c0_515] : memref<25x25x128xf32, #tpu.memory_space<vmem>>, vector<1x25x128xf32>
    %738 = vector.shape_cast %737 : vector<1x25x128xf32> to vector<25x128xf32>
    %739 = vector.shape_cast %738 : vector<25x128xf32> to vector<1x25x128xf32>
    %740 = vector.broadcast %736 : vector<4x1x128xf32> to vector<4x25x128xf32>
    %741 = vector.broadcast %739 : vector<1x25x128xf32> to vector<4x25x128xf32>
    %742 = arith.mulf %740, %741 : vector<4x25x128xf32>
    %743 = arith.addf %735, %742 : vector<4x25x128xf32>
    %744 = vector.shape_cast %630 : vector<4x128xf32> to vector<4x1x128xf32>
    %c12_516 = arith.constant 12 : index
    %c0_517 = arith.constant 0 : index
    %c0_518 = arith.constant 0 : index
    %745 = vector.load %arg9[%c12_516, %c0_517, %c0_518] : memref<25x25x128xf32, #tpu.memory_space<vmem>>, vector<1x25x128xf32>
    %746 = vector.shape_cast %745 : vector<1x25x128xf32> to vector<25x128xf32>
    %747 = vector.shape_cast %746 : vector<25x128xf32> to vector<1x25x128xf32>
    %748 = vector.broadcast %744 : vector<4x1x128xf32> to vector<4x25x128xf32>
    %749 = vector.broadcast %747 : vector<1x25x128xf32> to vector<4x25x128xf32>
    %750 = arith.mulf %748, %749 : vector<4x25x128xf32>
    %751 = arith.addf %743, %750 : vector<4x25x128xf32>
    %752 = vector.shape_cast %632 : vector<4x128xf32> to vector<4x1x128xf32>
    %c13_519 = arith.constant 13 : index
    %c0_520 = arith.constant 0 : index
    %c0_521 = arith.constant 0 : index
    %753 = vector.load %arg9[%c13_519, %c0_520, %c0_521] : memref<25x25x128xf32, #tpu.memory_space<vmem>>, vector<1x25x128xf32>
    %754 = vector.shape_cast %753 : vector<1x25x128xf32> to vector<25x128xf32>
    %755 = vector.shape_cast %754 : vector<25x128xf32> to vector<1x25x128xf32>
    %756 = vector.broadcast %752 : vector<4x1x128xf32> to vector<4x25x128xf32>
    %757 = vector.broadcast %755 : vector<1x25x128xf32> to vector<4x25x128xf32>
    %758 = arith.mulf %756, %757 : vector<4x25x128xf32>
    %759 = arith.addf %751, %758 : vector<4x25x128xf32>
    %760 = vector.shape_cast %634 : vector<4x128xf32> to vector<4x1x128xf32>
    %c14_522 = arith.constant 14 : index
    %c0_523 = arith.constant 0 : index
    %c0_524 = arith.constant 0 : index
    %761 = vector.load %arg9[%c14_522, %c0_523, %c0_524] : memref<25x25x128xf32, #tpu.memory_space<vmem>>, vector<1x25x128xf32>
    %762 = vector.shape_cast %761 : vector<1x25x128xf32> to vector<25x128xf32>
    %763 = vector.shape_cast %762 : vector<25x128xf32> to vector<1x25x128xf32>
    %764 = vector.broadcast %760 : vector<4x1x128xf32> to vector<4x25x128xf32>
    %765 = vector.broadcast %763 : vector<1x25x128xf32> to vector<4x25x128xf32>
    %766 = arith.mulf %764, %765 : vector<4x25x128xf32>
    %767 = arith.addf %759, %766 : vector<4x25x128xf32>
    %c2_525 = arith.constant 2 : index
    %c0_526 = arith.constant 0 : index
    %c0_527 = arith.constant 0 : index
    %c0_528 = arith.constant 0 : index
    %768 = vector.load %arg20[%c2_525, %c0_526, %c0_527, %c0_528] : memref<5x4x25x128xf32, #tpu.memory_space<vmem>>, vector<1x4x25x128xf32>
    %769 = vector.shape_cast %768 : vector<1x4x25x128xf32> to vector<4x25x128xf32>
    %770 = vector.shape_cast %767 : vector<4x25x128xf32> to vector<1x4x25x128xf32>
    tpu.vector_store %arg20[%c2_525, %c0_526, %c0_527, %c0_528], %770 {strides = array<i32>} : memref<5x4x25x128xf32, #tpu.memory_space<vmem>>, vector<1x4x25x128xf32>,
    %771 = vector.shape_cast %626 : vector<4x128xf32> to vector<4x1x128xf32>
    %c15 = arith.constant 15 : index
    %c0_529 = arith.constant 0 : index
    %c0_530 = arith.constant 0 : index
    %772 = vector.load %arg9[%c15, %c0_529, %c0_530] : memref<25x25x128xf32, #tpu.memory_space<vmem>>, vector<1x25x128xf32>
    %773 = vector.shape_cast %772 : vector<1x25x128xf32> to vector<25x128xf32>
    %774 = vector.shape_cast %773 : vector<25x128xf32> to vector<1x25x128xf32>
    %775 = vector.broadcast %771 : vector<4x1x128xf32> to vector<4x25x128xf32>
    %776 = vector.broadcast %774 : vector<1x25x128xf32> to vector<4x25x128xf32>
    %777 = arith.mulf %775, %776 : vector<4x25x128xf32>
    %778 = vector.shape_cast %628 : vector<4x128xf32> to vector<4x1x128xf32>
    %c16_531 = arith.constant 16 : index
    %c0_532 = arith.constant 0 : index
    %c0_533 = arith.constant 0 : index
    %779 = vector.load %arg9[%c16_531, %c0_532, %c0_533] : memref<25x25x128xf32, #tpu.memory_space<vmem>>, vector<1x25x128xf32>
    %780 = vector.shape_cast %779 : vector<1x25x128xf32> to vector<25x128xf32>
    %781 = vector.shape_cast %780 : vector<25x128xf32> to vector<1x25x128xf32>
    %782 = vector.broadcast %778 : vector<4x1x128xf32> to vector<4x25x128xf32>
    %783 = vector.broadcast %781 : vector<1x25x128xf32> to vector<4x25x128xf32>
    %784 = arith.mulf %782, %783 : vector<4x25x128xf32>
    %785 = arith.addf %777, %784 : vector<4x25x128xf32>
    %786 = vector.shape_cast %630 : vector<4x128xf32> to vector<4x1x128xf32>
    %c17 = arith.constant 17 : index
    %c0_534 = arith.constant 0 : index
    %c0_535 = arith.constant 0 : index
    %787 = vector.load %arg9[%c17, %c0_534, %c0_535] : memref<25x25x128xf32, #tpu.memory_space<vmem>>, vector<1x25x128xf32>
    %788 = vector.shape_cast %787 : vector<1x25x128xf32> to vector<25x128xf32>
    %789 = vector.shape_cast %788 : vector<25x128xf32> to vector<1x25x128xf32>
    %790 = vector.broadcast %786 : vector<4x1x128xf32> to vector<4x25x128xf32>
    %791 = vector.broadcast %789 : vector<1x25x128xf32> to vector<4x25x128xf32>
    %792 = arith.mulf %790, %791 : vector<4x25x128xf32>
    %793 = arith.addf %785, %792 : vector<4x25x128xf32>
    %794 = vector.shape_cast %632 : vector<4x128xf32> to vector<4x1x128xf32>
    %c18 = arith.constant 18 : index
    %c0_536 = arith.constant 0 : index
    %c0_537 = arith.constant 0 : index
    %795 = vector.load %arg9[%c18, %c0_536, %c0_537] : memref<25x25x128xf32, #tpu.memory_space<vmem>>, vector<1x25x128xf32>
    %796 = vector.shape_cast %795 : vector<1x25x128xf32> to vector<25x128xf32>
    %797 = vector.shape_cast %796 : vector<25x128xf32> to vector<1x25x128xf32>
    %798 = vector.broadcast %794 : vector<4x1x128xf32> to vector<4x25x128xf32>
    %799 = vector.broadcast %797 : vector<1x25x128xf32> to vector<4x25x128xf32>
    %800 = arith.mulf %798, %799 : vector<4x25x128xf32>
    %801 = arith.addf %793, %800 : vector<4x25x128xf32>
    %802 = vector.shape_cast %634 : vector<4x128xf32> to vector<4x1x128xf32>
    %c19 = arith.constant 19 : index
    %c0_538 = arith.constant 0 : index
    %c0_539 = arith.constant 0 : index
    %803 = vector.load %arg9[%c19, %c0_538, %c0_539] : memref<25x25x128xf32, #tpu.memory_space<vmem>>, vector<1x25x128xf32>
    %804 = vector.shape_cast %803 : vector<1x25x128xf32> to vector<25x128xf32>
    %805 = vector.shape_cast %804 : vector<25x128xf32> to vector<1x25x128xf32>
    %806 = vector.broadcast %802 : vector<4x1x128xf32> to vector<4x25x128xf32>
    %807 = vector.broadcast %805 : vector<1x25x128xf32> to vector<4x25x128xf32>
    %808 = arith.mulf %806, %807 : vector<4x25x128xf32>
    %809 = arith.addf %801, %808 : vector<4x25x128xf32>
    %c3_540 = arith.constant 3 : index
    %c0_541 = arith.constant 0 : index
    %c0_542 = arith.constant 0 : index
    %c0_543 = arith.constant 0 : index
    %810 = vector.load %arg20[%c3_540, %c0_541, %c0_542, %c0_543] : memref<5x4x25x128xf32, #tpu.memory_space<vmem>>, vector<1x4x25x128xf32>
    %811 = vector.shape_cast %810 : vector<1x4x25x128xf32> to vector<4x25x128xf32>
    %812 = vector.shape_cast %809 : vector<4x25x128xf32> to vector<1x4x25x128xf32>
    tpu.vector_store %arg20[%c3_540, %c0_541, %c0_542, %c0_543], %812 {strides = array<i32>} : memref<5x4x25x128xf32, #tpu.memory_space<vmem>>, vector<1x4x25x128xf32>,
    %813 = vector.shape_cast %626 : vector<4x128xf32> to vector<4x1x128xf32>
    %c20_544 = arith.constant 20 : index
    %c0_545 = arith.constant 0 : index
    %c0_546 = arith.constant 0 : index
    %814 = vector.load %arg9[%c20_544, %c0_545, %c0_546] : memref<25x25x128xf32, #tpu.memory_space<vmem>>, vector<1x25x128xf32>
    %815 = vector.shape_cast %814 : vector<1x25x128xf32> to vector<25x128xf32>
    %816 = vector.shape_cast %815 : vector<25x128xf32> to vector<1x25x128xf32>
    %817 = vector.broadcast %813 : vector<4x1x128xf32> to vector<4x25x128xf32>
    %818 = vector.broadcast %816 : vector<1x25x128xf32> to vector<4x25x128xf32>
    %819 = arith.mulf %817, %818 : vector<4x25x128xf32>
    %820 = vector.shape_cast %628 : vector<4x128xf32> to vector<4x1x128xf32>
    %c21 = arith.constant 21 : index
    %c0_547 = arith.constant 0 : index
    %c0_548 = arith.constant 0 : index
    %821 = vector.load %arg9[%c21, %c0_547, %c0_548] : memref<25x25x128xf32, #tpu.memory_space<vmem>>, vector<1x25x128xf32>
    %822 = vector.shape_cast %821 : vector<1x25x128xf32> to vector<25x128xf32>
    %823 = vector.shape_cast %822 : vector<25x128xf32> to vector<1x25x128xf32>
    %824 = vector.broadcast %820 : vector<4x1x128xf32> to vector<4x25x128xf32>
    %825 = vector.broadcast %823 : vector<1x25x128xf32> to vector<4x25x128xf32>
    %826 = arith.mulf %824, %825 : vector<4x25x128xf32>
    %827 = arith.addf %819, %826 : vector<4x25x128xf32>
    %828 = vector.shape_cast %630 : vector<4x128xf32> to vector<4x1x128xf32>
    %c22 = arith.constant 22 : index
    %c0_549 = arith.constant 0 : index
    %c0_550 = arith.constant 0 : index
    %829 = vector.load %arg9[%c22, %c0_549, %c0_550] : memref<25x25x128xf32, #tpu.memory_space<vmem>>, vector<1x25x128xf32>
    %830 = vector.shape_cast %829 : vector<1x25x128xf32> to vector<25x128xf32>
    %831 = vector.shape_cast %830 : vector<25x128xf32> to vector<1x25x128xf32>
    %832 = vector.broadcast %828 : vector<4x1x128xf32> to vector<4x25x128xf32>
    %833 = vector.broadcast %831 : vector<1x25x128xf32> to vector<4x25x128xf32>
    %834 = arith.mulf %832, %833 : vector<4x25x128xf32>
    %835 = arith.addf %827, %834 : vector<4x25x128xf32>
    %836 = vector.shape_cast %632 : vector<4x128xf32> to vector<4x1x128xf32>
    %c23 = arith.constant 23 : index
    %c0_551 = arith.constant 0 : index
    %c0_552 = arith.constant 0 : index
    %837 = vector.load %arg9[%c23, %c0_551, %c0_552] : memref<25x25x128xf32, #tpu.memory_space<vmem>>, vector<1x25x128xf32>
    %838 = vector.shape_cast %837 : vector<1x25x128xf32> to vector<25x128xf32>
    %839 = vector.shape_cast %838 : vector<25x128xf32> to vector<1x25x128xf32>
    %840 = vector.broadcast %836 : vector<4x1x128xf32> to vector<4x25x128xf32>
    %841 = vector.broadcast %839 : vector<1x25x128xf32> to vector<4x25x128xf32>
    %842 = arith.mulf %840, %841 : vector<4x25x128xf32>
    %843 = arith.addf %835, %842 : vector<4x25x128xf32>
    %844 = vector.shape_cast %634 : vector<4x128xf32> to vector<4x1x128xf32>
    %c24_553 = arith.constant 24 : index
    %c0_554 = arith.constant 0 : index
    %c0_555 = arith.constant 0 : index
    %845 = vector.load %arg9[%c24_553, %c0_554, %c0_555] : memref<25x25x128xf32, #tpu.memory_space<vmem>>, vector<1x25x128xf32>
    %846 = vector.shape_cast %845 : vector<1x25x128xf32> to vector<25x128xf32>
    %847 = vector.shape_cast %846 : vector<25x128xf32> to vector<1x25x128xf32>
    %848 = vector.broadcast %844 : vector<4x1x128xf32> to vector<4x25x128xf32>
    %849 = vector.broadcast %847 : vector<1x25x128xf32> to vector<4x25x128xf32>
    %850 = arith.mulf %848, %849 : vector<4x25x128xf32>
    %851 = arith.addf %843, %850 : vector<4x25x128xf32>
    %c4_556 = arith.constant 4 : index
    %c0_557 = arith.constant 0 : index
    %c0_558 = arith.constant 0 : index
    %c0_559 = arith.constant 0 : index
    %852 = vector.load %arg20[%c4_556, %c0_557, %c0_558, %c0_559] : memref<5x4x25x128xf32, #tpu.memory_space<vmem>>, vector<1x4x25x128xf32>
    %853 = vector.shape_cast %852 : vector<1x4x25x128xf32> to vector<4x25x128xf32>
    %854 = vector.shape_cast %851 : vector<4x25x128xf32> to vector<1x4x25x128xf32>
    tpu.vector_store %arg20[%c4_556, %c0_557, %c0_558, %c0_559], %854 {strides = array<i32>} : memref<5x4x25x128xf32, #tpu.memory_space<vmem>>, vector<1x4x25x128xf32>,
    %855 = vector.extract_strided_slice %636 {offsets = [0, 0], sizes = [1, 128], strides = [1, 1]} : vector<4x128xf32> to vector<1x128xf32>
    %856 = vector.shape_cast %855 : vector<1x128xf32> to vector<1x1x128xf32>
    %c0_560 = arith.constant 0 : index
    %c0_561 = arith.constant 0 : index
    %c0_562 = arith.constant 0 : index
    %c0_563 = arith.constant 0 : index
    %857 = vector.load %arg20[%c0_560, %c0_561, %c0_562, %c0_563] : memref<5x4x25x128xf32, #tpu.memory_space<vmem>>, vector<1x4x25x128xf32>
    %858 = vector.shape_cast %857 : vector<1x4x25x128xf32> to vector<4x25x128xf32>
    %859 = vector.broadcast %856 : vector<1x1x128xf32> to vector<4x25x128xf32>
    %860 = arith.mulf %859, %858 : vector<4x25x128xf32>
    %861 = vector.extract_strided_slice %638 {offsets = [0, 0], sizes = [1, 128], strides = [1, 1]} : vector<4x128xf32> to vector<1x128xf32>
    %862 = vector.shape_cast %861 : vector<1x128xf32> to vector<1x1x128xf32>
    %c1_564 = arith.constant 1 : index
    %c0_565 = arith.constant 0 : index
    %c0_566 = arith.constant 0 : index
    %c0_567 = arith.constant 0 : index
    %863 = vector.load %arg20[%c1_564, %c0_565, %c0_566, %c0_567] : memref<5x4x25x128xf32, #tpu.memory_space<vmem>>, vector<1x4x25x128xf32>
    %864 = vector.shape_cast %863 : vector<1x4x25x128xf32> to vector<4x25x128xf32>
    %865 = vector.broadcast %862 : vector<1x1x128xf32> to vector<4x25x128xf32>
    %866 = arith.mulf %865, %864 : vector<4x25x128xf32>
    %867 = arith.addf %860, %866 : vector<4x25x128xf32>
    %868 = vector.extract_strided_slice %640 {offsets = [0, 0], sizes = [1, 128], strides = [1, 1]} : vector<4x128xf32> to vector<1x128xf32>
    %869 = vector.shape_cast %868 : vector<1x128xf32> to vector<1x1x128xf32>
    %c2_568 = arith.constant 2 : index
    %c0_569 = arith.constant 0 : index
    %c0_570 = arith.constant 0 : index
    %c0_571 = arith.constant 0 : index
    %870 = vector.load %arg20[%c2_568, %c0_569, %c0_570, %c0_571] : memref<5x4x25x128xf32, #tpu.memory_space<vmem>>, vector<1x4x25x128xf32>
    %871 = vector.shape_cast %870 : vector<1x4x25x128xf32> to vector<4x25x128xf32>
    %872 = vector.broadcast %869 : vector<1x1x128xf32> to vector<4x25x128xf32>
    %873 = arith.mulf %872, %871 : vector<4x25x128xf32>
    %874 = arith.addf %867, %873 : vector<4x25x128xf32>
    %875 = vector.extract_strided_slice %642 {offsets = [0, 0], sizes = [1, 128], strides = [1, 1]} : vector<4x128xf32> to vector<1x128xf32>
    %876 = vector.shape_cast %875 : vector<1x128xf32> to vector<1x1x128xf32>
    %c3_572 = arith.constant 3 : index
    %c0_573 = arith.constant 0 : index
    %c0_574 = arith.constant 0 : index
    %c0_575 = arith.constant 0 : index
    %877 = vector.load %arg20[%c3_572, %c0_573, %c0_574, %c0_575] : memref<5x4x25x128xf32, #tpu.memory_space<vmem>>, vector<1x4x25x128xf32>
    %878 = vector.shape_cast %877 : vector<1x4x25x128xf32> to vector<4x25x128xf32>
    %879 = vector.broadcast %876 : vector<1x1x128xf32> to vector<4x25x128xf32>
    %880 = arith.mulf %879, %878 : vector<4x25x128xf32>
    %881 = arith.addf %874, %880 : vector<4x25x128xf32>
    %882 = vector.extract_strided_slice %644 {offsets = [0, 0], sizes = [1, 128], strides = [1, 1]} : vector<4x128xf32> to vector<1x128xf32>
    %883 = vector.shape_cast %882 : vector<1x128xf32> to vector<1x1x128xf32>
    %c4_576 = arith.constant 4 : index
    %c0_577 = arith.constant 0 : index
    %c0_578 = arith.constant 0 : index
    %c0_579 = arith.constant 0 : index
    %884 = vector.load %arg20[%c4_576, %c0_577, %c0_578, %c0_579] : memref<5x4x25x128xf32, #tpu.memory_space<vmem>>, vector<1x4x25x128xf32>
    %885 = vector.shape_cast %884 : vector<1x4x25x128xf32> to vector<4x25x128xf32>
    %886 = vector.broadcast %883 : vector<1x1x128xf32> to vector<4x25x128xf32>
    %887 = arith.mulf %886, %885 : vector<4x25x128xf32>
    %888 = arith.addf %881, %887 : vector<4x25x128xf32>
    %889 = vector.extract_strided_slice %888 {offsets = [0, 0, 0], sizes = [4, 1, 128], strides = [1, 1, 1]} : vector<4x25x128xf32> to vector<4x1x128xf32>
    %c32_580 = arith.constant 32 : index
    %c0_581 = arith.constant 0 : index
    %c0_582 = arith.constant 0 : index
    %890 = vector.load %arg10[%c32_580, %c0_581, %c0_582] : memref<48x1x128xf32, #tpu.memory_space<vmem>>, vector<4x1x128xf32>
    tpu.vector_store %arg10[%c32_580, %c0_581, %c0_582], %889 {strides = array<i32>} : memref<48x1x128xf32, #tpu.memory_space<vmem>>, vector<4x1x128xf32>,
    %891 = vector.extract_strided_slice %888 {offsets = [0, 1, 0], sizes = [4, 3, 128], strides = [1, 1, 1]} : vector<4x25x128xf32> to vector<4x3x128xf32>
    %c48 = arith.constant 48 : index
    %c0_583 = arith.constant 0 : index
    %c0_584 = arith.constant 0 : index
    %892 = vector.load %arg11[%c48, %c0_583, %c0_584] : memref<64x3x128xf32, #tpu.memory_space<vmem>>, vector<4x3x128xf32>
    tpu.vector_store %arg11[%c48, %c0_583, %c0_584], %891 {strides = array<i32>} : memref<64x3x128xf32, #tpu.memory_space<vmem>>, vector<4x3x128xf32>,
    %893 = vector.extract_strided_slice %888 {offsets = [0, 4, 0], sizes = [4, 5, 128], strides = [1, 1, 1]} : vector<4x25x128xf32> to vector<4x5x128xf32>
    %c48_585 = arith.constant 48 : index
    %c0_586 = arith.constant 0 : index
    %c0_587 = arith.constant 0 : index
    %894 = vector.load %arg12[%c48_585, %c0_586, %c0_587] : memref<64x5x128xf32, #tpu.memory_space<vmem>>, vector<4x5x128xf32>
    tpu.vector_store %arg12[%c48_585, %c0_586, %c0_587], %893 {strides = array<i32>} : memref<64x5x128xf32, #tpu.memory_space<vmem>>, vector<4x5x128xf32>,
    %895 = vector.extract_strided_slice %888 {offsets = [0, 9, 0], sizes = [4, 7, 128], strides = [1, 1, 1]} : vector<4x25x128xf32> to vector<4x7x128xf32>
    %c16_588 = arith.constant 16 : index
    %c0_589 = arith.constant 0 : index
    %c0_590 = arith.constant 0 : index
    %896 = vector.load %arg13[%c16_588, %c0_589, %c0_590] : memref<32x7x128xf32, #tpu.memory_space<vmem>>, vector<4x7x128xf32>
    tpu.vector_store %arg13[%c16_588, %c0_589, %c0_590], %895 {strides = array<i32>} : memref<32x7x128xf32, #tpu.memory_space<vmem>>, vector<4x7x128xf32>,
    %897 = vector.extract_strided_slice %888 {offsets = [0, 16, 0], sizes = [4, 9, 128], strides = [1, 1, 1]} : vector<4x25x128xf32> to vector<4x9x128xf32>
    %c0_591 = arith.constant 0 : index
    %c0_592 = arith.constant 0 : index
    %c0_593 = arith.constant 0 : index
    %898 = vector.load %arg14[%c0_591, %c0_592, %c0_593] : memref<16x9x128xf32, #tpu.memory_space<vmem>>, vector<4x9x128xf32>
    tpu.vector_store %arg14[%c0_591, %c0_592, %c0_593], %897 {strides = array<i32>} : memref<16x9x128xf32, #tpu.memory_space<vmem>>, vector<4x9x128xf32>,
    %899 = vector.extract_strided_slice %636 {offsets = [1, 0], sizes = [1, 128], strides = [1, 1]} : vector<4x128xf32> to vector<1x128xf32>
    %900 = vector.shape_cast %899 : vector<1x128xf32> to vector<1x1x128xf32>
    %c0_594 = arith.constant 0 : index
    %c0_595 = arith.constant 0 : index
    %c0_596 = arith.constant 0 : index
    %c0_597 = arith.constant 0 : index
    %901 = vector.load %arg20[%c0_594, %c0_595, %c0_596, %c0_597] : memref<5x4x25x128xf32, #tpu.memory_space<vmem>>, vector<1x4x25x128xf32>
    %902 = vector.shape_cast %901 : vector<1x4x25x128xf32> to vector<4x25x128xf32>
    %903 = vector.broadcast %900 : vector<1x1x128xf32> to vector<4x25x128xf32>
    %904 = arith.mulf %903, %902 : vector<4x25x128xf32>
    %905 = vector.extract_strided_slice %638 {offsets = [1, 0], sizes = [1, 128], strides = [1, 1]} : vector<4x128xf32> to vector<1x128xf32>
    %906 = vector.shape_cast %905 : vector<1x128xf32> to vector<1x1x128xf32>
    %c1_598 = arith.constant 1 : index
    %c0_599 = arith.constant 0 : index
    %c0_600 = arith.constant 0 : index
    %c0_601 = arith.constant 0 : index
    %907 = vector.load %arg20[%c1_598, %c0_599, %c0_600, %c0_601] : memref<5x4x25x128xf32, #tpu.memory_space<vmem>>, vector<1x4x25x128xf32>
    %908 = vector.shape_cast %907 : vector<1x4x25x128xf32> to vector<4x25x128xf32>
    %909 = vector.broadcast %906 : vector<1x1x128xf32> to vector<4x25x128xf32>
    %910 = arith.mulf %909, %908 : vector<4x25x128xf32>
    %911 = arith.addf %904, %910 : vector<4x25x128xf32>
    %912 = vector.extract_strided_slice %640 {offsets = [1, 0], sizes = [1, 128], strides = [1, 1]} : vector<4x128xf32> to vector<1x128xf32>
    %913 = vector.shape_cast %912 : vector<1x128xf32> to vector<1x1x128xf32>
    %c2_602 = arith.constant 2 : index
    %c0_603 = arith.constant 0 : index
    %c0_604 = arith.constant 0 : index
    %c0_605 = arith.constant 0 : index
    %914 = vector.load %arg20[%c2_602, %c0_603, %c0_604, %c0_605] : memref<5x4x25x128xf32, #tpu.memory_space<vmem>>, vector<1x4x25x128xf32>
    %915 = vector.shape_cast %914 : vector<1x4x25x128xf32> to vector<4x25x128xf32>
    %916 = vector.broadcast %913 : vector<1x1x128xf32> to vector<4x25x128xf32>
    %917 = arith.mulf %916, %915 : vector<4x25x128xf32>
    %918 = arith.addf %911, %917 : vector<4x25x128xf32>
    %919 = vector.extract_strided_slice %642 {offsets = [1, 0], sizes = [1, 128], strides = [1, 1]} : vector<4x128xf32> to vector<1x128xf32>
    %920 = vector.shape_cast %919 : vector<1x128xf32> to vector<1x1x128xf32>
    %c3_606 = arith.constant 3 : index
    %c0_607 = arith.constant 0 : index
    %c0_608 = arith.constant 0 : index
    %c0_609 = arith.constant 0 : index
    %921 = vector.load %arg20[%c3_606, %c0_607, %c0_608, %c0_609] : memref<5x4x25x128xf32, #tpu.memory_space<vmem>>, vector<1x4x25x128xf32>
    %922 = vector.shape_cast %921 : vector<1x4x25x128xf32> to vector<4x25x128xf32>
    %923 = vector.broadcast %920 : vector<1x1x128xf32> to vector<4x25x128xf32>
    %924 = arith.mulf %923, %922 : vector<4x25x128xf32>
    %925 = arith.addf %918, %924 : vector<4x25x128xf32>
    %926 = vector.extract_strided_slice %644 {offsets = [1, 0], sizes = [1, 128], strides = [1, 1]} : vector<4x128xf32> to vector<1x128xf32>
    %927 = vector.shape_cast %926 : vector<1x128xf32> to vector<1x1x128xf32>
    %c4_610 = arith.constant 4 : index
    %c0_611 = arith.constant 0 : index
    %c0_612 = arith.constant 0 : index
    %c0_613 = arith.constant 0 : index
    %928 = vector.load %arg20[%c4_610, %c0_611, %c0_612, %c0_613] : memref<5x4x25x128xf32, #tpu.memory_space<vmem>>, vector<1x4x25x128xf32>
    %929 = vector.shape_cast %928 : vector<1x4x25x128xf32> to vector<4x25x128xf32>
    %930 = vector.broadcast %927 : vector<1x1x128xf32> to vector<4x25x128xf32>
    %931 = arith.mulf %930, %929 : vector<4x25x128xf32>
    %932 = arith.addf %925, %931 : vector<4x25x128xf32>
    %933 = vector.extract_strided_slice %932 {offsets = [0, 0, 0], sizes = [4, 1, 128], strides = [1, 1, 1]} : vector<4x25x128xf32> to vector<4x1x128xf32>
    %c36_614 = arith.constant 36 : index
    %c0_615 = arith.constant 0 : index
    %c0_616 = arith.constant 0 : index
    %934 = vector.load %arg10[%c36_614, %c0_615, %c0_616] : memref<48x1x128xf32, #tpu.memory_space<vmem>>, vector<4x1x128xf32>
    tpu.vector_store %arg10[%c36_614, %c0_615, %c0_616], %933 {strides = array<i32>} : memref<48x1x128xf32, #tpu.memory_space<vmem>>, vector<4x1x128xf32>,
    %935 = vector.extract_strided_slice %932 {offsets = [0, 1, 0], sizes = [4, 3, 128], strides = [1, 1, 1]} : vector<4x25x128xf32> to vector<4x3x128xf32>
    %c52 = arith.constant 52 : index
    %c0_617 = arith.constant 0 : index
    %c0_618 = arith.constant 0 : index
    %936 = vector.load %arg11[%c52, %c0_617, %c0_618] : memref<64x3x128xf32, #tpu.memory_space<vmem>>, vector<4x3x128xf32>
    tpu.vector_store %arg11[%c52, %c0_617, %c0_618], %935 {strides = array<i32>} : memref<64x3x128xf32, #tpu.memory_space<vmem>>, vector<4x3x128xf32>,
    %937 = vector.extract_strided_slice %932 {offsets = [0, 4, 0], sizes = [4, 5, 128], strides = [1, 1, 1]} : vector<4x25x128xf32> to vector<4x5x128xf32>
    %c52_619 = arith.constant 52 : index
    %c0_620 = arith.constant 0 : index
    %c0_621 = arith.constant 0 : index
    %938 = vector.load %arg12[%c52_619, %c0_620, %c0_621] : memref<64x5x128xf32, #tpu.memory_space<vmem>>, vector<4x5x128xf32>
    tpu.vector_store %arg12[%c52_619, %c0_620, %c0_621], %937 {strides = array<i32>} : memref<64x5x128xf32, #tpu.memory_space<vmem>>, vector<4x5x128xf32>,
    %939 = vector.extract_strided_slice %932 {offsets = [0, 9, 0], sizes = [4, 7, 128], strides = [1, 1, 1]} : vector<4x25x128xf32> to vector<4x7x128xf32>
    %c20_622 = arith.constant 20 : index
    %c0_623 = arith.constant 0 : index
    %c0_624 = arith.constant 0 : index
    %940 = vector.load %arg13[%c20_622, %c0_623, %c0_624] : memref<32x7x128xf32, #tpu.memory_space<vmem>>, vector<4x7x128xf32>
    tpu.vector_store %arg13[%c20_622, %c0_623, %c0_624], %939 {strides = array<i32>} : memref<32x7x128xf32, #tpu.memory_space<vmem>>, vector<4x7x128xf32>,
    %941 = vector.extract_strided_slice %932 {offsets = [0, 16, 0], sizes = [4, 9, 128], strides = [1, 1, 1]} : vector<4x25x128xf32> to vector<4x9x128xf32>
    %c4_625 = arith.constant 4 : index
    %c0_626 = arith.constant 0 : index
    %c0_627 = arith.constant 0 : index
    %942 = vector.load %arg14[%c4_625, %c0_626, %c0_627] : memref<16x9x128xf32, #tpu.memory_space<vmem>>, vector<4x9x128xf32>
    tpu.vector_store %arg14[%c4_625, %c0_626, %c0_627], %941 {strides = array<i32>} : memref<16x9x128xf32, #tpu.memory_space<vmem>>, vector<4x9x128xf32>,
    %943 = vector.extract_strided_slice %636 {offsets = [2, 0], sizes = [1, 128], strides = [1, 1]} : vector<4x128xf32> to vector<1x128xf32>
    %944 = vector.shape_cast %943 : vector<1x128xf32> to vector<1x1x128xf32>
    %c0_628 = arith.constant 0 : index
    %c0_629 = arith.constant 0 : index
    %c0_630 = arith.constant 0 : index
    %c0_631 = arith.constant 0 : index
    %945 = vector.load %arg20[%c0_628, %c0_629, %c0_630, %c0_631] : memref<5x4x25x128xf32, #tpu.memory_space<vmem>>, vector<1x4x25x128xf32>
    %946 = vector.shape_cast %945 : vector<1x4x25x128xf32> to vector<4x25x128xf32>
    %947 = vector.broadcast %944 : vector<1x1x128xf32> to vector<4x25x128xf32>
    %948 = arith.mulf %947, %946 : vector<4x25x128xf32>
    %949 = vector.extract_strided_slice %638 {offsets = [2, 0], sizes = [1, 128], strides = [1, 1]} : vector<4x128xf32> to vector<1x128xf32>
    %950 = vector.shape_cast %949 : vector<1x128xf32> to vector<1x1x128xf32>
    %c1_632 = arith.constant 1 : index
    %c0_633 = arith.constant 0 : index
    %c0_634 = arith.constant 0 : index
    %c0_635 = arith.constant 0 : index
    %951 = vector.load %arg20[%c1_632, %c0_633, %c0_634, %c0_635] : memref<5x4x25x128xf32, #tpu.memory_space<vmem>>, vector<1x4x25x128xf32>
    %952 = vector.shape_cast %951 : vector<1x4x25x128xf32> to vector<4x25x128xf32>
    %953 = vector.broadcast %950 : vector<1x1x128xf32> to vector<4x25x128xf32>
    %954 = arith.mulf %953, %952 : vector<4x25x128xf32>
    %955 = arith.addf %948, %954 : vector<4x25x128xf32>
    %956 = vector.extract_strided_slice %640 {offsets = [2, 0], sizes = [1, 128], strides = [1, 1]} : vector<4x128xf32> to vector<1x128xf32>
    %957 = vector.shape_cast %956 : vector<1x128xf32> to vector<1x1x128xf32>
    %c2_636 = arith.constant 2 : index
    %c0_637 = arith.constant 0 : index
    %c0_638 = arith.constant 0 : index
    %c0_639 = arith.constant 0 : index
    %958 = vector.load %arg20[%c2_636, %c0_637, %c0_638, %c0_639] : memref<5x4x25x128xf32, #tpu.memory_space<vmem>>, vector<1x4x25x128xf32>
    %959 = vector.shape_cast %958 : vector<1x4x25x128xf32> to vector<4x25x128xf32>
    %960 = vector.broadcast %957 : vector<1x1x128xf32> to vector<4x25x128xf32>
    %961 = arith.mulf %960, %959 : vector<4x25x128xf32>
    %962 = arith.addf %955, %961 : vector<4x25x128xf32>
    %963 = vector.extract_strided_slice %642 {offsets = [2, 0], sizes = [1, 128], strides = [1, 1]} : vector<4x128xf32> to vector<1x128xf32>
    %964 = vector.shape_cast %963 : vector<1x128xf32> to vector<1x1x128xf32>
    %c3_640 = arith.constant 3 : index
    %c0_641 = arith.constant 0 : index
    %c0_642 = arith.constant 0 : index
    %c0_643 = arith.constant 0 : index
    %965 = vector.load %arg20[%c3_640, %c0_641, %c0_642, %c0_643] : memref<5x4x25x128xf32, #tpu.memory_space<vmem>>, vector<1x4x25x128xf32>
    %966 = vector.shape_cast %965 : vector<1x4x25x128xf32> to vector<4x25x128xf32>
    %967 = vector.broadcast %964 : vector<1x1x128xf32> to vector<4x25x128xf32>
    %968 = arith.mulf %967, %966 : vector<4x25x128xf32>
    %969 = arith.addf %962, %968 : vector<4x25x128xf32>
    %970 = vector.extract_strided_slice %644 {offsets = [2, 0], sizes = [1, 128], strides = [1, 1]} : vector<4x128xf32> to vector<1x128xf32>
    %971 = vector.shape_cast %970 : vector<1x128xf32> to vector<1x1x128xf32>
    %c4_644 = arith.constant 4 : index
    %c0_645 = arith.constant 0 : index
    %c0_646 = arith.constant 0 : index
    %c0_647 = arith.constant 0 : index
    %972 = vector.load %arg20[%c4_644, %c0_645, %c0_646, %c0_647] : memref<5x4x25x128xf32, #tpu.memory_space<vmem>>, vector<1x4x25x128xf32>
    %973 = vector.shape_cast %972 : vector<1x4x25x128xf32> to vector<4x25x128xf32>
    %974 = vector.broadcast %971 : vector<1x1x128xf32> to vector<4x25x128xf32>
    %975 = arith.mulf %974, %973 : vector<4x25x128xf32>
    %976 = arith.addf %969, %975 : vector<4x25x128xf32>
    %977 = vector.extract_strided_slice %976 {offsets = [0, 0, 0], sizes = [4, 1, 128], strides = [1, 1, 1]} : vector<4x25x128xf32> to vector<4x1x128xf32>
    %c40_648 = arith.constant 40 : index
    %c0_649 = arith.constant 0 : index
    %c0_650 = arith.constant 0 : index
    %978 = vector.load %arg10[%c40_648, %c0_649, %c0_650] : memref<48x1x128xf32, #tpu.memory_space<vmem>>, vector<4x1x128xf32>
    tpu.vector_store %arg10[%c40_648, %c0_649, %c0_650], %977 {strides = array<i32>} : memref<48x1x128xf32, #tpu.memory_space<vmem>>, vector<4x1x128xf32>,
    %979 = vector.extract_strided_slice %976 {offsets = [0, 1, 0], sizes = [4, 3, 128], strides = [1, 1, 1]} : vector<4x25x128xf32> to vector<4x3x128xf32>
    %c56 = arith.constant 56 : index
    %c0_651 = arith.constant 0 : index
    %c0_652 = arith.constant 0 : index
    %980 = vector.load %arg11[%c56, %c0_651, %c0_652] : memref<64x3x128xf32, #tpu.memory_space<vmem>>, vector<4x3x128xf32>
    tpu.vector_store %arg11[%c56, %c0_651, %c0_652], %979 {strides = array<i32>} : memref<64x3x128xf32, #tpu.memory_space<vmem>>, vector<4x3x128xf32>,
    %981 = vector.extract_strided_slice %976 {offsets = [0, 4, 0], sizes = [4, 5, 128], strides = [1, 1, 1]} : vector<4x25x128xf32> to vector<4x5x128xf32>
    %c56_653 = arith.constant 56 : index
    %c0_654 = arith.constant 0 : index
    %c0_655 = arith.constant 0 : index
    %982 = vector.load %arg12[%c56_653, %c0_654, %c0_655] : memref<64x5x128xf32, #tpu.memory_space<vmem>>, vector<4x5x128xf32>
    tpu.vector_store %arg12[%c56_653, %c0_654, %c0_655], %981 {strides = array<i32>} : memref<64x5x128xf32, #tpu.memory_space<vmem>>, vector<4x5x128xf32>,
    %983 = vector.extract_strided_slice %976 {offsets = [0, 9, 0], sizes = [4, 7, 128], strides = [1, 1, 1]} : vector<4x25x128xf32> to vector<4x7x128xf32>
    %c24_656 = arith.constant 24 : index
    %c0_657 = arith.constant 0 : index
    %c0_658 = arith.constant 0 : index
    %984 = vector.load %arg13[%c24_656, %c0_657, %c0_658] : memref<32x7x128xf32, #tpu.memory_space<vmem>>, vector<4x7x128xf32>
    tpu.vector_store %arg13[%c24_656, %c0_657, %c0_658], %983 {strides = array<i32>} : memref<32x7x128xf32, #tpu.memory_space<vmem>>, vector<4x7x128xf32>,
    %985 = vector.extract_strided_slice %976 {offsets = [0, 16, 0], sizes = [4, 9, 128], strides = [1, 1, 1]} : vector<4x25x128xf32> to vector<4x9x128xf32>
    %c8_659 = arith.constant 8 : index
    %c0_660 = arith.constant 0 : index
    %c0_661 = arith.constant 0 : index
    %986 = vector.load %arg14[%c8_659, %c0_660, %c0_661] : memref<16x9x128xf32, #tpu.memory_space<vmem>>, vector<4x9x128xf32>
    tpu.vector_store %arg14[%c8_659, %c0_660, %c0_661], %985 {strides = array<i32>} : memref<16x9x128xf32, #tpu.memory_space<vmem>>, vector<4x9x128xf32>,
    %987 = vector.extract_strided_slice %636 {offsets = [3, 0], sizes = [1, 128], strides = [1, 1]} : vector<4x128xf32> to vector<1x128xf32>
    %988 = vector.shape_cast %987 : vector<1x128xf32> to vector<1x1x128xf32>
    %c0_662 = arith.constant 0 : index
    %c0_663 = arith.constant 0 : index
    %c0_664 = arith.constant 0 : index
    %c0_665 = arith.constant 0 : index
    %989 = vector.load %arg20[%c0_662, %c0_663, %c0_664, %c0_665] : memref<5x4x25x128xf32, #tpu.memory_space<vmem>>, vector<1x4x25x128xf32>
    %990 = vector.shape_cast %989 : vector<1x4x25x128xf32> to vector<4x25x128xf32>
    %991 = vector.broadcast %988 : vector<1x1x128xf32> to vector<4x25x128xf32>
    %992 = arith.mulf %991, %990 : vector<4x25x128xf32>
    %993 = vector.extract_strided_slice %638 {offsets = [3, 0], sizes = [1, 128], strides = [1, 1]} : vector<4x128xf32> to vector<1x128xf32>
    %994 = vector.shape_cast %993 : vector<1x128xf32> to vector<1x1x128xf32>
    %c1_666 = arith.constant 1 : index
    %c0_667 = arith.constant 0 : index
    %c0_668 = arith.constant 0 : index
    %c0_669 = arith.constant 0 : index
    %995 = vector.load %arg20[%c1_666, %c0_667, %c0_668, %c0_669] : memref<5x4x25x128xf32, #tpu.memory_space<vmem>>, vector<1x4x25x128xf32>
    %996 = vector.shape_cast %995 : vector<1x4x25x128xf32> to vector<4x25x128xf32>
    %997 = vector.broadcast %994 : vector<1x1x128xf32> to vector<4x25x128xf32>
    %998 = arith.mulf %997, %996 : vector<4x25x128xf32>
    %999 = arith.addf %992, %998 : vector<4x25x128xf32>
    %1000 = vector.extract_strided_slice %640 {offsets = [3, 0], sizes = [1, 128], strides = [1, 1]} : vector<4x128xf32> to vector<1x128xf32>
    %1001 = vector.shape_cast %1000 : vector<1x128xf32> to vector<1x1x128xf32>
    %c2_670 = arith.constant 2 : index
    %c0_671 = arith.constant 0 : index
    %c0_672 = arith.constant 0 : index
    %c0_673 = arith.constant 0 : index
    %1002 = vector.load %arg20[%c2_670, %c0_671, %c0_672, %c0_673] : memref<5x4x25x128xf32, #tpu.memory_space<vmem>>, vector<1x4x25x128xf32>
    %1003 = vector.shape_cast %1002 : vector<1x4x25x128xf32> to vector<4x25x128xf32>
    %1004 = vector.broadcast %1001 : vector<1x1x128xf32> to vector<4x25x128xf32>
    %1005 = arith.mulf %1004, %1003 : vector<4x25x128xf32>
    %1006 = arith.addf %999, %1005 : vector<4x25x128xf32>
    %1007 = vector.extract_strided_slice %642 {offsets = [3, 0], sizes = [1, 128], strides = [1, 1]} : vector<4x128xf32> to vector<1x128xf32>
    %1008 = vector.shape_cast %1007 : vector<1x128xf32> to vector<1x1x128xf32>
    %c3_674 = arith.constant 3 : index
    %c0_675 = arith.constant 0 : index
    %c0_676 = arith.constant 0 : index
    %c0_677 = arith.constant 0 : index
    %1009 = vector.load %arg20[%c3_674, %c0_675, %c0_676, %c0_677] : memref<5x4x25x128xf32, #tpu.memory_space<vmem>>, vector<1x4x25x128xf32>
    %1010 = vector.shape_cast %1009 : vector<1x4x25x128xf32> to vector<4x25x128xf32>
    %1011 = vector.broadcast %1008 : vector<1x1x128xf32> to vector<4x25x128xf32>
    %1012 = arith.mulf %1011, %1010 : vector<4x25x128xf32>
    %1013 = arith.addf %1006, %1012 : vector<4x25x128xf32>
    %1014 = vector.extract_strided_slice %644 {offsets = [3, 0], sizes = [1, 128], strides = [1, 1]} : vector<4x128xf32> to vector<1x128xf32>
    %1015 = vector.shape_cast %1014 : vector<1x128xf32> to vector<1x1x128xf32>
    %c4_678 = arith.constant 4 : index
    %c0_679 = arith.constant 0 : index
    %c0_680 = arith.constant 0 : index
    %c0_681 = arith.constant 0 : index
    %1016 = vector.load %arg20[%c4_678, %c0_679, %c0_680, %c0_681] : memref<5x4x25x128xf32, #tpu.memory_space<vmem>>, vector<1x4x25x128xf32>
    %1017 = vector.shape_cast %1016 : vector<1x4x25x128xf32> to vector<4x25x128xf32>
    %1018 = vector.broadcast %1015 : vector<1x1x128xf32> to vector<4x25x128xf32>
    %1019 = arith.mulf %1018, %1017 : vector<4x25x128xf32>
    %1020 = arith.addf %1013, %1019 : vector<4x25x128xf32>
    %1021 = vector.extract_strided_slice %1020 {offsets = [0, 0, 0], sizes = [4, 1, 128], strides = [1, 1, 1]} : vector<4x25x128xf32> to vector<4x1x128xf32>
    %c44_682 = arith.constant 44 : index
    %c0_683 = arith.constant 0 : index
    %c0_684 = arith.constant 0 : index
    %1022 = vector.load %arg10[%c44_682, %c0_683, %c0_684] : memref<48x1x128xf32, #tpu.memory_space<vmem>>, vector<4x1x128xf32>
    tpu.vector_store %arg10[%c44_682, %c0_683, %c0_684], %1021 {strides = array<i32>} : memref<48x1x128xf32, #tpu.memory_space<vmem>>, vector<4x1x128xf32>,
    %1023 = vector.extract_strided_slice %1020 {offsets = [0, 1, 0], sizes = [4, 3, 128], strides = [1, 1, 1]} : vector<4x25x128xf32> to vector<4x3x128xf32>
    %c60 = arith.constant 60 : index
    %c0_685 = arith.constant 0 : index
    %c0_686 = arith.constant 0 : index
    %1024 = vector.load %arg11[%c60, %c0_685, %c0_686] : memref<64x3x128xf32, #tpu.memory_space<vmem>>, vector<4x3x128xf32>
    tpu.vector_store %arg11[%c60, %c0_685, %c0_686], %1023 {strides = array<i32>} : memref<64x3x128xf32, #tpu.memory_space<vmem>>, vector<4x3x128xf32>,
    %1025 = vector.extract_strided_slice %1020 {offsets = [0, 4, 0], sizes = [4, 5, 128], strides = [1, 1, 1]} : vector<4x25x128xf32> to vector<4x5x128xf32>
    %c60_687 = arith.constant 60 : index
    %c0_688 = arith.constant 0 : index
    %c0_689 = arith.constant 0 : index
    %1026 = vector.load %arg12[%c60_687, %c0_688, %c0_689] : memref<64x5x128xf32, #tpu.memory_space<vmem>>, vector<4x5x128xf32>
    tpu.vector_store %arg12[%c60_687, %c0_688, %c0_689], %1025 {strides = array<i32>} : memref<64x5x128xf32, #tpu.memory_space<vmem>>, vector<4x5x128xf32>,
    %1027 = vector.extract_strided_slice %1020 {offsets = [0, 9, 0], sizes = [4, 7, 128], strides = [1, 1, 1]} : vector<4x25x128xf32> to vector<4x7x128xf32>
    %c28_690 = arith.constant 28 : index
    %c0_691 = arith.constant 0 : index
    %c0_692 = arith.constant 0 : index
    %1028 = vector.load %arg13[%c28_690, %c0_691, %c0_692] : memref<32x7x128xf32, #tpu.memory_space<vmem>>, vector<4x7x128xf32>
    tpu.vector_store %arg13[%c28_690, %c0_691, %c0_692], %1027 {strides = array<i32>} : memref<32x7x128xf32, #tpu.memory_space<vmem>>, vector<4x7x128xf32>,
    %1029 = vector.extract_strided_slice %1020 {offsets = [0, 16, 0], sizes = [4, 9, 128], strides = [1, 1, 1]} : vector<4x25x128xf32> to vector<4x9x128xf32>
    %c12_693 = arith.constant 12 : index
    %c0_694 = arith.constant 0 : index
    %c0_695 = arith.constant 0 : index
    %1030 = vector.load %arg14[%c12_693, %c0_694, %c0_695] : memref<16x9x128xf32, #tpu.memory_space<vmem>>, vector<4x9x128xf32>
    tpu.vector_store %arg14[%c12_693, %c0_694, %c0_695], %1029 {strides = array<i32>} : memref<16x9x128xf32, #tpu.memory_space<vmem>>, vector<4x9x128xf32>,
    return
  }
  func.func @transform_0(%arg0: i32) -> (i32, i32, i32) {
    %c0_i32 = arith.constant 0 : i32
    %c0_i32_0 = arith.constant 0 : i32
    %c0_i32_1 = arith.constant 0 : i32
    return %c0_i32, %c0_i32_0, %arg0 : i32, i32, i32
  }
  func.func @transform_1(%arg0: i32) -> (i32, i32, i32) {
    %c0_i32 = arith.constant 0 : i32
    %c0_i32_0 = arith.constant 0 : i32
    %c0_i32_1 = arith.constant 0 : i32
    return %c0_i32, %c0_i32_0, %arg0 : i32, i32, i32
  }
  func.func @transform_2(%arg0: i32) -> (i32, i32, i32) {
    %c0_i32 = arith.constant 0 : i32
    %c0_i32_0 = arith.constant 0 : i32
    %c0_i32_1 = arith.constant 0 : i32
    return %c0_i32, %c0_i32_0, %arg0 : i32, i32, i32
  }
  func.func @transform_3(%arg0: i32) -> (i32, i32, i32) {
    %c0_i32 = arith.constant 0 : i32
    %c0_i32_0 = arith.constant 0 : i32
    %c0_i32_1 = arith.constant 0 : i32
    %c0_i32_2 = arith.constant 0 : i32
    return %c0_i32, %c0_i32_0, %c0_i32_1 : i32, i32, i32
  }
  func.func @transform_4(%arg0: i32) -> (i32, i32, i32) {
    %c0_i32 = arith.constant 0 : i32
    %c0_i32_0 = arith.constant 0 : i32
    %c0_i32_1 = arith.constant 0 : i32
    %c0_i32_2 = arith.constant 0 : i32
    return %c0_i32, %c0_i32_0, %c0_i32_1 : i32, i32, i32
  }
  func.func @transform_5(%arg0: i32) -> (i32, i32, i32) {
    %c0_i32 = arith.constant 0 : i32
    %c0_i32_0 = arith.constant 0 : i32
    %c0_i32_1 = arith.constant 0 : i32
    %c0_i32_2 = arith.constant 0 : i32
    return %c0_i32, %c0_i32_0, %c0_i32_1 : i32, i32, i32
  }
  func.func @transform_6(%arg0: i32) -> (i32, i32, i32) {
    %c0_i32 = arith.constant 0 : i32
    %c0_i32_0 = arith.constant 0 : i32
    %c0_i32_1 = arith.constant 0 : i32
    %c0_i32_2 = arith.constant 0 : i32
    return %c0_i32, %c0_i32_0, %c0_i32_1 : i32, i32, i32
  }
  func.func @transform_7(%arg0: i32) -> (i32, i32, i32) {
    %c0_i32 = arith.constant 0 : i32
    %c0_i32_0 = arith.constant 0 : i32
    %c0_i32_1 = arith.constant 0 : i32
    %c0_i32_2 = arith.constant 0 : i32
    return %c0_i32, %c0_i32_0, %c0_i32_1 : i32, i32, i32
  }
  func.func @transform_8(%arg0: i32) -> (i32, i32, i32) {
    %c0_i32 = arith.constant 0 : i32
    %c0_i32_0 = arith.constant 0 : i32
    %c0_i32_1 = arith.constant 0 : i32
    %c0_i32_2 = arith.constant 0 : i32
    return %c0_i32, %c0_i32_0, %c0_i32_1 : i32, i32, i32
  }
  func.func @transform_9(%arg0: i32) -> (i32, i32, i32) {
    %c0_i32 = arith.constant 0 : i32
    %c0_i32_0 = arith.constant 0 : i32
    %c0_i32_1 = arith.constant 0 : i32
    return %c0_i32, %c0_i32_0, %arg0 : i32, i32, i32
  }
  func.func @transform_10(%arg0: i32) -> (i32, i32, i32) {
    %c0_i32 = arith.constant 0 : i32
    %c0_i32_0 = arith.constant 0 : i32
    %c0_i32_1 = arith.constant 0 : i32
    return %c0_i32, %c0_i32_0, %arg0 : i32, i32, i32
  }
  func.func @transform_11(%arg0: i32) -> (i32, i32, i32) {
    %c0_i32 = arith.constant 0 : i32
    %c0_i32_0 = arith.constant 0 : i32
    %c0_i32_1 = arith.constant 0 : i32
    return %c0_i32, %c0_i32_0, %arg0 : i32, i32, i32
  }
  func.func @transform_12(%arg0: i32) -> (i32, i32, i32) {
    %c0_i32 = arith.constant 0 : i32
    %c0_i32_0 = arith.constant 0 : i32
    %c0_i32_1 = arith.constant 0 : i32
    return %c0_i32, %c0_i32_0, %arg0 : i32, i32, i32
  }
  func.func @transform_13(%arg0: i32) -> (i32, i32, i32) {
    %c0_i32 = arith.constant 0 : i32
    %c0_i32_0 = arith.constant 0 : i32
    %c0_i32_1 = arith.constant 0 : i32
    return %c0_i32, %c0_i32_0, %arg0 : i32, i32, i32
  }
}

</mosaic_0001>

<llo_original>
// kernel: tpu_custom_call.1
$region0: #{tpu_custom_call.1}
  #allocation0 [shape = 'u32[]', space=smem, size = 0x4, offset = 0x4, fixed_abs, tag = 'smem constant byte address 0x4 - core index']
  #allocation1 [shape = 'u32[144,128]{1,0:T(1,128)}', space=vmem, size = 0x12000, scoped, tag = 'internal scratch']
  #allocation2 [shape = 'f32[1,4,1,128]{3,2,1,0:T(1,128)}', space=vmem, size = 0x800, scoped, tag = 'scratch operand']
  #allocation3 [shape = 'f32[1,4,3,128]{3,2,1,0:T(4,128)}', space=vmem, size = 0x2000, scoped, tag = 'scratch operand']
  #allocation4 [shape = 'f32[1,4,5,128]{3,2,1,0:T(8,128)}', space=vmem, size = 0x4000, scoped, tag = 'scratch operand']
  #allocation5 [shape = 'f32[3,4,9,128]{3,2,1,0:T(8,128)}', space=vmem, size = 0x18000, scoped, tag = 'scratch operand']
  #allocation6 [shape = 'f32[3,4,15,128]{3,2,1,0:T(8,128)}', space=vmem, size = 0x18000, scoped, tag = 'scratch operand']
  #allocation7 [shape = 'f32[5,4,25,128]{3,2,1,0:T(8,128)}', space=vmem, size = 0x50000, scoped, tag = 'scratch operand']
  %s0 = inlined_call_operand.hbm [shape: f32[1,4,128], index: 0, kind: input, shape index: {}]
  %s1 = inlined_call_operand.hbm [shape: f32[3,4,128], index: 1, kind: input, shape index: {}]
  %s2 = inlined_call_operand.hbm [shape: f32[5,4,128], index: 2, kind: input, shape index: {}]
  %s3 = inlined_call_operand.vmem [shape: f32[1,1,128], index: 3, kind: input, shape index: {}]
  %s4 = inlined_call_operand.vmem [shape: f32[3,3,128], index: 4, kind: input, shape index: {}]
  %s5 = inlined_call_operand.hbm [shape: f32[5,5,128], index: 5, kind: input, shape index: {}]
  %s6 = inlined_call_operand.hbm [shape: f32[9,9,128], index: 6, kind: input, shape index: {}]
  %s7 = inlined_call_operand.hbm [shape: f32[15,15,128], index: 7, kind: input, shape index: {}]
  %s8 = inlined_call_operand.hbm [shape: f32[25,25,128], index: 8, kind: input, shape index: {}]
  %s9 = inlined_call_operand.hbm [shape: f32[48,1,128], index: 9, kind: output, shape index: {0}]
  %s10 = inlined_call_operand.vmem [shape: f32[64,3,128], index: 10, kind: output, shape index: {1}]
  %s11 = inlined_call_operand.vmem [shape: f32[64,5,128], index: 11, kind: output, shape index: {2}]
  %s12 = inlined_call_operand.vmem [shape: f32[32,7,128], index: 12, kind: output, shape index: {3}]
  %s13 = inlined_call_operand.vmem [shape: f32[16,9,128], index: 13, kind: output, shape index: {4}]
  %14 = xla_tuple %s9, %s10, %s11, %s12, %s13
  %s15 = sld [smem:[#allocation0]]
  $region106: #{tpu_custom_call.1} parent=0
    _
  %s17 = ssub.s32 1, %s15
  %s18 = scalar_select 0, %s17, %s15
  $region1: #{tpu_custom_call.1} parent=0
    #allocation8 [shape = 'u8[2048]{0}', space=vmem, size = 0x800, scoped, tag = 'input window, operand 0, single buffered']
    #allocation9 [shape = 's32[1]{0}', space=sflag, size = 0x4, scoped, tag = 'scoped memory for tpu_custom_call.1']
    #allocation10 [shape = 's32[1]{0}', space=sflag, size = 0x4, scoped, tag = 'scoped memory for tpu_custom_call.1']
    #allocation11 [shape = 'u8[6144]{0}', space=vmem, size = 0x1800, scoped, tag = 'input window, operand 1, single buffered']
    #allocation12 [shape = 's32[1]{0}', space=sflag, size = 0x4, scoped, tag = 'scoped memory for tpu_custom_call.1']
    #allocation13 [shape = 'u8[10240]{0}', space=vmem, size = 0x2800, scoped, tag = 'input window, operand 2, single buffered']
    #allocation14 [shape = 'u8[20480]{0}', space=vmem, size = 0x5000, scoped, tag = 'input window, operand 5, single buffered']
    #allocation15 [shape = 's32[1]{0}', space=sflag, size = 0x4, scoped, tag = 'scoped memory for tpu_custom_call.1']
    #allocation16 [shape = 'u8[73728]{0}', space=vmem, size = 0x12000, scoped, tag = 'input window, operand 6, single buffered']
    #allocation17 [shape = 'u8[122880]{0}', space=vmem, size = 0x1e000, scoped, tag = 'input window, operand 7, single buffered']
    #allocation18 [shape = 's32[1]{0}', space=sflag, size = 0x4, scoped, tag = 'scoped memory for tpu_custom_call.1']
    #allocation19 [shape = 'u8[409600]{0}', space=vmem, size = 0x64000, scoped, tag = 'input window, operand 8, single buffered']
    #allocation20 [shape = 'u8[24576]{0}', space=vmem, size = 0x6000, scoped, tag = 'output window, operand 0, single buffered']
    %19 = vsyncpa [#allocation9], 0
    %20 = vsyncpa [#allocation12], 0
    %21 = vsyncpa [#allocation15], 0
    %22 = vsyncpa [#allocation18], 0
    %23 = vsyncpa [#allocation10], 0
    // Predicated region
    $region2: #{tpu_custom_call.1} parent=1 // pred_check
      _
    $region3: #{tpu_custom_call.1} parent=1 // pred_check_branch
      %25 = sbr.rel (0) target = $region5
    $region4: #{tpu_custom_call.1} parent=1 // pred_region
      %s27 = ssub.s32 64, 64
      %28 = vsyncadd [#allocation9], %s27
      %s30 = sshll.u32 [#allocation8], 4
      %s31 = int_to_ptr.vmem [resolvable:$true] %s30
      %33 = dma.hbm_to_vmem [thread:$0]  %s0, 64, %s31, [#allocation9]
    $region5: #{tpu_custom_call.1} parent=1 // pred_fallthru
      _
    // Predicated region
    $region6: #{tpu_custom_call.1} parent=1 // pred_check
      _
    $region7: #{tpu_custom_call.1} parent=1 // pred_check_branch
      %35 = sbr.rel (0) target = $region9
    $region8: #{tpu_custom_call.1} parent=1 // pred_region
      %s37 = ssub.s32 192, 192
      %38 = vsyncadd [#allocation12], %s37
      %s39 = sshll.u32 [#allocation11], 4
      %s40 = int_to_ptr.vmem [resolvable:$true] %s39
      %45 = dma.hbm_to_vmem [thread:$0]  %s1, 192, %s40, [#allocation12], 64, 64, 4
    $region9: #{tpu_custom_call.1} parent=1 // pred_fallthru
      _
    // Predicated region
    $region10: #{tpu_custom_call.1} parent=1 // pred_check
      _
    $region11: #{tpu_custom_call.1} parent=1 // pred_check_branch
      %47 = sbr.rel (0) target = $region13
    $region12: #{tpu_custom_call.1} parent=1 // pred_region
      %s49 = ssub.s32 320, 320
      %50 = vsyncadd [#allocation12], %s49
      %s51 = sshll.u32 [#allocation13], 4
      %s52 = int_to_ptr.vmem [resolvable:$true] %s51
      %57 = dma.hbm_to_vmem [thread:$0]  %s2, 320, %s52, [#allocation12], 64, 64, 4
    $region13: #{tpu_custom_call.1} parent=1 // pred_fallthru
      _
    // Predicated region
    $region14: #{tpu_custom_call.1} parent=1 // pred_check
      _
    $region15: #{tpu_custom_call.1} parent=1 // pred_check_branch
      %59 = sbr.rel (0) target = $region17
    $region16: #{tpu_custom_call.1} parent=1 // pred_region
      _
    $region17: #{tpu_custom_call.1} parent=1 // pred_fallthru
      _
    // Predicated region
    $region18: #{tpu_custom_call.1} parent=1 // pred_check
      _
    $region19: #{tpu_custom_call.1} parent=1 // pred_check_branch
      %61 = sbr.rel (0) target = $region21
    $region20: #{tpu_custom_call.1} parent=1 // pred_region
      _
    $region21: #{tpu_custom_call.1} parent=1 // pred_fallthru
      _
    // Predicated region
    $region22: #{tpu_custom_call.1} parent=1 // pred_check
      _
    $region23: #{tpu_custom_call.1} parent=1 // pred_check_branch
      %63 = sbr.rel (0) target = $region25
    $region24: #{tpu_custom_call.1} parent=1 // pred_region
      %s65 = ssub.s32 640, 640
      %66 = vsyncadd [#allocation15], %s65
      %s67 = sshll.u32 [#allocation14], 4
      %s68 = int_to_ptr.vmem [resolvable:$true] %s67
      %73 = dma.hbm_to_vmem [thread:$0]  %s5, 640, %s68, [#allocation15], 128, 128, 8
    $region25: #{tpu_custom_call.1} parent=1 // pred_fallthru
      _
    // Predicated region
    $region26: #{tpu_custom_call.1} parent=1 // pred_check
      _
    $region27: #{tpu_custom_call.1} parent=1 // pred_check_branch
      %75 = sbr.rel (0) target = $region29
    $region28: #{tpu_custom_call.1} parent=1 // pred_region
      %s77 = ssub.s32 2304, 2304
      %78 = vsyncadd [#allocation15], %s77
      %s79 = sshll.u32 [#allocation16], 4
      %s80 = int_to_ptr.vmem [resolvable:$true] %s79
      %85 = dma.hbm_to_vmem [thread:$0]  %s6, 2304, %s80, [#allocation15], 128, 128, 8
    $region29: #{tpu_custom_call.1} parent=1 // pred_fallthru
      _
    // Predicated region
    $region30: #{tpu_custom_call.1} parent=1 // pred_check
      _
    $region31: #{tpu_custom_call.1} parent=1 // pred_check_branch
      %87 = sbr.rel (0) target = $region33
    $region32: #{tpu_custom_call.1} parent=1 // pred_region
      %s89 = ssub.s32 3840, 3840
      %90 = vsyncadd [#allocation18], %s89
      %s91 = sshll.u32 [#allocation17], 4
      %s92 = int_to_ptr.vmem [resolvable:$true] %s91
      %97 = dma.hbm_to_vmem [thread:$0]  %s7, 3840, %s92, [#allocation18], 128, 128, 8
    $region33: #{tpu_custom_call.1} parent=1 // pred_fallthru
      _
    // Predicated region
    $region34: #{tpu_custom_call.1} parent=1 // pred_check
      _
    $region35: #{tpu_custom_call.1} parent=1 // pred_check_branch
      %99 = sbr.rel (0) target = $region37
    $region36: #{tpu_custom_call.1} parent=1 // pred_region
      %s101 = ssub.s32 12800, 12800
      %102 = vsyncadd [#allocation18], %s101
      %s103 = sshll.u32 [#allocation19], 4
      %s104 = int_to_ptr.vmem [resolvable:$true] %s103
      %109 = dma.hbm_to_vmem [thread:$0]  %s8, 12800, %s104, [#allocation18], 128, 128, 8
    $region37: #{tpu_custom_call.1} parent=1 // pred_fallthru
      _
    // Predicated region
    $region38: #{tpu_custom_call.1} parent=1 // pred_check
      _
    $region39: #{tpu_custom_call.1} parent=1 // pred_check_branch
      %111 = sbr.rel (0) target = $region41
    $region40: #{tpu_custom_call.1} parent=1 // pred_region
      %112 = dma.done [#allocation9], 64
    $region41: #{tpu_custom_call.1} parent=1 // pred_fallthru
      _
    // Predicated region
    $region42: #{tpu_custom_call.1} parent=1 // pred_check
      _
    $region43: #{tpu_custom_call.1} parent=1 // pred_check_branch
      %114 = sbr.rel (0) target = $region45
    $region44: #{tpu_custom_call.1} parent=1 // pred_region
      %115 = dma.done [#allocation12], 192
    $region45: #{tpu_custom_call.1} parent=1 // pred_fallthru
      _
    // Predicated region
    $region46: #{tpu_custom_call.1} parent=1 // pred_check
      _
    $region47: #{tpu_custom_call.1} parent=1 // pred_check_branch
      %117 = sbr.rel (0) target = $region49
    $region48: #{tpu_custom_call.1} parent=1 // pred_region
      %118 = dma.done [#allocation12], 320
    $region49: #{tpu_custom_call.1} parent=1 // pred_fallthru
      _
    // Predicated region
    $region50: #{tpu_custom_call.1} parent=1 // pred_check
      _
    $region51: #{tpu_custom_call.1} parent=1 // pred_check_branch
      %120 = sbr.rel (0) target = $region53
    $region52: #{tpu_custom_call.1} parent=1 // pred_region
      %121 = dma.done [#allocation15], 640
    $region53: #{tpu_custom_call.1} parent=1 // pred_fallthru
      _
    // Predicated region
    $region54: #{tpu_custom_call.1} parent=1 // pred_check
      _
    $region55: #{tpu_custom_call.1} parent=1 // pred_check_branch
      %123 = sbr.rel (0) target = $region57
    $region56: #{tpu_custom_call.1} parent=1 // pred_region
      %124 = dma.done [#allocation15], 2304
    $region57: #{tpu_custom_call.1} parent=1 // pred_fallthru
      _
    // Predicated region
    $region58: #{tpu_custom_call.1} parent=1 // pred_check
      _
    $region59: #{tpu_custom_call.1} parent=1 // pred_check_branch
      %126 = sbr.rel (0) target = $region61
    $region60: #{tpu_custom_call.1} parent=1 // pred_region
      %127 = dma.done [#allocation18], 3840
    $region61: #{tpu_custom_call.1} parent=1 // pred_fallthru
      _
    // Predicated region
    $region62: #{tpu_custom_call.1} parent=1 // pred_check
      _
    $region63: #{tpu_custom_call.1} parent=1 // pred_check_branch
      %129 = sbr.rel (0) target = $region65
    $region64: #{tpu_custom_call.1} parent=1 // pred_region
      %130 = dma.done [#allocation18], 12800
    $region65: #{tpu_custom_call.1} parent=1 // pred_fallthru
      _
    %v131 = vld [vmem:[#allocation8] sm:$0xf]
    %v134 = vunpack.c.l.s4 1966171168
    %v135 = vunpack.c.0.s8 %v134
    %v136 = vlaneseq
    %v137 = vshrl.u32 %v136, 7
    %v138 = vsub.s32 %v135, %v137
    %v139 = vrot.slane %v131, %v138
    %v140 = vcombine.high %v139, %v139
    %v142 = vunpack.c.l.s4 1966171168
    %v143 = vunpack.c.0.s8 %v142
    %v144 = vlaneseq
    %v145 = vshrl.u32 %v144, 7
    %v146 = vsub.s32 %v143, %v145
    %v147 = vrot.slane %v139, %v146
    %v149 = vunpack.c.l.s4 1966171168
    %v150 = vunpack.c.0.s8 %v149
    %v151 = vlaneseq
    %v152 = vshrl.u32 %v151, 7
    %v153 = vsub.s32 %v150, %v152
    %v154 = vrot.slane %v140, %v153
    %v155 = vcombine.high %v147, %v147
    %v156 = vcombine.high %v154, %v154
    %v161 = vld [vmem:[%s3] sm:$0x1]
    %v162 = vmul.f32 %v147, %v161
    %v163 = vmul.f32 %v154, %v161
    %v164 = vmul.f32 %v155, %v161
    %v165 = vmul.f32 %v156, %v161
    %166 = vst [vmem:[#allocation2] sm:$0x1] %v162
    %167 = vst [vmem:[#allocation2 + $0x1] sm:$0x1] %v163
    %168 = vst [vmem:[#allocation2 + $0x2] sm:$0x1] %v164
    %169 = vst [vmem:[#allocation2 + $0x3] sm:$0x1] %v165
    %v170 = vld [vmem:[#allocation2] sm:$0x1]
    %v171 = vld [vmem:[#allocation2 + $0x1] sm:$0x1]
    %v172 = vld [vmem:[#allocation2 + $0x2] sm:$0x1]
    %v173 = vld [vmem:[#allocation2 + $0x3] sm:$0x1]
    %v174 = vmul.f32 %v131, %v170
    %v175 = vmul.f32 %v131, %v171
    %v176 = vmul.f32 %v131, %v172
    %v177 = vmul.f32 %v131, %v173
    %178 = vst [vmem:[#allocation20] sm:$0x1] %v174
    %179 = vst [vmem:[#allocation20 + $0x1] sm:$0x1] %v175
    %180 = vst [vmem:[#allocation20 + $0x2] sm:$0x1] %v176
    %181 = vst [vmem:[#allocation20 + $0x3] sm:$0x1] %v177
    %v182 = vld [vmem:[#allocation2] sm:$0x1]
    %v183 = vld [vmem:[#allocation2 + $0x1] sm:$0x1]
    %v184 = vld [vmem:[#allocation2 + $0x2] sm:$0x1]
    %v185 = vld [vmem:[#allocation2 + $0x3] sm:$0x1]
    %v190 = vlaneseq
    %v191 = vshrl.u32 %v190, 7
    %v192 = vsub.s32 0, %v191
    %v193 = vrot.slane %v182, %v192
    %v194 = vlaneseq
    %v195 = vshrl.u32 %v194, 7
    %v196 = vsub.s32 0, %v195
    %v197 = vrot.slane %v183, %v196
    %v198 = vlaneseq
    %v199 = vshrl.u32 %v198, 7
    %v200 = vsub.s32 0, %v199
    %v201 = vrot.slane %v184, %v200
    %v202 = vlaneseq
    %v203 = vshrl.u32 %v202, 7
    %v204 = vsub.s32 0, %v203
    %v205 = vrot.slane %v185, %v204
    %v210 = vmul.f32 %v131, %v193
    %v211 = vmul.f32 %v131, %v197
    %v212 = vmul.f32 %v131, %v201
    %v213 = vmul.f32 %v131, %v205
    %s214 = scalar_lea.vmem [#allocation20], 4
    %215 = vst [vmem:[%s214 - $0x1] sm:$0x2] %v210
    %216 = vst [vmem:[%s214] sm:$0x2] %v211
    %217 = vst [vmem:[%s214 + $0x1] sm:$0x2] %v212
    %218 = vst [vmem:[%s214 + $0x2] sm:$0x2] %v213
    %v219 = vld [vmem:[#allocation2] sm:$0x1]
    %v220 = vld [vmem:[#allocation2 + $0x1] sm:$0x1]
    %v221 = vld [vmem:[#allocation2 + $0x2] sm:$0x1]
    %v222 = vld [vmem:[#allocation2 + $0x3] sm:$0x1]
    %v227 = vlaneseq
    %v228 = vshrl.u32 %v227, 7
    %v229 = vsub.s32 0, %v228
    %v230 = vrot.slane %v219, %v229
    %v231 = vlaneseq
    %v232 = vshrl.u32 %v231, 7
    %v233 = vsub.s32 0, %v232
    %v234 = vrot.slane %v220, %v233
    %v235 = vlaneseq
    %v236 = vshrl.u32 %v235, 7
    %v237 = vsub.s32 0, %v236
    %v238 = vrot.slane %v221, %v237
    %v239 = vlaneseq
    %v240 = vshrl.u32 %v239, 7
    %v241 = vsub.s32 0, %v240
    %v242 = vrot.slane %v222, %v241
    %v247 = vmul.f32 %v131, %v230
    %v248 = vmul.f32 %v131, %v234
    %v249 = vmul.f32 %v131, %v238
    %v250 = vmul.f32 %v131, %v242
    %s251 = scalar_lea.vmem [#allocation20], 8
    %252 = vst [vmem:[%s251 - $0x2] sm:$0x4] %v247
    %253 = vst [vmem:[%s251 - $0x1] sm:$0x4] %v248
    %254 = vst [vmem:[%s251] sm:$0x4] %v249
    %255 = vst [vmem:[%s251 + $0x1] sm:$0x4] %v250
    %v256 = vld [vmem:[#allocation2] sm:$0x1]
    %v257 = vld [vmem:[#allocation2 + $0x1] sm:$0x1]
    %v258 = vld [vmem:[#allocation2 + $0x2] sm:$0x1]
    %v259 = vld [vmem:[#allocation2 + $0x3] sm:$0x1]
    %v264 = vlaneseq
    %v265 = vshrl.u32 %v264, 7
    %v266 = vsub.s32 0, %v265
    %v267 = vrot.slane %v256, %v266
    %v268 = vlaneseq
    %v269 = vshrl.u32 %v268, 7
    %v270 = vsub.s32 0, %v269
    %v271 = vrot.slane %v257, %v270
    %v272 = vlaneseq
    %v273 = vshrl.u32 %v272, 7
    %v274 = vsub.s32 0, %v273
    %v275 = vrot.slane %v258, %v274
    %v276 = vlaneseq
    %v277 = vshrl.u32 %v276, 7
    %v278 = vsub.s32 0, %v277
    %v279 = vrot.slane %v259, %v278
    %v284 = vmul.f32 %v131, %v267
    %v285 = vmul.f32 %v131, %v271
    %v286 = vmul.f32 %v131, %v275
    %v287 = vmul.f32 %v131, %v279
    %s288 = scalar_lea.vmem [#allocation20], 12
    %289 = vst [vmem:[%s288 - $0x3] sm:$0x8] %v284
    %290 = vst [vmem:[%s288 - $0x2] sm:$0x8] %v285
    %291 = vst [vmem:[%s288 - $0x1] sm:$0x8] %v286
    %292 = vst [vmem:[%s288] sm:$0x8] %v287
    %v293 = vld [vmem:[#allocation11] sm:$0xf]
    %s294 = scalar_lea.vmem [#allocation11], 4
    %v295 = vld [vmem:[%s294] sm:$0xf]
    %s296 = scalar_lea.vmem [#allocation11], 8
    %v297 = vld [vmem:[%s296] sm:$0xf]
    %v298 = vld [vmem:[#allocation8] sm:$0xf]
    %v301 = vunpack.c.l.s4 1966171168
    %v302 = vunpack.c.0.s8 %v301
    %v303 = vlaneseq
    %v304 = vshrl.u32 %v303, 7
    %v305 = vsub.s32 %v302, %v304
    %v306 = vrot.slane %v293, %v305
    %v307 = vcombine.high %v306, %v306
    %v309 = vunpack.c.l.s4 1966171168
    %v310 = vunpack.c.0.s8 %v309
    %v311 = vlaneseq
    %v312 = vshrl.u32 %v311, 7
    %v313 = vsub.s32 %v310, %v312
    %v314 = vrot.slane %v306, %v313
    %v316 = vunpack.c.l.s4 1966171168
    %v317 = vunpack.c.0.s8 %v316
    %v318 = vlaneseq
    %v319 = vshrl.u32 %v318, 7
    %v320 = vsub.s32 %v317, %v319
    %v321 = vrot.slane %v307, %v320
    %v322 = vcombine.high %v314, %v314
    %v323 = vcombine.high %v321, %v321
    %v324 = vld [vmem:[%s4] sm:$0x7]
    %v325 = vlaneseq
    %v326 = vshrl.u32 %v325, 7
    %v327 = vsub.s32 0, %v326
    %v328 = vrot.slane %v314, %v327
    %v329 = vlaneseq
    %v330 = vshrl.u32 %v329, 7
    %v331 = vsub.s32 0, %v330
    %v332 = vrot.slane %v321, %v331
    %v333 = vlaneseq
    %v334 = vshrl.u32 %v333, 7
    %v335 = vsub.s32 0, %v334
    %v336 = vrot.slane %v322, %v335
    %v337 = vlaneseq
    %v338 = vshrl.u32 %v337, 7
    %v339 = vsub.s32 0, %v338
    %v340 = vrot.slane %v323, %v339
    %v345 = vmul.f32 %v328, %v324
    %v346 = vmul.f32 %v332, %v324
    %v347 = vmul.f32 %v336, %v324
    %v348 = vmul.f32 %v340, %v324
    %v351 = vunpack.c.l.s4 1966171168
    %v352 = vunpack.c.0.s8 %v351
    %v353 = vlaneseq
    %v354 = vshrl.u32 %v353, 7
    %v355 = vsub.s32 %v352, %v354
    %v356 = vrot.slane %v295, %v355
    %v357 = vcombine.high %v356, %v356
    %v359 = vunpack.c.l.s4 1966171168
    %v360 = vunpack.c.0.s8 %v359
    %v361 = vlaneseq
    %v362 = vshrl.u32 %v361, 7
    %v363 = vsub.s32 %v360, %v362
    %v364 = vrot.slane %v356, %v363
    %v366 = vunpack.c.l.s4 1966171168
    %v367 = vunpack.c.0.s8 %v366
    %v368 = vlaneseq
    %v369 = vshrl.u32 %v368, 7
    %v370 = vsub.s32 %v367, %v369
    %v371 = vrot.slane %v357, %v370
    %v372 = vcombine.high %v364, %v364
    %v373 = vcombine.high %v371, %v371
    %s374 = scalar_lea.vmem %s4, 4
    %v375 = vld [vmem:[%s374] sm:$0x7]
    %v376 = vlaneseq
    %v377 = vshrl.u32 %v376, 7
    %v378 = vsub.s32 0, %v377
    %v379 = vrot.slane %v364, %v378
    %v380 = vlaneseq
    %v381 = vshrl.u32 %v380, 7
    %v382 = vsub.s32 0, %v381
    %v383 = vrot.slane %v371, %v382
    %v384 = vlaneseq
    %v385 = vshrl.u32 %v384, 7
    %v386 = vsub.s32 0, %v385
    %v387 = vrot.slane %v372, %v386
    %v388 = vlaneseq
    %v389 = vshrl.u32 %v388, 7
    %v390 = vsub.s32 0, %v389
    %v391 = vrot.slane %v373, %v390
    %v396 = vmul.f32 %v379, %v375
    %v397 = vmul.f32 %v383, %v375
    %v398 = vmul.f32 %v387, %v375
    %v399 = vmul.f32 %v391, %v375
    %v400 = vadd.f32 %v345, %v396
    %v401 = vadd.f32 %v346, %v397
    %v402 = vadd.f32 %v347, %v398
    %v403 = vadd.f32 %v348, %v399
    %v406 = vunpack.c.l.s4 1966171168
    %v407 = vunpack.c.0.s8 %v406
    %v408 = vlaneseq
    %v409 = vshrl.u32 %v408, 7
    %v410 = vsub.s32 %v407, %v409
    %v411 = vrot.slane %v297, %v410
    %v412 = vcombine.high %v411, %v411
    %v414 = vunpack.c.l.s4 1966171168
    %v415 = vunpack.c.0.s8 %v414
    %v416 = vlaneseq
    %v417 = vshrl.u32 %v416, 7
    %v418 = vsub.s32 %v415, %v417
    %v419 = vrot.slane %v411, %v418
    %v421 = vunpack.c.l.s4 1966171168
    %v422 = vunpack.c.0.s8 %v421
    %v423 = vlaneseq
    %v424 = vshrl.u32 %v423, 7
    %v425 = vsub.s32 %v422, %v424
    %v426 = vrot.slane %v412, %v425
    %v427 = vcombine.high %v419, %v419
    %v428 = vcombine.high %v426, %v426
    %s429 = scalar_lea.vmem %s4, 8
    %v430 = vld [vmem:[%s429] sm:$0x7]
    %v431 = vlaneseq
    %v432 = vshrl.u32 %v431, 7
    %v433 = vsub.s32 0, %v432
    %v434 = vrot.slane %v419, %v433
    %v435 = vlaneseq
    %v436 = vshrl.u32 %v435, 7
    %v437 = vsub.s32 0, %v436
    %v438 = vrot.slane %v426, %v437
    %v439 = vlaneseq
    %v440 = vshrl.u32 %v439, 7
    %v441 = vsub.s32 0, %v440
    %v442 = vrot.slane %v427, %v441
    %v443 = vlaneseq
    %v444 = vshrl.u32 %v443, 7
    %v445 = vsub.s32 0, %v444
    %v446 = vrot.slane %v428, %v445
    %v451 = vmul.f32 %v434, %v430
    %v452 = vmul.f32 %v438, %v430
    %v453 = vmul.f32 %v442, %v430
    %v454 = vmul.f32 %v446, %v430
    %v455 = vadd.f32 %v400, %v451
    %v456 = vadd.f32 %v401, %v452
    %v457 = vadd.f32 %v402, %v453
    %v458 = vadd.f32 %v403, %v454
    %459 = vst [vmem:[#allocation3] sm:$0x7] %v455
    %460 = vst [vmem:[#allocation3 + $0x4] sm:$0x7] %v456
    %461 = vst [vmem:[#allocation3 + $0x8] sm:$0x7] %v457
    %462 = vst [vmem:[#allocation3 + $0xc] sm:$0x7] %v458
    %v463 = vld [vmem:[#allocation3] sm:$0x7]
    %v464 = vld [vmem:[#allocation3 + $0x4] sm:$0x7]
    %v465 = vld [vmem:[#allocation3 + $0x8] sm:$0x7]
    %v466 = vld [vmem:[#allocation3 + $0xc] sm:$0x7]
    %v467 = vlaneseq
    %v468 = vshrl.u32 %v467, 7
    %v469 = vsub.s32 0, %v468
    %v470 = vrot.slane %v298, %v469
    %v471 = vmul.f32 %v470, %v463
    %v472 = vmul.f32 %v470, %v464
    %v473 = vmul.f32 %v470, %v465
    %v474 = vmul.f32 %v470, %v466
    %475 = vst [vmem:[%s10] sm:$0x7] %v471
    %476 = vst [vmem:[%s10 + $0x4] sm:$0x7] %v472
    %477 = vst [vmem:[%s10 + $0x8] sm:$0x7] %v473
    %478 = vst [vmem:[%s10 + $0xc] sm:$0x7] %v474
    %v479 = vld [vmem:[#allocation3] sm:$0x7]
    %v480 = vld [vmem:[#allocation3 + $0x4] sm:$0x7]
    %v481 = vld [vmem:[#allocation3 + $0x8] sm:$0x7]
    %v482 = vld [vmem:[#allocation3 + $0xc] sm:$0x7]
    %v483 = vlaneseq
    %v484 = vshrl.u32 %v483, 7
    %v485 = vsub.s32 1, %v484
    %v486 = vrot.slane %v298, %v485
    %v487 = vmul.f32 %v486, %v479
    %v488 = vmul.f32 %v486, %v480
    %v489 = vmul.f32 %v486, %v481
    %v490 = vmul.f32 %v486, %v482
    %s491 = scalar_lea.vmem %s10, 16
    %492 = vst [vmem:[%s491] sm:$0x7] %v487
    %493 = vst [vmem:[%s491 + $0x4] sm:$0x7] %v488
    %494 = vst [vmem:[%s491 + $0x8] sm:$0x7] %v489
    %495 = vst [vmem:[%s491 + $0xc] sm:$0x7] %v490
    %v496 = vld [vmem:[#allocation3] sm:$0x7]
    %v497 = vld [vmem:[#allocation3 + $0x4] sm:$0x7]
    %v498 = vld [vmem:[#allocation3 + $0x8] sm:$0x7]
    %v499 = vld [vmem:[#allocation3 + $0xc] sm:$0x7]
    %v500 = vlaneseq
    %v501 = vshrl.u32 %v500, 7
    %v502 = vsub.s32 2, %v501
    %v503 = vrot.slane %v298, %v502
    %v504 = vmul.f32 %v503, %v496
    %v505 = vmul.f32 %v503, %v497
    %v506 = vmul.f32 %v503, %v498
    %v507 = vmul.f32 %v503, %v499
    %s508 = scalar_lea.vmem %s10, 32
    %509 = vst [vmem:[%s508] sm:$0x7] %v504
    %510 = vst [vmem:[%s508 + $0x4] sm:$0x7] %v505
    %511 = vst [vmem:[%s508 + $0x8] sm:$0x7] %v506
    %512 = vst [vmem:[%s508 + $0xc] sm:$0x7] %v507
    %v513 = vld [vmem:[#allocation3] sm:$0x7]
    %v514 = vld [vmem:[#allocation3 + $0x4] sm:$0x7]
    %v515 = vld [vmem:[#allocation3 + $0x8] sm:$0x7]
    %v516 = vld [vmem:[#allocation3 + $0xc] sm:$0x7]
    %v517 = vlaneseq
    %v518 = vshrl.u32 %v517, 7
    %v519 = vsub.s32 3, %v518
    %v520 = vrot.slane %v298, %v519
    %v521 = vmul.f32 %v520, %v513
    %v522 = vmul.f32 %v520, %v514
    %v523 = vmul.f32 %v520, %v515
    %v524 = vmul.f32 %v520, %v516
    %s525 = scalar_lea.vmem %s10, 48
    %526 = vst [vmem:[%s525] sm:$0x7] %v521
    %527 = vst [vmem:[%s525 + $0x4] sm:$0x7] %v522
    %528 = vst [vmem:[%s525 + $0x8] sm:$0x7] %v523
    %529 = vst [vmem:[%s525 + $0xc] sm:$0x7] %v524
    %v530 = vld [vmem:[#allocation13] sm:$0xf]
    %s531 = scalar_lea.vmem [#allocation13], 4
    %v532 = vld [vmem:[%s531] sm:$0xf]
    %s533 = scalar_lea.vmem [#allocation13], 8
    %v534 = vld [vmem:[%s533] sm:$0xf]
    %s535 = scalar_lea.vmem [#allocation13], 12
    %v536 = vld [vmem:[%s535] sm:$0xf]
    %s537 = scalar_lea.vmem [#allocation13], 16
    %v538 = vld [vmem:[%s537] sm:$0xf]
    %v539 = vld [vmem:[#allocation8] sm:$0xf]
    %v542 = vunpack.c.l.s4 1966171168
    %v543 = vunpack.c.0.s8 %v542
    %v544 = vlaneseq
    %v545 = vshrl.u32 %v544, 7
    %v546 = vsub.s32 %v543, %v545
    %v547 = vrot.slane %v530, %v546
    %v548 = vcombine.high %v547, %v547
    %v550 = vunpack.c.l.s4 1966171168
    %v551 = vunpack.c.0.s8 %v550
    %v552 = vlaneseq
    %v553 = vshrl.u32 %v552, 7
    %v554 = vsub.s32 %v551, %v553
    %v555 = vrot.slane %v547, %v554
    %v557 = vunpack.c.l.s4 1966171168
    %v558 = vunpack.c.0.s8 %v557
    %v559 = vlaneseq
    %v560 = vshrl.u32 %v559, 7
    %v561 = vsub.s32 %v558, %v560
    %v562 = vrot.slane %v548, %v561
    %v563 = vcombine.high %v555, %v555
    %v564 = vcombine.high %v562, %v562
    %v565 = vld [vmem:[#allocation14] sm:$0x1f]
    %v566 = vlaneseq
    %v567 = vshrl.u32 %v566, 7
    %v568 = vsub.s32 0, %v567
    %v569 = vrot.slane %v555, %v568
    %v570 = vlaneseq
    %v571 = vshrl.u32 %v570, 7
    %v572 = vsub.s32 0, %v571
    %v573 = vrot.slane %v562, %v572
    %v574 = vlaneseq
    %v575 = vshrl.u32 %v574, 7
    %v576 = vsub.s32 0, %v575
    %v577 = vrot.slane %v563, %v576
    %v578 = vlaneseq
    %v579 = vshrl.u32 %v578, 7
    %v580 = vsub.s32 0, %v579
    %v581 = vrot.slane %v564, %v580
    %v586 = vmul.f32 %v569, %v565
    %v587 = vmul.f32 %v573, %v565
    %v588 = vmul.f32 %v577, %v565
    %v589 = vmul.f32 %v581, %v565
    %v592 = vunpack.c.l.s4 1966171168
    %v593 = vunpack.c.0.s8 %v592
    %v594 = vlaneseq
    %v595 = vshrl.u32 %v594, 7
    %v596 = vsub.s32 %v593, %v595
    %v597 = vrot.slane %v532, %v596
    %v598 = vcombine.high %v597, %v597
    %v600 = vunpack.c.l.s4 1966171168
    %v601 = vunpack.c.0.s8 %v600
    %v602 = vlaneseq
    %v603 = vshrl.u32 %v602, 7
    %v604 = vsub.s32 %v601, %v603
    %v605 = vrot.slane %v597, %v604
    %v607 = vunpack.c.l.s4 1966171168
    %v608 = vunpack.c.0.s8 %v607
    %v609 = vlaneseq
    %v610 = vshrl.u32 %v609, 7
    %v611 = vsub.s32 %v608, %v610
    %v612 = vrot.slane %v598, %v611
    %v613 = vcombine.high %v605, %v605
    %v614 = vcombine.high %v612, %v612
    %s615 = scalar_lea.vmem [#allocation14], 8
    %v616 = vld [vmem:[%s615] sm:$0x1f]
    %v617 = vlaneseq
    %v618 = vshrl.u32 %v617, 7
    %v619 = vsub.s32 0, %v618
    %v620 = vrot.slane %v605, %v619
    %v621 = vlaneseq
    %v622 = vshrl.u32 %v621, 7
    %v623 = vsub.s32 0, %v622
    %v624 = vrot.slane %v612, %v623
    %v625 = vlaneseq
    %v626 = vshrl.u32 %v625, 7
    %v627 = vsub.s32 0, %v626
    %v628 = vrot.slane %v613, %v627
    %v629 = vlaneseq
    %v630 = vshrl.u32 %v629, 7
    %v631 = vsub.s32 0, %v630
    %v632 = vrot.slane %v614, %v631
    %v637 = vmul.f32 %v620, %v616
    %v638 = vmul.f32 %v624, %v616
    %v639 = vmul.f32 %v628, %v616
    %v640 = vmul.f32 %v632, %v616
    %v641 = vadd.f32 %v586, %v637
    %v642 = vadd.f32 %v587, %v638
    %v643 = vadd.f32 %v588, %v639
    %v644 = vadd.f32 %v589, %v640
    %v647 = vunpack.c.l.s4 1966171168
    %v648 = vunpack.c.0.s8 %v647
    %v649 = vlaneseq
    %v650 = vshrl.u32 %v649, 7
    %v651 = vsub.s32 %v648, %v650
    %v652 = vrot.slane %v534, %v651
    %v653 = vcombine.high %v652, %v652
    %v655 = vunpack.c.l.s4 1966171168
    %v656 = vunpack.c.0.s8 %v655
    %v657 = vlaneseq
    %v658 = vshrl.u32 %v657, 7
    %v659 = vsub.s32 %v656, %v658
    %v660 = vrot.slane %v652, %v659
    %v662 = vunpack.c.l.s4 1966171168
    %v663 = vunpack.c.0.s8 %v662
    %v664 = vlaneseq
    %v665 = vshrl.u32 %v664, 7
    %v666 = vsub.s32 %v663, %v665
    %v667 = vrot.slane %v653, %v666
    %v668 = vcombine.high %v660, %v660
    %v669 = vcombine.high %v667, %v667
    %s670 = scalar_lea.vmem [#allocation14], 16
    %v671 = vld [vmem:[%s670] sm:$0x1f]
    %v672 = vlaneseq
    %v673 = vshrl.u32 %v672, 7
    %v674 = vsub.s32 0, %v673
    %v675 = vrot.slane %v660, %v674
    %v676 = vlaneseq
    %v677 = vshrl.u32 %v676, 7
    %v678 = vsub.s32 0, %v677
    %v679 = vrot.slane %v667, %v678
    %v680 = vlaneseq
    %v681 = vshrl.u32 %v680, 7
    %v682 = vsub.s32 0, %v681
    %v683 = vrot.slane %v668, %v682
    %v684 = vlaneseq
    %v685 = vshrl.u32 %v684, 7
    %v686 = vsub.s32 0, %v685
    %v687 = vrot.slane %v669, %v686
    %v692 = vmul.f32 %v675, %v671
    %v693 = vmul.f32 %v679, %v671
    %v694 = vmul.f32 %v683, %v671
    %v695 = vmul.f32 %v687, %v671
    %v696 = vadd.f32 %v641, %v692
    %v697 = vadd.f32 %v642, %v693
    %v698 = vadd.f32 %v643, %v694
    %v699 = vadd.f32 %v644, %v695
    %v702 = vunpack.c.l.s4 1966171168
    %v703 = vunpack.c.0.s8 %v702
    %v704 = vlaneseq
    %v705 = vshrl.u32 %v704, 7
    %v706 = vsub.s32 %v703, %v705
    %v707 = vrot.slane %v536, %v706
    %v708 = vcombine.high %v707, %v707
    %v710 = vunpack.c.l.s4 1966171168
    %v711 = vunpack.c.0.s8 %v710
    %v712 = vlaneseq
    %v713 = vshrl.u32 %v712, 7
    %v714 = vsub.s32 %v711, %v713
    %v715 = vrot.slane %v707, %v714
    %v717 = vunpack.c.l.s4 1966171168
    %v718 = vunpack.c.0.s8 %v717
    %v719 = vlaneseq
    %v720 = vshrl.u32 %v719, 7
    %v721 = vsub.s32 %v718, %v720
    %v722 = vrot.slane %v708, %v721
    %v723 = vcombine.high %v715, %v715
    %v724 = vcombine.high %v722, %v722
    %s725 = scalar_lea.vmem [#allocation14], 24
    %v726 = vld [vmem:[%s725] sm:$0x1f]
    %v727 = vlaneseq
    %v728 = vshrl.u32 %v727, 7
    %v729 = vsub.s32 0, %v728
    %v730 = vrot.slane %v715, %v729
    %v731 = vlaneseq
    %v732 = vshrl.u32 %v731, 7
    %v733 = vsub.s32 0, %v732
    %v734 = vrot.slane %v722, %v733
    %v735 = vlaneseq
    %v736 = vshrl.u32 %v735, 7
    %v737 = vsub.s32 0, %v736
    %v738 = vrot.slane %v723, %v737
    %v739 = vlaneseq
    %v740 = vshrl.u32 %v739, 7
    %v741 = vsub.s32 0, %v740
    %v742 = vrot.slane %v724, %v741
    %v747 = vmul.f32 %v730, %v726
    %v748 = vmul.f32 %v734, %v726
    %v749 = vmul.f32 %v738, %v726
    %v750 = vmul.f32 %v742, %v726
    %v751 = vadd.f32 %v696, %v747
    %v752 = vadd.f32 %v697, %v748
    %v753 = vadd.f32 %v698, %v749
    %v754 = vadd.f32 %v699, %v750
    %v757 = vunpack.c.l.s4 1966171168
    %v758 = vunpack.c.0.s8 %v757
    %v759 = vlaneseq
    %v760 = vshrl.u32 %v759, 7
    %v761 = vsub.s32 %v758, %v760
    %v762 = vrot.slane %v538, %v761
    %v763 = vcombine.high %v762, %v762
    %v765 = vunpack.c.l.s4 1966171168
    %v766 = vunpack.c.0.s8 %v765
    %v767 = vlaneseq
    %v768 = vshrl.u32 %v767, 7
    %v769 = vsub.s32 %v766, %v768
    %v770 = vrot.slane %v762, %v769
    %v772 = vunpack.c.l.s4 1966171168
    %v773 = vunpack.c.0.s8 %v772
    %v774 = vlaneseq
    %v775 = vshrl.u32 %v774, 7
    %v776 = vsub.s32 %v773, %v775
    %v777 = vrot.slane %v763, %v776
    %v778 = vcombine.high %v770, %v770
    %v779 = vcombine.high %v777, %v777
    %s780 = scalar_lea.vmem [#allocation14], 32
    %v781 = vld [vmem:[%s780] sm:$0x1f]
    %v782 = vlaneseq
    %v783 = vshrl.u32 %v782, 7
    %v784 = vsub.s32 0, %v783
    %v785 = vrot.slane %v770, %v784
    %v786 = vlaneseq
    %v787 = vshrl.u32 %v786, 7
    %v788 = vsub.s32 0, %v787
    %v789 = vrot.slane %v777, %v788
    %v790 = vlaneseq
    %v791 = vshrl.u32 %v790, 7
    %v792 = vsub.s32 0, %v791
    %v793 = vrot.slane %v778, %v792
    %v794 = vlaneseq
    %v795 = vshrl.u32 %v794, 7
    %v796 = vsub.s32 0, %v795
    %v797 = vrot.slane %v779, %v796
    %v802 = vmul.f32 %v785, %v781
    %v803 = vmul.f32 %v789, %v781
    %v804 = vmul.f32 %v793, %v781
    %v805 = vmul.f32 %v797, %v781
    %v806 = vadd.f32 %v751, %v802
    %v807 = vadd.f32 %v752, %v803
    %v808 = vadd.f32 %v753, %v804
    %v809 = vadd.f32 %v754, %v805
    %810 = vst [vmem:[#allocation4] sm:$0x1f] %v806
    %811 = vst [vmem:[#allocation4 + $0x8] sm:$0x1f] %v807
    %812 = vst [vmem:[#allocation4 + $0x10] sm:$0x1f] %v808
    %813 = vst [vmem:[#allocation4 + $0x18] sm:$0x1f] %v809
    %v814 = vld [vmem:[#allocation4] sm:$0x1f]
    %v815 = vld [vmem:[#allocation4 + $0x8] sm:$0x1f]
    %v816 = vld [vmem:[#allocation4 + $0x10] sm:$0x1f]
    %v817 = vld [vmem:[#allocation4 + $0x18] sm:$0x1f]
    %v818 = vlaneseq
    %v819 = vshrl.u32 %v818, 7
    %v820 = vsub.s32 0, %v819
    %v821 = vrot.slane %v539, %v820
    %v822 = vmul.f32 %v821, %v814
    %v823 = vmul.f32 %v821, %v815
    %v824 = vmul.f32 %v821, %v816
    %v825 = vmul.f32 %v821, %v817
    %826 = vst [vmem:[%s11] sm:$0x1f] %v822
    %827 = vst [vmem:[%s11 + $0x8] sm:$0x1f] %v823
    %828 = vst [vmem:[%s11 + $0x10] sm:$0x1f] %v824
    %829 = vst [vmem:[%s11 + $0x18] sm:$0x1f] %v825
    %v830 = vld [vmem:[#allocation4] sm:$0x1f]
    %v831 = vld [vmem:[#allocation4 + $0x8] sm:$0x1f]
    %v832 = vld [vmem:[#allocation4 + $0x10] sm:$0x1f]
    %v833 = vld [vmem:[#allocation4 + $0x18] sm:$0x1f]
    %v834 = vlaneseq
    %v835 = vshrl.u32 %v834, 7
    %v836 = vsub.s32 1, %v835
    %v837 = vrot.slane %v539, %v836
    %v838 = vmul.f32 %v837, %v830
    %v839 = vmul.f32 %v837, %v831
    %v840 = vmul.f32 %v837, %v832
    %v841 = vmul.f32 %v837, %v833
    %s842 = scalar_lea.vmem %s11, 32
    %843 = vst [vmem:[%s842] sm:$0x1f] %v838
    %844 = vst [vmem:[%s842 + $0x8] sm:$0x1f] %v839
    %845 = vst [vmem:[%s842 + $0x10] sm:$0x1f] %v840
    %846 = vst [vmem:[%s842 + $0x18] sm:$0x1f] %v841
    %v847 = vld [vmem:[#allocation4] sm:$0x1f]
    %v848 = vld [vmem:[#allocation4 + $0x8] sm:$0x1f]
    %v849 = vld [vmem:[#allocation4 + $0x10] sm:$0x1f]
    %v850 = vld [vmem:[#allocation4 + $0x18] sm:$0x1f]
    %v851 = vlaneseq
    %v852 = vshrl.u32 %v851, 7
    %v853 = vsub.s32 2, %v852
    %v854 = vrot.slane %v539, %v853
    %v855 = vmul.f32 %v854, %v847
    %v856 = vmul.f32 %v854, %v848
    %v857 = vmul.f32 %v854, %v849
    %v858 = vmul.f32 %v854, %v850
    %s859 = scalar_lea.vmem %s11, 64
    %860 = vst [vmem:[%s859] sm:$0x1f] %v855
    %861 = vst [vmem:[%s859 + $0x8] sm:$0x1f] %v856
    %862 = vst [vmem:[%s859 + $0x10] sm:$0x1f] %v857
    %863 = vst [vmem:[%s859 + $0x18] sm:$0x1f] %v858
    %v864 = vld [vmem:[#allocation4] sm:$0x1f]
    %v865 = vld [vmem:[#allocation4 + $0x8] sm:$0x1f]
    %v866 = vld [vmem:[#allocation4 + $0x10] sm:$0x1f]
    %v867 = vld [vmem:[#allocation4 + $0x18] sm:$0x1f]
    %v868 = vlaneseq
    %v869 = vshrl.u32 %v868, 7
    %v870 = vsub.s32 3, %v869
    %v871 = vrot.slane %v539, %v870
    %v872 = vmul.f32 %v871, %v864
    %v873 = vmul.f32 %v871, %v865
    %v874 = vmul.f32 %v871, %v866
    %v875 = vmul.f32 %v871, %v867
    %s876 = scalar_lea.vmem %s11, 96
    %877 = vst [vmem:[%s876] sm:$0x1f] %v872
    %878 = vst [vmem:[%s876 + $0x8] sm:$0x1f] %v873
    %879 = vst [vmem:[%s876 + $0x10] sm:$0x1f] %v874
    %880 = vst [vmem:[%s876 + $0x18] sm:$0x1f] %v875
    %v881 = vld [vmem:[#allocation11] sm:$0xf]
    %v882 = vld [vmem:[%s294] sm:$0xf]
    %v883 = vld [vmem:[%s296] sm:$0xf]
    %v886 = vunpack.c.l.s4 1966171168
    %v887 = vunpack.c.0.s8 %v886
    %v888 = vlaneseq
    %v889 = vshrl.u32 %v888, 7
    %v890 = vsub.s32 %v887, %v889
    %v891 = vrot.slane %v881, %v890
    %v892 = vcombine.high %v891, %v891
    %v894 = vunpack.c.l.s4 1966171168
    %v895 = vunpack.c.0.s8 %v894
    %v896 = vlaneseq
    %v897 = vshrl.u32 %v896, 7
    %v898 = vsub.s32 %v895, %v897
    %v899 = vrot.slane %v891, %v898
    %v901 = vunpack.c.l.s4 1966171168
    %v902 = vunpack.c.0.s8 %v901
    %v903 = vlaneseq
    %v904 = vshrl.u32 %v903, 7
    %v905 = vsub.s32 %v902, %v904
    %v906 = vrot.slane %v892, %v905
    %v907 = vcombine.high %v899, %v899
    %v908 = vcombine.high %v906, %v906
    %v909 = vld [vmem:[#allocation16] sm:$0xff]
    %v910 = vld [vmem:[#allocation16 + $0x8] sm:$0x1]
    %v911 = vlaneseq
    %v912 = vshrl.u32 %v911, 7
    %v913 = vsub.s32 0, %v912
    %v914 = vrot.slane %v899, %v913
    %v915 = vlaneseq
    %v916 = vshrl.u32 %v915, 7
    %v917 = vsub.s32 0, %v916
    %v918 = vrot.slane %v906, %v917
    %v919 = vlaneseq
    %v920 = vshrl.u32 %v919, 7
    %v921 = vsub.s32 0, %v920
    %v922 = vrot.slane %v907, %v921
    %v923 = vlaneseq
    %v924 = vshrl.u32 %v923, 7
    %v925 = vsub.s32 0, %v924
    %v926 = vrot.slane %v908, %v925
    %v931 = vmul.f32 %v914, %v909
    %v932 = vmul.f32 %v914, %v910
    %v933 = vmul.f32 %v918, %v909
    %v934 = vmul.f32 %v918, %v910
    %v935 = vmul.f32 %v922, %v909
    %v936 = vmul.f32 %v922, %v910
    %v937 = vmul.f32 %v926, %v909
    %v938 = vmul.f32 %v926, %v910
    %v941 = vunpack.c.l.s4 1966171168
    %v942 = vunpack.c.0.s8 %v941
    %v943 = vlaneseq
    %v944 = vshrl.u32 %v943, 7
    %v945 = vsub.s32 %v942, %v944
    %v946 = vrot.slane %v882, %v945
    %v947 = vcombine.high %v946, %v946
    %v949 = vunpack.c.l.s4 1966171168
    %v950 = vunpack.c.0.s8 %v949
    %v951 = vlaneseq
    %v952 = vshrl.u32 %v951, 7
    %v953 = vsub.s32 %v950, %v952
    %v954 = vrot.slane %v946, %v953
    %v956 = vunpack.c.l.s4 1966171168
    %v957 = vunpack.c.0.s8 %v956
    %v958 = vlaneseq
    %v959 = vshrl.u32 %v958, 7
    %v960 = vsub.s32 %v957, %v959
    %v961 = vrot.slane %v947, %v960
    %v962 = vcombine.high %v954, %v954
    %v963 = vcombine.high %v961, %v961
    %s964 = scalar_lea.vmem [#allocation16], 16
    %v965 = vld [vmem:[%s964] sm:$0xff]
    %v966 = vld [vmem:[%s964 + $0x8] sm:$0x1]
    %v967 = vlaneseq
    %v968 = vshrl.u32 %v967, 7
    %v969 = vsub.s32 0, %v968
    %v970 = vrot.slane %v954, %v969
    %v971 = vlaneseq
    %v972 = vshrl.u32 %v971, 7
    %v973 = vsub.s32 0, %v972
    %v974 = vrot.slane %v961, %v973
    %v975 = vlaneseq
    %v976 = vshrl.u32 %v975, 7
    %v977 = vsub.s32 0, %v976
    %v978 = vrot.slane %v962, %v977
    %v979 = vlaneseq
    %v980 = vshrl.u32 %v979, 7
    %v981 = vsub.s32 0, %v980
    %v982 = vrot.slane %v963, %v981
    %v987 = vmul.f32 %v970, %v965
    %v988 = vmul.f32 %v970, %v966
    %v989 = vmul.f32 %v974, %v965
    %v990 = vmul.f32 %v974, %v966
    %v991 = vmul.f32 %v978, %v965
    %v992 = vmul.f32 %v978, %v966
    %v993 = vmul.f32 %v982, %v965
    %v994 = vmul.f32 %v982, %v966
    %v995 = vadd.f32 %v931, %v987
    %v996 = vadd.f32 %v932, %v988
    %v997 = vadd.f32 %v933, %v989
    %v998 = vadd.f32 %v934, %v990
    %v999 = vadd.f32 %v935, %v991
    %v1000 = vadd.f32 %v936, %v992
    %v1001 = vadd.f32 %v937, %v993
    %v1002 = vadd.f32 %v938, %v994
    %v1005 = vunpack.c.l.s4 1966171168
    %v1006 = vunpack.c.0.s8 %v1005
    %v1007 = vlaneseq
    %v1008 = vshrl.u32 %v1007, 7
    %v1009 = vsub.s32 %v1006, %v1008
    %v1010 = vrot.slane %v883, %v1009
    %v1011 = vcombine.high %v1010, %v1010
    %v1013 = vunpack.c.l.s4 1966171168
    %v1014 = vunpack.c.0.s8 %v1013
    %v1015 = vlaneseq
    %v1016 = vshrl.u32 %v1015, 7
    %v1017 = vsub.s32 %v1014, %v1016
    %v1018 = vrot.slane %v1010, %v1017
    %v1020 = vunpack.c.l.s4 1966171168
    %v1021 = vunpack.c.0.s8 %v1020
    %v1022 = vlaneseq
    %v1023 = vshrl.u32 %v1022, 7
    %v1024 = vsub.s32 %v1021, %v1023
    %v1025 = vrot.slane %v1011, %v1024
    %v1026 = vcombine.high %v1018, %v1018
    %v1027 = vcombine.high %v1025, %v1025
    %s1028 = scalar_lea.vmem [#allocation16], 32
    %v1029 = vld [vmem:[%s1028] sm:$0xff]
    %v1030 = vld [vmem:[%s1028 + $0x8] sm:$0x1]
    %v1031 = vlaneseq
    %v1032 = vshrl.u32 %v1031, 7
    %v1033 = vsub.s32 0, %v1032
    %v1034 = vrot.slane %v1018, %v1033
    %v1035 = vlaneseq
    %v1036 = vshrl.u32 %v1035, 7
    %v1037 = vsub.s32 0, %v1036
    %v1038 = vrot.slane %v1025, %v1037
    %v1039 = vlaneseq
    %v1040 = vshrl.u32 %v1039, 7
    %v1041 = vsub.s32 0, %v1040
    %v1042 = vrot.slane %v1026, %v1041
    %v1043 = vlaneseq
    %v1044 = vshrl.u32 %v1043, 7
    %v1045 = vsub.s32 0, %v1044
    %v1046 = vrot.slane %v1027, %v1045
    %v1051 = vmul.f32 %v1034, %v1029
    %v1052 = vmul.f32 %v1034, %v1030
    %v1053 = vmul.f32 %v1038, %v1029
    %v1054 = vmul.f32 %v1038, %v1030
    %v1055 = vmul.f32 %v1042, %v1029
    %v1056 = vmul.f32 %v1042, %v1030
    %v1057 = vmul.f32 %v1046, %v1029
    %v1058 = vmul.f32 %v1046, %v1030
    %v1059 = vadd.f32 %v995, %v1051
    %v1060 = vadd.f32 %v996, %v1052
    %v1061 = vadd.f32 %v997, %v1053
    %v1062 = vadd.f32 %v998, %v1054
    %v1063 = vadd.f32 %v999, %v1055
    %v1064 = vadd.f32 %v1000, %v1056
    %v1065 = vadd.f32 %v1001, %v1057
    %v1066 = vadd.f32 %v1002, %v1058
    %1067 = vst [vmem:[#allocation5] sm:$0xff] %v1059
    %1068 = vst [vmem:[#allocation5 + $0x8] sm:$0x1] %v1060
    %1069 = vst [vmem:[#allocation5 + $0x10] sm:$0xff] %v1061
    %1070 = vst [vmem:[#allocation5 + $0x18] sm:$0x1] %v1062
    %1071 = vst [vmem:[#allocation5 + $0x20] sm:$0xff] %v1063
    %1072 = vst [vmem:[#allocation5 + $0x28] sm:$0x1] %v1064
    %1073 = vst [vmem:[#allocation5 + $0x30] sm:$0xff] %v1065
    %1074 = vst [vmem:[#allocation5 + $0x38] sm:$0x1] %v1066
    %s1075 = scalar_lea.vmem [#allocation16], 48
    %v1076 = vld [vmem:[%s1075] sm:$0xff]
    %v1077 = vld [vmem:[%s1075 + $0x8] sm:$0x1]
    %v1078 = vmul.f32 %v914, %v1076
    %v1079 = vmul.f32 %v914, %v1077
    %v1080 = vmul.f32 %v918, %v1076
    %v1081 = vmul.f32 %v918, %v1077
    %v1082 = vmul.f32 %v922, %v1076
    %v1083 = vmul.f32 %v922, %v1077
    %v1084 = vmul.f32 %v926, %v1076
    %v1085 = vmul.f32 %v926, %v1077
    %s1086 = scalar_lea.vmem [#allocation16], 64
    %v1087 = vld [vmem:[%s1086] sm:$0xff]
    %v1088 = vld [vmem:[%s1086 + $0x8] sm:$0x1]
    %v1089 = vmul.f32 %v970, %v1087
    %v1090 = vmul.f32 %v970, %v1088
    %v1091 = vmul.f32 %v974, %v1087
    %v1092 = vmul.f32 %v974, %v1088
    %v1093 = vmul.f32 %v978, %v1087
    %v1094 = vmul.f32 %v978, %v1088
    %v1095 = vmul.f32 %v982, %v1087
    %v1096 = vmul.f32 %v982, %v1088
    %v1097 = vadd.f32 %v1078, %v1089
    %v1098 = vadd.f32 %v1079, %v1090
    %v1099 = vadd.f32 %v1080, %v1091
    %v1100 = vadd.f32 %v1081, %v1092
    %v1101 = vadd.f32 %v1082, %v1093
    %v1102 = vadd.f32 %v1083, %v1094
    %v1103 = vadd.f32 %v1084, %v1095
    %v1104 = vadd.f32 %v1085, %v1096
    %s1105 = scalar_lea.vmem [#allocation16], 80
    %v1106 = vld [vmem:[%s1105] sm:$0xff]
    %v1107 = vld [vmem:[%s1105 + $0x8] sm:$0x1]
    %v1108 = vmul.f32 %v1034, %v1106
    %v1109 = vmul.f32 %v1034, %v1107
    %v1110 = vmul.f32 %v1038, %v1106
    %v1111 = vmul.f32 %v1038, %v1107
    %v1112 = vmul.f32 %v1042, %v1106
    %v1113 = vmul.f32 %v1042, %v1107
    %v1114 = vmul.f32 %v1046, %v1106
    %v1115 = vmul.f32 %v1046, %v1107
    %v1116 = vadd.f32 %v1097, %v1108
    %v1117 = vadd.f32 %v1098, %v1109
    %v1118 = vadd.f32 %v1099, %v1110
    %v1119 = vadd.f32 %v1100, %v1111
    %v1120 = vadd.f32 %v1101, %v1112
    %v1121 = vadd.f32 %v1102, %v1113
    %v1122 = vadd.f32 %v1103, %v1114
    %v1123 = vadd.f32 %v1104, %v1115
    %s1124 = scalar_lea.vmem [#allocation5], 64
    %1125 = vst [vmem:[%s1124] sm:$0xff] %v1116
    %1126 = vst [vmem:[%s1124 + $0x8] sm:$0x1] %v1117
    %1127 = vst [vmem:[%s1124 + $0x10] sm:$0xff] %v1118
    %1128 = vst [vmem:[%s1124 + $0x18] sm:$0x1] %v1119
    %1129 = vst [vmem:[%s1124 + $0x20] sm:$0xff] %v1120
    %1130 = vst [vmem:[%s1124 + $0x28] sm:$0x1] %v1121
    %1131 = vst [vmem:[%s1124 + $0x30] sm:$0xff] %v1122
    %1132 = vst [vmem:[%s1124 + $0x38] sm:$0x1] %v1123
    %s1133 = scalar_lea.vmem [#allocation16], 96
    %v1134 = vld [vmem:[%s1133] sm:$0xff]
    %v1135 = vld [vmem:[%s1133 + $0x8] sm:$0x1]
    %v1136 = vmul.f32 %v914, %v1134
    %v1137 = vmul.f32 %v914, %v1135
    %v1138 = vmul.f32 %v918, %v1134
    %v1139 = vmul.f32 %v918, %v1135
    %v1140 = vmul.f32 %v922, %v1134
    %v1141 = vmul.f32 %v922, %v1135
    %v1142 = vmul.f32 %v926, %v1134
    %v1143 = vmul.f32 %v926, %v1135
    %s1144 = scalar_lea.vmem [#allocation16], 112
    %v1145 = vld [vmem:[%s1144] sm:$0xff]
    %v1146 = vld [vmem:[%s1144 + $0x8] sm:$0x1]
    %v1147 = vmul.f32 %v970, %v1145
    %v1148 = vmul.f32 %v970, %v1146
    %v1149 = vmul.f32 %v974, %v1145
    %v1150 = vmul.f32 %v974, %v1146
    %v1151 = vmul.f32 %v978, %v1145
    %v1152 = vmul.f32 %v978, %v1146
    %v1153 = vmul.f32 %v982, %v1145
    %v1154 = vmul.f32 %v982, %v1146
    %v1155 = vadd.f32 %v1136, %v1147
    %v1156 = vadd.f32 %v1137, %v1148
    %v1157 = vadd.f32 %v1138, %v1149
    %v1158 = vadd.f32 %v1139, %v1150
    %v1159 = vadd.f32 %v1140, %v1151
    %v1160 = vadd.f32 %v1141, %v1152
    %v1161 = vadd.f32 %v1142, %v1153
    %v1162 = vadd.f32 %v1143, %v1154
    %s1163 = scalar_lea.vmem [#allocation16], 128
    %v1164 = vld [vmem:[%s1163] sm:$0xff]
    %v1165 = vld [vmem:[%s1163 + $0x8] sm:$0x1]
    %v1166 = vmul.f32 %v1034, %v1164
    %v1167 = vmul.f32 %v1034, %v1165
    %v1168 = vmul.f32 %v1038, %v1164
    %v1169 = vmul.f32 %v1038, %v1165
    %v1170 = vmul.f32 %v1042, %v1164
    %v1171 = vmul.f32 %v1042, %v1165
    %v1172 = vmul.f32 %v1046, %v1164
    %v1173 = vmul.f32 %v1046, %v1165
    %v1174 = vadd.f32 %v1155, %v1166
    %v1175 = vadd.f32 %v1156, %v1167
    %v1176 = vadd.f32 %v1157, %v1168
    %v1177 = vadd.f32 %v1158, %v1169
    %v1178 = vadd.f32 %v1159, %v1170
    %v1179 = vadd.f32 %v1160, %v1171
    %v1180 = vadd.f32 %v1161, %v1172
    %v1181 = vadd.f32 %v1162, %v1173
    %s1182 = scalar_lea.vmem [#allocation5], 128
    %1183 = vst [vmem:[%s1182] sm:$0xff] %v1174
    %1184 = vst [vmem:[%s1182 + $0x8] sm:$0x1] %v1175
    %1185 = vst [vmem:[%s1182 + $0x10] sm:$0xff] %v1176
    %1186 = vst [vmem:[%s1182 + $0x18] sm:$0x1] %v1177
    %1187 = vst [vmem:[%s1182 + $0x20] sm:$0xff] %v1178
    %1188 = vst [vmem:[%s1182 + $0x28] sm:$0x1] %v1179
    %1189 = vst [vmem:[%s1182 + $0x30] sm:$0xff] %v1180
    %1190 = vst [vmem:[%s1182 + $0x38] sm:$0x1] %v1181
    %v1191 = vld [vmem:[#allocation5] sm:$0xff]
    %v1192 = vld [vmem:[#allocation5 + $0x8] sm:$0x1]
    %v1193 = vld [vmem:[#allocation5 + $0x10] sm:$0xff]
    %v1194 = vld [vmem:[#allocation5 + $0x18] sm:$0x1]
    %v1195 = vld [vmem:[#allocation5 + $0x20] sm:$0xff]
    %v1196 = vld [vmem:[#allocation5 + $0x28] sm:$0x1]
    %v1197 = vld [vmem:[#allocation5 + $0x30] sm:$0xff]
    %v1198 = vld [vmem:[#allocation5 + $0x38] sm:$0x1]
    %v1199 = vlaneseq
    %v1200 = vshrl.u32 %v1199, 7
    %v1201 = vsub.s32 0, %v1200
    %v1202 = vrot.slane %v881, %v1201
    %v1203 = vmul.f32 %v1202, %v1191
    %v1204 = vmul.f32 %v1202, %v1192
    %v1205 = vmul.f32 %v1202, %v1193
    %v1206 = vmul.f32 %v1202, %v1194
    %v1207 = vmul.f32 %v1202, %v1195
    %v1208 = vmul.f32 %v1202, %v1196
    %v1209 = vmul.f32 %v1202, %v1197
    %v1210 = vmul.f32 %v1202, %v1198
    %v1211 = vld [vmem:[%s1124] sm:$0xff]
    %v1212 = vld [vmem:[%s1124 + $0x8] sm:$0x1]
    %v1213 = vld [vmem:[%s1124 + $0x10] sm:$0xff]
    %v1214 = vld [vmem:[%s1124 + $0x18] sm:$0x1]
    %v1215 = vld [vmem:[%s1124 + $0x20] sm:$0xff]
    %v1216 = vld [vmem:[%s1124 + $0x28] sm:$0x1]
    %v1217 = vld [vmem:[%s1124 + $0x30] sm:$0xff]
    %v1218 = vld [vmem:[%s1124 + $0x38] sm:$0x1]
    %v1219 = vlaneseq
    %v1220 = vshrl.u32 %v1219, 7
    %v1221 = vsub.s32 0, %v1220
    %v1222 = vrot.slane %v882, %v1221
    %v1223 = vmul.f32 %v1222, %v1211
    %v1224 = vmul.f32 %v1222, %v1212
    %v1225 = vmul.f32 %v1222, %v1213
    %v1226 = vmul.f32 %v1222, %v1214
    %v1227 = vmul.f32 %v1222, %v1215
    %v1228 = vmul.f32 %v1222, %v1216
    %v1229 = vmul.f32 %v1222, %v1217
    %v1230 = vmul.f32 %v1222, %v1218
    %v1231 = vadd.f32 %v1203, %v1223
    %v1232 = vadd.f32 %v1204, %v1224
    %v1233 = vadd.f32 %v1205, %v1225
    %v1234 = vadd.f32 %v1206, %v1226
    %v1235 = vadd.f32 %v1207, %v1227
    %v1236 = vadd.f32 %v1208, %v1228
    %v1237 = vadd.f32 %v1209, %v1229
    %v1238 = vadd.f32 %v1210, %v1230
    %v1239 = vld [vmem:[%s1182] sm:$0xff]
    %v1240 = vld [vmem:[%s1182 + $0x8] sm:$0x1]
    %v1241 = vld [vmem:[%s1182 + $0x10] sm:$0xff]
    %v1242 = vld [vmem:[%s1182 + $0x18] sm:$0x1]
    %v1243 = vld [vmem:[%s1182 + $0x20] sm:$0xff]
    %v1244 = vld [vmem:[%s1182 + $0x28] sm:$0x1]
    %v1245 = vld [vmem:[%s1182 + $0x30] sm:$0xff]
    %v1246 = vld [vmem:[%s1182 + $0x38] sm:$0x1]
    %v1247 = vlaneseq
    %v1248 = vshrl.u32 %v1247, 7
    %v1249 = vsub.s32 0, %v1248
    %v1250 = vrot.slane %v883, %v1249
    %v1251 = vmul.f32 %v1250, %v1239
    %v1252 = vmul.f32 %v1250, %v1240
    %v1253 = vmul.f32 %v1250, %v1241
    %v1254 = vmul.f32 %v1250, %v1242
    %v1255 = vmul.f32 %v1250, %v1243
    %v1256 = vmul.f32 %v1250, %v1244
    %v1257 = vmul.f32 %v1250, %v1245
    %v1258 = vmul.f32 %v1250, %v1246
    %v1259 = vadd.f32 %v1231, %v1251
    %v1260 = vadd.f32 %v1232, %v1252
    %v1261 = vadd.f32 %v1233, %v1253
    %v1262 = vadd.f32 %v1234, %v1254
    %v1263 = vadd.f32 %v1235, %v1255
    %v1264 = vadd.f32 %v1236, %v1256
    %v1265 = vadd.f32 %v1237, %v1257
    %v1266 = vadd.f32 %v1238, %v1258
    %s1267 = scalar_lea.vmem [#allocation20], 16
    %1268 = vst [vmem:[%s1267] sm:$0x1] %v1259
    %1269 = vst [vmem:[%s1267 + $0x1] sm:$0x1] %v1261
    %1270 = vst [vmem:[%s1267 + $0x2] sm:$0x1] %v1263
    %1271 = vst [vmem:[%s1267 + $0x3] sm:$0x1] %v1265
    %s1272 = scalar_lea.vmem %s10, 64
    %1273 = vst [vmem:[%s1272 - $0x1] sm:$0xe] %v1259
    %1274 = vst [vmem:[%s1272 + $0x3] sm:$0xe] %v1261
    %1275 = vst [vmem:[%s1272 + $0x7] sm:$0xe] %v1263
    %1276 = vst [vmem:[%s1272 + $0xb] sm:$0xe] %v1265
    %s1277 = scalar_lea.vmem %s11, 128
    %1278 = vst [vmem:[%s1277 - $0x4] sm:$0xf0] %v1259
    %1279 = vst [vmem:[%s1277 + $0x4] sm:$0x1] %v1260
    %1280 = vst [vmem:[%s1277 + $0x4] sm:$0xf0] %v1261
    %1281 = vst [vmem:[%s1277 + $0xc] sm:$0x1] %v1262
    %1282 = vst [vmem:[%s1277 + $0xc] sm:$0xf0] %v1263
    %1283 = vst [vmem:[%s1277 + $0x14] sm:$0x1] %v1264
    %1284 = vst [vmem:[%s1277 + $0x14] sm:$0xf0] %v1265
    %1285 = vst [vmem:[%s1277 + $0x1c] sm:$0x1] %v1266
    %v1286 = vld [vmem:[#allocation5] sm:$0xff]
    %v1287 = vld [vmem:[#allocation5 + $0x8] sm:$0x1]
    %v1288 = vld [vmem:[#allocation5 + $0x10] sm:$0xff]
    %v1289 = vld [vmem:[#allocation5 + $0x18] sm:$0x1]
    %v1290 = vld [vmem:[#allocation5 + $0x20] sm:$0xff]
    %v1291 = vld [vmem:[#allocation5 + $0x28] sm:$0x1]
    %v1292 = vld [vmem:[#allocation5 + $0x30] sm:$0xff]
    %v1293 = vld [vmem:[#allocation5 + $0x38] sm:$0x1]
    %v1294 = vlaneseq
    %v1295 = vshrl.u32 %v1294, 7
    %v1296 = vsub.s32 1, %v1295
    %v1297 = vrot.slane %v881, %v1296
    %v1298 = vmul.f32 %v1297, %v1286
    %v1299 = vmul.f32 %v1297, %v1287
    %v1300 = vmul.f32 %v1297, %v1288
    %v1301 = vmul.f32 %v1297, %v1289
    %v1302 = vmul.f32 %v1297, %v1290
    %v1303 = vmul.f32 %v1297, %v1291
    %v1304 = vmul.f32 %v1297, %v1292
    %v1305 = vmul.f32 %v1297, %v1293
    %v1306 = vld [vmem:[%s1124] sm:$0xff]
    %v1307 = vld [vmem:[%s1124 + $0x8] sm:$0x1]
    %v1308 = vld [vmem:[%s1124 + $0x10] sm:$0xff]
    %v1309 = vld [vmem:[%s1124 + $0x18] sm:$0x1]
    %v1310 = vld [vmem:[%s1124 + $0x20] sm:$0xff]
    %v1311 = vld [vmem:[%s1124 + $0x28] sm:$0x1]
    %v1312 = vld [vmem:[%s1124 + $0x30] sm:$0xff]
    %v1313 = vld [vmem:[%s1124 + $0x38] sm:$0x1]
    %v1314 = vlaneseq
    %v1315 = vshrl.u32 %v1314, 7
    %v1316 = vsub.s32 1, %v1315
    %v1317 = vrot.slane %v882, %v1316
    %v1318 = vmul.f32 %v1317, %v1306
    %v1319 = vmul.f32 %v1317, %v1307
    %v1320 = vmul.f32 %v1317, %v1308
    %v1321 = vmul.f32 %v1317, %v1309
    %v1322 = vmul.f32 %v1317, %v1310
    %v1323 = vmul.f32 %v1317, %v1311
    %v1324 = vmul.f32 %v1317, %v1312
    %v1325 = vmul.f32 %v1317, %v1313
    %v1326 = vadd.f32 %v1298, %v1318
    %v1327 = vadd.f32 %v1299, %v1319
    %v1328 = vadd.f32 %v1300, %v1320
    %v1329 = vadd.f32 %v1301, %v1321
    %v1330 = vadd.f32 %v1302, %v1322
    %v1331 = vadd.f32 %v1303, %v1323
    %v1332 = vadd.f32 %v1304, %v1324
    %v1333 = vadd.f32 %v1305, %v1325
    %v1334 = vld [vmem:[%s1182] sm:$0xff]
    %v1335 = vld [vmem:[%s1182 + $0x8] sm:$0x1]
    %v1336 = vld [vmem:[%s1182 + $0x10] sm:$0xff]
    %v1337 = vld [vmem:[%s1182 + $0x18] sm:$0x1]
    %v1338 = vld [vmem:[%s1182 + $0x20] sm:$0xff]
    %v1339 = vld [vmem:[%s1182 + $0x28] sm:$0x1]
    %v1340 = vld [vmem:[%s1182 + $0x30] sm:$0xff]
    %v1341 = vld [vmem:[%s1182 + $0x38] sm:$0x1]
    %v1342 = vlaneseq
    %v1343 = vshrl.u32 %v1342, 7
    %v1344 = vsub.s32 1, %v1343
    %v1345 = vrot.slane %v883, %v1344
    %v1346 = vmul.f32 %v1345, %v1334
    %v1347 = vmul.f32 %v1345, %v1335
    %v1348 = vmul.f32 %v1345, %v1336
    %v1349 = vmul.f32 %v1345, %v1337
    %v1350 = vmul.f32 %v1345, %v1338
    %v1351 = vmul.f32 %v1345, %v1339
    %v1352 = vmul.f32 %v1345, %v1340
    %v1353 = vmul.f32 %v1345, %v1341
    %v1354 = vadd.f32 %v1326, %v1346
    %v1355 = vadd.f32 %v1327, %v1347
    %v1356 = vadd.f32 %v1328, %v1348
    %v1357 = vadd.f32 %v1329, %v1349
    %v1358 = vadd.f32 %v1330, %v1350
    %v1359 = vadd.f32 %v1331, %v1351
    %v1360 = vadd.f32 %v1332, %v1352
    %v1361 = vadd.f32 %v1333, %v1353
    %s1362 = scalar_lea.vmem [#allocation20], 20
    %1363 = vst [vmem:[%s1362] sm:$0x1] %v1354
    %1364 = vst [vmem:[%s1362 + $0x1] sm:$0x1] %v1356
    %1365 = vst [vmem:[%s1362 + $0x2] sm:$0x1] %v1358
    %1366 = vst [vmem:[%s1362 + $0x3] sm:$0x1] %v1360
    %s1367 = scalar_lea.vmem %s10, 80
    %1368 = vst [vmem:[%s1367 - $0x1] sm:$0xe] %v1354
    %1369 = vst [vmem:[%s1367 + $0x3] sm:$0xe] %v1356
    %1370 = vst [vmem:[%s1367 + $0x7] sm:$0xe] %v1358
    %1371 = vst [vmem:[%s1367 + $0xb] sm:$0xe] %v1360
    %s1372 = scalar_lea.vmem %s11, 160
    %1373 = vst [vmem:[%s1372 - $0x4] sm:$0xf0] %v1354
    %1374 = vst [vmem:[%s1372 + $0x4] sm:$0x1] %v1355
    %1375 = vst [vmem:[%s1372 + $0x4] sm:$0xf0] %v1356
    %1376 = vst [vmem:[%s1372 + $0xc] sm:$0x1] %v1357
    %1377 = vst [vmem:[%s1372 + $0xc] sm:$0xf0] %v1358
    %1378 = vst [vmem:[%s1372 + $0x14] sm:$0x1] %v1359
    %1379 = vst [vmem:[%s1372 + $0x14] sm:$0xf0] %v1360
    %1380 = vst [vmem:[%s1372 + $0x1c] sm:$0x1] %v1361
    %v1381 = vld [vmem:[#allocation5] sm:$0xff]
    %v1382 = vld [vmem:[#allocation5 + $0x8] sm:$0x1]
    %v1383 = vld [vmem:[#allocation5 + $0x10] sm:$0xff]
    %v1384 = vld [vmem:[#allocation5 + $0x18] sm:$0x1]
    %v1385 = vld [vmem:[#allocation5 + $0x20] sm:$0xff]
    %v1386 = vld [vmem:[#allocation5 + $0x28] sm:$0x1]
    %v1387 = vld [vmem:[#allocation5 + $0x30] sm:$0xff]
    %v1388 = vld [vmem:[#allocation5 + $0x38] sm:$0x1]
    %v1389 = vlaneseq
    %v1390 = vshrl.u32 %v1389, 7
    %v1391 = vsub.s32 2, %v1390
    %v1392 = vrot.slane %v881, %v1391
    %v1393 = vmul.f32 %v1392, %v1381
    %v1394 = vmul.f32 %v1392, %v1382
    %v1395 = vmul.f32 %v1392, %v1383
    %v1396 = vmul.f32 %v1392, %v1384
    %v1397 = vmul.f32 %v1392, %v1385
    %v1398 = vmul.f32 %v1392, %v1386
    %v1399 = vmul.f32 %v1392, %v1387
    %v1400 = vmul.f32 %v1392, %v1388
    %v1401 = vld [vmem:[%s1124] sm:$0xff]
    %v1402 = vld [vmem:[%s1124 + $0x8] sm:$0x1]
    %v1403 = vld [vmem:[%s1124 + $0x10] sm:$0xff]
    %v1404 = vld [vmem:[%s1124 + $0x18] sm:$0x1]
    %v1405 = vld [vmem:[%s1124 + $0x20] sm:$0xff]
    %v1406 = vld [vmem:[%s1124 + $0x28] sm:$0x1]
    %v1407 = vld [vmem:[%s1124 + $0x30] sm:$0xff]
    %v1408 = vld [vmem:[%s1124 + $0x38] sm:$0x1]
    %v1409 = vlaneseq
    %v1410 = vshrl.u32 %v1409, 7
    %v1411 = vsub.s32 2, %v1410
    %v1412 = vrot.slane %v882, %v1411
    %v1413 = vmul.f32 %v1412, %v1401
    %v1414 = vmul.f32 %v1412, %v1402
    %v1415 = vmul.f32 %v1412, %v1403
    %v1416 = vmul.f32 %v1412, %v1404
    %v1417 = vmul.f32 %v1412, %v1405
    %v1418 = vmul.f32 %v1412, %v1406
    %v1419 = vmul.f32 %v1412, %v1407
    %v1420 = vmul.f32 %v1412, %v1408
    %v1421 = vadd.f32 %v1393, %v1413
    %v1422 = vadd.f32 %v1394, %v1414
    %v1423 = vadd.f32 %v1395, %v1415
    %v1424 = vadd.f32 %v1396, %v1416
    %v1425 = vadd.f32 %v1397, %v1417
    %v1426 = vadd.f32 %v1398, %v1418
    %v1427 = vadd.f32 %v1399, %v1419
    %v1428 = vadd.f32 %v1400, %v1420
    %v1429 = vld [vmem:[%s1182] sm:$0xff]
    %v1430 = vld [vmem:[%s1182 + $0x8] sm:$0x1]
    %v1431 = vld [vmem:[%s1182 + $0x10] sm:$0xff]
    %v1432 = vld [vmem:[%s1182 + $0x18] sm:$0x1]
    %v1433 = vld [vmem:[%s1182 + $0x20] sm:$0xff]
    %v1434 = vld [vmem:[%s1182 + $0x28] sm:$0x1]
    %v1435 = vld [vmem:[%s1182 + $0x30] sm:$0xff]
    %v1436 = vld [vmem:[%s1182 + $0x38] sm:$0x1]
    %v1437 = vlaneseq
    %v1438 = vshrl.u32 %v1437, 7
    %v1439 = vsub.s32 2, %v1438
    %v1440 = vrot.slane %v883, %v1439
    %v1441 = vmul.f32 %v1440, %v1429
    %v1442 = vmul.f32 %v1440, %v1430
    %v1443 = vmul.f32 %v1440, %v1431
    %v1444 = vmul.f32 %v1440, %v1432
    %v1445 = vmul.f32 %v1440, %v1433
    %v1446 = vmul.f32 %v1440, %v1434
    %v1447 = vmul.f32 %v1440, %v1435
    %v1448 = vmul.f32 %v1440, %v1436
    %v1449 = vadd.f32 %v1421, %v1441
    %v1450 = vadd.f32 %v1422, %v1442
    %v1451 = vadd.f32 %v1423, %v1443
    %v1452 = vadd.f32 %v1424, %v1444
    %v1453 = vadd.f32 %v1425, %v1445
    %v1454 = vadd.f32 %v1426, %v1446
    %v1455 = vadd.f32 %v1427, %v1447
    %v1456 = vadd.f32 %v1428, %v1448
    %s1457 = scalar_lea.vmem [#allocation20], 24
    %1458 = vst [vmem:[%s1457] sm:$0x1] %v1449
    %1459 = vst [vmem:[%s1457 + $0x1] sm:$0x1] %v1451
    %1460 = vst [vmem:[%s1457 + $0x2] sm:$0x1] %v1453
    %1461 = vst [vmem:[%s1457 + $0x3] sm:$0x1] %v1455
    %s1462 = scalar_lea.vmem %s10, 96
    %1463 = vst [vmem:[%s1462 - $0x1] sm:$0xe] %v1449
    %1464 = vst [vmem:[%s1462 + $0x3] sm:$0xe] %v1451
    %1465 = vst [vmem:[%s1462 + $0x7] sm:$0xe] %v1453
    %1466 = vst [vmem:[%s1462 + $0xb] sm:$0xe] %v1455
    %s1467 = scalar_lea.vmem %s11, 192
    %1468 = vst [vmem:[%s1467 - $0x4] sm:$0xf0] %v1449
    %1469 = vst [vmem:[%s1467 + $0x4] sm:$0x1] %v1450
    %1470 = vst [vmem:[%s1467 + $0x4] sm:$0xf0] %v1451
    %1471 = vst [vmem:[%s1467 + $0xc] sm:$0x1] %v1452
    %1472 = vst [vmem:[%s1467 + $0xc] sm:$0xf0] %v1453
    %1473 = vst [vmem:[%s1467 + $0x14] sm:$0x1] %v1454
    %1474 = vst [vmem:[%s1467 + $0x14] sm:$0xf0] %v1455
    %1475 = vst [vmem:[%s1467 + $0x1c] sm:$0x1] %v1456
    %v1476 = vld [vmem:[#allocation5] sm:$0xff]
    %v1477 = vld [vmem:[#allocation5 + $0x8] sm:$0x1]
    %v1478 = vld [vmem:[#allocation5 + $0x10] sm:$0xff]
    %v1479 = vld [vmem:[#allocation5 + $0x18] sm:$0x1]
    %v1480 = vld [vmem:[#allocation5 + $0x20] sm:$0xff]
    %v1481 = vld [vmem:[#allocation5 + $0x28] sm:$0x1]
    %v1482 = vld [vmem:[#allocation5 + $0x30] sm:$0xff]
    %v1483 = vld [vmem:[#allocation5 + $0x38] sm:$0x1]
    %v1484 = vlaneseq
    %v1485 = vshrl.u32 %v1484, 7
    %v1486 = vsub.s32 3, %v1485
    %v1487 = vrot.slane %v881, %v1486
    %v1488 = vmul.f32 %v1487, %v1476
    %v1489 = vmul.f32 %v1487, %v1477
    %v1490 = vmul.f32 %v1487, %v1478
    %v1491 = vmul.f32 %v1487, %v1479
    %v1492 = vmul.f32 %v1487, %v1480
    %v1493 = vmul.f32 %v1487, %v1481
    %v1494 = vmul.f32 %v1487, %v1482
    %v1495 = vmul.f32 %v1487, %v1483
    %v1496 = vld [vmem:[%s1124] sm:$0xff]
    %v1497 = vld [vmem:[%s1124 + $0x8] sm:$0x1]
    %v1498 = vld [vmem:[%s1124 + $0x10] sm:$0xff]
    %v1499 = vld [vmem:[%s1124 + $0x18] sm:$0x1]
    %v1500 = vld [vmem:[%s1124 + $0x20] sm:$0xff]
    %v1501 = vld [vmem:[%s1124 + $0x28] sm:$0x1]
    %v1502 = vld [vmem:[%s1124 + $0x30] sm:$0xff]
    %v1503 = vld [vmem:[%s1124 + $0x38] sm:$0x1]
    %v1504 = vlaneseq
    %v1505 = vshrl.u32 %v1504, 7
    %v1506 = vsub.s32 3, %v1505
    %v1507 = vrot.slane %v882, %v1506
    %v1508 = vmul.f32 %v1507, %v1496
    %v1509 = vmul.f32 %v1507, %v1497
    %v1510 = vmul.f32 %v1507, %v1498
    %v1511 = vmul.f32 %v1507, %v1499
    %v1512 = vmul.f32 %v1507, %v1500
    %v1513 = vmul.f32 %v1507, %v1501
    %v1514 = vmul.f32 %v1507, %v1502
    %v1515 = vmul.f32 %v1507, %v1503
    %v1516 = vadd.f32 %v1488, %v1508
    %v1517 = vadd.f32 %v1489, %v1509
    %v1518 = vadd.f32 %v1490, %v1510
    %v1519 = vadd.f32 %v1491, %v1511
    %v1520 = vadd.f32 %v1492, %v1512
    %v1521 = vadd.f32 %v1493, %v1513
    %v1522 = vadd.f32 %v1494, %v1514
    %v1523 = vadd.f32 %v1495, %v1515
    %v1524 = vld [vmem:[%s1182] sm:$0xff]
    %v1525 = vld [vmem:[%s1182 + $0x8] sm:$0x1]
    %v1526 = vld [vmem:[%s1182 + $0x10] sm:$0xff]
    %v1527 = vld [vmem:[%s1182 + $0x18] sm:$0x1]
    %v1528 = vld [vmem:[%s1182 + $0x20] sm:$0xff]
    %v1529 = vld [vmem:[%s1182 + $0x28] sm:$0x1]
    %v1530 = vld [vmem:[%s1182 + $0x30] sm:$0xff]
    %v1531 = vld [vmem:[%s1182 + $0x38] sm:$0x1]
    %v1532 = vlaneseq
    %v1533 = vshrl.u32 %v1532, 7
    %v1534 = vsub.s32 3, %v1533
    %v1535 = vrot.slane %v883, %v1534
    %v1536 = vmul.f32 %v1535, %v1524
    %v1537 = vmul.f32 %v1535, %v1525
    %v1538 = vmul.f32 %v1535, %v1526
    %v1539 = vmul.f32 %v1535, %v1527
    %v1540 = vmul.f32 %v1535, %v1528
    %v1541 = vmul.f32 %v1535, %v1529
    %v1542 = vmul.f32 %v1535, %v1530
    %v1543 = vmul.f32 %v1535, %v1531
    %v1544 = vadd.f32 %v1516, %v1536
    %v1545 = vadd.f32 %v1517, %v1537
    %v1546 = vadd.f32 %v1518, %v1538
    %v1547 = vadd.f32 %v1519, %v1539
    %v1548 = vadd.f32 %v1520, %v1540
    %v1549 = vadd.f32 %v1521, %v1541
    %v1550 = vadd.f32 %v1522, %v1542
    %v1551 = vadd.f32 %v1523, %v1543
    %s1552 = scalar_lea.vmem [#allocation20], 28
    %1553 = vst [vmem:[%s1552] sm:$0x1] %v1544
    %1554 = vst [vmem:[%s1552 + $0x1] sm:$0x1] %v1546
    %1555 = vst [vmem:[%s1552 + $0x2] sm:$0x1] %v1548
    %1556 = vst [vmem:[%s1552 + $0x3] sm:$0x1] %v1550
    %s1557 = scalar_lea.vmem %s10, 112
    %1558 = vst [vmem:[%s1557 - $0x1] sm:$0xe] %v1544
    %1559 = vst [vmem:[%s1557 + $0x3] sm:$0xe] %v1546
    %1560 = vst [vmem:[%s1557 + $0x7] sm:$0xe] %v1548
    %1561 = vst [vmem:[%s1557 + $0xb] sm:$0xe] %v1550
    %s1562 = scalar_lea.vmem %s11, 224
    %1563 = vst [vmem:[%s1562 - $0x4] sm:$0xf0] %v1544
    %1564 = vst [vmem:[%s1562 + $0x4] sm:$0x1] %v1545
    %1565 = vst [vmem:[%s1562 + $0x4] sm:$0xf0] %v1546
    %1566 = vst [vmem:[%s1562 + $0xc] sm:$0x1] %v1547
    %1567 = vst [vmem:[%s1562 + $0xc] sm:$0xf0] %v1548
    %1568 = vst [vmem:[%s1562 + $0x14] sm:$0x1] %v1549
    %1569 = vst [vmem:[%s1562 + $0x14] sm:$0xf0] %v1550
    %1570 = vst [vmem:[%s1562 + $0x1c] sm:$0x1] %v1551
    %v1571 = vld [vmem:[#allocation13] sm:$0xf]
    %v1572 = vld [vmem:[%s531] sm:$0xf]
    %v1573 = vld [vmem:[%s533] sm:$0xf]
    %v1574 = vld [vmem:[%s535] sm:$0xf]
    %v1575 = vld [vmem:[%s537] sm:$0xf]
    %v1576 = vld [vmem:[#allocation11] sm:$0xf]
    %v1577 = vld [vmem:[%s294] sm:$0xf]
    %v1578 = vld [vmem:[%s296] sm:$0xf]
    %v1581 = vunpack.c.l.s4 1966171168
    %v1582 = vunpack.c.0.s8 %v1581
    %v1583 = vlaneseq
    %v1584 = vshrl.u32 %v1583, 7
    %v1585 = vsub.s32 %v1582, %v1584
    %v1586 = vrot.slane %v1571, %v1585
    %v1587 = vcombine.high %v1586, %v1586
    %v1589 = vunpack.c.l.s4 1966171168
    %v1590 = vunpack.c.0.s8 %v1589
    %v1591 = vlaneseq
    %v1592 = vshrl.u32 %v1591, 7
    %v1593 = vsub.s32 %v1590, %v1592
    %v1594 = vrot.slane %v1586, %v1593
    %v1596 = vunpack.c.l.s4 1966171168
    %v1597 = vunpack.c.0.s8 %v1596
    %v1598 = vlaneseq
    %v1599 = vshrl.u32 %v1598, 7
    %v1600 = vsub.s32 %v1597, %v1599
    %v1601 = vrot.slane %v1587, %v1600
    %v1602 = vcombine.high %v1594, %v1594
    %v1603 = vcombine.high %v1601, %v1601
    %v1604 = vld [vmem:[#allocation17] sm:$0xff]
    %v1605 = vld [vmem:[#allocation17 + $0x8] sm:$0x7f]
    %v1606 = vlaneseq
    %v1607 = vshrl.u32 %v1606, 7
    %v1608 = vsub.s32 0, %v1607
    %v1609 = vrot.slane %v1594, %v1608
    %v1610 = vlaneseq
    %v1611 = vshrl.u32 %v1610, 7
    %v1612 = vsub.s32 0, %v1611
    %v1613 = vrot.slane %v1601, %v1612
    %v1614 = vlaneseq
    %v1615 = vshrl.u32 %v1614, 7
    %v1616 = vsub.s32 0, %v1615
    %v1617 = vrot.slane %v1602, %v1616
    %v1618 = vlaneseq
    %v1619 = vshrl.u32 %v1618, 7
    %v1620 = vsub.s32 0, %v1619
    %v1621 = vrot.slane %v1603, %v1620
    %v1626 = vmul.f32 %v1609, %v1604
    %v1627 = vmul.f32 %v1609, %v1605
    %v1628 = vmul.f32 %v1613, %v1604
    %v1629 = vmul.f32 %v1613, %v1605
    %v1630 = vmul.f32 %v1617, %v1604
    %v1631 = vmul.f32 %v1617, %v1605
    %v1632 = vmul.f32 %v1621, %v1604
    %v1633 = vmul.f32 %v1621, %v1605
    %v1636 = vunpack.c.l.s4 1966171168
    %v1637 = vunpack.c.0.s8 %v1636
    %v1638 = vlaneseq
    %v1639 = vshrl.u32 %v1638, 7
    %v1640 = vsub.s32 %v1637, %v1639
    %v1641 = vrot.slane %v1572, %v1640
    %v1642 = vcombine.high %v1641, %v1641
    %v1644 = vunpack.c.l.s4 1966171168
    %v1645 = vunpack.c.0.s8 %v1644
    %v1646 = vlaneseq
    %v1647 = vshrl.u32 %v1646, 7
    %v1648 = vsub.s32 %v1645, %v1647
    %v1649 = vrot.slane %v1641, %v1648
    %v1651 = vunpack.c.l.s4 1966171168
    %v1652 = vunpack.c.0.s8 %v1651
    %v1653 = vlaneseq
    %v1654 = vshrl.u32 %v1653, 7
    %v1655 = vsub.s32 %v1652, %v1654
    %v1656 = vrot.slane %v1642, %v1655
    %v1657 = vcombine.high %v1649, %v1649
    %v1658 = vcombine.high %v1656, %v1656
    %s1659 = scalar_lea.vmem [#allocation17], 16
    %v1660 = vld [vmem:[%s1659] sm:$0xff]
    %v1661 = vld [vmem:[%s1659 + $0x8] sm:$0x7f]
    %v1662 = vlaneseq
    %v1663 = vshrl.u32 %v1662, 7
    %v1664 = vsub.s32 0, %v1663
    %v1665 = vrot.slane %v1649, %v1664
    %v1666 = vlaneseq
    %v1667 = vshrl.u32 %v1666, 7
    %v1668 = vsub.s32 0, %v1667
    %v1669 = vrot.slane %v1656, %v1668
    %v1670 = vlaneseq
    %v1671 = vshrl.u32 %v1670, 7
    %v1672 = vsub.s32 0, %v1671
    %v1673 = vrot.slane %v1657, %v1672
    %v1674 = vlaneseq
    %v1675 = vshrl.u32 %v1674, 7
    %v1676 = vsub.s32 0, %v1675
    %v1677 = vrot.slane %v1658, %v1676
    %v1682 = vmul.f32 %v1665, %v1660
    %v1683 = vmul.f32 %v1665, %v1661
    %v1684 = vmul.f32 %v1669, %v1660
    %v1685 = vmul.f32 %v1669, %v1661
    %v1686 = vmul.f32 %v1673, %v1660
    %v1687 = vmul.f32 %v1673, %v1661
    %v1688 = vmul.f32 %v1677, %v1660
    %v1689 = vmul.f32 %v1677, %v1661
    %v1690 = vadd.f32 %v1626, %v1682
    %v1691 = vadd.f32 %v1627, %v1683
    %v1692 = vadd.f32 %v1628, %v1684
    %v1693 = vadd.f32 %v1629, %v1685
    %v1694 = vadd.f32 %v1630, %v1686
    %v1695 = vadd.f32 %v1631, %v1687
    %v1696 = vadd.f32 %v1632, %v1688
    %v1697 = vadd.f32 %v1633, %v1689
    %v1700 = vunpack.c.l.s4 1966171168
    %v1701 = vunpack.c.0.s8 %v1700
    %v1702 = vlaneseq
    %v1703 = vshrl.u32 %v1702, 7
    %v1704 = vsub.s32 %v1701, %v1703
    %v1705 = vrot.slane %v1573, %v1704
    %v1706 = vcombine.high %v1705, %v1705
    %v1708 = vunpack.c.l.s4 1966171168
    %v1709 = vunpack.c.0.s8 %v1708
    %v1710 = vlaneseq
    %v1711 = vshrl.u32 %v1710, 7
    %v1712 = vsub.s32 %v1709, %v1711
    %v1713 = vrot.slane %v1705, %v1712
    %v1715 = vunpack.c.l.s4 1966171168
    %v1716 = vunpack.c.0.s8 %v1715
    %v1717 = vlaneseq
    %v1718 = vshrl.u32 %v1717, 7
    %v1719 = vsub.s32 %v1716, %v1718
    %v1720 = vrot.slane %v1706, %v1719
    %v1721 = vcombine.high %v1713, %v1713
    %v1722 = vcombine.high %v1720, %v1720
    %s1723 = scalar_lea.vmem [#allocation17], 32
    %v1724 = vld [vmem:[%s1723] sm:$0xff]
    %v1725 = vld [vmem:[%s1723 + $0x8] sm:$0x7f]
    %v1726 = vlaneseq
    %v1727 = vshrl.u32 %v1726, 7
    %v1728 = vsub.s32 0, %v1727
    %v1729 = vrot.slane %v1713, %v1728
    %v1730 = vlaneseq
    %v1731 = vshrl.u32 %v1730, 7
    %v1732 = vsub.s32 0, %v1731
    %v1733 = vrot.slane %v1720, %v1732
    %v1734 = vlaneseq
    %v1735 = vshrl.u32 %v1734, 7
    %v1736 = vsub.s32 0, %v1735
    %v1737 = vrot.slane %v1721, %v1736
    %v1738 = vlaneseq
    %v1739 = vshrl.u32 %v1738, 7
    %v1740 = vsub.s32 0, %v1739
    %v1741 = vrot.slane %v1722, %v1740
    %v1746 = vmul.f32 %v1729, %v1724
    %v1747 = vmul.f32 %v1729, %v1725
    %v1748 = vmul.f32 %v1733, %v1724
    %v1749 = vmul.f32 %v1733, %v1725
    %v1750 = vmul.f32 %v1737, %v1724
    %v1751 = vmul.f32 %v1737, %v1725
    %v1752 = vmul.f32 %v1741, %v1724
    %v1753 = vmul.f32 %v1741, %v1725
    %v1754 = vadd.f32 %v1690, %v1746
    %v1755 = vadd.f32 %v1691, %v1747
    %v1756 = vadd.f32 %v1692, %v1748
    %v1757 = vadd.f32 %v1693, %v1749
    %v1758 = vadd.f32 %v1694, %v1750
    %v1759 = vadd.f32 %v1695, %v1751
    %v1760 = vadd.f32 %v1696, %v1752
    %v1761 = vadd.f32 %v1697, %v1753
    %v1764 = vunpack.c.l.s4 1966171168
    %v1765 = vunpack.c.0.s8 %v1764
    %v1766 = vlaneseq
    %v1767 = vshrl.u32 %v1766, 7
    %v1768 = vsub.s32 %v1765, %v1767
    %v1769 = vrot.slane %v1574, %v1768
    %v1770 = vcombine.high %v1769, %v1769
    %v1772 = vunpack.c.l.s4 1966171168
    %v1773 = vunpack.c.0.s8 %v1772
    %v1774 = vlaneseq
    %v1775 = vshrl.u32 %v1774, 7
    %v1776 = vsub.s32 %v1773, %v1775
    %v1777 = vrot.slane %v1769, %v1776
    %v1779 = vunpack.c.l.s4 1966171168
    %v1780 = vunpack.c.0.s8 %v1779
    %v1781 = vlaneseq
    %v1782 = vshrl.u32 %v1781, 7
    %v1783 = vsub.s32 %v1780, %v1782
    %v1784 = vrot.slane %v1770, %v1783
    %v1785 = vcombine.high %v1777, %v1777
    %v1786 = vcombine.high %v1784, %v1784
    %s1787 = scalar_lea.vmem [#allocation17], 48
    %v1788 = vld [vmem:[%s1787] sm:$0xff]
    %v1789 = vld [vmem:[%s1787 + $0x8] sm:$0x7f]
    %v1790 = vlaneseq
    %v1791 = vshrl.u32 %v1790, 7
    %v1792 = vsub.s32 0, %v1791
    %v1793 = vrot.slane %v1777, %v1792
    %v1794 = vlaneseq
    %v1795 = vshrl.u32 %v1794, 7
    %v1796 = vsub.s32 0, %v1795
    %v1797 = vrot.slane %v1784, %v1796
    %v1798 = vlaneseq
    %v1799 = vshrl.u32 %v1798, 7
    %v1800 = vsub.s32 0, %v1799
    %v1801 = vrot.slane %v1785, %v1800
    %v1802 = vlaneseq
    %v1803 = vshrl.u32 %v1802, 7
    %v1804 = vsub.s32 0, %v1803
    %v1805 = vrot.slane %v1786, %v1804
    %v1810 = vmul.f32 %v1793, %v1788
    %v1811 = vmul.f32 %v1793, %v1789
    %v1812 = vmul.f32 %v1797, %v1788
    %v1813 = vmul.f32 %v1797, %v1789
    %v1814 = vmul.f32 %v1801, %v1788
    %v1815 = vmul.f32 %v1801, %v1789
    %v1816 = vmul.f32 %v1805, %v1788
    %v1817 = vmul.f32 %v1805, %v1789
    %v1818 = vadd.f32 %v1754, %v1810
    %v1819 = vadd.f32 %v1755, %v1811
    %v1820 = vadd.f32 %v1756, %v1812
    %v1821 = vadd.f32 %v1757, %v1813
    %v1822 = vadd.f32 %v1758, %v1814
    %v1823 = vadd.f32 %v1759, %v1815
    %v1824 = vadd.f32 %v1760, %v1816
    %v1825 = vadd.f32 %v1761, %v1817
    %v1828 = vunpack.c.l.s4 1966171168
    %v1829 = vunpack.c.0.s8 %v1828
    %v1830 = vlaneseq
    %v1831 = vshrl.u32 %v1830, 7
    %v1832 = vsub.s32 %v1829, %v1831
    %v1833 = vrot.slane %v1575, %v1832
    %v1834 = vcombine.high %v1833, %v1833
    %v1836 = vunpack.c.l.s4 1966171168
    %v1837 = vunpack.c.0.s8 %v1836
    %v1838 = vlaneseq
    %v1839 = vshrl.u32 %v1838, 7
    %v1840 = vsub.s32 %v1837, %v1839
    %v1841 = vrot.slane %v1833, %v1840
    %v1843 = vunpack.c.l.s4 1966171168
    %v1844 = vunpack.c.0.s8 %v1843
    %v1845 = vlaneseq
    %v1846 = vshrl.u32 %v1845, 7
    %v1847 = vsub.s32 %v1844, %v1846
    %v1848 = vrot.slane %v1834, %v1847
    %v1849 = vcombine.high %v1841, %v1841
    %v1850 = vcombine.high %v1848, %v1848
    %s1851 = scalar_lea.vmem [#allocation17], 64
    %v1852 = vld [vmem:[%s1851] sm:$0xff]
    %v1853 = vld [vmem:[%s1851 + $0x8] sm:$0x7f]
    %v1854 = vlaneseq
    %v1855 = vshrl.u32 %v1854, 7
    %v1856 = vsub.s32 0, %v1855
    %v1857 = vrot.slane %v1841, %v1856
    %v1858 = vlaneseq
    %v1859 = vshrl.u32 %v1858, 7
    %v1860 = vsub.s32 0, %v1859
    %v1861 = vrot.slane %v1848, %v1860
    %v1862 = vlaneseq
    %v1863 = vshrl.u32 %v1862, 7
    %v1864 = vsub.s32 0, %v1863
    %v1865 = vrot.slane %v1849, %v1864
    %v1866 = vlaneseq
    %v1867 = vshrl.u32 %v1866, 7
    %v1868 = vsub.s32 0, %v1867
    %v1869 = vrot.slane %v1850, %v1868
    %v1874 = vmul.f32 %v1857, %v1852
    %v1875 = vmul.f32 %v1857, %v1853
    %v1876 = vmul.f32 %v1861, %v1852
    %v1877 = vmul.f32 %v1861, %v1853
    %v1878 = vmul.f32 %v1865, %v1852
    %v1879 = vmul.f32 %v1865, %v1853
    %v1880 = vmul.f32 %v1869, %v1852
    %v1881 = vmul.f32 %v1869, %v1853
    %v1882 = vadd.f32 %v1818, %v1874
    %v1883 = vadd.f32 %v1819, %v1875
    %v1884 = vadd.f32 %v1820, %v1876
    %v1885 = vadd.f32 %v1821, %v1877
    %v1886 = vadd.f32 %v1822, %v1878
    %v1887 = vadd.f32 %v1823, %v1879
    %v1888 = vadd.f32 %v1824, %v1880
    %v1889 = vadd.f32 %v1825, %v1881
    %1890 = vst [vmem:[#allocation6] sm:$0xff] %v1882
    %1891 = vst [vmem:[#allocation6 + $0x8] sm:$0x7f] %v1883
    %1892 = vst [vmem:[#allocation6 + $0x10] sm:$0xff] %v1884
    %1893 = vst [vmem:[#allocation6 + $0x18] sm:$0x7f] %v1885
    %1894 = vst [vmem:[#allocation6 + $0x20] sm:$0xff] %v1886
    %1895 = vst [vmem:[#allocation6 + $0x28] sm:$0x7f] %v1887
    %1896 = vst [vmem:[#allocation6 + $0x30] sm:$0xff] %v1888
    %1897 = vst [vmem:[#allocation6 + $0x38] sm:$0x7f] %v1889
    %s1898 = scalar_lea.vmem [#allocation17], 80
    %v1899 = vld [vmem:[%s1898] sm:$0xff]
    %v1900 = vld [vmem:[%s1898 + $0x8] sm:$0x7f]
    %v1901 = vmul.f32 %v1609, %v1899
    %v1902 = vmul.f32 %v1609, %v1900
    %v1903 = vmul.f32 %v1613, %v1899
    %v1904 = vmul.f32 %v1613, %v1900
    %v1905 = vmul.f32 %v1617, %v1899
    %v1906 = vmul.f32 %v1617, %v1900
    %v1907 = vmul.f32 %v1621, %v1899
    %v1908 = vmul.f32 %v1621, %v1900
    %s1909 = scalar_lea.vmem [#allocation17], 96
    %v1910 = vld [vmem:[%s1909] sm:$0xff]
    %v1911 = vld [vmem:[%s1909 + $0x8] sm:$0x7f]
    %v1912 = vmul.f32 %v1665, %v1910
    %v1913 = vmul.f32 %v1665, %v1911
    %v1914 = vmul.f32 %v1669, %v1910
    %v1915 = vmul.f32 %v1669, %v1911
    %v1916 = vmul.f32 %v1673, %v1910
    %v1917 = vmul.f32 %v1673, %v1911
    %v1918 = vmul.f32 %v1677, %v1910
    %v1919 = vmul.f32 %v1677, %v1911
    %v1920 = vadd.f32 %v1901, %v1912
    %v1921 = vadd.f32 %v1902, %v1913
    %v1922 = vadd.f32 %v1903, %v1914
    %v1923 = vadd.f32 %v1904, %v1915
    %v1924 = vadd.f32 %v1905, %v1916
    %v1925 = vadd.f32 %v1906, %v1917
    %v1926 = vadd.f32 %v1907, %v1918
    %v1927 = vadd.f32 %v1908, %v1919
    %s1928 = scalar_lea.vmem [#allocation17], 112
    %v1929 = vld [vmem:[%s1928] sm:$0xff]
    %v1930 = vld [vmem:[%s1928 + $0x8] sm:$0x7f]
    %v1931 = vmul.f32 %v1729, %v1929
    %v1932 = vmul.f32 %v1729, %v1930
    %v1933 = vmul.f32 %v1733, %v1929
    %v1934 = vmul.f32 %v1733, %v1930
    %v1935 = vmul.f32 %v1737, %v1929
    %v1936 = vmul.f32 %v1737, %v1930
    %v1937 = vmul.f32 %v1741, %v1929
    %v1938 = vmul.f32 %v1741, %v1930
    %v1939 = vadd.f32 %v1920, %v1931
    %v1940 = vadd.f32 %v1921, %v1932
    %v1941 = vadd.f32 %v1922, %v1933
    %v1942 = vadd.f32 %v1923, %v1934
    %v1943 = vadd.f32 %v1924, %v1935
    %v1944 = vadd.f32 %v1925, %v1936
    %v1945 = vadd.f32 %v1926, %v1937
    %v1946 = vadd.f32 %v1927, %v1938
    %s1947 = scalar_lea.vmem [#allocation17], 128
    %v1948 = vld [vmem:[%s1947] sm:$0xff]
    %v1949 = vld [vmem:[%s1947 + $0x8] sm:$0x7f]
    %v1950 = vmul.f32 %v1793, %v1948
    %v1951 = vmul.f32 %v1793, %v1949
    %v1952 = vmul.f32 %v1797, %v1948
    %v1953 = vmul.f32 %v1797, %v1949
    %v1954 = vmul.f32 %v1801, %v1948
    %v1955 = vmul.f32 %v1801, %v1949
    %v1956 = vmul.f32 %v1805, %v1948
    %v1957 = vmul.f32 %v1805, %v1949
    %v1958 = vadd.f32 %v1939, %v1950
    %v1959 = vadd.f32 %v1940, %v1951
    %v1960 = vadd.f32 %v1941, %v1952
    %v1961 = vadd.f32 %v1942, %v1953
    %v1962 = vadd.f32 %v1943, %v1954
    %v1963 = vadd.f32 %v1944, %v1955
    %v1964 = vadd.f32 %v1945, %v1956
    %v1965 = vadd.f32 %v1946, %v1957
    %s1966 = scalar_lea.vmem [#allocation17], 144
    %v1967 = vld [vmem:[%s1966] sm:$0xff]
    %v1968 = vld [vmem:[%s1966 + $0x8] sm:$0x7f]
    %v1969 = vmul.f32 %v1857, %v1967
    %v1970 = vmul.f32 %v1857, %v1968
    %v1971 = vmul.f32 %v1861, %v1967
    %v1972 = vmul.f32 %v1861, %v1968
    %v1973 = vmul.f32 %v1865, %v1967
    %v1974 = vmul.f32 %v1865, %v1968
    %v1975 = vmul.f32 %v1869, %v1967
    %v1976 = vmul.f32 %v1869, %v1968
    %v1977 = vadd.f32 %v1958, %v1969
    %v1978 = vadd.f32 %v1959, %v1970
    %v1979 = vadd.f32 %v1960, %v1971
    %v1980 = vadd.f32 %v1961, %v1972
    %v1981 = vadd.f32 %v1962, %v1973
    %v1982 = vadd.f32 %v1963, %v1974
    %v1983 = vadd.f32 %v1964, %v1975
    %v1984 = vadd.f32 %v1965, %v1976
    %s1985 = scalar_lea.vmem [#allocation6], 64
    %1986 = vst [vmem:[%s1985] sm:$0xff] %v1977
    %1987 = vst [vmem:[%s1985 + $0x8] sm:$0x7f] %v1978
    %1988 = vst [vmem:[%s1985 + $0x10] sm:$0xff] %v1979
    %1989 = vst [vmem:[%s1985 + $0x18] sm:$0x7f] %v1980
    %1990 = vst [vmem:[%s1985 + $0x20] sm:$0xff] %v1981
    %1991 = vst [vmem:[%s1985 + $0x28] sm:$0x7f] %v1982
    %1992 = vst [vmem:[%s1985 + $0x30] sm:$0xff] %v1983
    %1993 = vst [vmem:[%s1985 + $0x38] sm:$0x7f] %v1984
    %s1994 = scalar_lea.vmem [#allocation17], 160
    %v1995 = vld [vmem:[%s1994] sm:$0xff]
    %v1996 = vld [vmem:[%s1994 + $0x8] sm:$0x7f]
    %v1997 = vmul.f32 %v1609, %v1995
    %v1998 = vmul.f32 %v1609, %v1996
    %v1999 = vmul.f32 %v1613, %v1995
    %v2000 = vmul.f32 %v1613, %v1996
    %v2001 = vmul.f32 %v1617, %v1995
    %v2002 = vmul.f32 %v1617, %v1996
    %v2003 = vmul.f32 %v1621, %v1995
    %v2004 = vmul.f32 %v1621, %v1996
    %s2005 = scalar_lea.vmem [#allocation17], 176
    %v2006 = vld [vmem:[%s2005] sm:$0xff]
    %v2007 = vld [vmem:[%s2005 + $0x8] sm:$0x7f]
    %v2008 = vmul.f32 %v1665, %v2006
    %v2009 = vmul.f32 %v1665, %v2007
    %v2010 = vmul.f32 %v1669, %v2006
    %v2011 = vmul.f32 %v1669, %v2007
    %v2012 = vmul.f32 %v1673, %v2006
    %v2013 = vmul.f32 %v1673, %v2007
    %v2014 = vmul.f32 %v1677, %v2006
    %v2015 = vmul.f32 %v1677, %v2007
    %v2016 = vadd.f32 %v1997, %v2008
    %v2017 = vadd.f32 %v1998, %v2009
    %v2018 = vadd.f32 %v1999, %v2010
    %v2019 = vadd.f32 %v2000, %v2011
    %v2020 = vadd.f32 %v2001, %v2012
    %v2021 = vadd.f32 %v2002, %v2013
    %v2022 = vadd.f32 %v2003, %v2014
    %v2023 = vadd.f32 %v2004, %v2015
    %s2024 = scalar_lea.vmem [#allocation17], 192
    %v2025 = vld [vmem:[%s2024] sm:$0xff]
    %v2026 = vld [vmem:[%s2024 + $0x8] sm:$0x7f]
    %v2027 = vmul.f32 %v1729, %v2025
    %v2028 = vmul.f32 %v1729, %v2026
    %v2029 = vmul.f32 %v1733, %v2025
    %v2030 = vmul.f32 %v1733, %v2026
    %v2031 = vmul.f32 %v1737, %v2025
    %v2032 = vmul.f32 %v1737, %v2026
    %v2033 = vmul.f32 %v1741, %v2025
    %v2034 = vmul.f32 %v1741, %v2026
    %v2035 = vadd.f32 %v2016, %v2027
    %v2036 = vadd.f32 %v2017, %v2028
    %v2037 = vadd.f32 %v2018, %v2029
    %v2038 = vadd.f32 %v2019, %v2030
    %v2039 = vadd.f32 %v2020, %v2031
    %v2040 = vadd.f32 %v2021, %v2032
    %v2041 = vadd.f32 %v2022, %v2033
    %v2042 = vadd.f32 %v2023, %v2034
    %s2043 = scalar_lea.vmem [#allocation17], 208
    %v2044 = vld [vmem:[%s2043] sm:$0xff]
    %v2045 = vld [vmem:[%s2043 + $0x8] sm:$0x7f]
    %v2046 = vmul.f32 %v1793, %v2044
    %v2047 = vmul.f32 %v1793, %v2045
    %v2048 = vmul.f32 %v1797, %v2044
    %v2049 = vmul.f32 %v1797, %v2045
    %v2050 = vmul.f32 %v1801, %v2044
    %v2051 = vmul.f32 %v1801, %v2045
    %v2052 = vmul.f32 %v1805, %v2044
    %v2053 = vmul.f32 %v1805, %v2045
    %v2054 = vadd.f32 %v2035, %v2046
    %v2055 = vadd.f32 %v2036, %v2047
    %v2056 = vadd.f32 %v2037, %v2048
    %v2057 = vadd.f32 %v2038, %v2049
    %v2058 = vadd.f32 %v2039, %v2050
    %v2059 = vadd.f32 %v2040, %v2051
    %v2060 = vadd.f32 %v2041, %v2052
    %v2061 = vadd.f32 %v2042, %v2053
    %s2062 = scalar_lea.vmem [#allocation17], 224
    %v2063 = vld [vmem:[%s2062] sm:$0xff]
    %v2064 = vld [vmem:[%s2062 + $0x8] sm:$0x7f]
    %v2065 = vmul.f32 %v1857, %v2063
    %v2066 = vmul.f32 %v1857, %v2064
    %v2067 = vmul.f32 %v1861, %v2063
    %v2068 = vmul.f32 %v1861, %v2064
    %v2069 = vmul.f32 %v1865, %v2063
    %v2070 = vmul.f32 %v1865, %v2064
    %v2071 = vmul.f32 %v1869, %v2063
    %v2072 = vmul.f32 %v1869, %v2064
    %v2073 = vadd.f32 %v2054, %v2065
    %v2074 = vadd.f32 %v2055, %v2066
    %v2075 = vadd.f32 %v2056, %v2067
    %v2076 = vadd.f32 %v2057, %v2068
    %v2077 = vadd.f32 %v2058, %v2069
    %v2078 = vadd.f32 %v2059, %v2070
    %v2079 = vadd.f32 %v2060, %v2071
    %v2080 = vadd.f32 %v2061, %v2072
    %s2081 = scalar_lea.vmem [#allocation6], 128
    %2082 = vst [vmem:[%s2081] sm:$0xff] %v2073
    %2083 = vst [vmem:[%s2081 + $0x8] sm:$0x7f] %v2074
    %2084 = vst [vmem:[%s2081 + $0x10] sm:$0xff] %v2075
    %2085 = vst [vmem:[%s2081 + $0x18] sm:$0x7f] %v2076
    %2086 = vst [vmem:[%s2081 + $0x20] sm:$0xff] %v2077
    %2087 = vst [vmem:[%s2081 + $0x28] sm:$0x7f] %v2078
    %2088 = vst [vmem:[%s2081 + $0x30] sm:$0xff] %v2079
    %2089 = vst [vmem:[%s2081 + $0x38] sm:$0x7f] %v2080
    %v2090 = vld [vmem:[#allocation6] sm:$0xff]
    %v2091 = vld [vmem:[#allocation6 + $0x8] sm:$0x7f]
    %v2092 = vld [vmem:[#allocation6 + $0x10] sm:$0xff]
    %v2093 = vld [vmem:[#allocation6 + $0x18] sm:$0x7f]
    %v2094 = vld [vmem:[#allocation6 + $0x20] sm:$0xff]
    %v2095 = vld [vmem:[#allocation6 + $0x28] sm:$0x7f]
    %v2096 = vld [vmem:[#allocation6 + $0x30] sm:$0xff]
    %v2097 = vld [vmem:[#allocation6 + $0x38] sm:$0x7f]
    %v2098 = vlaneseq
    %v2099 = vshrl.u32 %v2098, 7
    %v2100 = vsub.s32 0, %v2099
    %v2101 = vrot.slane %v1576, %v2100
    %v2102 = vmul.f32 %v2101, %v2090
    %v2103 = vmul.f32 %v2101, %v2091
    %v2104 = vmul.f32 %v2101, %v2092
    %v2105 = vmul.f32 %v2101, %v2093
    %v2106 = vmul.f32 %v2101, %v2094
    %v2107 = vmul.f32 %v2101, %v2095
    %v2108 = vmul.f32 %v2101, %v2096
    %v2109 = vmul.f32 %v2101, %v2097
    %v2110 = vld [vmem:[%s1985] sm:$0xff]
    %v2111 = vld [vmem:[%s1985 + $0x8] sm:$0x7f]
    %v2112 = vld [vmem:[%s1985 + $0x10] sm:$0xff]
    %v2113 = vld [vmem:[%s1985 + $0x18] sm:$0x7f]
    %v2114 = vld [vmem:[%s1985 + $0x20] sm:$0xff]
    %v2115 = vld [vmem:[%s1985 + $0x28] sm:$0x7f]
    %v2116 = vld [vmem:[%s1985 + $0x30] sm:$0xff]
    %v2117 = vld [vmem:[%s1985 + $0x38] sm:$0x7f]
    %v2118 = vlaneseq
    %v2119 = vshrl.u32 %v2118, 7
    %v2120 = vsub.s32 0, %v2119
    %v2121 = vrot.slane %v1577, %v2120
    %v2122 = vmul.f32 %v2121, %v2110
    %v2123 = vmul.f32 %v2121, %v2111
    %v2124 = vmul.f32 %v2121, %v2112
    %v2125 = vmul.f32 %v2121, %v2113
    %v2126 = vmul.f32 %v2121, %v2114
    %v2127 = vmul.f32 %v2121, %v2115
    %v2128 = vmul.f32 %v2121, %v2116
    %v2129 = vmul.f32 %v2121, %v2117
    %v2130 = vadd.f32 %v2102, %v2122
    %v2131 = vadd.f32 %v2103, %v2123
    %v2132 = vadd.f32 %v2104, %v2124
    %v2133 = vadd.f32 %v2105, %v2125
    %v2134 = vadd.f32 %v2106, %v2126
    %v2135 = vadd.f32 %v2107, %v2127
    %v2136 = vadd.f32 %v2108, %v2128
    %v2137 = vadd.f32 %v2109, %v2129
    %v2138 = vld [vmem:[%s2081] sm:$0xff]
    %v2139 = vld [vmem:[%s2081 + $0x8] sm:$0x7f]
    %v2140 = vld [vmem:[%s2081 + $0x10] sm:$0xff]
    %v2141 = vld [vmem:[%s2081 + $0x18] sm:$0x7f]
    %v2142 = vld [vmem:[%s2081 + $0x20] sm:$0xff]
    %v2143 = vld [vmem:[%s2081 + $0x28] sm:$0x7f]
    %v2144 = vld [vmem:[%s2081 + $0x30] sm:$0xff]
    %v2145 = vld [vmem:[%s2081 + $0x38] sm:$0x7f]
    %v2146 = vlaneseq
    %v2147 = vshrl.u32 %v2146, 7
    %v2148 = vsub.s32 0, %v2147
    %v2149 = vrot.slane %v1578, %v2148
    %v2150 = vmul.f32 %v2149, %v2138
    %v2151 = vmul.f32 %v2149, %v2139
    %v2152 = vmul.f32 %v2149, %v2140
    %v2153 = vmul.f32 %v2149, %v2141
    %v2154 = vmul.f32 %v2149, %v2142
    %v2155 = vmul.f32 %v2149, %v2143
    %v2156 = vmul.f32 %v2149, %v2144
    %v2157 = vmul.f32 %v2149, %v2145
    %v2158 = vadd.f32 %v2130, %v2150
    %v2159 = vadd.f32 %v2131, %v2151
    %v2160 = vadd.f32 %v2132, %v2152
    %v2161 = vadd.f32 %v2133, %v2153
    %v2162 = vadd.f32 %v2134, %v2154
    %v2163 = vadd.f32 %v2135, %v2155
    %v2164 = vadd.f32 %v2136, %v2156
    %v2165 = vadd.f32 %v2137, %v2157
    %s2166 = scalar_lea.vmem %s10, 128
    %2167 = vst [vmem:[%s2166] sm:$0x7] %v2158
    %2168 = vst [vmem:[%s2166 + $0x4] sm:$0x7] %v2160
    %2169 = vst [vmem:[%s2166 + $0x8] sm:$0x7] %v2162
    %2170 = vst [vmem:[%s2166 + $0xc] sm:$0x7] %v2164
    %s2171 = scalar_lea.vmem %s11, 256
    %2172 = vst [vmem:[%s2171 - $0x3] sm:$0xf8] %v2158
    %2173 = vst [vmem:[%s2171 + $0x5] sm:$0xf8] %v2160
    %2174 = vst [vmem:[%s2171 + $0xd] sm:$0xf8] %v2162
    %2175 = vst [vmem:[%s2171 + $0x15] sm:$0xf8] %v2164
    %2176 = vst [vmem:[%s12] sm:$0x7f] %v2159
    %2177 = vst [vmem:[%s12 + $0x8] sm:$0x7f] %v2161
    %2178 = vst [vmem:[%s12 + $0x10] sm:$0x7f] %v2163
    %2179 = vst [vmem:[%s12 + $0x18] sm:$0x7f] %v2165
    %v2180 = vld [vmem:[#allocation6] sm:$0xff]
    %v2181 = vld [vmem:[#allocation6 + $0x8] sm:$0x7f]
    %v2182 = vld [vmem:[#allocation6 + $0x10] sm:$0xff]
    %v2183 = vld [vmem:[#allocation6 + $0x18] sm:$0x7f]
    %v2184 = vld [vmem:[#allocation6 + $0x20] sm:$0xff]
    %v2185 = vld [vmem:[#allocation6 + $0x28] sm:$0x7f]
    %v2186 = vld [vmem:[#allocation6 + $0x30] sm:$0xff]
    %v2187 = vld [vmem:[#allocation6 + $0x38] sm:$0x7f]
    %v2188 = vlaneseq
    %v2189 = vshrl.u32 %v2188, 7
    %v2190 = vsub.s32 1, %v2189
    %v2191 = vrot.slane %v1576, %v2190
    %v2192 = vmul.f32 %v2191, %v2180
    %v2193 = vmul.f32 %v2191, %v2181
    %v2194 = vmul.f32 %v2191, %v2182
    %v2195 = vmul.f32 %v2191, %v2183
    %v2196 = vmul.f32 %v2191, %v2184
    %v2197 = vmul.f32 %v2191, %v2185
    %v2198 = vmul.f32 %v2191, %v2186
    %v2199 = vmul.f32 %v2191, %v2187
    %v2200 = vld [vmem:[%s1985] sm:$0xff]
    %v2201 = vld [vmem:[%s1985 + $0x8] sm:$0x7f]
    %v2202 = vld [vmem:[%s1985 + $0x10] sm:$0xff]
    %v2203 = vld [vmem:[%s1985 + $0x18] sm:$0x7f]
    %v2204 = vld [vmem:[%s1985 + $0x20] sm:$0xff]
    %v2205 = vld [vmem:[%s1985 + $0x28] sm:$0x7f]
    %v2206 = vld [vmem:[%s1985 + $0x30] sm:$0xff]
    %v2207 = vld [vmem:[%s1985 + $0x38] sm:$0x7f]
    %v2208 = vlaneseq
    %v2209 = vshrl.u32 %v2208, 7
    %v2210 = vsub.s32 1, %v2209
    %v2211 = vrot.slane %v1577, %v2210
    %v2212 = vmul.f32 %v2211, %v2200
    %v2213 = vmul.f32 %v2211, %v2201
    %v2214 = vmul.f32 %v2211, %v2202
    %v2215 = vmul.f32 %v2211, %v2203
    %v2216 = vmul.f32 %v2211, %v2204
    %v2217 = vmul.f32 %v2211, %v2205
    %v2218 = vmul.f32 %v2211, %v2206
    %v2219 = vmul.f32 %v2211, %v2207
    %v2220 = vadd.f32 %v2192, %v2212
    %v2221 = vadd.f32 %v2193, %v2213
    %v2222 = vadd.f32 %v2194, %v2214
    %v2223 = vadd.f32 %v2195, %v2215
    %v2224 = vadd.f32 %v2196, %v2216
    %v2225 = vadd.f32 %v2197, %v2217
    %v2226 = vadd.f32 %v2198, %v2218
    %v2227 = vadd.f32 %v2199, %v2219
    %v2228 = vld [vmem:[%s2081] sm:$0xff]
    %v2229 = vld [vmem:[%s2081 + $0x8] sm:$0x7f]
    %v2230 = vld [vmem:[%s2081 + $0x10] sm:$0xff]
    %v2231 = vld [vmem:[%s2081 + $0x18] sm:$0x7f]
    %v2232 = vld [vmem:[%s2081 + $0x20] sm:$0xff]
    %v2233 = vld [vmem:[%s2081 + $0x28] sm:$0x7f]
    %v2234 = vld [vmem:[%s2081 + $0x30] sm:$0xff]
    %v2235 = vld [vmem:[%s2081 + $0x38] sm:$0x7f]
    %v2236 = vlaneseq
    %v2237 = vshrl.u32 %v2236, 7
    %v2238 = vsub.s32 1, %v2237
    %v2239 = vrot.slane %v1578, %v2238
    %v2240 = vmul.f32 %v2239, %v2228
    %v2241 = vmul.f32 %v2239, %v2229
    %v2242 = vmul.f32 %v2239, %v2230
    %v2243 = vmul.f32 %v2239, %v2231
    %v2244 = vmul.f32 %v2239, %v2232
    %v2245 = vmul.f32 %v2239, %v2233
    %v2246 = vmul.f32 %v2239, %v2234
    %v2247 = vmul.f32 %v2239, %v2235
    %v2248 = vadd.f32 %v2220, %v2240
    %v2249 = vadd.f32 %v2221, %v2241
    %v2250 = vadd.f32 %v2222, %v2242
    %v2251 = vadd.f32 %v2223, %v2243
    %v2252 = vadd.f32 %v2224, %v2244
    %v2253 = vadd.f32 %v2225, %v2245
    %v2254 = vadd.f32 %v2226, %v2246
    %v2255 = vadd.f32 %v2227, %v2247
    %s2256 = scalar_lea.vmem %s10, 144
    %2257 = vst [vmem:[%s2256] sm:$0x7] %v2248
    %2258 = vst [vmem:[%s2256 + $0x4] sm:$0x7] %v2250
    %2259 = vst [vmem:[%s2256 + $0x8] sm:$0x7] %v2252
    %2260 = vst [vmem:[%s2256 + $0xc] sm:$0x7] %v2254
    %s2261 = scalar_lea.vmem %s11, 288
    %2262 = vst [vmem:[%s2261 - $0x3] sm:$0xf8] %v2248
    %2263 = vst [vmem:[%s2261 + $0x5] sm:$0xf8] %v2250
    %2264 = vst [vmem:[%s2261 + $0xd] sm:$0xf8] %v2252
    %2265 = vst [vmem:[%s2261 + $0x15] sm:$0xf8] %v2254
    %s2266 = scalar_lea.vmem %s12, 32
    %2267 = vst [vmem:[%s2266] sm:$0x7f] %v2249
    %2268 = vst [vmem:[%s2266 + $0x8] sm:$0x7f] %v2251
    %2269 = vst [vmem:[%s2266 + $0x10] sm:$0x7f] %v2253
    %2270 = vst [vmem:[%s2266 + $0x18] sm:$0x7f] %v2255
    %v2271 = vld [vmem:[#allocation6] sm:$0xff]
    %v2272 = vld [vmem:[#allocation6 + $0x8] sm:$0x7f]
    %v2273 = vld [vmem:[#allocation6 + $0x10] sm:$0xff]
    %v2274 = vld [vmem:[#allocation6 + $0x18] sm:$0x7f]
    %v2275 = vld [vmem:[#allocation6 + $0x20] sm:$0xff]
    %v2276 = vld [vmem:[#allocation6 + $0x28] sm:$0x7f]
    %v2277 = vld [vmem:[#allocation6 + $0x30] sm:$0xff]
    %v2278 = vld [vmem:[#allocation6 + $0x38] sm:$0x7f]
    %v2279 = vlaneseq
    %v2280 = vshrl.u32 %v2279, 7
    %v2281 = vsub.s32 2, %v2280
    %v2282 = vrot.slane %v1576, %v2281
    %v2283 = vmul.f32 %v2282, %v2271
    %v2284 = vmul.f32 %v2282, %v2272
    %v2285 = vmul.f32 %v2282, %v2273
    %v2286 = vmul.f32 %v2282, %v2274
    %v2287 = vmul.f32 %v2282, %v2275
    %v2288 = vmul.f32 %v2282, %v2276
    %v2289 = vmul.f32 %v2282, %v2277
    %v2290 = vmul.f32 %v2282, %v2278
    %v2291 = vld [vmem:[%s1985] sm:$0xff]
    %v2292 = vld [vmem:[%s1985 + $0x8] sm:$0x7f]
    %v2293 = vld [vmem:[%s1985 + $0x10] sm:$0xff]
    %v2294 = vld [vmem:[%s1985 + $0x18] sm:$0x7f]
    %v2295 = vld [vmem:[%s1985 + $0x20] sm:$0xff]
    %v2296 = vld [vmem:[%s1985 + $0x28] sm:$0x7f]
    %v2297 = vld [vmem:[%s1985 + $0x30] sm:$0xff]
    %v2298 = vld [vmem:[%s1985 + $0x38] sm:$0x7f]
    %v2299 = vlaneseq
    %v2300 = vshrl.u32 %v2299, 7
    %v2301 = vsub.s32 2, %v2300
    %v2302 = vrot.slane %v1577, %v2301
    %v2303 = vmul.f32 %v2302, %v2291
    %v2304 = vmul.f32 %v2302, %v2292
    %v2305 = vmul.f32 %v2302, %v2293
    %v2306 = vmul.f32 %v2302, %v2294
    %v2307 = vmul.f32 %v2302, %v2295
    %v2308 = vmul.f32 %v2302, %v2296
    %v2309 = vmul.f32 %v2302, %v2297
    %v2310 = vmul.f32 %v2302, %v2298
    %v2311 = vadd.f32 %v2283, %v2303
    %v2312 = vadd.f32 %v2284, %v2304
    %v2313 = vadd.f32 %v2285, %v2305
    %v2314 = vadd.f32 %v2286, %v2306
    %v2315 = vadd.f32 %v2287, %v2307
    %v2316 = vadd.f32 %v2288, %v2308
    %v2317 = vadd.f32 %v2289, %v2309
    %v2318 = vadd.f32 %v2290, %v2310
    %v2319 = vld [vmem:[%s2081] sm:$0xff]
    %v2320 = vld [vmem:[%s2081 + $0x8] sm:$0x7f]
    %v2321 = vld [vmem:[%s2081 + $0x10] sm:$0xff]
    %v2322 = vld [vmem:[%s2081 + $0x18] sm:$0x7f]
    %v2323 = vld [vmem:[%s2081 + $0x20] sm:$0xff]
    %v2324 = vld [vmem:[%s2081 + $0x28] sm:$0x7f]
    %v2325 = vld [vmem:[%s2081 + $0x30] sm:$0xff]
    %v2326 = vld [vmem:[%s2081 + $0x38] sm:$0x7f]
    %v2327 = vlaneseq
    %v2328 = vshrl.u32 %v2327, 7
    %v2329 = vsub.s32 2, %v2328
    %v2330 = vrot.slane %v1578, %v2329
    %v2331 = vmul.f32 %v2330, %v2319
    %v2332 = vmul.f32 %v2330, %v2320
    %v2333 = vmul.f32 %v2330, %v2321
    %v2334 = vmul.f32 %v2330, %v2322
    %v2335 = vmul.f32 %v2330, %v2323
    %v2336 = vmul.f32 %v2330, %v2324
    %v2337 = vmul.f32 %v2330, %v2325
    %v2338 = vmul.f32 %v2330, %v2326
    %v2339 = vadd.f32 %v2311, %v2331
    %v2340 = vadd.f32 %v2312, %v2332
    %v2341 = vadd.f32 %v2313, %v2333
    %v2342 = vadd.f32 %v2314, %v2334
    %v2343 = vadd.f32 %v2315, %v2335
    %v2344 = vadd.f32 %v2316, %v2336
    %v2345 = vadd.f32 %v2317, %v2337
    %v2346 = vadd.f32 %v2318, %v2338
    %s2347 = scalar_lea.vmem %s10, 160
    %2348 = vst [vmem:[%s2347] sm:$0x7] %v2339
    %2349 = vst [vmem:[%s2347 + $0x4] sm:$0x7] %v2341
    %2350 = vst [vmem:[%s2347 + $0x8] sm:$0x7] %v2343
    %2351 = vst [vmem:[%s2347 + $0xc] sm:$0x7] %v2345
    %s2352 = scalar_lea.vmem %s11, 320
    %2353 = vst [vmem:[%s2352 - $0x3] sm:$0xf8] %v2339
    %2354 = vst [vmem:[%s2352 + $0x5] sm:$0xf8] %v2341
    %2355 = vst [vmem:[%s2352 + $0xd] sm:$0xf8] %v2343
    %2356 = vst [vmem:[%s2352 + $0x15] sm:$0xf8] %v2345
    %s2357 = scalar_lea.vmem %s12, 64
    %2358 = vst [vmem:[%s2357] sm:$0x7f] %v2340
    %2359 = vst [vmem:[%s2357 + $0x8] sm:$0x7f] %v2342
    %2360 = vst [vmem:[%s2357 + $0x10] sm:$0x7f] %v2344
    %2361 = vst [vmem:[%s2357 + $0x18] sm:$0x7f] %v2346
    %v2362 = vld [vmem:[#allocation6] sm:$0xff]
    %v2363 = vld [vmem:[#allocation6 + $0x8] sm:$0x7f]
    %v2364 = vld [vmem:[#allocation6 + $0x10] sm:$0xff]
    %v2365 = vld [vmem:[#allocation6 + $0x18] sm:$0x7f]
    %v2366 = vld [vmem:[#allocation6 + $0x20] sm:$0xff]
    %v2367 = vld [vmem:[#allocation6 + $0x28] sm:$0x7f]
    %v2368 = vld [vmem:[#allocation6 + $0x30] sm:$0xff]
    %v2369 = vld [vmem:[#allocation6 + $0x38] sm:$0x7f]
    %v2370 = vlaneseq
    %v2371 = vshrl.u32 %v2370, 7
    %v2372 = vsub.s32 3, %v2371
    %v2373 = vrot.slane %v1576, %v2372
    %v2374 = vmul.f32 %v2373, %v2362
    %v2375 = vmul.f32 %v2373, %v2363
    %v2376 = vmul.f32 %v2373, %v2364
    %v2377 = vmul.f32 %v2373, %v2365
    %v2378 = vmul.f32 %v2373, %v2366
    %v2379 = vmul.f32 %v2373, %v2367
    %v2380 = vmul.f32 %v2373, %v2368
    %v2381 = vmul.f32 %v2373, %v2369
    %v2382 = vld [vmem:[%s1985] sm:$0xff]
    %v2383 = vld [vmem:[%s1985 + $0x8] sm:$0x7f]
    %v2384 = vld [vmem:[%s1985 + $0x10] sm:$0xff]
    %v2385 = vld [vmem:[%s1985 + $0x18] sm:$0x7f]
    %v2386 = vld [vmem:[%s1985 + $0x20] sm:$0xff]
    %v2387 = vld [vmem:[%s1985 + $0x28] sm:$0x7f]
    %v2388 = vld [vmem:[%s1985 + $0x30] sm:$0xff]
    %v2389 = vld [vmem:[%s1985 + $0x38] sm:$0x7f]
    %v2390 = vlaneseq
    %v2391 = vshrl.u32 %v2390, 7
    %v2392 = vsub.s32 3, %v2391
    %v2393 = vrot.slane %v1577, %v2392
    %v2394 = vmul.f32 %v2393, %v2382
    %v2395 = vmul.f32 %v2393, %v2383
    %v2396 = vmul.f32 %v2393, %v2384
    %v2397 = vmul.f32 %v2393, %v2385
    %v2398 = vmul.f32 %v2393, %v2386
    %v2399 = vmul.f32 %v2393, %v2387
    %v2400 = vmul.f32 %v2393, %v2388
    %v2401 = vmul.f32 %v2393, %v2389
    %v2402 = vadd.f32 %v2374, %v2394
    %v2403 = vadd.f32 %v2375, %v2395
    %v2404 = vadd.f32 %v2376, %v2396
    %v2405 = vadd.f32 %v2377, %v2397
    %v2406 = vadd.f32 %v2378, %v2398
    %v2407 = vadd.f32 %v2379, %v2399
    %v2408 = vadd.f32 %v2380, %v2400
    %v2409 = vadd.f32 %v2381, %v2401
    %v2410 = vld [vmem:[%s2081] sm:$0xff]
    %v2411 = vld [vmem:[%s2081 + $0x8] sm:$0x7f]
    %v2412 = vld [vmem:[%s2081 + $0x10] sm:$0xff]
    %v2413 = vld [vmem:[%s2081 + $0x18] sm:$0x7f]
    %v2414 = vld [vmem:[%s2081 + $0x20] sm:$0xff]
    %v2415 = vld [vmem:[%s2081 + $0x28] sm:$0x7f]
    %v2416 = vld [vmem:[%s2081 + $0x30] sm:$0xff]
    %v2417 = vld [vmem:[%s2081 + $0x38] sm:$0x7f]
    %v2418 = vlaneseq
    %v2419 = vshrl.u32 %v2418, 7
    %v2420 = vsub.s32 3, %v2419
    %v2421 = vrot.slane %v1578, %v2420
    %v2422 = vmul.f32 %v2421, %v2410
    %v2423 = vmul.f32 %v2421, %v2411
    %v2424 = vmul.f32 %v2421, %v2412
    %v2425 = vmul.f32 %v2421, %v2413
    %v2426 = vmul.f32 %v2421, %v2414
    %v2427 = vmul.f32 %v2421, %v2415
    %v2428 = vmul.f32 %v2421, %v2416
    %v2429 = vmul.f32 %v2421, %v2417
    %v2430 = vadd.f32 %v2402, %v2422
    %v2431 = vadd.f32 %v2403, %v2423
    %v2432 = vadd.f32 %v2404, %v2424
    %v2433 = vadd.f32 %v2405, %v2425
    %v2434 = vadd.f32 %v2406, %v2426
    %v2435 = vadd.f32 %v2407, %v2427
    %v2436 = vadd.f32 %v2408, %v2428
    %v2437 = vadd.f32 %v2409, %v2429
    %s2438 = scalar_lea.vmem %s10, 176
    %2439 = vst [vmem:[%s2438] sm:$0x7] %v2430
    %2440 = vst [vmem:[%s2438 + $0x4] sm:$0x7] %v2432
    %2441 = vst [vmem:[%s2438 + $0x8] sm:$0x7] %v2434
    %2442 = vst [vmem:[%s2438 + $0xc] sm:$0x7] %v2436
    %s2443 = scalar_lea.vmem %s11, 352
    %2444 = vst [vmem:[%s2443 - $0x3] sm:$0xf8] %v2430
    %2445 = vst [vmem:[%s2443 + $0x5] sm:$0xf8] %v2432
    %2446 = vst [vmem:[%s2443 + $0xd] sm:$0xf8] %v2434
    %2447 = vst [vmem:[%s2443 + $0x15] sm:$0xf8] %v2436
    %s2448 = scalar_lea.vmem %s12, 96
    %2449 = vst [vmem:[%s2448] sm:$0x7f] %v2431
    %2450 = vst [vmem:[%s2448 + $0x8] sm:$0x7f] %v2433
    %2451 = vst [vmem:[%s2448 + $0x10] sm:$0x7f] %v2435
    %2452 = vst [vmem:[%s2448 + $0x18] sm:$0x7f] %v2437
    %v2453 = vld [vmem:[#allocation13] sm:$0xf]
    %v2454 = vld [vmem:[%s531] sm:$0xf]
    %v2455 = vld [vmem:[%s533] sm:$0xf]
    %v2456 = vld [vmem:[%s535] sm:$0xf]
    %v2457 = vld [vmem:[%s537] sm:$0xf]
    %v2460 = vunpack.c.l.s4 1966171168
    %v2461 = vunpack.c.0.s8 %v2460
    %v2462 = vlaneseq
    %v2463 = vshrl.u32 %v2462, 7
    %v2464 = vsub.s32 %v2461, %v2463
    %v2465 = vrot.slane %v2453, %v2464
    %v2466 = vcombine.high %v2465, %v2465
    %v2468 = vunpack.c.l.s4 1966171168
    %v2469 = vunpack.c.0.s8 %v2468
    %v2470 = vlaneseq
    %v2471 = vshrl.u32 %v2470, 7
    %v2472 = vsub.s32 %v2469, %v2471
    %v2473 = vrot.slane %v2465, %v2472
    %v2475 = vunpack.c.l.s4 1966171168
    %v2476 = vunpack.c.0.s8 %v2475
    %v2477 = vlaneseq
    %v2478 = vshrl.u32 %v2477, 7
    %v2479 = vsub.s32 %v2476, %v2478
    %v2480 = vrot.slane %v2466, %v2479
    %v2481 = vcombine.high %v2473, %v2473
    %v2482 = vcombine.high %v2480, %v2480
    %v2483 = vld [vmem:[#allocation19] sm:$0xff]
    %v2484 = vld [vmem:[#allocation19 + $0x8] sm:$0xff]
    %v2485 = vld [vmem:[#allocation19 + $0x10] sm:$0xff]
    %v2486 = vld [vmem:[#allocation19 + $0x18] sm:$0x1]
    %v2487 = vlaneseq
    %v2488 = vshrl.u32 %v2487, 7
    %v2489 = vsub.s32 0, %v2488
    %v2490 = vrot.slane %v2473, %v2489
    %v2491 = vlaneseq
    %v2492 = vshrl.u32 %v2491, 7
    %v2493 = vsub.s32 0, %v2492
    %v2494 = vrot.slane %v2480, %v2493
    %v2495 = vlaneseq
    %v2496 = vshrl.u32 %v2495, 7
    %v2497 = vsub.s32 0, %v2496
    %v2498 = vrot.slane %v2481, %v2497
    %v2499 = vlaneseq
    %v2500 = vshrl.u32 %v2499, 7
    %v2501 = vsub.s32 0, %v2500
    %v2502 = vrot.slane %v2482, %v2501
    %v2507 = vmul.f32 %v2490, %v2483
    %v2508 = vmul.f32 %v2490, %v2484
    %v2509 = vmul.f32 %v2490, %v2485
    %v2510 = vmul.f32 %v2490, %v2486
    %v2511 = vmul.f32 %v2494, %v2483
    %v2512 = vmul.f32 %v2494, %v2484
    %v2513 = vmul.f32 %v2494, %v2485
    %v2514 = vmul.f32 %v2494, %v2486
    %v2515 = vmul.f32 %v2498, %v2483
    %v2516 = vmul.f32 %v2498, %v2484
    %v2517 = vmul.f32 %v2498, %v2485
    %v2518 = vmul.f32 %v2498, %v2486
    %v2519 = vmul.f32 %v2502, %v2483
    %v2520 = vmul.f32 %v2502, %v2484
    %v2521 = vmul.f32 %v2502, %v2485
    %v2522 = vmul.f32 %v2502, %v2486
    %v2525 = vunpack.c.l.s4 1966171168
    %v2526 = vunpack.c.0.s8 %v2525
    %v2527 = vlaneseq
    %v2528 = vshrl.u32 %v2527, 7
    %v2529 = vsub.s32 %v2526, %v2528
    %v2530 = vrot.slane %v2454, %v2529
    %v2531 = vcombine.high %v2530, %v2530
    %v2533 = vunpack.c.l.s4 1966171168
    %v2534 = vunpack.c.0.s8 %v2533
    %v2535 = vlaneseq
    %v2536 = vshrl.u32 %v2535, 7
    %v2537 = vsub.s32 %v2534, %v2536
    %v2538 = vrot.slane %v2530, %v2537
    %v2540 = vunpack.c.l.s4 1966171168
    %v2541 = vunpack.c.0.s8 %v2540
    %v2542 = vlaneseq
    %v2543 = vshrl.u32 %v2542, 7
    %v2544 = vsub.s32 %v2541, %v2543
    %v2545 = vrot.slane %v2531, %v2544
    %v2546 = vcombine.high %v2538, %v2538
    %v2547 = vcombine.high %v2545, %v2545
    %s2548 = scalar_lea.vmem [#allocation19], 32
    %v2549 = vld [vmem:[%s2548] sm:$0xff]
    %v2550 = vld [vmem:[%s2548 + $0x8] sm:$0xff]
    %v2551 = vld [vmem:[%s2548 + $0x10] sm:$0xff]
    %v2552 = vld [vmem:[%s2548 + $0x18] sm:$0x1]
    %v2553 = vlaneseq
    %v2554 = vshrl.u32 %v2553, 7
    %v2555 = vsub.s32 0, %v2554
    %v2556 = vrot.slane %v2538, %v2555
    %v2557 = vlaneseq
    %v2558 = vshrl.u32 %v2557, 7
    %v2559 = vsub.s32 0, %v2558
    %v2560 = vrot.slane %v2545, %v2559
    %v2561 = vlaneseq
    %v2562 = vshrl.u32 %v2561, 7
    %v2563 = vsub.s32 0, %v2562
    %v2564 = vrot.slane %v2546, %v2563
    %v2565 = vlaneseq
    %v2566 = vshrl.u32 %v2565, 7
    %v2567 = vsub.s32 0, %v2566
    %v2568 = vrot.slane %v2547, %v2567
    %v2573 = vmul.f32 %v2556, %v2549
    %v2574 = vmul.f32 %v2556, %v2550
    %v2575 = vmul.f32 %v2556, %v2551
    %v2576 = vmul.f32 %v2556, %v2552
    %v2577 = vmul.f32 %v2560, %v2549
    %v2578 = vmul.f32 %v2560, %v2550
    %v2579 = vmul.f32 %v2560, %v2551
    %v2580 = vmul.f32 %v2560, %v2552
    %v2581 = vmul.f32 %v2564, %v2549
    %v2582 = vmul.f32 %v2564, %v2550
    %v2583 = vmul.f32 %v2564, %v2551
    %v2584 = vmul.f32 %v2564, %v2552
    %v2585 = vmul.f32 %v2568, %v2549
    %v2586 = vmul.f32 %v2568, %v2550
    %v2587 = vmul.f32 %v2568, %v2551
    %v2588 = vmul.f32 %v2568, %v2552
    %v2589 = vadd.f32 %v2507, %v2573
    %v2590 = vadd.f32 %v2508, %v2574
    %v2591 = vadd.f32 %v2509, %v2575
    %v2592 = vadd.f32 %v2510, %v2576
    %v2593 = vadd.f32 %v2511, %v2577
    %v2594 = vadd.f32 %v2512, %v2578
    %v2595 = vadd.f32 %v2513, %v2579
    %v2596 = vadd.f32 %v2514, %v2580
    %v2597 = vadd.f32 %v2515, %v2581
    %v2598 = vadd.f32 %v2516, %v2582
    %v2599 = vadd.f32 %v2517, %v2583
    %v2600 = vadd.f32 %v2518, %v2584
    %v2601 = vadd.f32 %v2519, %v2585
    %v2602 = vadd.f32 %v2520, %v2586
    %v2603 = vadd.f32 %v2521, %v2587
    %v2604 = vadd.f32 %v2522, %v2588
    %v2607 = vunpack.c.l.s4 1966171168
    %v2608 = vunpack.c.0.s8 %v2607
    %v2609 = vlaneseq
    %v2610 = vshrl.u32 %v2609, 7
    %v2611 = vsub.s32 %v2608, %v2610
    %v2612 = vrot.slane %v2455, %v2611
    %v2613 = vcombine.high %v2612, %v2612
    %v2615 = vunpack.c.l.s4 1966171168
    %v2616 = vunpack.c.0.s8 %v2615
    %v2617 = vlaneseq
    %v2618 = vshrl.u32 %v2617, 7
    %v2619 = vsub.s32 %v2616, %v2618
    %v2620 = vrot.slane %v2612, %v2619
    %v2622 = vunpack.c.l.s4 1966171168
    %v2623 = vunpack.c.0.s8 %v2622
    %v2624 = vlaneseq
    %v2625 = vshrl.u32 %v2624, 7
    %v2626 = vsub.s32 %v2623, %v2625
    %v2627 = vrot.slane %v2613, %v2626
    %v2628 = vcombine.high %v2620, %v2620
    %v2629 = vcombine.high %v2627, %v2627
    %s2630 = scalar_lea.vmem [#allocation19], 64
    %v2631 = vld [vmem:[%s2630] sm:$0xff]
    %v2632 = vld [vmem:[%s2630 + $0x8] sm:$0xff]
    %v2633 = vld [vmem:[%s2630 + $0x10] sm:$0xff]
    %v2634 = vld [vmem:[%s2630 + $0x18] sm:$0x1]
    %v2635 = vlaneseq
    %v2636 = vshrl.u32 %v2635, 7
    %v2637 = vsub.s32 0, %v2636
    %v2638 = vrot.slane %v2620, %v2637
    %v2639 = vlaneseq
    %v2640 = vshrl.u32 %v2639, 7
    %v2641 = vsub.s32 0, %v2640
    %v2642 = vrot.slane %v2627, %v2641
    %v2643 = vlaneseq
    %v2644 = vshrl.u32 %v2643, 7
    %v2645 = vsub.s32 0, %v2644
    %v2646 = vrot.slane %v2628, %v2645
    %v2647 = vlaneseq
    %v2648 = vshrl.u32 %v2647, 7
    %v2649 = vsub.s32 0, %v2648
    %v2650 = vrot.slane %v2629, %v2649
    %v2655 = vmul.f32 %v2638, %v2631
    %v2656 = vmul.f32 %v2638, %v2632
    %v2657 = vmul.f32 %v2638, %v2633
    %v2658 = vmul.f32 %v2638, %v2634
    %v2659 = vmul.f32 %v2642, %v2631
    %v2660 = vmul.f32 %v2642, %v2632
    %v2661 = vmul.f32 %v2642, %v2633
    %v2662 = vmul.f32 %v2642, %v2634
    %v2663 = vmul.f32 %v2646, %v2631
    %v2664 = vmul.f32 %v2646, %v2632
    %v2665 = vmul.f32 %v2646, %v2633
    %v2666 = vmul.f32 %v2646, %v2634
    %v2667 = vmul.f32 %v2650, %v2631
    %v2668 = vmul.f32 %v2650, %v2632
    %v2669 = vmul.f32 %v2650, %v2633
    %v2670 = vmul.f32 %v2650, %v2634
    %v2671 = vadd.f32 %v2589, %v2655
    %v2672 = vadd.f32 %v2590, %v2656
    %v2673 = vadd.f32 %v2591, %v2657
    %v2674 = vadd.f32 %v2592, %v2658
    %v2675 = vadd.f32 %v2593, %v2659
    %v2676 = vadd.f32 %v2594, %v2660
    %v2677 = vadd.f32 %v2595, %v2661
    %v2678 = vadd.f32 %v2596, %v2662
    %v2679 = vadd.f32 %v2597, %v2663
    %v2680 = vadd.f32 %v2598, %v2664
    %v2681 = vadd.f32 %v2599, %v2665
    %v2682 = vadd.f32 %v2600, %v2666
    %v2683 = vadd.f32 %v2601, %v2667
    %v2684 = vadd.f32 %v2602, %v2668
    %v2685 = vadd.f32 %v2603, %v2669
    %v2686 = vadd.f32 %v2604, %v2670
    %v2689 = vunpack.c.l.s4 1966171168
    %v2690 = vunpack.c.0.s8 %v2689
    %v2691 = vlaneseq
    %v2692 = vshrl.u32 %v2691, 7
    %v2693 = vsub.s32 %v2690, %v2692
    %v2694 = vrot.slane %v2456, %v2693
    %v2695 = vcombine.high %v2694, %v2694
    %v2697 = vunpack.c.l.s4 1966171168
    %v2698 = vunpack.c.0.s8 %v2697
    %v2699 = vlaneseq
    %v2700 = vshrl.u32 %v2699, 7
    %v2701 = vsub.s32 %v2698, %v2700
    %v2702 = vrot.slane %v2694, %v2701
    %v2704 = vunpack.c.l.s4 1966171168
    %v2705 = vunpack.c.0.s8 %v2704
    %v2706 = vlaneseq
    %v2707 = vshrl.u32 %v2706, 7
    %v2708 = vsub.s32 %v2705, %v2707
    %v2709 = vrot.slane %v2695, %v2708
    %v2710 = vcombine.high %v2702, %v2702
    %v2711 = vcombine.high %v2709, %v2709
    %s2712 = scalar_lea.vmem [#allocation19], 96
    %v2713 = vld [vmem:[%s2712] sm:$0xff]
    %v2714 = vld [vmem:[%s2712 + $0x8] sm:$0xff]
    %v2715 = vld [vmem:[%s2712 + $0x10] sm:$0xff]
    %v2716 = vld [vmem:[%s2712 + $0x18] sm:$0x1]
    %v2717 = vlaneseq
    %v2718 = vshrl.u32 %v2717, 7
    %v2719 = vsub.s32 0, %v2718
    %v2720 = vrot.slane %v2702, %v2719
    %v2721 = vlaneseq
    %v2722 = vshrl.u32 %v2721, 7
    %v2723 = vsub.s32 0, %v2722
    %v2724 = vrot.slane %v2709, %v2723
    %v2725 = vlaneseq
    %v2726 = vshrl.u32 %v2725, 7
    %v2727 = vsub.s32 0, %v2726
    %v2728 = vrot.slane %v2710, %v2727
    %v2729 = vlaneseq
    %v2730 = vshrl.u32 %v2729, 7
    %v2731 = vsub.s32 0, %v2730
    %v2732 = vrot.slane %v2711, %v2731
    %v2737 = vmul.f32 %v2720, %v2713
    %v2738 = vmul.f32 %v2720, %v2714
    %v2739 = vmul.f32 %v2720, %v2715
    %v2740 = vmul.f32 %v2720, %v2716
    %v2741 = vmul.f32 %v2724, %v2713
    %v2742 = vmul.f32 %v2724, %v2714
    %v2743 = vmul.f32 %v2724, %v2715
    %v2744 = vmul.f32 %v2724, %v2716
    %v2745 = vmul.f32 %v2728, %v2713
    %v2746 = vmul.f32 %v2728, %v2714
    %v2747 = vmul.f32 %v2728, %v2715
    %v2748 = vmul.f32 %v2728, %v2716
    %v2749 = vmul.f32 %v2732, %v2713
    %v2750 = vmul.f32 %v2732, %v2714
    %v2751 = vmul.f32 %v2732, %v2715
    %v2752 = vmul.f32 %v2732, %v2716
    %v2753 = vadd.f32 %v2671, %v2737
    %v2754 = vadd.f32 %v2672, %v2738
    %v2755 = vadd.f32 %v2673, %v2739
    %v2756 = vadd.f32 %v2674, %v2740
    %v2757 = vadd.f32 %v2675, %v2741
    %v2758 = vadd.f32 %v2676, %v2742
    %v2759 = vadd.f32 %v2677, %v2743
    %v2760 = vadd.f32 %v2678, %v2744
    %v2761 = vadd.f32 %v2679, %v2745
    %v2762 = vadd.f32 %v2680, %v2746
    %v2763 = vadd.f32 %v2681, %v2747
    %v2764 = vadd.f32 %v2682, %v2748
    %v2765 = vadd.f32 %v2683, %v2749
    %v2766 = vadd.f32 %v2684, %v2750
    %v2767 = vadd.f32 %v2685, %v2751
    %v2768 = vadd.f32 %v2686, %v2752
    %v2771 = vunpack.c.l.s4 1966171168
    %v2772 = vunpack.c.0.s8 %v2771
    %v2773 = vlaneseq
    %v2774 = vshrl.u32 %v2773, 7
    %v2775 = vsub.s32 %v2772, %v2774
    %v2776 = vrot.slane %v2457, %v2775
    %v2777 = vcombine.high %v2776, %v2776
    %v2779 = vunpack.c.l.s4 1966171168
    %v2780 = vunpack.c.0.s8 %v2779
    %v2781 = vlaneseq
    %v2782 = vshrl.u32 %v2781, 7
    %v2783 = vsub.s32 %v2780, %v2782
    %v2784 = vrot.slane %v2776, %v2783
    %v2786 = vunpack.c.l.s4 1966171168
    %v2787 = vunpack.c.0.s8 %v2786
    %v2788 = vlaneseq
    %v2789 = vshrl.u32 %v2788, 7
    %v2790 = vsub.s32 %v2787, %v2789
    %v2791 = vrot.slane %v2777, %v2790
    %v2792 = vcombine.high %v2784, %v2784
    %v2793 = vcombine.high %v2791, %v2791
    %s2794 = scalar_lea.vmem [#allocation19], 128
    %v2795 = vld [vmem:[%s2794] sm:$0xff]
    %v2796 = vld [vmem:[%s2794 + $0x8] sm:$0xff]
    %v2797 = vld [vmem:[%s2794 + $0x10] sm:$0xff]
    %v2798 = vld [vmem:[%s2794 + $0x18] sm:$0x1]
    %v2799 = vlaneseq
    %v2800 = vshrl.u32 %v2799, 7
    %v2801 = vsub.s32 0, %v2800
    %v2802 = vrot.slane %v2784, %v2801
    %v2803 = vlaneseq
    %v2804 = vshrl.u32 %v2803, 7
    %v2805 = vsub.s32 0, %v2804
    %v2806 = vrot.slane %v2791, %v2805
    %v2807 = vlaneseq
    %v2808 = vshrl.u32 %v2807, 7
    %v2809 = vsub.s32 0, %v2808
    %v2810 = vrot.slane %v2792, %v2809
    %v2811 = vlaneseq
    %v2812 = vshrl.u32 %v2811, 7
    %v2813 = vsub.s32 0, %v2812
    %v2814 = vrot.slane %v2793, %v2813
    %v2819 = vmul.f32 %v2802, %v2795
    %v2820 = vmul.f32 %v2802, %v2796
    %v2821 = vmul.f32 %v2802, %v2797
    %v2822 = vmul.f32 %v2802, %v2798
    %v2823 = vmul.f32 %v2806, %v2795
    %v2824 = vmul.f32 %v2806, %v2796
    %v2825 = vmul.f32 %v2806, %v2797
    %v2826 = vmul.f32 %v2806, %v2798
    %v2827 = vmul.f32 %v2810, %v2795
    %v2828 = vmul.f32 %v2810, %v2796
    %v2829 = vmul.f32 %v2810, %v2797
    %v2830 = vmul.f32 %v2810, %v2798
    %v2831 = vmul.f32 %v2814, %v2795
    %v2832 = vmul.f32 %v2814, %v2796
    %v2833 = vmul.f32 %v2814, %v2797
    %v2834 = vmul.f32 %v2814, %v2798
    %v2835 = vadd.f32 %v2753, %v2819
    %v2836 = vadd.f32 %v2754, %v2820
    %v2837 = vadd.f32 %v2755, %v2821
    %v2838 = vadd.f32 %v2756, %v2822
    %v2839 = vadd.f32 %v2757, %v2823
    %v2840 = vadd.f32 %v2758, %v2824
    %v2841 = vadd.f32 %v2759, %v2825
    %v2842 = vadd.f32 %v2760, %v2826
    %v2843 = vadd.f32 %v2761, %v2827
    %v2844 = vadd.f32 %v2762, %v2828
    %v2845 = vadd.f32 %v2763, %v2829
    %v2846 = vadd.f32 %v2764, %v2830
    %v2847 = vadd.f32 %v2765, %v2831
    %v2848 = vadd.f32 %v2766, %v2832
    %v2849 = vadd.f32 %v2767, %v2833
    %v2850 = vadd.f32 %v2768, %v2834
    %2851 = vst [vmem:[#allocation7] sm:$0xff] %v2835
    %2852 = vst [vmem:[#allocation7 + $0x8] sm:$0xff] %v2836
    %2853 = vst [vmem:[#allocation7 + $0x10] sm:$0xff] %v2837
    %2854 = vst [vmem:[#allocation7 + $0x18] sm:$0x1] %v2838
    %2855 = vst [vmem:[#allocation7 + $0x20] sm:$0xff] %v2839
    %2856 = vst [vmem:[#allocation7 + $0x28] sm:$0xff] %v2840
    %2857 = vst [vmem:[#allocation7 + $0x30] sm:$0xff] %v2841
    %2858 = vst [vmem:[#allocation7 + $0x38] sm:$0x1] %v2842
    %2859 = vst [vmem:[#allocation7 + $0x40] sm:$0xff] %v2843
    %2860 = vst [vmem:[#allocation7 + $0x48] sm:$0xff] %v2844
    %2861 = vst [vmem:[#allocation7 + $0x50] sm:$0xff] %v2845
    %2862 = vst [vmem:[#allocation7 + $0x58] sm:$0x1] %v2846
    %2863 = vst [vmem:[#allocation7 + $0x60] sm:$0xff] %v2847
    %2864 = vst [vmem:[#allocation7 + $0x68] sm:$0xff] %v2848
    %2865 = vst [vmem:[#allocation7 + $0x70] sm:$0xff] %v2849
    %2866 = vst [vmem:[#allocation7 + $0x78] sm:$0x1] %v2850
    %s2867 = scalar_lea.vmem [#allocation19], 160
    %v2868 = vld [vmem:[%s2867] sm:$0xff]
    %v2869 = vld [vmem:[%s2867 + $0x8] sm:$0xff]
    %v2870 = vld [vmem:[%s2867 + $0x10] sm:$0xff]
    %v2871 = vld [vmem:[%s2867 + $0x18] sm:$0x1]
    %v2872 = vmul.f32 %v2490, %v2868
    %v2873 = vmul.f32 %v2490, %v2869
    %v2874 = vmul.f32 %v2490, %v2870
    %v2875 = vmul.f32 %v2490, %v2871
    %v2876 = vmul.f32 %v2494, %v2868
    %v2877 = vmul.f32 %v2494, %v2869
    %v2878 = vmul.f32 %v2494, %v2870
    %v2879 = vmul.f32 %v2494, %v2871
    %v2880 = vmul.f32 %v2498, %v2868
    %v2881 = vmul.f32 %v2498, %v2869
    %v2882 = vmul.f32 %v2498, %v2870
    %v2883 = vmul.f32 %v2498, %v2871
    %v2884 = vmul.f32 %v2502, %v2868
    %v2885 = vmul.f32 %v2502, %v2869
    %v2886 = vmul.f32 %v2502, %v2870
    %v2887 = vmul.f32 %v2502, %v2871
    %s2888 = scalar_lea.vmem [#allocation19], 192
    %v2889 = vld [vmem:[%s2888] sm:$0xff]
    %v2890 = vld [vmem:[%s2888 + $0x8] sm:$0xff]
    %v2891 = vld [vmem:[%s2888 + $0x10] sm:$0xff]
    %v2892 = vld [vmem:[%s2888 + $0x18] sm:$0x1]
    %v2893 = vmul.f32 %v2556, %v2889
    %v2894 = vmul.f32 %v2556, %v2890
    %v2895 = vmul.f32 %v2556, %v2891
    %v2896 = vmul.f32 %v2556, %v2892
    %v2897 = vmul.f32 %v2560, %v2889
    %v2898 = vmul.f32 %v2560, %v2890
    %v2899 = vmul.f32 %v2560, %v2891
    %v2900 = vmul.f32 %v2560, %v2892
    %v2901 = vmul.f32 %v2564, %v2889
    %v2902 = vmul.f32 %v2564, %v2890
    %v2903 = vmul.f32 %v2564, %v2891
    %v2904 = vmul.f32 %v2564, %v2892
    %v2905 = vmul.f32 %v2568, %v2889
    %v2906 = vmul.f32 %v2568, %v2890
    %v2907 = vmul.f32 %v2568, %v2891
    %v2908 = vmul.f32 %v2568, %v2892
    %v2909 = vadd.f32 %v2872, %v2893
    %v2910 = vadd.f32 %v2873, %v2894
    %v2911 = vadd.f32 %v2874, %v2895
    %v2912 = vadd.f32 %v2875, %v2896
    %v2913 = vadd.f32 %v2876, %v2897
    %v2914 = vadd.f32 %v2877, %v2898
    %v2915 = vadd.f32 %v2878, %v2899
    %v2916 = vadd.f32 %v2879, %v2900
    %v2917 = vadd.f32 %v2880, %v2901
    %v2918 = vadd.f32 %v2881, %v2902
    %v2919 = vadd.f32 %v2882, %v2903
    %v2920 = vadd.f32 %v2883, %v2904
    %v2921 = vadd.f32 %v2884, %v2905
    %v2922 = vadd.f32 %v2885, %v2906
    %v2923 = vadd.f32 %v2886, %v2907
    %v2924 = vadd.f32 %v2887, %v2908
    %s2925 = scalar_lea.vmem [#allocation19], 224
    %v2926 = vld [vmem:[%s2925] sm:$0xff]
    %v2927 = vld [vmem:[%s2925 + $0x8] sm:$0xff]
    %v2928 = vld [vmem:[%s2925 + $0x10] sm:$0xff]
    %v2929 = vld [vmem:[%s2925 + $0x18] sm:$0x1]
    %v2930 = vmul.f32 %v2638, %v2926
    %v2931 = vmul.f32 %v2638, %v2927
    %v2932 = vmul.f32 %v2638, %v2928
    %v2933 = vmul.f32 %v2638, %v2929
    %v2934 = vmul.f32 %v2642, %v2926
    %v2935 = vmul.f32 %v2642, %v2927
    %v2936 = vmul.f32 %v2642, %v2928
    %v2937 = vmul.f32 %v2642, %v2929
    %v2938 = vmul.f32 %v2646, %v2926
    %v2939 = vmul.f32 %v2646, %v2927
    %v2940 = vmul.f32 %v2646, %v2928
    %v2941 = vmul.f32 %v2646, %v2929
    %v2942 = vmul.f32 %v2650, %v2926
    %v2943 = vmul.f32 %v2650, %v2927
    %v2944 = vmul.f32 %v2650, %v2928
    %v2945 = vmul.f32 %v2650, %v2929
    %v2946 = vadd.f32 %v2909, %v2930
    %v2947 = vadd.f32 %v2910, %v2931
    %v2948 = vadd.f32 %v2911, %v2932
    %v2949 = vadd.f32 %v2912, %v2933
    %v2950 = vadd.f32 %v2913, %v2934
    %v2951 = vadd.f32 %v2914, %v2935
    %v2952 = vadd.f32 %v2915, %v2936
    %v2953 = vadd.f32 %v2916, %v2937
    %v2954 = vadd.f32 %v2917, %v2938
    %v2955 = vadd.f32 %v2918, %v2939
    %v2956 = vadd.f32 %v2919, %v2940
    %v2957 = vadd.f32 %v2920, %v2941
    %v2958 = vadd.f32 %v2921, %v2942
    %v2959 = vadd.f32 %v2922, %v2943
    %v2960 = vadd.f32 %v2923, %v2944
    %v2961 = vadd.f32 %v2924, %v2945
    %s2962 = scalar_lea.vmem [#allocation19], 256
    %v2963 = vld [vmem:[%s2962] sm:$0xff]
    %v2964 = vld [vmem:[%s2962 + $0x8] sm:$0xff]
    %v2965 = vld [vmem:[%s2962 + $0x10] sm:$0xff]
    %v2966 = vld [vmem:[%s2962 + $0x18] sm:$0x1]
    %v2967 = vmul.f32 %v2720, %v2963
    %v2968 = vmul.f32 %v2720, %v2964
    %v2969 = vmul.f32 %v2720, %v2965
    %v2970 = vmul.f32 %v2720, %v2966
    %v2971 = vmul.f32 %v2724, %v2963
    %v2972 = vmul.f32 %v2724, %v2964
    %v2973 = vmul.f32 %v2724, %v2965
    %v2974 = vmul.f32 %v2724, %v2966
    %v2975 = vmul.f32 %v2728, %v2963
    %v2976 = vmul.f32 %v2728, %v2964
    %v2977 = vmul.f32 %v2728, %v2965
    %v2978 = vmul.f32 %v2728, %v2966
    %v2979 = vmul.f32 %v2732, %v2963
    %v2980 = vmul.f32 %v2732, %v2964
    %v2981 = vmul.f32 %v2732, %v2965
    %v2982 = vmul.f32 %v2732, %v2966
    %v2983 = vadd.f32 %v2946, %v2967
    %v2984 = vadd.f32 %v2947, %v2968
    %v2985 = vadd.f32 %v2948, %v2969
    %v2986 = vadd.f32 %v2949, %v2970
    %v2987 = vadd.f32 %v2950, %v2971
    %v2988 = vadd.f32 %v2951, %v2972
    %v2989 = vadd.f32 %v2952, %v2973
    %v2990 = vadd.f32 %v2953, %v2974
    %v2991 = vadd.f32 %v2954, %v2975
    %v2992 = vadd.f32 %v2955, %v2976
    %v2993 = vadd.f32 %v2956, %v2977
    %v2994 = vadd.f32 %v2957, %v2978
    %v2995 = vadd.f32 %v2958, %v2979
    %v2996 = vadd.f32 %v2959, %v2980
    %v2997 = vadd.f32 %v2960, %v2981
    %v2998 = vadd.f32 %v2961, %v2982
    %s2999 = scalar_lea.vmem [#allocation19], 288
    %v3000 = vld [vmem:[%s2999] sm:$0xff]
    %v3001 = vld [vmem:[%s2999 + $0x8] sm:$0xff]
    %v3002 = vld [vmem:[%s2999 + $0x10] sm:$0xff]
    %v3003 = vld [vmem:[%s2999 + $0x18] sm:$0x1]
    %v3004 = vmul.f32 %v2802, %v3000
    %v3005 = vmul.f32 %v2802, %v3001
    %v3006 = vmul.f32 %v2802, %v3002
    %v3007 = vmul.f32 %v2802, %v3003
    %v3008 = vmul.f32 %v2806, %v3000
    %v3009 = vmul.f32 %v2806, %v3001
    %v3010 = vmul.f32 %v2806, %v3002
    %v3011 = vmul.f32 %v2806, %v3003
    %v3012 = vmul.f32 %v2810, %v3000
    %v3013 = vmul.f32 %v2810, %v3001
    %v3014 = vmul.f32 %v2810, %v3002
    %v3015 = vmul.f32 %v2810, %v3003
    %v3016 = vmul.f32 %v2814, %v3000
    %v3017 = vmul.f32 %v2814, %v3001
    %v3018 = vmul.f32 %v2814, %v3002
    %v3019 = vmul.f32 %v2814, %v3003
    %v3020 = vadd.f32 %v2983, %v3004
    %v3021 = vadd.f32 %v2984, %v3005
    %v3022 = vadd.f32 %v2985, %v3006
    %v3023 = vadd.f32 %v2986, %v3007
    %v3024 = vadd.f32 %v2987, %v3008
    %v3025 = vadd.f32 %v2988, %v3009
    %v3026 = vadd.f32 %v2989, %v3010
    %v3027 = vadd.f32 %v2990, %v3011
    %v3028 = vadd.f32 %v2991, %v3012
    %v3029 = vadd.f32 %v2992, %v3013
    %v3030 = vadd.f32 %v2993, %v3014
    %v3031 = vadd.f32 %v2994, %v3015
    %v3032 = vadd.f32 %v2995, %v3016
    %v3033 = vadd.f32 %v2996, %v3017
    %v3034 = vadd.f32 %v2997, %v3018
    %v3035 = vadd.f32 %v2998, %v3019
    %s3036 = scalar_lea.vmem [#allocation7], 128
    %3037 = vst [vmem:[%s3036] sm:$0xff] %v3020
    %3038 = vst [vmem:[%s3036 + $0x8] sm:$0xff] %v3021
    %3039 = vst [vmem:[%s3036 + $0x10] sm:$0xff] %v3022
    %3040 = vst [vmem:[%s3036 + $0x18] sm:$0x1] %v3023
    %3041 = vst [vmem:[%s3036 + $0x20] sm:$0xff] %v3024
    %3042 = vst [vmem:[%s3036 + $0x28] sm:$0xff] %v3025
    %3043 = vst [vmem:[%s3036 + $0x30] sm:$0xff] %v3026
    %3044 = vst [vmem:[%s3036 + $0x38] sm:$0x1] %v3027
    %3045 = vst [vmem:[%s3036 + $0x40] sm:$0xff] %v3028
    %3046 = vst [vmem:[%s3036 + $0x48] sm:$0xff] %v3029
    %3047 = vst [vmem:[%s3036 + $0x50] sm:$0xff] %v3030
    %3048 = vst [vmem:[%s3036 + $0x58] sm:$0x1] %v3031
    %3049 = vst [vmem:[%s3036 + $0x60] sm:$0xff] %v3032
    %3050 = vst [vmem:[%s3036 + $0x68] sm:$0xff] %v3033
    %3051 = vst [vmem:[%s3036 + $0x70] sm:$0xff] %v3034
    %3052 = vst [vmem:[%s3036 + $0x78] sm:$0x1] %v3035
    %s3053 = scalar_lea.vmem [#allocation19], 320
    %v3054 = vld [vmem:[%s3053] sm:$0xff]
    %v3055 = vld [vmem:[%s3053 + $0x8] sm:$0xff]
    %v3056 = vld [vmem:[%s3053 + $0x10] sm:$0xff]
    %v3057 = vld [vmem:[%s3053 + $0x18] sm:$0x1]
    %v3058 = vmul.f32 %v2490, %v3054
    %v3059 = vmul.f32 %v2490, %v3055
    %v3060 = vmul.f32 %v2490, %v3056
    %v3061 = vmul.f32 %v2490, %v3057
    %v3062 = vmul.f32 %v2494, %v3054
    %v3063 = vmul.f32 %v2494, %v3055
    %v3064 = vmul.f32 %v2494, %v3056
    %v3065 = vmul.f32 %v2494, %v3057
    %v3066 = vmul.f32 %v2498, %v3054
    %v3067 = vmul.f32 %v2498, %v3055
    %v3068 = vmul.f32 %v2498, %v3056
    %v3069 = vmul.f32 %v2498, %v3057
    %v3070 = vmul.f32 %v2502, %v3054
    %v3071 = vmul.f32 %v2502, %v3055
    %v3072 = vmul.f32 %v2502, %v3056
    %v3073 = vmul.f32 %v2502, %v3057
    %s3074 = scalar_lea.vmem [#allocation19], 352
    %v3075 = vld [vmem:[%s3074] sm:$0xff]
    %v3076 = vld [vmem:[%s3074 + $0x8] sm:$0xff]
    %v3077 = vld [vmem:[%s3074 + $0x10] sm:$0xff]
    %v3078 = vld [vmem:[%s3074 + $0x18] sm:$0x1]
    %v3079 = vmul.f32 %v2556, %v3075
    %v3080 = vmul.f32 %v2556, %v3076
    %v3081 = vmul.f32 %v2556, %v3077
    %v3082 = vmul.f32 %v2556, %v3078
    %v3083 = vmul.f32 %v2560, %v3075
    %v3084 = vmul.f32 %v2560, %v3076
    %v3085 = vmul.f32 %v2560, %v3077
    %v3086 = vmul.f32 %v2560, %v3078
    %v3087 = vmul.f32 %v2564, %v3075
    %v3088 = vmul.f32 %v2564, %v3076
    %v3089 = vmul.f32 %v2564, %v3077
    %v3090 = vmul.f32 %v2564, %v3078
    %v3091 = vmul.f32 %v2568, %v3075
    %v3092 = vmul.f32 %v2568, %v3076
    %v3093 = vmul.f32 %v2568, %v3077
    %v3094 = vmul.f32 %v2568, %v3078
    %v3095 = vadd.f32 %v3058, %v3079
    %v3096 = vadd.f32 %v3059, %v3080
    %v3097 = vadd.f32 %v3060, %v3081
    %v3098 = vadd.f32 %v3061, %v3082
    %v3099 = vadd.f32 %v3062, %v3083
    %v3100 = vadd.f32 %v3063, %v3084
    %v3101 = vadd.f32 %v3064, %v3085
    %v3102 = vadd.f32 %v3065, %v3086
    %v3103 = vadd.f32 %v3066, %v3087
    %v3104 = vadd.f32 %v3067, %v3088
    %v3105 = vadd.f32 %v3068, %v3089
    %v3106 = vadd.f32 %v3069, %v3090
    %v3107 = vadd.f32 %v3070, %v3091
    %v3108 = vadd.f32 %v3071, %v3092
    %v3109 = vadd.f32 %v3072, %v3093
    %v3110 = vadd.f32 %v3073, %v3094
    %s3111 = scalar_lea.vmem [#allocation19], 384
    %v3112 = vld [vmem:[%s3111] sm:$0xff]
    %v3113 = vld [vmem:[%s3111 + $0x8] sm:$0xff]
    %v3114 = vld [vmem:[%s3111 + $0x10] sm:$0xff]
    %v3115 = vld [vmem:[%s3111 + $0x18] sm:$0x1]
    %v3116 = vmul.f32 %v2638, %v3112
    %v3117 = vmul.f32 %v2638, %v3113
    %v3118 = vmul.f32 %v2638, %v3114
    %v3119 = vmul.f32 %v2638, %v3115
    %v3120 = vmul.f32 %v2642, %v3112
    %v3121 = vmul.f32 %v2642, %v3113
    %v3122 = vmul.f32 %v2642, %v3114
    %v3123 = vmul.f32 %v2642, %v3115
    %v3124 = vmul.f32 %v2646, %v3112
    %v3125 = vmul.f32 %v2646, %v3113
    %v3126 = vmul.f32 %v2646, %v3114
    %v3127 = vmul.f32 %v2646, %v3115
    %v3128 = vmul.f32 %v2650, %v3112
    %v3129 = vmul.f32 %v2650, %v3113
    %v3130 = vmul.f32 %v2650, %v3114
    %v3131 = vmul.f32 %v2650, %v3115
    %v3132 = vadd.f32 %v3095, %v3116
    %v3133 = vadd.f32 %v3096, %v3117
    %v3134 = vadd.f32 %v3097, %v3118
    %v3135 = vadd.f32 %v3098, %v3119
    %v3136 = vadd.f32 %v3099, %v3120
    %v3137 = vadd.f32 %v3100, %v3121
    %v3138 = vadd.f32 %v3101, %v3122
    %v3139 = vadd.f32 %v3102, %v3123
    %v3140 = vadd.f32 %v3103, %v3124
    %v3141 = vadd.f32 %v3104, %v3125
    %v3142 = vadd.f32 %v3105, %v3126
    %v3143 = vadd.f32 %v3106, %v3127
    %v3144 = vadd.f32 %v3107, %v3128
    %v3145 = vadd.f32 %v3108, %v3129
    %v3146 = vadd.f32 %v3109, %v3130
    %v3147 = vadd.f32 %v3110, %v3131
    %s3148 = scalar_lea.vmem [#allocation19], 416
    %v3149 = vld [vmem:[%s3148] sm:$0xff]
    %v3150 = vld [vmem:[%s3148 + $0x8] sm:$0xff]
    %v3151 = vld [vmem:[%s3148 + $0x10] sm:$0xff]
    %v3152 = vld [vmem:[%s3148 + $0x18] sm:$0x1]
    %v3153 = vmul.f32 %v2720, %v3149
    %v3154 = vmul.f32 %v2720, %v3150
    %v3155 = vmul.f32 %v2720, %v3151
    %v3156 = vmul.f32 %v2720, %v3152
    %v3157 = vmul.f32 %v2724, %v3149
    %v3158 = vmul.f32 %v2724, %v3150
    %v3159 = vmul.f32 %v2724, %v3151
    %v3160 = vmul.f32 %v2724, %v3152
    %v3161 = vmul.f32 %v2728, %v3149
    %v3162 = vmul.f32 %v2728, %v3150
    %v3163 = vmul.f32 %v2728, %v3151
    %v3164 = vmul.f32 %v2728, %v3152
    %v3165 = vmul.f32 %v2732, %v3149
    %v3166 = vmul.f32 %v2732, %v3150
    %v3167 = vmul.f32 %v2732, %v3151
    %v3168 = vmul.f32 %v2732, %v3152
    %v3169 = vadd.f32 %v3132, %v3153
    %v3170 = vadd.f32 %v3133, %v3154
    %v3171 = vadd.f32 %v3134, %v3155
    %v3172 = vadd.f32 %v3135, %v3156
    %v3173 = vadd.f32 %v3136, %v3157
    %v3174 = vadd.f32 %v3137, %v3158
    %v3175 = vadd.f32 %v3138, %v3159
    %v3176 = vadd.f32 %v3139, %v3160
    %v3177 = vadd.f32 %v3140, %v3161
    %v3178 = vadd.f32 %v3141, %v3162
    %v3179 = vadd.f32 %v3142, %v3163
    %v3180 = vadd.f32 %v3143, %v3164
    %v3181 = vadd.f32 %v3144, %v3165
    %v3182 = vadd.f32 %v3145, %v3166
    %v3183 = vadd.f32 %v3146, %v3167
    %v3184 = vadd.f32 %v3147, %v3168
    %s3185 = scalar_lea.vmem [#allocation19], 448
    %v3186 = vld [vmem:[%s3185] sm:$0xff]
    %v3187 = vld [vmem:[%s3185 + $0x8] sm:$0xff]
    %v3188 = vld [vmem:[%s3185 + $0x10] sm:$0xff]
    %v3189 = vld [vmem:[%s3185 + $0x18] sm:$0x1]
    %v3190 = vmul.f32 %v2802, %v3186
    %v3191 = vmul.f32 %v2802, %v3187
    %v3192 = vmul.f32 %v2802, %v3188
    %v3193 = vmul.f32 %v2802, %v3189
    %v3194 = vmul.f32 %v2806, %v3186
    %v3195 = vmul.f32 %v2806, %v3187
    %v3196 = vmul.f32 %v2806, %v3188
    %v3197 = vmul.f32 %v2806, %v3189
    %v3198 = vmul.f32 %v2810, %v3186
    %v3199 = vmul.f32 %v2810, %v3187
    %v3200 = vmul.f32 %v2810, %v3188
    %v3201 = vmul.f32 %v2810, %v3189
    %v3202 = vmul.f32 %v2814, %v3186
    %v3203 = vmul.f32 %v2814, %v3187
    %v3204 = vmul.f32 %v2814, %v3188
    %v3205 = vmul.f32 %v2814, %v3189
    %v3206 = vadd.f32 %v3169, %v3190
    %v3207 = vadd.f32 %v3170, %v3191
    %v3208 = vadd.f32 %v3171, %v3192
    %v3209 = vadd.f32 %v3172, %v3193
    %v3210 = vadd.f32 %v3173, %v3194
    %v3211 = vadd.f32 %v3174, %v3195
    %v3212 = vadd.f32 %v3175, %v3196
    %v3213 = vadd.f32 %v3176, %v3197
    %v3214 = vadd.f32 %v3177, %v3198
    %v3215 = vadd.f32 %v3178, %v3199
    %v3216 = vadd.f32 %v3179, %v3200
    %v3217 = vadd.f32 %v3180, %v3201
    %v3218 = vadd.f32 %v3181, %v3202
    %v3219 = vadd.f32 %v3182, %v3203
    %v3220 = vadd.f32 %v3183, %v3204
    %v3221 = vadd.f32 %v3184, %v3205
    %s3222 = scalar_lea.vmem [#allocation7], 256
    %3223 = vst [vmem:[%s3222] sm:$0xff] %v3206
    %3224 = vst [vmem:[%s3222 + $0x8] sm:$0xff] %v3207
    %3225 = vst [vmem:[%s3222 + $0x10] sm:$0xff] %v3208
    %3226 = vst [vmem:[%s3222 + $0x18] sm:$0x1] %v3209
    %3227 = vst [vmem:[%s3222 + $0x20] sm:$0xff] %v3210
    %3228 = vst [vmem:[%s3222 + $0x28] sm:$0xff] %v3211
    %3229 = vst [vmem:[%s3222 + $0x30] sm:$0xff] %v3212
    %3230 = vst [vmem:[%s3222 + $0x38] sm:$0x1] %v3213
    %3231 = vst [vmem:[%s3222 + $0x40] sm:$0xff] %v3214
    %3232 = vst [vmem:[%s3222 + $0x48] sm:$0xff] %v3215
    %3233 = vst [vmem:[%s3222 + $0x50] sm:$0xff] %v3216
    %3234 = vst [vmem:[%s3222 + $0x58] sm:$0x1] %v3217
    %3235 = vst [vmem:[%s3222 + $0x60] sm:$0xff] %v3218
    %3236 = vst [vmem:[%s3222 + $0x68] sm:$0xff] %v3219
    %3237 = vst [vmem:[%s3222 + $0x70] sm:$0xff] %v3220
    %3238 = vst [vmem:[%s3222 + $0x78] sm:$0x1] %v3221
    %s3239 = scalar_lea.vmem [#allocation19], 480
    %v3240 = vld [vmem:[%s3239] sm:$0xff]
    %v3241 = vld [vmem:[%s3239 + $0x8] sm:$0xff]
    %v3242 = vld [vmem:[%s3239 + $0x10] sm:$0xff]
    %v3243 = vld [vmem:[%s3239 + $0x18] sm:$0x1]
    %v3244 = vmul.f32 %v2490, %v3240
    %v3245 = vmul.f32 %v2490, %v3241
    %v3246 = vmul.f32 %v2490, %v3242
    %v3247 = vmul.f32 %v2490, %v3243
    %v3248 = vmul.f32 %v2494, %v3240
    %v3249 = vmul.f32 %v2494, %v3241
    %v3250 = vmul.f32 %v2494, %v3242
    %v3251 = vmul.f32 %v2494, %v3243
    %v3252 = vmul.f32 %v2498, %v3240
    %v3253 = vmul.f32 %v2498, %v3241
    %v3254 = vmul.f32 %v2498, %v3242
    %v3255 = vmul.f32 %v2498, %v3243
    %v3256 = vmul.f32 %v2502, %v3240
    %v3257 = vmul.f32 %v2502, %v3241
    %v3258 = vmul.f32 %v2502, %v3242
    %v3259 = vmul.f32 %v2502, %v3243
    %s3260 = scalar_lea.vmem [#allocation19], 512
    %v3261 = vld [vmem:[%s3260] sm:$0xff]
    %v3262 = vld [vmem:[%s3260 + $0x8] sm:$0xff]
    %v3263 = vld [vmem:[%s3260 + $0x10] sm:$0xff]
    %v3264 = vld [vmem:[%s3260 + $0x18] sm:$0x1]
    %v3265 = vmul.f32 %v2556, %v3261
    %v3266 = vmul.f32 %v2556, %v3262
    %v3267 = vmul.f32 %v2556, %v3263
    %v3268 = vmul.f32 %v2556, %v3264
    %v3269 = vmul.f32 %v2560, %v3261
    %v3270 = vmul.f32 %v2560, %v3262
    %v3271 = vmul.f32 %v2560, %v3263
    %v3272 = vmul.f32 %v2560, %v3264
    %v3273 = vmul.f32 %v2564, %v3261
    %v3274 = vmul.f32 %v2564, %v3262
    %v3275 = vmul.f32 %v2564, %v3263
    %v3276 = vmul.f32 %v2564, %v3264
    %v3277 = vmul.f32 %v2568, %v3261
    %v3278 = vmul.f32 %v2568, %v3262
    %v3279 = vmul.f32 %v2568, %v3263
    %v3280 = vmul.f32 %v2568, %v3264
    %v3281 = vadd.f32 %v3244, %v3265
    %v3282 = vadd.f32 %v3245, %v3266
    %v3283 = vadd.f32 %v3246, %v3267
    %v3284 = vadd.f32 %v3247, %v3268
    %v3285 = vadd.f32 %v3248, %v3269
    %v3286 = vadd.f32 %v3249, %v3270
    %v3287 = vadd.f32 %v3250, %v3271
    %v3288 = vadd.f32 %v3251, %v3272
    %v3289 = vadd.f32 %v3252, %v3273
    %v3290 = vadd.f32 %v3253, %v3274
    %v3291 = vadd.f32 %v3254, %v3275
    %v3292 = vadd.f32 %v3255, %v3276
    %v3293 = vadd.f32 %v3256, %v3277
    %v3294 = vadd.f32 %v3257, %v3278
    %v3295 = vadd.f32 %v3258, %v3279
    %v3296 = vadd.f32 %v3259, %v3280
    %s3297 = scalar_lea.vmem [#allocation19], 544
    %v3298 = vld [vmem:[%s3297] sm:$0xff]
    %v3299 = vld [vmem:[%s3297 + $0x8] sm:$0xff]
    %v3300 = vld [vmem:[%s3297 + $0x10] sm:$0xff]
    %v3301 = vld [vmem:[%s3297 + $0x18] sm:$0x1]
    %v3302 = vmul.f32 %v2638, %v3298
    %v3303 = vmul.f32 %v2638, %v3299
    %v3304 = vmul.f32 %v2638, %v3300
    %v3305 = vmul.f32 %v2638, %v3301
    %v3306 = vmul.f32 %v2642, %v3298
    %v3307 = vmul.f32 %v2642, %v3299
    %v3308 = vmul.f32 %v2642, %v3300
    %v3309 = vmul.f32 %v2642, %v3301
    %v3310 = vmul.f32 %v2646, %v3298
    %v3311 = vmul.f32 %v2646, %v3299
    %v3312 = vmul.f32 %v2646, %v3300
    %v3313 = vmul.f32 %v2646, %v3301
    %v3314 = vmul.f32 %v2650, %v3298
    %v3315 = vmul.f32 %v2650, %v3299
    %v3316 = vmul.f32 %v2650, %v3300
    %v3317 = vmul.f32 %v2650, %v3301
    %v3318 = vadd.f32 %v3281, %v3302
    %v3319 = vadd.f32 %v3282, %v3303
    %v3320 = vadd.f32 %v3283, %v3304
    %v3321 = vadd.f32 %v3284, %v3305
    %v3322 = vadd.f32 %v3285, %v3306
    %v3323 = vadd.f32 %v3286, %v3307
    %v3324 = vadd.f32 %v3287, %v3308
    %v3325 = vadd.f32 %v3288, %v3309
    %v3326 = vadd.f32 %v3289, %v3310
    %v3327 = vadd.f32 %v3290, %v3311
    %v3328 = vadd.f32 %v3291, %v3312
    %v3329 = vadd.f32 %v3292, %v3313
    %v3330 = vadd.f32 %v3293, %v3314
    %v3331 = vadd.f32 %v3294, %v3315
    %v3332 = vadd.f32 %v3295, %v3316
    %v3333 = vadd.f32 %v3296, %v3317
    %s3334 = scalar_lea.vmem [#allocation19], 576
    %v3335 = vld [vmem:[%s3334] sm:$0xff]
    %v3336 = vld [vmem:[%s3334 + $0x8] sm:$0xff]
    %v3337 = vld [vmem:[%s3334 + $0x10] sm:$0xff]
    %v3338 = vld [vmem:[%s3334 + $0x18] sm:$0x1]
    %v3339 = vmul.f32 %v2720, %v3335
    %v3340 = vmul.f32 %v2720, %v3336
    %v3341 = vmul.f32 %v2720, %v3337
    %v3342 = vmul.f32 %v2720, %v3338
    %v3343 = vmul.f32 %v2724, %v3335
    %v3344 = vmul.f32 %v2724, %v3336
    %v3345 = vmul.f32 %v2724, %v3337
    %v3346 = vmul.f32 %v2724, %v3338
    %v3347 = vmul.f32 %v2728, %v3335
    %v3348 = vmul.f32 %v2728, %v3336
    %v3349 = vmul.f32 %v2728, %v3337
    %v3350 = vmul.f32 %v2728, %v3338
    %v3351 = vmul.f32 %v2732, %v3335
    %v3352 = vmul.f32 %v2732, %v3336
    %v3353 = vmul.f32 %v2732, %v3337
    %v3354 = vmul.f32 %v2732, %v3338
    %v3355 = vadd.f32 %v3318, %v3339
    %v3356 = vadd.f32 %v3319, %v3340
    %v3357 = vadd.f32 %v3320, %v3341
    %v3358 = vadd.f32 %v3321, %v3342
    %v3359 = vadd.f32 %v3322, %v3343
    %v3360 = vadd.f32 %v3323, %v3344
    %v3361 = vadd.f32 %v3324, %v3345
    %v3362 = vadd.f32 %v3325, %v3346
    %v3363 = vadd.f32 %v3326, %v3347
    %v3364 = vadd.f32 %v3327, %v3348
    %v3365 = vadd.f32 %v3328, %v3349
    %v3366 = vadd.f32 %v3329, %v3350
    %v3367 = vadd.f32 %v3330, %v3351
    %v3368 = vadd.f32 %v3331, %v3352
    %v3369 = vadd.f32 %v3332, %v3353
    %v3370 = vadd.f32 %v3333, %v3354
    %s3371 = scalar_lea.vmem [#allocation19], 608
    %v3372 = vld [vmem:[%s3371] sm:$0xff]
    %v3373 = vld [vmem:[%s3371 + $0x8] sm:$0xff]
    %v3374 = vld [vmem:[%s3371 + $0x10] sm:$0xff]
    %v3375 = vld [vmem:[%s3371 + $0x18] sm:$0x1]
    %v3376 = vmul.f32 %v2802, %v3372
    %v3377 = vmul.f32 %v2802, %v3373
    %v3378 = vmul.f32 %v2802, %v3374
    %v3379 = vmul.f32 %v2802, %v3375
    %v3380 = vmul.f32 %v2806, %v3372
    %v3381 = vmul.f32 %v2806, %v3373
    %v3382 = vmul.f32 %v2806, %v3374
    %v3383 = vmul.f32 %v2806, %v3375
    %v3384 = vmul.f32 %v2810, %v3372
    %v3385 = vmul.f32 %v2810, %v3373
    %v3386 = vmul.f32 %v2810, %v3374
    %v3387 = vmul.f32 %v2810, %v3375
    %v3388 = vmul.f32 %v2814, %v3372
    %v3389 = vmul.f32 %v2814, %v3373
    %v3390 = vmul.f32 %v2814, %v3374
    %v3391 = vmul.f32 %v2814, %v3375
    %v3392 = vadd.f32 %v3355, %v3376
    %v3393 = vadd.f32 %v3356, %v3377
    %v3394 = vadd.f32 %v3357, %v3378
    %v3395 = vadd.f32 %v3358, %v3379
    %v3396 = vadd.f32 %v3359, %v3380
    %v3397 = vadd.f32 %v3360, %v3381
    %v3398 = vadd.f32 %v3361, %v3382
    %v3399 = vadd.f32 %v3362, %v3383
    %v3400 = vadd.f32 %v3363, %v3384
    %v3401 = vadd.f32 %v3364, %v3385
    %v3402 = vadd.f32 %v3365, %v3386
    %v3403 = vadd.f32 %v3366, %v3387
    %v3404 = vadd.f32 %v3367, %v3388
    %v3405 = vadd.f32 %v3368, %v3389
    %v3406 = vadd.f32 %v3369, %v3390
    %v3407 = vadd.f32 %v3370, %v3391
    %s3408 = scalar_lea.vmem [#allocation7], 384
    %3409 = vst [vmem:[%s3408] sm:$0xff] %v3392
    %3410 = vst [vmem:[%s3408 + $0x8] sm:$0xff] %v3393
    %3411 = vst [vmem:[%s3408 + $0x10] sm:$0xff] %v3394
    %3412 = vst [vmem:[%s3408 + $0x18] sm:$0x1] %v3395
    %3413 = vst [vmem:[%s3408 + $0x20] sm:$0xff] %v3396
    %3414 = vst [vmem:[%s3408 + $0x28] sm:$0xff] %v3397
    %3415 = vst [vmem:[%s3408 + $0x30] sm:$0xff] %v3398
    %3416 = vst [vmem:[%s3408 + $0x38] sm:$0x1] %v3399
    %3417 = vst [vmem:[%s3408 + $0x40] sm:$0xff] %v3400
    %3418 = vst [vmem:[%s3408 + $0x48] sm:$0xff] %v3401
    %3419 = vst [vmem:[%s3408 + $0x50] sm:$0xff] %v3402
    %3420 = vst [vmem:[%s3408 + $0x58] sm:$0x1] %v3403
    %3421 = vst [vmem:[%s3408 + $0x60] sm:$0xff] %v3404
    %3422 = vst [vmem:[%s3408 + $0x68] sm:$0xff] %v3405
    %3423 = vst [vmem:[%s3408 + $0x70] sm:$0xff] %v3406
    %3424 = vst [vmem:[%s3408 + $0x78] sm:$0x1] %v3407
    %s3425 = scalar_lea.vmem [#allocation19], 640
    %v3426 = vld [vmem:[%s3425] sm:$0xff]
    %v3427 = vld [vmem:[%s3425 + $0x8] sm:$0xff]
    %v3428 = vld [vmem:[%s3425 + $0x10] sm:$0xff]
    %v3429 = vld [vmem:[%s3425 + $0x18] sm:$0x1]
    %v3430 = vmul.f32 %v2490, %v3426
    %v3431 = vmul.f32 %v2490, %v3427
    %v3432 = vmul.f32 %v2490, %v3428
    %v3433 = vmul.f32 %v2490, %v3429
    %v3434 = vmul.f32 %v2494, %v3426
    %v3435 = vmul.f32 %v2494, %v3427
    %v3436 = vmul.f32 %v2494, %v3428
    %v3437 = vmul.f32 %v2494, %v3429
    %v3438 = vmul.f32 %v2498, %v3426
    %v3439 = vmul.f32 %v2498, %v3427
    %v3440 = vmul.f32 %v2498, %v3428
    %v3441 = vmul.f32 %v2498, %v3429
    %v3442 = vmul.f32 %v2502, %v3426
    %v3443 = vmul.f32 %v2502, %v3427
    %v3444 = vmul.f32 %v2502, %v3428
    %v3445 = vmul.f32 %v2502, %v3429
    %s3446 = scalar_lea.vmem [#allocation19], 672
    %v3447 = vld [vmem:[%s3446] sm:$0xff]
    %v3448 = vld [vmem:[%s3446 + $0x8] sm:$0xff]
    %v3449 = vld [vmem:[%s3446 + $0x10] sm:$0xff]
    %v3450 = vld [vmem:[%s3446 + $0x18] sm:$0x1]
    %v3451 = vmul.f32 %v2556, %v3447
    %v3452 = vmul.f32 %v2556, %v3448
    %v3453 = vmul.f32 %v2556, %v3449
    %v3454 = vmul.f32 %v2556, %v3450
    %v3455 = vmul.f32 %v2560, %v3447
    %v3456 = vmul.f32 %v2560, %v3448
    %v3457 = vmul.f32 %v2560, %v3449
    %v3458 = vmul.f32 %v2560, %v3450
    %v3459 = vmul.f32 %v2564, %v3447
    %v3460 = vmul.f32 %v2564, %v3448
    %v3461 = vmul.f32 %v2564, %v3449
    %v3462 = vmul.f32 %v2564, %v3450
    %v3463 = vmul.f32 %v2568, %v3447
    %v3464 = vmul.f32 %v2568, %v3448
    %v3465 = vmul.f32 %v2568, %v3449
    %v3466 = vmul.f32 %v2568, %v3450
    %v3467 = vadd.f32 %v3430, %v3451
    %v3468 = vadd.f32 %v3431, %v3452
    %v3469 = vadd.f32 %v3432, %v3453
    %v3470 = vadd.f32 %v3433, %v3454
    %v3471 = vadd.f32 %v3434, %v3455
    %v3472 = vadd.f32 %v3435, %v3456
    %v3473 = vadd.f32 %v3436, %v3457
    %v3474 = vadd.f32 %v3437, %v3458
    %v3475 = vadd.f32 %v3438, %v3459
    %v3476 = vadd.f32 %v3439, %v3460
    %v3477 = vadd.f32 %v3440, %v3461
    %v3478 = vadd.f32 %v3441, %v3462
    %v3479 = vadd.f32 %v3442, %v3463
    %v3480 = vadd.f32 %v3443, %v3464
    %v3481 = vadd.f32 %v3444, %v3465
    %v3482 = vadd.f32 %v3445, %v3466
    %s3483 = scalar_lea.vmem [#allocation19], 704
    %v3484 = vld [vmem:[%s3483] sm:$0xff]
    %v3485 = vld [vmem:[%s3483 + $0x8] sm:$0xff]
    %v3486 = vld [vmem:[%s3483 + $0x10] sm:$0xff]
    %v3487 = vld [vmem:[%s3483 + $0x18] sm:$0x1]
    %v3488 = vmul.f32 %v2638, %v3484
    %v3489 = vmul.f32 %v2638, %v3485
    %v3490 = vmul.f32 %v2638, %v3486
    %v3491 = vmul.f32 %v2638, %v3487
    %v3492 = vmul.f32 %v2642, %v3484
    %v3493 = vmul.f32 %v2642, %v3485
    %v3494 = vmul.f32 %v2642, %v3486
    %v3495 = vmul.f32 %v2642, %v3487
    %v3496 = vmul.f32 %v2646, %v3484
    %v3497 = vmul.f32 %v2646, %v3485
    %v3498 = vmul.f32 %v2646, %v3486
    %v3499 = vmul.f32 %v2646, %v3487
    %v3500 = vmul.f32 %v2650, %v3484
    %v3501 = vmul.f32 %v2650, %v3485
    %v3502 = vmul.f32 %v2650, %v3486
    %v3503 = vmul.f32 %v2650, %v3487
    %v3504 = vadd.f32 %v3467, %v3488
    %v3505 = vadd.f32 %v3468, %v3489
    %v3506 = vadd.f32 %v3469, %v3490
    %v3507 = vadd.f32 %v3470, %v3491
    %v3508 = vadd.f32 %v3471, %v3492
    %v3509 = vadd.f32 %v3472, %v3493
    %v3510 = vadd.f32 %v3473, %v3494
    %v3511 = vadd.f32 %v3474, %v3495
    %v3512 = vadd.f32 %v3475, %v3496
    %v3513 = vadd.f32 %v3476, %v3497
    %v3514 = vadd.f32 %v3477, %v3498
    %v3515 = vadd.f32 %v3478, %v3499
    %v3516 = vadd.f32 %v3479, %v3500
    %v3517 = vadd.f32 %v3480, %v3501
    %v3518 = vadd.f32 %v3481, %v3502
    %v3519 = vadd.f32 %v3482, %v3503
    %s3520 = scalar_lea.vmem [#allocation19], 736
    %v3521 = vld [vmem:[%s3520] sm:$0xff]
    %v3522 = vld [vmem:[%s3520 + $0x8] sm:$0xff]
    %v3523 = vld [vmem:[%s3520 + $0x10] sm:$0xff]
    %v3524 = vld [vmem:[%s3520 + $0x18] sm:$0x1]
    %v3525 = vmul.f32 %v2720, %v3521
    %v3526 = vmul.f32 %v2720, %v3522
    %v3527 = vmul.f32 %v2720, %v3523
    %v3528 = vmul.f32 %v2720, %v3524
    %v3529 = vmul.f32 %v2724, %v3521
    %v3530 = vmul.f32 %v2724, %v3522
    %v3531 = vmul.f32 %v2724, %v3523
    %v3532 = vmul.f32 %v2724, %v3524
    %v3533 = vmul.f32 %v2728, %v3521
    %v3534 = vmul.f32 %v2728, %v3522
    %v3535 = vmul.f32 %v2728, %v3523
    %v3536 = vmul.f32 %v2728, %v3524
    %v3537 = vmul.f32 %v2732, %v3521
    %v3538 = vmul.f32 %v2732, %v3522
    %v3539 = vmul.f32 %v2732, %v3523
    %v3540 = vmul.f32 %v2732, %v3524
    %v3541 = vadd.f32 %v3504, %v3525
    %v3542 = vadd.f32 %v3505, %v3526
    %v3543 = vadd.f32 %v3506, %v3527
    %v3544 = vadd.f32 %v3507, %v3528
    %v3545 = vadd.f32 %v3508, %v3529
    %v3546 = vadd.f32 %v3509, %v3530
    %v3547 = vadd.f32 %v3510, %v3531
    %v3548 = vadd.f32 %v3511, %v3532
    %v3549 = vadd.f32 %v3512, %v3533
    %v3550 = vadd.f32 %v3513, %v3534
    %v3551 = vadd.f32 %v3514, %v3535
    %v3552 = vadd.f32 %v3515, %v3536
    %v3553 = vadd.f32 %v3516, %v3537
    %v3554 = vadd.f32 %v3517, %v3538
    %v3555 = vadd.f32 %v3518, %v3539
    %v3556 = vadd.f32 %v3519, %v3540
    %s3557 = scalar_lea.vmem [#allocation19], 768
    %v3558 = vld [vmem:[%s3557] sm:$0xff]
    %v3559 = vld [vmem:[%s3557 + $0x8] sm:$0xff]
    %v3560 = vld [vmem:[%s3557 + $0x10] sm:$0xff]
    %v3561 = vld [vmem:[%s3557 + $0x18] sm:$0x1]
    %v3562 = vmul.f32 %v2802, %v3558
    %v3563 = vmul.f32 %v2802, %v3559
    %v3564 = vmul.f32 %v2802, %v3560
    %v3565 = vmul.f32 %v2802, %v3561
    %v3566 = vmul.f32 %v2806, %v3558
    %v3567 = vmul.f32 %v2806, %v3559
    %v3568 = vmul.f32 %v2806, %v3560
    %v3569 = vmul.f32 %v2806, %v3561
    %v3570 = vmul.f32 %v2810, %v3558
    %v3571 = vmul.f32 %v2810, %v3559
    %v3572 = vmul.f32 %v2810, %v3560
    %v3573 = vmul.f32 %v2810, %v3561
    %v3574 = vmul.f32 %v2814, %v3558
    %v3575 = vmul.f32 %v2814, %v3559
    %v3576 = vmul.f32 %v2814, %v3560
    %v3577 = vmul.f32 %v2814, %v3561
    %v3578 = vadd.f32 %v3541, %v3562
    %v3579 = vadd.f32 %v3542, %v3563
    %v3580 = vadd.f32 %v3543, %v3564
    %v3581 = vadd.f32 %v3544, %v3565
    %v3582 = vadd.f32 %v3545, %v3566
    %v3583 = vadd.f32 %v3546, %v3567
    %v3584 = vadd.f32 %v3547, %v3568
    %v3585 = vadd.f32 %v3548, %v3569
    %v3586 = vadd.f32 %v3549, %v3570
    %v3587 = vadd.f32 %v3550, %v3571
    %v3588 = vadd.f32 %v3551, %v3572
    %v3589 = vadd.f32 %v3552, %v3573
    %v3590 = vadd.f32 %v3553, %v3574
    %v3591 = vadd.f32 %v3554, %v3575
    %v3592 = vadd.f32 %v3555, %v3576
    %v3593 = vadd.f32 %v3556, %v3577
    %s3594 = scalar_lea.vmem [#allocation7], 512
    %3595 = vst [vmem:[%s3594] sm:$0xff] %v3578
    %3596 = vst [vmem:[%s3594 + $0x8] sm:$0xff] %v3579
    %3597 = vst [vmem:[%s3594 + $0x10] sm:$0xff] %v3580
    %3598 = vst [vmem:[%s3594 + $0x18] sm:$0x1] %v3581
    %3599 = vst [vmem:[%s3594 + $0x20] sm:$0xff] %v3582
    %3600 = vst [vmem:[%s3594 + $0x28] sm:$0xff] %v3583
    %3601 = vst [vmem:[%s3594 + $0x30] sm:$0xff] %v3584
    %3602 = vst [vmem:[%s3594 + $0x38] sm:$0x1] %v3585
    %3603 = vst [vmem:[%s3594 + $0x40] sm:$0xff] %v3586
    %3604 = vst [vmem:[%s3594 + $0x48] sm:$0xff] %v3587
    %3605 = vst [vmem:[%s3594 + $0x50] sm:$0xff] %v3588
    %3606 = vst [vmem:[%s3594 + $0x58] sm:$0x1] %v3589
    %3607 = vst [vmem:[%s3594 + $0x60] sm:$0xff] %v3590
    %3608 = vst [vmem:[%s3594 + $0x68] sm:$0xff] %v3591
    %3609 = vst [vmem:[%s3594 + $0x70] sm:$0xff] %v3592
    %3610 = vst [vmem:[%s3594 + $0x78] sm:$0x1] %v3593
    %v3611 = vld [vmem:[#allocation7] sm:$0xff]
    %v3612 = vld [vmem:[#allocation7 + $0x8] sm:$0xff]
    %v3613 = vld [vmem:[#allocation7 + $0x10] sm:$0xff]
    %v3614 = vld [vmem:[#allocation7 + $0x18] sm:$0x1]
    %v3615 = vld [vmem:[#allocation7 + $0x20] sm:$0xff]
    %v3616 = vld [vmem:[#allocation7 + $0x28] sm:$0xff]
    %v3617 = vld [vmem:[#allocation7 + $0x30] sm:$0xff]
    %v3618 = vld [vmem:[#allocation7 + $0x38] sm:$0x1]
    %v3619 = vld [vmem:[#allocation7 + $0x40] sm:$0xff]
    %v3620 = vld [vmem:[#allocation7 + $0x48] sm:$0xff]
    %v3621 = vld [vmem:[#allocation7 + $0x50] sm:$0xff]
    %v3622 = vld [vmem:[#allocation7 + $0x58] sm:$0x1]
    %v3623 = vld [vmem:[#allocation7 + $0x60] sm:$0xff]
    %v3624 = vld [vmem:[#allocation7 + $0x68] sm:$0xff]
    %v3625 = vld [vmem:[#allocation7 + $0x70] sm:$0xff]
    %v3626 = vld [vmem:[#allocation7 + $0x78] sm:$0x1]
    %v3627 = vlaneseq
    %v3628 = vshrl.u32 %v3627, 7
    %v3629 = vsub.s32 0, %v3628
    %v3630 = vrot.slane %v2453, %v3629
    %v3631 = vmul.f32 %v3630, %v3611
    %v3632 = vmul.f32 %v3630, %v3612
    %v3633 = vmul.f32 %v3630, %v3613
    %v3634 = vmul.f32 %v3630, %v3614
    %v3635 = vmul.f32 %v3630, %v3615
    %v3636 = vmul.f32 %v3630, %v3616
    %v3637 = vmul.f32 %v3630, %v3617
    %v3638 = vmul.f32 %v3630, %v3618
    %v3639 = vmul.f32 %v3630, %v3619
    %v3640 = vmul.f32 %v3630, %v3620
    %v3641 = vmul.f32 %v3630, %v3621
    %v3642 = vmul.f32 %v3630, %v3622
    %v3643 = vmul.f32 %v3630, %v3623
    %v3644 = vmul.f32 %v3630, %v3624
    %v3645 = vmul.f32 %v3630, %v3625
    %v3646 = vmul.f32 %v3630, %v3626
    %v3647 = vld [vmem:[%s3036] sm:$0xff]
    %v3648 = vld [vmem:[%s3036 + $0x8] sm:$0xff]
    %v3649 = vld [vmem:[%s3036 + $0x10] sm:$0xff]
    %v3650 = vld [vmem:[%s3036 + $0x18] sm:$0x1]
    %v3651 = vld [vmem:[%s3036 + $0x20] sm:$0xff]
    %v3652 = vld [vmem:[%s3036 + $0x28] sm:$0xff]
    %v3653 = vld [vmem:[%s3036 + $0x30] sm:$0xff]
    %v3654 = vld [vmem:[%s3036 + $0x38] sm:$0x1]
    %v3655 = vld [vmem:[%s3036 + $0x40] sm:$0xff]
    %v3656 = vld [vmem:[%s3036 + $0x48] sm:$0xff]
    %v3657 = vld [vmem:[%s3036 + $0x50] sm:$0xff]
    %v3658 = vld [vmem:[%s3036 + $0x58] sm:$0x1]
    %v3659 = vld [vmem:[%s3036 + $0x60] sm:$0xff]
    %v3660 = vld [vmem:[%s3036 + $0x68] sm:$0xff]
    %v3661 = vld [vmem:[%s3036 + $0x70] sm:$0xff]
    %v3662 = vld [vmem:[%s3036 + $0x78] sm:$0x1]
    %v3663 = vlaneseq
    %v3664 = vshrl.u32 %v3663, 7
    %v3665 = vsub.s32 0, %v3664
    %v3666 = vrot.slane %v2454, %v3665
    %v3667 = vmul.f32 %v3666, %v3647
    %v3668 = vmul.f32 %v3666, %v3648
    %v3669 = vmul.f32 %v3666, %v3649
    %v3670 = vmul.f32 %v3666, %v3650
    %v3671 = vmul.f32 %v3666, %v3651
    %v3672 = vmul.f32 %v3666, %v3652
    %v3673 = vmul.f32 %v3666, %v3653
    %v3674 = vmul.f32 %v3666, %v3654
    %v3675 = vmul.f32 %v3666, %v3655
    %v3676 = vmul.f32 %v3666, %v3656
    %v3677 = vmul.f32 %v3666, %v3657
    %v3678 = vmul.f32 %v3666, %v3658
    %v3679 = vmul.f32 %v3666, %v3659
    %v3680 = vmul.f32 %v3666, %v3660
    %v3681 = vmul.f32 %v3666, %v3661
    %v3682 = vmul.f32 %v3666, %v3662
    %v3683 = vadd.f32 %v3631, %v3667
    %v3684 = vadd.f32 %v3632, %v3668
    %v3685 = vadd.f32 %v3633, %v3669
    %v3686 = vadd.f32 %v3634, %v3670
    %v3687 = vadd.f32 %v3635, %v3671
    %v3688 = vadd.f32 %v3636, %v3672
    %v3689 = vadd.f32 %v3637, %v3673
    %v3690 = vadd.f32 %v3638, %v3674
    %v3691 = vadd.f32 %v3639, %v3675
    %v3692 = vadd.f32 %v3640, %v3676
    %v3693 = vadd.f32 %v3641, %v3677
    %v3694 = vadd.f32 %v3642, %v3678
    %v3695 = vadd.f32 %v3643, %v3679
    %v3696 = vadd.f32 %v3644, %v3680
    %v3697 = vadd.f32 %v3645, %v3681
    %v3698 = vadd.f32 %v3646, %v3682
    %v3699 = vld [vmem:[%s3222] sm:$0xff]
    %v3700 = vld [vmem:[%s3222 + $0x8] sm:$0xff]
    %v3701 = vld [vmem:[%s3222 + $0x10] sm:$0xff]
    %v3702 = vld [vmem:[%s3222 + $0x18] sm:$0x1]
    %v3703 = vld [vmem:[%s3222 + $0x20] sm:$0xff]
    %v3704 = vld [vmem:[%s3222 + $0x28] sm:$0xff]
    %v3705 = vld [vmem:[%s3222 + $0x30] sm:$0xff]
    %v3706 = vld [vmem:[%s3222 + $0x38] sm:$0x1]
    %v3707 = vld [vmem:[%s3222 + $0x40] sm:$0xff]
    %v3708 = vld [vmem:[%s3222 + $0x48] sm:$0xff]
    %v3709 = vld [vmem:[%s3222 + $0x50] sm:$0xff]
    %v3710 = vld [vmem:[%s3222 + $0x58] sm:$0x1]
    %v3711 = vld [vmem:[%s3222 + $0x60] sm:$0xff]
    %v3712 = vld [vmem:[%s3222 + $0x68] sm:$0xff]
    %v3713 = vld [vmem:[%s3222 + $0x70] sm:$0xff]
    %v3714 = vld [vmem:[%s3222 + $0x78] sm:$0x1]
    %v3715 = vlaneseq
    %v3716 = vshrl.u32 %v3715, 7
    %v3717 = vsub.s32 0, %v3716
    %v3718 = vrot.slane %v2455, %v3717
    %v3719 = vmul.f32 %v3718, %v3699
    %v3720 = vmul.f32 %v3718, %v3700
    %v3721 = vmul.f32 %v3718, %v3701
    %v3722 = vmul.f32 %v3718, %v3702
    %v3723 = vmul.f32 %v3718, %v3703
    %v3724 = vmul.f32 %v3718, %v3704
    %v3725 = vmul.f32 %v3718, %v3705
    %v3726 = vmul.f32 %v3718, %v3706
    %v3727 = vmul.f32 %v3718, %v3707
    %v3728 = vmul.f32 %v3718, %v3708
    %v3729 = vmul.f32 %v3718, %v3709
    %v3730 = vmul.f32 %v3718, %v3710
    %v3731 = vmul.f32 %v3718, %v3711
    %v3732 = vmul.f32 %v3718, %v3712
    %v3733 = vmul.f32 %v3718, %v3713
    %v3734 = vmul.f32 %v3718, %v3714
    %v3735 = vadd.f32 %v3683, %v3719
    %v3736 = vadd.f32 %v3684, %v3720
    %v3737 = vadd.f32 %v3685, %v3721
    %v3738 = vadd.f32 %v3686, %v3722
    %v3739 = vadd.f32 %v3687, %v3723
    %v3740 = vadd.f32 %v3688, %v3724
    %v3741 = vadd.f32 %v3689, %v3725
    %v3742 = vadd.f32 %v3690, %v3726
    %v3743 = vadd.f32 %v3691, %v3727
    %v3744 = vadd.f32 %v3692, %v3728
    %v3745 = vadd.f32 %v3693, %v3729
    %v3746 = vadd.f32 %v3694, %v3730
    %v3747 = vadd.f32 %v3695, %v3731
    %v3748 = vadd.f32 %v3696, %v3732
    %v3749 = vadd.f32 %v3697, %v3733
    %v3750 = vadd.f32 %v3698, %v3734
    %v3751 = vld [vmem:[%s3408] sm:$0xff]
    %v3752 = vld [vmem:[%s3408 + $0x8] sm:$0xff]
    %v3753 = vld [vmem:[%s3408 + $0x10] sm:$0xff]
    %v3754 = vld [vmem:[%s3408 + $0x18] sm:$0x1]
    %v3755 = vld [vmem:[%s3408 + $0x20] sm:$0xff]
    %v3756 = vld [vmem:[%s3408 + $0x28] sm:$0xff]
    %v3757 = vld [vmem:[%s3408 + $0x30] sm:$0xff]
    %v3758 = vld [vmem:[%s3408 + $0x38] sm:$0x1]
    %v3759 = vld [vmem:[%s3408 + $0x40] sm:$0xff]
    %v3760 = vld [vmem:[%s3408 + $0x48] sm:$0xff]
    %v3761 = vld [vmem:[%s3408 + $0x50] sm:$0xff]
    %v3762 = vld [vmem:[%s3408 + $0x58] sm:$0x1]
    %v3763 = vld [vmem:[%s3408 + $0x60] sm:$0xff]
    %v3764 = vld [vmem:[%s3408 + $0x68] sm:$0xff]
    %v3765 = vld [vmem:[%s3408 + $0x70] sm:$0xff]
    %v3766 = vld [vmem:[%s3408 + $0x78] sm:$0x1]
    %v3767 = vlaneseq
    %v3768 = vshrl.u32 %v3767, 7
    %v3769 = vsub.s32 0, %v3768
    %v3770 = vrot.slane %v2456, %v3769
    %v3771 = vmul.f32 %v3770, %v3751
    %v3772 = vmul.f32 %v3770, %v3752
    %v3773 = vmul.f32 %v3770, %v3753
    %v3774 = vmul.f32 %v3770, %v3754
    %v3775 = vmul.f32 %v3770, %v3755
    %v3776 = vmul.f32 %v3770, %v3756
    %v3777 = vmul.f32 %v3770, %v3757
    %v3778 = vmul.f32 %v3770, %v3758
    %v3779 = vmul.f32 %v3770, %v3759
    %v3780 = vmul.f32 %v3770, %v3760
    %v3781 = vmul.f32 %v3770, %v3761
    %v3782 = vmul.f32 %v3770, %v3762
    %v3783 = vmul.f32 %v3770, %v3763
    %v3784 = vmul.f32 %v3770, %v3764
    %v3785 = vmul.f32 %v3770, %v3765
    %v3786 = vmul.f32 %v3770, %v3766
    %v3787 = vadd.f32 %v3735, %v3771
    %v3788 = vadd.f32 %v3736, %v3772
    %v3789 = vadd.f32 %v3737, %v3773
    %v3790 = vadd.f32 %v3738, %v3774
    %v3791 = vadd.f32 %v3739, %v3775
    %v3792 = vadd.f32 %v3740, %v3776
    %v3793 = vadd.f32 %v3741, %v3777
    %v3794 = vadd.f32 %v3742, %v3778
    %v3795 = vadd.f32 %v3743, %v3779
    %v3796 = vadd.f32 %v3744, %v3780
    %v3797 = vadd.f32 %v3745, %v3781
    %v3798 = vadd.f32 %v3746, %v3782
    %v3799 = vadd.f32 %v3747, %v3783
    %v3800 = vadd.f32 %v3748, %v3784
    %v3801 = vadd.f32 %v3749, %v3785
    %v3802 = vadd.f32 %v3750, %v3786
    %v3803 = vld [vmem:[%s3594] sm:$0xff]
    %v3804 = vld [vmem:[%s3594 + $0x8] sm:$0xff]
    %v3805 = vld [vmem:[%s3594 + $0x10] sm:$0xff]
    %v3806 = vld [vmem:[%s3594 + $0x18] sm:$0x1]
    %v3807 = vld [vmem:[%s3594 + $0x20] sm:$0xff]
    %v3808 = vld [vmem:[%s3594 + $0x28] sm:$0xff]
    %v3809 = vld [vmem:[%s3594 + $0x30] sm:$0xff]
    %v3810 = vld [vmem:[%s3594 + $0x38] sm:$0x1]
    %v3811 = vld [vmem:[%s3594 + $0x40] sm:$0xff]
    %v3812 = vld [vmem:[%s3594 + $0x48] sm:$0xff]
    %v3813 = vld [vmem:[%s3594 + $0x50] sm:$0xff]
    %v3814 = vld [vmem:[%s3594 + $0x58] sm:$0x1]
    %v3815 = vld [vmem:[%s3594 + $0x60] sm:$0xff]
    %v3816 = vld [vmem:[%s3594 + $0x68] sm:$0xff]
    %v3817 = vld [vmem:[%s3594 + $0x70] sm:$0xff]
    %v3818 = vld [vmem:[%s3594 + $0x78] sm:$0x1]
    %v3819 = vlaneseq
    %v3820 = vshrl.u32 %v3819, 7
    %v3821 = vsub.s32 0, %v3820
    %v3822 = vrot.slane %v2457, %v3821
    %v3823 = vmul.f32 %v3822, %v3803
    %v3824 = vmul.f32 %v3822, %v3804
    %v3825 = vmul.f32 %v3822, %v3805
    %v3826 = vmul.f32 %v3822, %v3806
    %v3827 = vmul.f32 %v3822, %v3807
    %v3828 = vmul.f32 %v3822, %v3808
    %v3829 = vmul.f32 %v3822, %v3809
    %v3830 = vmul.f32 %v3822, %v3810
    %v3831 = vmul.f32 %v3822, %v3811
    %v3832 = vmul.f32 %v3822, %v3812
    %v3833 = vmul.f32 %v3822, %v3813
    %v3834 = vmul.f32 %v3822, %v3814
    %v3835 = vmul.f32 %v3822, %v3815
    %v3836 = vmul.f32 %v3822, %v3816
    %v3837 = vmul.f32 %v3822, %v3817
    %v3838 = vmul.f32 %v3822, %v3818
    %v3839 = vadd.f32 %v3787, %v3823
    %v3840 = vadd.f32 %v3788, %v3824
    %v3841 = vadd.f32 %v3789, %v3825
    %v3842 = vadd.f32 %v3790, %v3826
    %v3843 = vadd.f32 %v3791, %v3827
    %v3844 = vadd.f32 %v3792, %v3828
    %v3845 = vadd.f32 %v3793, %v3829
    %v3846 = vadd.f32 %v3794, %v3830
    %v3847 = vadd.f32 %v3795, %v3831
    %v3848 = vadd.f32 %v3796, %v3832
    %v3849 = vadd.f32 %v3797, %v3833
    %v3850 = vadd.f32 %v3798, %v3834
    %v3851 = vadd.f32 %v3799, %v3835
    %v3852 = vadd.f32 %v3800, %v3836
    %v3853 = vadd.f32 %v3801, %v3837
    %v3854 = vadd.f32 %v3802, %v3838
    %s3855 = scalar_lea.vmem [#allocation20], 32
    %3856 = vst [vmem:[%s3855] sm:$0x1] %v3839
    %3857 = vst [vmem:[%s3855 + $0x1] sm:$0x1] %v3843
    %3858 = vst [vmem:[%s3855 + $0x2] sm:$0x1] %v3847
    %3859 = vst [vmem:[%s3855 + $0x3] sm:$0x1] %v3851
    %s3860 = scalar_lea.vmem %s10, 192
    %3861 = vst [vmem:[%s3860 - $0x1] sm:$0xe] %v3839
    %3862 = vst [vmem:[%s3860 + $0x3] sm:$0xe] %v3843
    %3863 = vst [vmem:[%s3860 + $0x7] sm:$0xe] %v3847
    %3864 = vst [vmem:[%s3860 + $0xb] sm:$0xe] %v3851
    %s3865 = scalar_lea.vmem %s11, 384
    %3866 = vst [vmem:[%s3865 - $0x4] sm:$0xf0] %v3839
    %3867 = vst [vmem:[%s3865 + $0x4] sm:$0x1] %v3840
    %3868 = vst [vmem:[%s3865 + $0x4] sm:$0xf0] %v3843
    %3869 = vst [vmem:[%s3865 + $0xc] sm:$0x1] %v3844
    %3870 = vst [vmem:[%s3865 + $0xc] sm:$0xf0] %v3847
    %3871 = vst [vmem:[%s3865 + $0x14] sm:$0x1] %v3848
    %3872 = vst [vmem:[%s3865 + $0x14] sm:$0xf0] %v3851
    %3873 = vst [vmem:[%s3865 + $0x1c] sm:$0x1] %v3852
    %s3874 = scalar_lea.vmem %s12, 128
    %3875 = vst [vmem:[%s3874 - $0x1] sm:$0xfe] %v3840
    %3876 = vst [vmem:[%s3874 + $0x7] sm:$0xfe] %v3844
    %3877 = vst [vmem:[%s3874 + $0xf] sm:$0xfe] %v3848
    %3878 = vst [vmem:[%s3874 + $0x17] sm:$0xfe] %v3852
    %3879 = vst [vmem:[%s13] sm:$0xff] %v3841
    %3880 = vst [vmem:[%s13 + $0x8] sm:$0x1] %v3842
    %3881 = vst [vmem:[%s13 + $0x10] sm:$0xff] %v3845
    %3882 = vst [vmem:[%s13 + $0x18] sm:$0x1] %v3846
    %3883 = vst [vmem:[%s13 + $0x20] sm:$0xff] %v3849
    %3884 = vst [vmem:[%s13 + $0x28] sm:$0x1] %v3850
    %3885 = vst [vmem:[%s13 + $0x30] sm:$0xff] %v3853
    %3886 = vst [vmem:[%s13 + $0x38] sm:$0x1] %v3854
    %v3887 = vld [vmem:[#allocation7] sm:$0xff]
    %v3888 = vld [vmem:[#allocation7 + $0x8] sm:$0xff]
    %v3889 = vld [vmem:[#allocation7 + $0x10] sm:$0xff]
    %v3890 = vld [vmem:[#allocation7 + $0x18] sm:$0x1]
    %v3891 = vld [vmem:[#allocation7 + $0x20] sm:$0xff]
    %v3892 = vld [vmem:[#allocation7 + $0x28] sm:$0xff]
    %v3893 = vld [vmem:[#allocation7 + $0x30] sm:$0xff]
    %v3894 = vld [vmem:[#allocation7 + $0x38] sm:$0x1]
    %v3895 = vld [vmem:[#allocation7 + $0x40] sm:$0xff]
    %v3896 = vld [vmem:[#allocation7 + $0x48] sm:$0xff]
    %v3897 = vld [vmem:[#allocation7 + $0x50] sm:$0xff]
    %v3898 = vld [vmem:[#allocation7 + $0x58] sm:$0x1]
    %v3899 = vld [vmem:[#allocation7 + $0x60] sm:$0xff]
    %v3900 = vld [vmem:[#allocation7 + $0x68] sm:$0xff]
    %v3901 = vld [vmem:[#allocation7 + $0x70] sm:$0xff]
    %v3902 = vld [vmem:[#allocation7 + $0x78] sm:$0x1]
    %v3903 = vlaneseq
    %v3904 = vshrl.u32 %v3903, 7
    %v3905 = vsub.s32 1, %v3904
    %v3906 = vrot.slane %v2453, %v3905
    %v3907 = vmul.f32 %v3906, %v3887
    %v3908 = vmul.f32 %v3906, %v3888
    %v3909 = vmul.f32 %v3906, %v3889
    %v3910 = vmul.f32 %v3906, %v3890
    %v3911 = vmul.f32 %v3906, %v3891
    %v3912 = vmul.f32 %v3906, %v3892
    %v3913 = vmul.f32 %v3906, %v3893
    %v3914 = vmul.f32 %v3906, %v3894
    %v3915 = vmul.f32 %v3906, %v3895
    %v3916 = vmul.f32 %v3906, %v3896
    %v3917 = vmul.f32 %v3906, %v3897
    %v3918 = vmul.f32 %v3906, %v3898
    %v3919 = vmul.f32 %v3906, %v3899
    %v3920 = vmul.f32 %v3906, %v3900
    %v3921 = vmul.f32 %v3906, %v3901
    %v3922 = vmul.f32 %v3906, %v3902
    %v3923 = vld [vmem:[%s3036] sm:$0xff]
    %v3924 = vld [vmem:[%s3036 + $0x8] sm:$0xff]
    %v3925 = vld [vmem:[%s3036 + $0x10] sm:$0xff]
    %v3926 = vld [vmem:[%s3036 + $0x18] sm:$0x1]
    %v3927 = vld [vmem:[%s3036 + $0x20] sm:$0xff]
    %v3928 = vld [vmem:[%s3036 + $0x28] sm:$0xff]
    %v3929 = vld [vmem:[%s3036 + $0x30] sm:$0xff]
    %v3930 = vld [vmem:[%s3036 + $0x38] sm:$0x1]
    %v3931 = vld [vmem:[%s3036 + $0x40] sm:$0xff]
    %v3932 = vld [vmem:[%s3036 + $0x48] sm:$0xff]
    %v3933 = vld [vmem:[%s3036 + $0x50] sm:$0xff]
    %v3934 = vld [vmem:[%s3036 + $0x58] sm:$0x1]
    %v3935 = vld [vmem:[%s3036 + $0x60] sm:$0xff]
    %v3936 = vld [vmem:[%s3036 + $0x68] sm:$0xff]
    %v3937 = vld [vmem:[%s3036 + $0x70] sm:$0xff]
    %v3938 = vld [vmem:[%s3036 + $0x78] sm:$0x1]
    %v3939 = vlaneseq
    %v3940 = vshrl.u32 %v3939, 7
    %v3941 = vsub.s32 1, %v3940
    %v3942 = vrot.slane %v2454, %v3941
    %v3943 = vmul.f32 %v3942, %v3923
    %v3944 = vmul.f32 %v3942, %v3924
    %v3945 = vmul.f32 %v3942, %v3925
    %v3946 = vmul.f32 %v3942, %v3926
    %v3947 = vmul.f32 %v3942, %v3927
    %v3948 = vmul.f32 %v3942, %v3928
    %v3949 = vmul.f32 %v3942, %v3929
    %v3950 = vmul.f32 %v3942, %v3930
    %v3951 = vmul.f32 %v3942, %v3931
    %v3952 = vmul.f32 %v3942, %v3932
    %v3953 = vmul.f32 %v3942, %v3933
    %v3954 = vmul.f32 %v3942, %v3934
    %v3955 = vmul.f32 %v3942, %v3935
    %v3956 = vmul.f32 %v3942, %v3936
    %v3957 = vmul.f32 %v3942, %v3937
    %v3958 = vmul.f32 %v3942, %v3938
    %v3959 = vadd.f32 %v3907, %v3943
    %v3960 = vadd.f32 %v3908, %v3944
    %v3961 = vadd.f32 %v3909, %v3945
    %v3962 = vadd.f32 %v3910, %v3946
    %v3963 = vadd.f32 %v3911, %v3947
    %v3964 = vadd.f32 %v3912, %v3948
    %v3965 = vadd.f32 %v3913, %v3949
    %v3966 = vadd.f32 %v3914, %v3950
    %v3967 = vadd.f32 %v3915, %v3951
    %v3968 = vadd.f32 %v3916, %v3952
    %v3969 = vadd.f32 %v3917, %v3953
    %v3970 = vadd.f32 %v3918, %v3954
    %v3971 = vadd.f32 %v3919, %v3955
    %v3972 = vadd.f32 %v3920, %v3956
    %v3973 = vadd.f32 %v3921, %v3957
    %v3974 = vadd.f32 %v3922, %v3958
    %v3975 = vld [vmem:[%s3222] sm:$0xff]
    %v3976 = vld [vmem:[%s3222 + $0x8] sm:$0xff]
    %v3977 = vld [vmem:[%s3222 + $0x10] sm:$0xff]
    %v3978 = vld [vmem:[%s3222 + $0x18] sm:$0x1]
    %v3979 = vld [vmem:[%s3222 + $0x20] sm:$0xff]
    %v3980 = vld [vmem:[%s3222 + $0x28] sm:$0xff]
    %v3981 = vld [vmem:[%s3222 + $0x30] sm:$0xff]
    %v3982 = vld [vmem:[%s3222 + $0x38] sm:$0x1]
    %v3983 = vld [vmem:[%s3222 + $0x40] sm:$0xff]
    %v3984 = vld [vmem:[%s3222 + $0x48] sm:$0xff]
    %v3985 = vld [vmem:[%s3222 + $0x50] sm:$0xff]
    %v3986 = vld [vmem:[%s3222 + $0x58] sm:$0x1]
    %v3987 = vld [vmem:[%s3222 + $0x60] sm:$0xff]
    %v3988 = vld [vmem:[%s3222 + $0x68] sm:$0xff]
    %v3989 = vld [vmem:[%s3222 + $0x70] sm:$0xff]
    %v3990 = vld [vmem:[%s3222 + $0x78] sm:$0x1]
    %v3991 = vlaneseq
    %v3992 = vshrl.u32 %v3991, 7
    %v3993 = vsub.s32 1, %v3992
    %v3994 = vrot.slane %v2455, %v3993
    %v3995 = vmul.f32 %v3994, %v3975
    %v3996 = vmul.f32 %v3994, %v3976
    %v3997 = vmul.f32 %v3994, %v3977
    %v3998 = vmul.f32 %v3994, %v3978
    %v3999 = vmul.f32 %v3994, %v3979
    %v4000 = vmul.f32 %v3994, %v3980
    %v4001 = vmul.f32 %v3994, %v3981
    %v4002 = vmul.f32 %v3994, %v3982
    %v4003 = vmul.f32 %v3994, %v3983
    %v4004 = vmul.f32 %v3994, %v3984
    %v4005 = vmul.f32 %v3994, %v3985
    %v4006 = vmul.f32 %v3994, %v3986
    %v4007 = vmul.f32 %v3994, %v3987
    %v4008 = vmul.f32 %v3994, %v3988
    %v4009 = vmul.f32 %v3994, %v3989
    %v4010 = vmul.f32 %v3994, %v3990
    %v4011 = vadd.f32 %v3959, %v3995
    %v4012 = vadd.f32 %v3960, %v3996
    %v4013 = vadd.f32 %v3961, %v3997
    %v4014 = vadd.f32 %v3962, %v3998
    %v4015 = vadd.f32 %v3963, %v3999
    %v4016 = vadd.f32 %v3964, %v4000
    %v4017 = vadd.f32 %v3965, %v4001
    %v4018 = vadd.f32 %v3966, %v4002
    %v4019 = vadd.f32 %v3967, %v4003
    %v4020 = vadd.f32 %v3968, %v4004
    %v4021 = vadd.f32 %v3969, %v4005
    %v4022 = vadd.f32 %v3970, %v4006
    %v4023 = vadd.f32 %v3971, %v4007
    %v4024 = vadd.f32 %v3972, %v4008
    %v4025 = vadd.f32 %v3973, %v4009
    %v4026 = vadd.f32 %v3974, %v4010
    %v4027 = vld [vmem:[%s3408] sm:$0xff]
    %v4028 = vld [vmem:[%s3408 + $0x8] sm:$0xff]
    %v4029 = vld [vmem:[%s3408 + $0x10] sm:$0xff]
    %v4030 = vld [vmem:[%s3408 + $0x18] sm:$0x1]
    %v4031 = vld [vmem:[%s3408 + $0x20] sm:$0xff]
    %v4032 = vld [vmem:[%s3408 + $0x28] sm:$0xff]
    %v4033 = vld [vmem:[%s3408 + $0x30] sm:$0xff]
    %v4034 = vld [vmem:[%s3408 + $0x38] sm:$0x1]
    %v4035 = vld [vmem:[%s3408 + $0x40] sm:$0xff]
    %v4036 = vld [vmem:[%s3408 + $0x48] sm:$0xff]
    %v4037 = vld [vmem:[%s3408 + $0x50] sm:$0xff]
    %v4038 = vld [vmem:[%s3408 + $0x58] sm:$0x1]
    %v4039 = vld [vmem:[%s3408 + $0x60] sm:$0xff]
    %v4040 = vld [vmem:[%s3408 + $0x68] sm:$0xff]
    %v4041 = vld [vmem:[%s3408 + $0x70] sm:$0xff]
    %v4042 = vld [vmem:[%s3408 + $0x78] sm:$0x1]
    %v4043 = vlaneseq
    %v4044 = vshrl.u32 %v4043, 7
    %v4045 = vsub.s32 1, %v4044
    %v4046 = vrot.slane %v2456, %v4045
    %v4047 = vmul.f32 %v4046, %v4027
    %v4048 = vmul.f32 %v4046, %v4028
    %v4049 = vmul.f32 %v4046, %v4029
    %v4050 = vmul.f32 %v4046, %v4030
    %v4051 = vmul.f32 %v4046, %v4031
    %v4052 = vmul.f32 %v4046, %v4032
    %v4053 = vmul.f32 %v4046, %v4033
    %v4054 = vmul.f32 %v4046, %v4034
    %v4055 = vmul.f32 %v4046, %v4035
    %v4056 = vmul.f32 %v4046, %v4036
    %v4057 = vmul.f32 %v4046, %v4037
    %v4058 = vmul.f32 %v4046, %v4038
    %v4059 = vmul.f32 %v4046, %v4039
    %v4060 = vmul.f32 %v4046, %v4040
    %v4061 = vmul.f32 %v4046, %v4041
    %v4062 = vmul.f32 %v4046, %v4042
    %v4063 = vadd.f32 %v4011, %v4047
    %v4064 = vadd.f32 %v4012, %v4048
    %v4065 = vadd.f32 %v4013, %v4049
    %v4066 = vadd.f32 %v4014, %v4050
    %v4067 = vadd.f32 %v4015, %v4051
    %v4068 = vadd.f32 %v4016, %v4052
    %v4069 = vadd.f32 %v4017, %v4053
    %v4070 = vadd.f32 %v4018, %v4054
    %v4071 = vadd.f32 %v4019, %v4055
    %v4072 = vadd.f32 %v4020, %v4056
    %v4073 = vadd.f32 %v4021, %v4057
    %v4074 = vadd.f32 %v4022, %v4058
    %v4075 = vadd.f32 %v4023, %v4059
    %v4076 = vadd.f32 %v4024, %v4060
    %v4077 = vadd.f32 %v4025, %v4061
    %v4078 = vadd.f32 %v4026, %v4062
    %v4079 = vld [vmem:[%s3594] sm:$0xff]
    %v4080 = vld [vmem:[%s3594 + $0x8] sm:$0xff]
    %v4081 = vld [vmem:[%s3594 + $0x10] sm:$0xff]
    %v4082 = vld [vmem:[%s3594 + $0x18] sm:$0x1]
    %v4083 = vld [vmem:[%s3594 + $0x20] sm:$0xff]
    %v4084 = vld [vmem:[%s3594 + $0x28] sm:$0xff]
    %v4085 = vld [vmem:[%s3594 + $0x30] sm:$0xff]
    %v4086 = vld [vmem:[%s3594 + $0x38] sm:$0x1]
    %v4087 = vld [vmem:[%s3594 + $0x40] sm:$0xff]
    %v4088 = vld [vmem:[%s3594 + $0x48] sm:$0xff]
    %v4089 = vld [vmem:[%s3594 + $0x50] sm:$0xff]
    %v4090 = vld [vmem:[%s3594 + $0x58] sm:$0x1]
    %v4091 = vld [vmem:[%s3594 + $0x60] sm:$0xff]
    %v4092 = vld [vmem:[%s3594 + $0x68] sm:$0xff]
    %v4093 = vld [vmem:[%s3594 + $0x70] sm:$0xff]
    %v4094 = vld [vmem:[%s3594 + $0x78] sm:$0x1]
    %v4095 = vlaneseq
    %v4096 = vshrl.u32 %v4095, 7
    %v4097 = vsub.s32 1, %v4096
    %v4098 = vrot.slane %v2457, %v4097
    %v4099 = vmul.f32 %v4098, %v4079
    %v4100 = vmul.f32 %v4098, %v4080
    %v4101 = vmul.f32 %v4098, %v4081
    %v4102 = vmul.f32 %v4098, %v4082
    %v4103 = vmul.f32 %v4098, %v4083
    %v4104 = vmul.f32 %v4098, %v4084
    %v4105 = vmul.f32 %v4098, %v4085
    %v4106 = vmul.f32 %v4098, %v4086
    %v4107 = vmul.f32 %v4098, %v4087
    %v4108 = vmul.f32 %v4098, %v4088
    %v4109 = vmul.f32 %v4098, %v4089
    %v4110 = vmul.f32 %v4098, %v4090
    %v4111 = vmul.f32 %v4098, %v4091
    %v4112 = vmul.f32 %v4098, %v4092
    %v4113 = vmul.f32 %v4098, %v4093
    %v4114 = vmul.f32 %v4098, %v4094
    %v4115 = vadd.f32 %v4063, %v4099
    %v4116 = vadd.f32 %v4064, %v4100
    %v4117 = vadd.f32 %v4065, %v4101
    %v4118 = vadd.f32 %v4066, %v4102
    %v4119 = vadd.f32 %v4067, %v4103
    %v4120 = vadd.f32 %v4068, %v4104
    %v4121 = vadd.f32 %v4069, %v4105
    %v4122 = vadd.f32 %v4070, %v4106
    %v4123 = vadd.f32 %v4071, %v4107
    %v4124 = vadd.f32 %v4072, %v4108
    %v4125 = vadd.f32 %v4073, %v4109
    %v4126 = vadd.f32 %v4074, %v4110
    %v4127 = vadd.f32 %v4075, %v4111
    %v4128 = vadd.f32 %v4076, %v4112
    %v4129 = vadd.f32 %v4077, %v4113
    %v4130 = vadd.f32 %v4078, %v4114
    %s4131 = scalar_lea.vmem [#allocation20], 36
    %4132 = vst [vmem:[%s4131] sm:$0x1] %v4115
    %4133 = vst [vmem:[%s4131 + $0x1] sm:$0x1] %v4119
    %4134 = vst [vmem:[%s4131 + $0x2] sm:$0x1] %v4123
    %4135 = vst [vmem:[%s4131 + $0x3] sm:$0x1] %v4127
    %s4136 = scalar_lea.vmem %s10, 208
    %4137 = vst [vmem:[%s4136 - $0x1] sm:$0xe] %v4115
    %4138 = vst [vmem:[%s4136 + $0x3] sm:$0xe] %v4119
    %4139 = vst [vmem:[%s4136 + $0x7] sm:$0xe] %v4123
    %4140 = vst [vmem:[%s4136 + $0xb] sm:$0xe] %v4127
    %s4141 = scalar_lea.vmem %s11, 416
    %4142 = vst [vmem:[%s4141 - $0x4] sm:$0xf0] %v4115
    %4143 = vst [vmem:[%s4141 + $0x4] sm:$0x1] %v4116
    %4144 = vst [vmem:[%s4141 + $0x4] sm:$0xf0] %v4119
    %4145 = vst [vmem:[%s4141 + $0xc] sm:$0x1] %v4120
    %4146 = vst [vmem:[%s4141 + $0xc] sm:$0xf0] %v4123
    %4147 = vst [vmem:[%s4141 + $0x14] sm:$0x1] %v4124
    %4148 = vst [vmem:[%s4141 + $0x14] sm:$0xf0] %v4127
    %4149 = vst [vmem:[%s4141 + $0x1c] sm:$0x1] %v4128
    %s4150 = scalar_lea.vmem %s12, 160
    %4151 = vst [vmem:[%s4150 - $0x1] sm:$0xfe] %v4116
    %4152 = vst [vmem:[%s4150 + $0x7] sm:$0xfe] %v4120
    %4153 = vst [vmem:[%s4150 + $0xf] sm:$0xfe] %v4124
    %4154 = vst [vmem:[%s4150 + $0x17] sm:$0xfe] %v4128
    %s4155 = scalar_lea.vmem %s13, 64
    %4156 = vst [vmem:[%s4155] sm:$0xff] %v4117
    %4157 = vst [vmem:[%s4155 + $0x8] sm:$0x1] %v4118
    %4158 = vst [vmem:[%s4155 + $0x10] sm:$0xff] %v4121
    %4159 = vst [vmem:[%s4155 + $0x18] sm:$0x1] %v4122
    %4160 = vst [vmem:[%s4155 + $0x20] sm:$0xff] %v4125
    %4161 = vst [vmem:[%s4155 + $0x28] sm:$0x1] %v4126
    %4162 = vst [vmem:[%s4155 + $0x30] sm:$0xff] %v4129
    %4163 = vst [vmem:[%s4155 + $0x38] sm:$0x1] %v4130
    %v4164 = vld [vmem:[#allocation7] sm:$0xff]
    %v4165 = vld [vmem:[#allocation7 + $0x8] sm:$0xff]
    %v4166 = vld [vmem:[#allocation7 + $0x10] sm:$0xff]
    %v4167 = vld [vmem:[#allocation7 + $0x18] sm:$0x1]
    %v4168 = vld [vmem:[#allocation7 + $0x20] sm:$0xff]
    %v4169 = vld [vmem:[#allocation7 + $0x28] sm:$0xff]
    %v4170 = vld [vmem:[#allocation7 + $0x30] sm:$0xff]
    %v4171 = vld [vmem:[#allocation7 + $0x38] sm:$0x1]
    %v4172 = vld [vmem:[#allocation7 + $0x40] sm:$0xff]
    %v4173 = vld [vmem:[#allocation7 + $0x48] sm:$0xff]
    %v4174 = vld [vmem:[#allocation7 + $0x50] sm:$0xff]
    %v4175 = vld [vmem:[#allocation7 + $0x58] sm:$0x1]
    %v4176 = vld [vmem:[#allocation7 + $0x60] sm:$0xff]
    %v4177 = vld [vmem:[#allocation7 + $0x68] sm:$0xff]
    %v4178 = vld [vmem:[#allocation7 + $0x70] sm:$0xff]
    %v4179 = vld [vmem:[#allocation7 + $0x78] sm:$0x1]
    %v4180 = vlaneseq
    %v4181 = vshrl.u32 %v4180, 7
    %v4182 = vsub.s32 2, %v4181
    %v4183 = vrot.slane %v2453, %v4182
    %v4184 = vmul.f32 %v4183, %v4164
    %v4185 = vmul.f32 %v4183, %v4165
    %v4186 = vmul.f32 %v4183, %v4166
    %v4187 = vmul.f32 %v4183, %v4167
    %v4188 = vmul.f32 %v4183, %v4168
    %v4189 = vmul.f32 %v4183, %v4169
    %v4190 = vmul.f32 %v4183, %v4170
    %v4191 = vmul.f32 %v4183, %v4171
    %v4192 = vmul.f32 %v4183, %v4172
    %v4193 = vmul.f32 %v4183, %v4173
    %v4194 = vmul.f32 %v4183, %v4174
    %v4195 = vmul.f32 %v4183, %v4175
    %v4196 = vmul.f32 %v4183, %v4176
    %v4197 = vmul.f32 %v4183, %v4177
    %v4198 = vmul.f32 %v4183, %v4178
    %v4199 = vmul.f32 %v4183, %v4179
    %v4200 = vld [vmem:[%s3036] sm:$0xff]
    %v4201 = vld [vmem:[%s3036 + $0x8] sm:$0xff]
    %v4202 = vld [vmem:[%s3036 + $0x10] sm:$0xff]
    %v4203 = vld [vmem:[%s3036 + $0x18] sm:$0x1]
    %v4204 = vld [vmem:[%s3036 + $0x20] sm:$0xff]
    %v4205 = vld [vmem:[%s3036 + $0x28] sm:$0xff]
    %v4206 = vld [vmem:[%s3036 + $0x30] sm:$0xff]
    %v4207 = vld [vmem:[%s3036 + $0x38] sm:$0x1]
    %v4208 = vld [vmem:[%s3036 + $0x40] sm:$0xff]
    %v4209 = vld [vmem:[%s3036 + $0x48] sm:$0xff]
    %v4210 = vld [vmem:[%s3036 + $0x50] sm:$0xff]
    %v4211 = vld [vmem:[%s3036 + $0x58] sm:$0x1]
    %v4212 = vld [vmem:[%s3036 + $0x60] sm:$0xff]
    %v4213 = vld [vmem:[%s3036 + $0x68] sm:$0xff]
    %v4214 = vld [vmem:[%s3036 + $0x70] sm:$0xff]
    %v4215 = vld [vmem:[%s3036 + $0x78] sm:$0x1]
    %v4216 = vlaneseq
    %v4217 = vshrl.u32 %v4216, 7
    %v4218 = vsub.s32 2, %v4217
    %v4219 = vrot.slane %v2454, %v4218
    %v4220 = vmul.f32 %v4219, %v4200
    %v4221 = vmul.f32 %v4219, %v4201
    %v4222 = vmul.f32 %v4219, %v4202
    %v4223 = vmul.f32 %v4219, %v4203
    %v4224 = vmul.f32 %v4219, %v4204
    %v4225 = vmul.f32 %v4219, %v4205
    %v4226 = vmul.f32 %v4219, %v4206
    %v4227 = vmul.f32 %v4219, %v4207
    %v4228 = vmul.f32 %v4219, %v4208
    %v4229 = vmul.f32 %v4219, %v4209
    %v4230 = vmul.f32 %v4219, %v4210
    %v4231 = vmul.f32 %v4219, %v4211
    %v4232 = vmul.f32 %v4219, %v4212
    %v4233 = vmul.f32 %v4219, %v4213
    %v4234 = vmul.f32 %v4219, %v4214
    %v4235 = vmul.f32 %v4219, %v4215
    %v4236 = vadd.f32 %v4184, %v4220
    %v4237 = vadd.f32 %v4185, %v4221
    %v4238 = vadd.f32 %v4186, %v4222
    %v4239 = vadd.f32 %v4187, %v4223
    %v4240 = vadd.f32 %v4188, %v4224
    %v4241 = vadd.f32 %v4189, %v4225
    %v4242 = vadd.f32 %v4190, %v4226
    %v4243 = vadd.f32 %v4191, %v4227
    %v4244 = vadd.f32 %v4192, %v4228
    %v4245 = vadd.f32 %v4193, %v4229
    %v4246 = vadd.f32 %v4194, %v4230
    %v4247 = vadd.f32 %v4195, %v4231
    %v4248 = vadd.f32 %v4196, %v4232
    %v4249 = vadd.f32 %v4197, %v4233
    %v4250 = vadd.f32 %v4198, %v4234
    %v4251 = vadd.f32 %v4199, %v4235
    %v4252 = vld [vmem:[%s3222] sm:$0xff]
    %v4253 = vld [vmem:[%s3222 + $0x8] sm:$0xff]
    %v4254 = vld [vmem:[%s3222 + $0x10] sm:$0xff]
    %v4255 = vld [vmem:[%s3222 + $0x18] sm:$0x1]
    %v4256 = vld [vmem:[%s3222 + $0x20] sm:$0xff]
    %v4257 = vld [vmem:[%s3222 + $0x28] sm:$0xff]
    %v4258 = vld [vmem:[%s3222 + $0x30] sm:$0xff]
    %v4259 = vld [vmem:[%s3222 + $0x38] sm:$0x1]
    %v4260 = vld [vmem:[%s3222 + $0x40] sm:$0xff]
    %v4261 = vld [vmem:[%s3222 + $0x48] sm:$0xff]
    %v4262 = vld [vmem:[%s3222 + $0x50] sm:$0xff]
    %v4263 = vld [vmem:[%s3222 + $0x58] sm:$0x1]
    %v4264 = vld [vmem:[%s3222 + $0x60] sm:$0xff]
    %v4265 = vld [vmem:[%s3222 + $0x68] sm:$0xff]
    %v4266 = vld [vmem:[%s3222 + $0x70] sm:$0xff]
    %v4267 = vld [vmem:[%s3222 + $0x78] sm:$0x1]
    %v4268 = vlaneseq
    %v4269 = vshrl.u32 %v4268, 7
    %v4270 = vsub.s32 2, %v4269
    %v4271 = vrot.slane %v2455, %v4270
    %v4272 = vmul.f32 %v4271, %v4252
    %v4273 = vmul.f32 %v4271, %v4253
    %v4274 = vmul.f32 %v4271, %v4254
    %v4275 = vmul.f32 %v4271, %v4255
    %v4276 = vmul.f32 %v4271, %v4256
    %v4277 = vmul.f32 %v4271, %v4257
    %v4278 = vmul.f32 %v4271, %v4258
    %v4279 = vmul.f32 %v4271, %v4259
    %v4280 = vmul.f32 %v4271, %v4260
    %v4281 = vmul.f32 %v4271, %v4261
    %v4282 = vmul.f32 %v4271, %v4262
    %v4283 = vmul.f32 %v4271, %v4263
    %v4284 = vmul.f32 %v4271, %v4264
    %v4285 = vmul.f32 %v4271, %v4265
    %v4286 = vmul.f32 %v4271, %v4266
    %v4287 = vmul.f32 %v4271, %v4267
    %v4288 = vadd.f32 %v4236, %v4272
    %v4289 = vadd.f32 %v4237, %v4273
    %v4290 = vadd.f32 %v4238, %v4274
    %v4291 = vadd.f32 %v4239, %v4275
    %v4292 = vadd.f32 %v4240, %v4276
    %v4293 = vadd.f32 %v4241, %v4277
    %v4294 = vadd.f32 %v4242, %v4278
    %v4295 = vadd.f32 %v4243, %v4279
    %v4296 = vadd.f32 %v4244, %v4280
    %v4297 = vadd.f32 %v4245, %v4281
    %v4298 = vadd.f32 %v4246, %v4282
    %v4299 = vadd.f32 %v4247, %v4283
    %v4300 = vadd.f32 %v4248, %v4284
    %v4301 = vadd.f32 %v4249, %v4285
    %v4302 = vadd.f32 %v4250, %v4286
    %v4303 = vadd.f32 %v4251, %v4287
    %v4304 = vld [vmem:[%s3408] sm:$0xff]
    %v4305 = vld [vmem:[%s3408 + $0x8] sm:$0xff]
    %v4306 = vld [vmem:[%s3408 + $0x10] sm:$0xff]
    %v4307 = vld [vmem:[%s3408 + $0x18] sm:$0x1]
    %v4308 = vld [vmem:[%s3408 + $0x20] sm:$0xff]
    %v4309 = vld [vmem:[%s3408 + $0x28] sm:$0xff]
    %v4310 = vld [vmem:[%s3408 + $0x30] sm:$0xff]
    %v4311 = vld [vmem:[%s3408 + $0x38] sm:$0x1]
    %v4312 = vld [vmem:[%s3408 + $0x40] sm:$0xff]
    %v4313 = vld [vmem:[%s3408 + $0x48] sm:$0xff]
    %v4314 = vld [vmem:[%s3408 + $0x50] sm:$0xff]
    %v4315 = vld [vmem:[%s3408 + $0x58] sm:$0x1]
    %v4316 = vld [vmem:[%s3408 + $0x60] sm:$0xff]
    %v4317 = vld [vmem:[%s3408 + $0x68] sm:$0xff]
    %v4318 = vld [vmem:[%s3408 + $0x70] sm:$0xff]
    %v4319 = vld [vmem:[%s3408 + $0x78] sm:$0x1]
    %v4320 = vlaneseq
    %v4321 = vshrl.u32 %v4320, 7
    %v4322 = vsub.s32 2, %v4321
    %v4323 = vrot.slane %v2456, %v4322
    %v4324 = vmul.f32 %v4323, %v4304
    %v4325 = vmul.f32 %v4323, %v4305
    %v4326 = vmul.f32 %v4323, %v4306
    %v4327 = vmul.f32 %v4323, %v4307
    %v4328 = vmul.f32 %v4323, %v4308
    %v4329 = vmul.f32 %v4323, %v4309
    %v4330 = vmul.f32 %v4323, %v4310
    %v4331 = vmul.f32 %v4323, %v4311
    %v4332 = vmul.f32 %v4323, %v4312
    %v4333 = vmul.f32 %v4323, %v4313
    %v4334 = vmul.f32 %v4323, %v4314
    %v4335 = vmul.f32 %v4323, %v4315
    %v4336 = vmul.f32 %v4323, %v4316
    %v4337 = vmul.f32 %v4323, %v4317
    %v4338 = vmul.f32 %v4323, %v4318
    %v4339 = vmul.f32 %v4323, %v4319
    %v4340 = vadd.f32 %v4288, %v4324
    %v4341 = vadd.f32 %v4289, %v4325
    %v4342 = vadd.f32 %v4290, %v4326
    %v4343 = vadd.f32 %v4291, %v4327
    %v4344 = vadd.f32 %v4292, %v4328
    %v4345 = vadd.f32 %v4293, %v4329
    %v4346 = vadd.f32 %v4294, %v4330
    %v4347 = vadd.f32 %v4295, %v4331
    %v4348 = vadd.f32 %v4296, %v4332
    %v4349 = vadd.f32 %v4297, %v4333
    %v4350 = vadd.f32 %v4298, %v4334
    %v4351 = vadd.f32 %v4299, %v4335
    %v4352 = vadd.f32 %v4300, %v4336
    %v4353 = vadd.f32 %v4301, %v4337
    %v4354 = vadd.f32 %v4302, %v4338
    %v4355 = vadd.f32 %v4303, %v4339
    %v4356 = vld [vmem:[%s3594] sm:$0xff]
    %v4357 = vld [vmem:[%s3594 + $0x8] sm:$0xff]
    %v4358 = vld [vmem:[%s3594 + $0x10] sm:$0xff]
    %v4359 = vld [vmem:[%s3594 + $0x18] sm:$0x1]
    %v4360 = vld [vmem:[%s3594 + $0x20] sm:$0xff]
    %v4361 = vld [vmem:[%s3594 + $0x28] sm:$0xff]
    %v4362 = vld [vmem:[%s3594 + $0x30] sm:$0xff]
    %v4363 = vld [vmem:[%s3594 + $0x38] sm:$0x1]
    %v4364 = vld [vmem:[%s3594 + $0x40] sm:$0xff]
    %v4365 = vld [vmem:[%s3594 + $0x48] sm:$0xff]
    %v4366 = vld [vmem:[%s3594 + $0x50] sm:$0xff]
    %v4367 = vld [vmem:[%s3594 + $0x58] sm:$0x1]
    %v4368 = vld [vmem:[%s3594 + $0x60] sm:$0xff]
    %v4369 = vld [vmem:[%s3594 + $0x68] sm:$0xff]
    %v4370 = vld [vmem:[%s3594 + $0x70] sm:$0xff]
    %v4371 = vld [vmem:[%s3594 + $0x78] sm:$0x1]
    %v4372 = vlaneseq
    %v4373 = vshrl.u32 %v4372, 7
    %v4374 = vsub.s32 2, %v4373
    %v4375 = vrot.slane %v2457, %v4374
    %v4376 = vmul.f32 %v4375, %v4356
    %v4377 = vmul.f32 %v4375, %v4357
    %v4378 = vmul.f32 %v4375, %v4358
    %v4379 = vmul.f32 %v4375, %v4359
    %v4380 = vmul.f32 %v4375, %v4360
    %v4381 = vmul.f32 %v4375, %v4361
    %v4382 = vmul.f32 %v4375, %v4362
    %v4383 = vmul.f32 %v4375, %v4363
    %v4384 = vmul.f32 %v4375, %v4364
    %v4385 = vmul.f32 %v4375, %v4365
    %v4386 = vmul.f32 %v4375, %v4366
    %v4387 = vmul.f32 %v4375, %v4367
    %v4388 = vmul.f32 %v4375, %v4368
    %v4389 = vmul.f32 %v4375, %v4369
    %v4390 = vmul.f32 %v4375, %v4370
    %v4391 = vmul.f32 %v4375, %v4371
    %v4392 = vadd.f32 %v4340, %v4376
    %v4393 = vadd.f32 %v4341, %v4377
    %v4394 = vadd.f32 %v4342, %v4378
    %v4395 = vadd.f32 %v4343, %v4379
    %v4396 = vadd.f32 %v4344, %v4380
    %v4397 = vadd.f32 %v4345, %v4381
    %v4398 = vadd.f32 %v4346, %v4382
    %v4399 = vadd.f32 %v4347, %v4383
    %v4400 = vadd.f32 %v4348, %v4384
    %v4401 = vadd.f32 %v4349, %v4385
    %v4402 = vadd.f32 %v4350, %v4386
    %v4403 = vadd.f32 %v4351, %v4387
    %v4404 = vadd.f32 %v4352, %v4388
    %v4405 = vadd.f32 %v4353, %v4389
    %v4406 = vadd.f32 %v4354, %v4390
    %v4407 = vadd.f32 %v4355, %v4391
    %s4408 = scalar_lea.vmem [#allocation20], 40
    %4409 = vst [vmem:[%s4408] sm:$0x1] %v4392
    %4410 = vst [vmem:[%s4408 + $0x1] sm:$0x1] %v4396
    %4411 = vst [vmem:[%s4408 + $0x2] sm:$0x1] %v4400
    %4412 = vst [vmem:[%s4408 + $0x3] sm:$0x1] %v4404
    %s4413 = scalar_lea.vmem %s10, 224
    %4414 = vst [vmem:[%s4413 - $0x1] sm:$0xe] %v4392
    %4415 = vst [vmem:[%s4413 + $0x3] sm:$0xe] %v4396
    %4416 = vst [vmem:[%s4413 + $0x7] sm:$0xe] %v4400
    %4417 = vst [vmem:[%s4413 + $0xb] sm:$0xe] %v4404
    %s4418 = scalar_lea.vmem %s11, 448
    %4419 = vst [vmem:[%s4418 - $0x4] sm:$0xf0] %v4392
    %4420 = vst [vmem:[%s4418 + $0x4] sm:$0x1] %v4393
    %4421 = vst [vmem:[%s4418 + $0x4] sm:$0xf0] %v4396
    %4422 = vst [vmem:[%s4418 + $0xc] sm:$0x1] %v4397
    %4423 = vst [vmem:[%s4418 + $0xc] sm:$0xf0] %v4400
    %4424 = vst [vmem:[%s4418 + $0x14] sm:$0x1] %v4401
    %4425 = vst [vmem:[%s4418 + $0x14] sm:$0xf0] %v4404
    %4426 = vst [vmem:[%s4418 + $0x1c] sm:$0x1] %v4405
    %s4427 = scalar_lea.vmem %s12, 192
    %4428 = vst [vmem:[%s4427 - $0x1] sm:$0xfe] %v4393
    %4429 = vst [vmem:[%s4427 + $0x7] sm:$0xfe] %v4397
    %4430 = vst [vmem:[%s4427 + $0xf] sm:$0xfe] %v4401
    %4431 = vst [vmem:[%s4427 + $0x17] sm:$0xfe] %v4405
    %s4432 = scalar_lea.vmem %s13, 128
    %4433 = vst [vmem:[%s4432] sm:$0xff] %v4394
    %4434 = vst [vmem:[%s4432 + $0x8] sm:$0x1] %v4395
    %4435 = vst [vmem:[%s4432 + $0x10] sm:$0xff] %v4398
    %4436 = vst [vmem:[%s4432 + $0x18] sm:$0x1] %v4399
    %4437 = vst [vmem:[%s4432 + $0x20] sm:$0xff] %v4402
    %4438 = vst [vmem:[%s4432 + $0x28] sm:$0x1] %v4403
    %4439 = vst [vmem:[%s4432 + $0x30] sm:$0xff] %v4406
    %4440 = vst [vmem:[%s4432 + $0x38] sm:$0x1] %v4407
    %v4441 = vld [vmem:[#allocation7] sm:$0xff]
    %v4442 = vld [vmem:[#allocation7 + $0x8] sm:$0xff]
    %v4443 = vld [vmem:[#allocation7 + $0x10] sm:$0xff]
    %v4444 = vld [vmem:[#allocation7 + $0x18] sm:$0x1]
    %v4445 = vld [vmem:[#allocation7 + $0x20] sm:$0xff]
    %v4446 = vld [vmem:[#allocation7 + $0x28] sm:$0xff]
    %v4447 = vld [vmem:[#allocation7 + $0x30] sm:$0xff]
    %v4448 = vld [vmem:[#allocation7 + $0x38] sm:$0x1]
    %v4449 = vld [vmem:[#allocation7 + $0x40] sm:$0xff]
    %v4450 = vld [vmem:[#allocation7 + $0x48] sm:$0xff]
    %v4451 = vld [vmem:[#allocation7 + $0x50] sm:$0xff]
    %v4452 = vld [vmem:[#allocation7 + $0x58] sm:$0x1]
    %v4453 = vld [vmem:[#allocation7 + $0x60] sm:$0xff]
    %v4454 = vld [vmem:[#allocation7 + $0x68] sm:$0xff]
    %v4455 = vld [vmem:[#allocation7 + $0x70] sm:$0xff]
    %v4456 = vld [vmem:[#allocation7 + $0x78] sm:$0x1]
    %v4457 = vlaneseq
    %v4458 = vshrl.u32 %v4457, 7
    %v4459 = vsub.s32 3, %v4458
    %v4460 = vrot.slane %v2453, %v4459
    %v4461 = vmul.f32 %v4460, %v4441
    %v4462 = vmul.f32 %v4460, %v4442
    %v4463 = vmul.f32 %v4460, %v4443
    %v4464 = vmul.f32 %v4460, %v4444
    %v4465 = vmul.f32 %v4460, %v4445
    %v4466 = vmul.f32 %v4460, %v4446
    %v4467 = vmul.f32 %v4460, %v4447
    %v4468 = vmul.f32 %v4460, %v4448
    %v4469 = vmul.f32 %v4460, %v4449
    %v4470 = vmul.f32 %v4460, %v4450
    %v4471 = vmul.f32 %v4460, %v4451
    %v4472 = vmul.f32 %v4460, %v4452
    %v4473 = vmul.f32 %v4460, %v4453
    %v4474 = vmul.f32 %v4460, %v4454
    %v4475 = vmul.f32 %v4460, %v4455
    %v4476 = vmul.f32 %v4460, %v4456
    %v4477 = vld [vmem:[%s3036] sm:$0xff]
    %v4478 = vld [vmem:[%s3036 + $0x8] sm:$0xff]
    %v4479 = vld [vmem:[%s3036 + $0x10] sm:$0xff]
    %v4480 = vld [vmem:[%s3036 + $0x18] sm:$0x1]
    %v4481 = vld [vmem:[%s3036 + $0x20] sm:$0xff]
    %v4482 = vld [vmem:[%s3036 + $0x28] sm:$0xff]
    %v4483 = vld [vmem:[%s3036 + $0x30] sm:$0xff]
    %v4484 = vld [vmem:[%s3036 + $0x38] sm:$0x1]
    %v4485 = vld [vmem:[%s3036 + $0x40] sm:$0xff]
    %v4486 = vld [vmem:[%s3036 + $0x48] sm:$0xff]
    %v4487 = vld [vmem:[%s3036 + $0x50] sm:$0xff]
    %v4488 = vld [vmem:[%s3036 + $0x58] sm:$0x1]
    %v4489 = vld [vmem:[%s3036 + $0x60] sm:$0xff]
    %v4490 = vld [vmem:[%s3036 + $0x68] sm:$0xff]
    %v4491 = vld [vmem:[%s3036 + $0x70] sm:$0xff]
    %v4492 = vld [vmem:[%s3036 + $0x78] sm:$0x1]
    %v4493 = vlaneseq
    %v4494 = vshrl.u32 %v4493, 7
    %v4495 = vsub.s32 3, %v4494
    %v4496 = vrot.slane %v2454, %v4495
    %v4497 = vmul.f32 %v4496, %v4477
    %v4498 = vmul.f32 %v4496, %v4478
    %v4499 = vmul.f32 %v4496, %v4479
    %v4500 = vmul.f32 %v4496, %v4480
    %v4501 = vmul.f32 %v4496, %v4481
    %v4502 = vmul.f32 %v4496, %v4482
    %v4503 = vmul.f32 %v4496, %v4483
    %v4504 = vmul.f32 %v4496, %v4484
    %v4505 = vmul.f32 %v4496, %v4485
    %v4506 = vmul.f32 %v4496, %v4486
    %v4507 = vmul.f32 %v4496, %v4487
    %v4508 = vmul.f32 %v4496, %v4488
    %v4509 = vmul.f32 %v4496, %v4489
    %v4510 = vmul.f32 %v4496, %v4490
    %v4511 = vmul.f32 %v4496, %v4491
    %v4512 = vmul.f32 %v4496, %v4492
    %v4513 = vadd.f32 %v4461, %v4497
    %v4514 = vadd.f32 %v4462, %v4498
    %v4515 = vadd.f32 %v4463, %v4499
    %v4516 = vadd.f32 %v4464, %v4500
    %v4517 = vadd.f32 %v4465, %v4501
    %v4518 = vadd.f32 %v4466, %v4502
    %v4519 = vadd.f32 %v4467, %v4503
    %v4520 = vadd.f32 %v4468, %v4504
    %v4521 = vadd.f32 %v4469, %v4505
    %v4522 = vadd.f32 %v4470, %v4506
    %v4523 = vadd.f32 %v4471, %v4507
    %v4524 = vadd.f32 %v4472, %v4508
    %v4525 = vadd.f32 %v4473, %v4509
    %v4526 = vadd.f32 %v4474, %v4510
    %v4527 = vadd.f32 %v4475, %v4511
    %v4528 = vadd.f32 %v4476, %v4512
    %v4529 = vld [vmem:[%s3222] sm:$0xff]
    %v4530 = vld [vmem:[%s3222 + $0x8] sm:$0xff]
    %v4531 = vld [vmem:[%s3222 + $0x10] sm:$0xff]
    %v4532 = vld [vmem:[%s3222 + $0x18] sm:$0x1]
    %v4533 = vld [vmem:[%s3222 + $0x20] sm:$0xff]
    %v4534 = vld [vmem:[%s3222 + $0x28] sm:$0xff]
    %v4535 = vld [vmem:[%s3222 + $0x30] sm:$0xff]
    %v4536 = vld [vmem:[%s3222 + $0x38] sm:$0x1]
    %v4537 = vld [vmem:[%s3222 + $0x40] sm:$0xff]
    %v4538 = vld [vmem:[%s3222 + $0x48] sm:$0xff]
    %v4539 = vld [vmem:[%s3222 + $0x50] sm:$0xff]
    %v4540 = vld [vmem:[%s3222 + $0x58] sm:$0x1]
    %v4541 = vld [vmem:[%s3222 + $0x60] sm:$0xff]
    %v4542 = vld [vmem:[%s3222 + $0x68] sm:$0xff]
    %v4543 = vld [vmem:[%s3222 + $0x70] sm:$0xff]
    %v4544 = vld [vmem:[%s3222 + $0x78] sm:$0x1]
    %v4545 = vlaneseq
    %v4546 = vshrl.u32 %v4545, 7
    %v4547 = vsub.s32 3, %v4546
    %v4548 = vrot.slane %v2455, %v4547
    %v4549 = vmul.f32 %v4548, %v4529
    %v4550 = vmul.f32 %v4548, %v4530
    %v4551 = vmul.f32 %v4548, %v4531
    %v4552 = vmul.f32 %v4548, %v4532
    %v4553 = vmul.f32 %v4548, %v4533
    %v4554 = vmul.f32 %v4548, %v4534
    %v4555 = vmul.f32 %v4548, %v4535
    %v4556 = vmul.f32 %v4548, %v4536
    %v4557 = vmul.f32 %v4548, %v4537
    %v4558 = vmul.f32 %v4548, %v4538
    %v4559 = vmul.f32 %v4548, %v4539
    %v4560 = vmul.f32 %v4548, %v4540
    %v4561 = vmul.f32 %v4548, %v4541
    %v4562 = vmul.f32 %v4548, %v4542
    %v4563 = vmul.f32 %v4548, %v4543
    %v4564 = vmul.f32 %v4548, %v4544
    %v4565 = vadd.f32 %v4513, %v4549
    %v4566 = vadd.f32 %v4514, %v4550
    %v4567 = vadd.f32 %v4515, %v4551
    %v4568 = vadd.f32 %v4516, %v4552
    %v4569 = vadd.f32 %v4517, %v4553
    %v4570 = vadd.f32 %v4518, %v4554
    %v4571 = vadd.f32 %v4519, %v4555
    %v4572 = vadd.f32 %v4520, %v4556
    %v4573 = vadd.f32 %v4521, %v4557
    %v4574 = vadd.f32 %v4522, %v4558
    %v4575 = vadd.f32 %v4523, %v4559
    %v4576 = vadd.f32 %v4524, %v4560
    %v4577 = vadd.f32 %v4525, %v4561
    %v4578 = vadd.f32 %v4526, %v4562
    %v4579 = vadd.f32 %v4527, %v4563
    %v4580 = vadd.f32 %v4528, %v4564
    %v4581 = vld [vmem:[%s3408] sm:$0xff]
    %v4582 = vld [vmem:[%s3408 + $0x8] sm:$0xff]
    %v4583 = vld [vmem:[%s3408 + $0x10] sm:$0xff]
    %v4584 = vld [vmem:[%s3408 + $0x18] sm:$0x1]
    %v4585 = vld [vmem:[%s3408 + $0x20] sm:$0xff]
    %v4586 = vld [vmem:[%s3408 + $0x28] sm:$0xff]
    %v4587 = vld [vmem:[%s3408 + $0x30] sm:$0xff]
    %v4588 = vld [vmem:[%s3408 + $0x38] sm:$0x1]
    %v4589 = vld [vmem:[%s3408 + $0x40] sm:$0xff]
    %v4590 = vld [vmem:[%s3408 + $0x48] sm:$0xff]
    %v4591 = vld [vmem:[%s3408 + $0x50] sm:$0xff]
    %v4592 = vld [vmem:[%s3408 + $0x58] sm:$0x1]
    %v4593 = vld [vmem:[%s3408 + $0x60] sm:$0xff]
    %v4594 = vld [vmem:[%s3408 + $0x68] sm:$0xff]
    %v4595 = vld [vmem:[%s3408 + $0x70] sm:$0xff]
    %v4596 = vld [vmem:[%s3408 + $0x78] sm:$0x1]
    %v4597 = vlaneseq
    %v4598 = vshrl.u32 %v4597, 7
    %v4599 = vsub.s32 3, %v4598
    %v4600 = vrot.slane %v2456, %v4599
    %v4601 = vmul.f32 %v4600, %v4581
    %v4602 = vmul.f32 %v4600, %v4582
    %v4603 = vmul.f32 %v4600, %v4583
    %v4604 = vmul.f32 %v4600, %v4584
    %v4605 = vmul.f32 %v4600, %v4585
    %v4606 = vmul.f32 %v4600, %v4586
    %v4607 = vmul.f32 %v4600, %v4587
    %v4608 = vmul.f32 %v4600, %v4588
    %v4609 = vmul.f32 %v4600, %v4589
    %v4610 = vmul.f32 %v4600, %v4590
    %v4611 = vmul.f32 %v4600, %v4591
    %v4612 = vmul.f32 %v4600, %v4592
    %v4613 = vmul.f32 %v4600, %v4593
    %v4614 = vmul.f32 %v4600, %v4594
    %v4615 = vmul.f32 %v4600, %v4595
    %v4616 = vmul.f32 %v4600, %v4596
    %v4617 = vadd.f32 %v4565, %v4601
    %v4618 = vadd.f32 %v4566, %v4602
    %v4619 = vadd.f32 %v4567, %v4603
    %v4620 = vadd.f32 %v4568, %v4604
    %v4621 = vadd.f32 %v4569, %v4605
    %v4622 = vadd.f32 %v4570, %v4606
    %v4623 = vadd.f32 %v4571, %v4607
    %v4624 = vadd.f32 %v4572, %v4608
    %v4625 = vadd.f32 %v4573, %v4609
    %v4626 = vadd.f32 %v4574, %v4610
    %v4627 = vadd.f32 %v4575, %v4611
    %v4628 = vadd.f32 %v4576, %v4612
    %v4629 = vadd.f32 %v4577, %v4613
    %v4630 = vadd.f32 %v4578, %v4614
    %v4631 = vadd.f32 %v4579, %v4615
    %v4632 = vadd.f32 %v4580, %v4616
    %v4633 = vld [vmem:[%s3594] sm:$0xff]
    %v4634 = vld [vmem:[%s3594 + $0x8] sm:$0xff]
    %v4635 = vld [vmem:[%s3594 + $0x10] sm:$0xff]
    %v4636 = vld [vmem:[%s3594 + $0x18] sm:$0x1]
    %v4637 = vld [vmem:[%s3594 + $0x20] sm:$0xff]
    %v4638 = vld [vmem:[%s3594 + $0x28] sm:$0xff]
    %v4639 = vld [vmem:[%s3594 + $0x30] sm:$0xff]
    %v4640 = vld [vmem:[%s3594 + $0x38] sm:$0x1]
    %v4641 = vld [vmem:[%s3594 + $0x40] sm:$0xff]
    %v4642 = vld [vmem:[%s3594 + $0x48] sm:$0xff]
    %v4643 = vld [vmem:[%s3594 + $0x50] sm:$0xff]
    %v4644 = vld [vmem:[%s3594 + $0x58] sm:$0x1]
    %v4645 = vld [vmem:[%s3594 + $0x60] sm:$0xff]
    %v4646 = vld [vmem:[%s3594 + $0x68] sm:$0xff]
    %v4647 = vld [vmem:[%s3594 + $0x70] sm:$0xff]
    %v4648 = vld [vmem:[%s3594 + $0x78] sm:$0x1]
    %v4649 = vlaneseq
    %v4650 = vshrl.u32 %v4649, 7
    %v4651 = vsub.s32 3, %v4650
    %v4652 = vrot.slane %v2457, %v4651
    %v4653 = vmul.f32 %v4652, %v4633
    %v4654 = vmul.f32 %v4652, %v4634
    %v4655 = vmul.f32 %v4652, %v4635
    %v4656 = vmul.f32 %v4652, %v4636
    %v4657 = vmul.f32 %v4652, %v4637
    %v4658 = vmul.f32 %v4652, %v4638
    %v4659 = vmul.f32 %v4652, %v4639
    %v4660 = vmul.f32 %v4652, %v4640
    %v4661 = vmul.f32 %v4652, %v4641
    %v4662 = vmul.f32 %v4652, %v4642
    %v4663 = vmul.f32 %v4652, %v4643
    %v4664 = vmul.f32 %v4652, %v4644
    %v4665 = vmul.f32 %v4652, %v4645
    %v4666 = vmul.f32 %v4652, %v4646
    %v4667 = vmul.f32 %v4652, %v4647
    %v4668 = vmul.f32 %v4652, %v4648
    %v4669 = vadd.f32 %v4617, %v4653
    %v4670 = vadd.f32 %v4618, %v4654
    %v4671 = vadd.f32 %v4619, %v4655
    %v4672 = vadd.f32 %v4620, %v4656
    %v4673 = vadd.f32 %v4621, %v4657
    %v4674 = vadd.f32 %v4622, %v4658
    %v4675 = vadd.f32 %v4623, %v4659
    %v4676 = vadd.f32 %v4624, %v4660
    %v4677 = vadd.f32 %v4625, %v4661
    %v4678 = vadd.f32 %v4626, %v4662
    %v4679 = vadd.f32 %v4627, %v4663
    %v4680 = vadd.f32 %v4628, %v4664
    %v4681 = vadd.f32 %v4629, %v4665
    %v4682 = vadd.f32 %v4630, %v4666
    %v4683 = vadd.f32 %v4631, %v4667
    %v4684 = vadd.f32 %v4632, %v4668
    %s4685 = scalar_lea.vmem [#allocation20], 44
    %4686 = vst [vmem:[%s4685] sm:$0x1] %v4669
    %4687 = vst [vmem:[%s4685 + $0x1] sm:$0x1] %v4673
    %4688 = vst [vmem:[%s4685 + $0x2] sm:$0x1] %v4677
    %4689 = vst [vmem:[%s4685 + $0x3] sm:$0x1] %v4681
    %s4690 = scalar_lea.vmem %s10, 240
    %4691 = vst [vmem:[%s4690 - $0x1] sm:$0xe] %v4669
    %4692 = vst [vmem:[%s4690 + $0x3] sm:$0xe] %v4673
    %4693 = vst [vmem:[%s4690 + $0x7] sm:$0xe] %v4677
    %4694 = vst [vmem:[%s4690 + $0xb] sm:$0xe] %v4681
    %s4695 = scalar_lea.vmem %s11, 480
    %4696 = vst [vmem:[%s4695 - $0x4] sm:$0xf0] %v4669
    %4697 = vst [vmem:[%s4695 + $0x4] sm:$0x1] %v4670
    %4698 = vst [vmem:[%s4695 + $0x4] sm:$0xf0] %v4673
    %4699 = vst [vmem:[%s4695 + $0xc] sm:$0x1] %v4674
    %4700 = vst [vmem:[%s4695 + $0xc] sm:$0xf0] %v4677
    %4701 = vst [vmem:[%s4695 + $0x14] sm:$0x1] %v4678
    %4702 = vst [vmem:[%s4695 + $0x14] sm:$0xf0] %v4681
    %4703 = vst [vmem:[%s4695 + $0x1c] sm:$0x1] %v4682
    %s4704 = scalar_lea.vmem %s12, 224
    %4705 = vst [vmem:[%s4704 - $0x1] sm:$0xfe] %v4670
    %4706 = vst [vmem:[%s4704 + $0x7] sm:$0xfe] %v4674
    %4707 = vst [vmem:[%s4704 + $0xf] sm:$0xfe] %v4678
    %4708 = vst [vmem:[%s4704 + $0x17] sm:$0xfe] %v4682
    %s4709 = scalar_lea.vmem %s13, 192
    %4710 = vst [vmem:[%s4709] sm:$0xff] %v4671
    %4711 = vst [vmem:[%s4709 + $0x8] sm:$0x1] %v4672
    %4712 = vst [vmem:[%s4709 + $0x10] sm:$0xff] %v4675
    %4713 = vst [vmem:[%s4709 + $0x18] sm:$0x1] %v4676
    %4714 = vst [vmem:[%s4709 + $0x20] sm:$0xff] %v4679
    %4715 = vst [vmem:[%s4709 + $0x28] sm:$0x1] %v4680
    %4716 = vst [vmem:[%s4709 + $0x30] sm:$0xff] %v4683
    %4717 = vst [vmem:[%s4709 + $0x38] sm:$0x1] %v4684
    // Predicated region
    $region66: #{tpu_custom_call.1} parent=1 // pred_check
      _
    $region67: #{tpu_custom_call.1} parent=1 // pred_check_branch
      %4719 = sbr.rel (0) target = $region69
    $region68: #{tpu_custom_call.1} parent=1 // pred_region
      %s4721 = ssub.s32 768, 768
      %4722 = vsyncadd [#allocation10], %s4721
      %s4723 = sshll.u32 [#allocation20], 4
      %s4724 = int_to_ptr.vmem [resolvable:$true] %s4723
      %4729 = dma.vmem_to_hbm [thread:$0]  %s4724, 768, %s9, [#allocation10], 16, 16, 1
    $region69: #{tpu_custom_call.1} parent=1 // pred_fallthru
      _
    // Predicated region
    $region70: #{tpu_custom_call.1} parent=1 // pred_check
      _
    $region71: #{tpu_custom_call.1} parent=1 // pred_check_branch
      %4731 = sbr.rel (0) target = $region73
    $region72: #{tpu_custom_call.1} parent=1 // pred_region
      _
    $region73: #{tpu_custom_call.1} parent=1 // pred_fallthru
      _
    // Predicated region
    $region74: #{tpu_custom_call.1} parent=1 // pred_check
      _
    $region75: #{tpu_custom_call.1} parent=1 // pred_check_branch
      %4733 = sbr.rel (0) target = $region77
    $region76: #{tpu_custom_call.1} parent=1 // pred_region
      _
    $region77: #{tpu_custom_call.1} parent=1 // pred_fallthru
      _
    // Predicated region
    $region78: #{tpu_custom_call.1} parent=1 // pred_check
      _
    $region79: #{tpu_custom_call.1} parent=1 // pred_check_branch
      %4735 = sbr.rel (0) target = $region81
    $region80: #{tpu_custom_call.1} parent=1 // pred_region
      _
    $region81: #{tpu_custom_call.1} parent=1 // pred_fallthru
      _
    // Predicated region
    $region82: #{tpu_custom_call.1} parent=1 // pred_check
      _
    $region83: #{tpu_custom_call.1} parent=1 // pred_check_branch
      %4737 = sbr.rel (0) target = $region85
    $region84: #{tpu_custom_call.1} parent=1 // pred_region
      _
    $region85: #{tpu_custom_call.1} parent=1 // pred_fallthru
      _
    // Predicated region
    $region86: #{tpu_custom_call.1} parent=1 // pred_check
      _
    $region87: #{tpu_custom_call.1} parent=1 // pred_check_branch
      %4739 = sbr.rel (0) target = $region89
    $region88: #{tpu_custom_call.1} parent=1 // pred_region
      %4740 = dma.done [#allocation10], 768
    $region89: #{tpu_custom_call.1} parent=1 // pred_fallthru
      _
    // Predicated region
    $region90: #{tpu_custom_call.1} parent=1 // pred_check
      _
    $region91: #{tpu_custom_call.1} parent=1 // pred_check_branch
      %4742 = sbr.rel (0) target = $region93
    $region92: #{tpu_custom_call.1} parent=1 // pred_region
      _
    $region93: #{tpu_custom_call.1} parent=1 // pred_fallthru
      _
    // Predicated region
    $region94: #{tpu_custom_call.1} parent=1 // pred_check
      _
    $region95: #{tpu_custom_call.1} parent=1 // pred_check_branch
      %4744 = sbr.rel (0) target = $region97
    $region96: #{tpu_custom_call.1} parent=1 // pred_region
      _
    $region97: #{tpu_custom_call.1} parent=1 // pred_fallthru
      _
    // Predicated region
    $region98: #{tpu_custom_call.1} parent=1 // pred_check
      _
    $region99: #{tpu_custom_call.1} parent=1 // pred_check_branch
      %4746 = sbr.rel (0) target = $region101
    $region100: #{tpu_custom_call.1} parent=1 // pred_region
      _
    $region101: #{tpu_custom_call.1} parent=1 // pred_fallthru
      _
    // Predicated region
    $region102: #{tpu_custom_call.1} parent=1 // pred_check
      _
    $region103: #{tpu_custom_call.1} parent=1 // pred_check_branch
      %4748 = sbr.rel (0) target = $region105
    $region104: #{tpu_custom_call.1} parent=1 // pred_region
      _
    $region105: #{tpu_custom_call.1} parent=1 // pred_fallthru
      _
    %4749 = vsyncpa [#allocation9], 1
    %4750 = vsyncpa [#allocation12], 1
    %4751 = vsyncpa [#allocation15], 1
    %4752 = vsyncpa [#allocation18], 1
    %4753 = vsyncpa [#allocation10], 1

</llo_original>
